<compile_context>
chip_gen: v5e
topology: v5e:2x2
jax: 0.10.0
libtpu: 0.0.40
codegen_flags: <defaults>
</compile_context>

<pallas_src>
import functools

import jax
import jax.numpy as jnp
from jax.experimental import pallas as pl
from jax.experimental.pallas import tpu as pltpu


LRELU_SLOPE = 0.2
LN_EPS = 1e-5
VMEM_LIMIT_BYTES = 48 * 1024 * 1024


# ----------------------------------------------------------------------------
# Kernel 1: fused Conv(4x4, s=2, p=1, no bias) [+ LayerNorm] + LeakyReLU
# ----------------------------------------------------------------------------
def _conv_ln_lrelu_kernel(*refs, Ho, Wo, use_ln, slope, eps):
    if use_ln:
        x00, x01, x10, x11, w_ref, g_ref, b_ref, m_ref, o_ref = refs
    else:
        x00, x01, x10, x11, w_ref, o_ref = refs

    xs = ((x00, x01), (x10, x11))      # parity grids [row parity][col parity]
    wp1 = Wo + 1                       # output rows carry one "garbage" column
    L = Ho * wp1
    cout = w_ref.shape[-1]

    acc = jnp.zeros((L, cout), jnp.float32)
    for kh in range(4):
        for kw in range(4):
            src = xs[kh % 2][kw % 2]
            start = (kh // 2) * wp1 + (kw // 2)
            patch = src[0, start:start + L, :]          # (L, Cin) bf16, no reshape
            acc = acc + jnp.dot(patch, w_ref[kh, kw],
                                preferred_element_type=jnp.float32)

    if use_ln:
        # LayerNorm over the whole sample (C*H*W); garbage rows masked out of the
        # statistics via the precomputed (L, 1) validity mask.
        msk = m_ref[...]
        inv_n = 1.0 / float(Ho * Wo * cout)
        mean = jnp.sum(acc * msk, keepdims=True) * inv_n
        diff = (acc - mean) * msk
        var = jnp.sum(diff * diff, keepdims=True) * inv_n
        acc = (acc - mean) * jax.lax.rsqrt(var + eps)
        acc = acc * g_ref[...] + b_ref[...]             # gamma/beta are 0 on garbage rows

    acc = jnp.where(acc > 0, acc, slope * acc)          # LeakyReLU
    o_ref[0] = acc.astype(o_ref.dtype)


def _split_parity(x):
    """x: (N, H, W, C) -> 4 arrays (N, (Ho+1)*(Wo+1)+1, C), parities (ph, pw)."""
    N, H, W, C = x.shape
    Ho, Wo = H // 2, W // 2
    xp = jnp.pad(x, ((0, 0), (1, 1), (1, 1), (0, 0)))
    parts = []
    for ph in range(2):
        for pw in range(2):
            t = xp[:, ph::2, pw::2, :]                        # (N, Ho+1, Wo+1, C)
            t = t.reshape(N, (Ho + 1) * (Wo + 1), C)
            t = jnp.pad(t, ((0, 0), (0, 1), (0, 0)))          # +1 guard row
            parts.append(t)
    return parts, Ho, Wo


def conv_block(x, w_hwio, gamma=None, beta=None, mask=None, trim=True):
    """x: (N,H,W,Cin); w_hwio: (4,4,Cin,Cout) bf16; gamma/beta: (Ho*(Wo+1),Cout) f32;
       mask: (Ho*(Wo+1),1) f32.
       trim=True  -> returns (N, Ho, Wo, Cout) bf16 (garbage column dropped).
       trim=False -> returns the raw (N, Ho*(Wo+1), Cout) slab (garbage kept)."""
    N, H, W, Cin = x.shape
    assert H % 2 == 0 and W % 2 == 0
    Cout = w_hwio.shape[-1]
    parts, Ho, Wo = _split_parity(x.astype(jnp.bfloat16))
    P = (Ho + 1) * (Wo + 1) + 1
    L = Ho * (Wo + 1)
    use_ln = gamma is not None

    in_specs = [pl.BlockSpec((1, P, Cin), lambda n: (n, 0, 0)) for _ in range(4)]
    in_specs.append(pl.BlockSpec((4, 4, Cin, Cout), lambda n: (0, 0, 0, 0)))
    inputs = list(parts) + [w_hwio]
    if use_ln:
        in_specs += [pl.BlockSpec((L, Cout), lambda n: (0, 0)),
                     pl.BlockSpec((L, Cout), lambda n: (0, 0)),
                     pl.BlockSpec((L, 1), lambda n: (0, 0))]
        inputs += [gamma, beta, mask]

    flops = 2 * N * L * Cout * Cin * 16
    bytes_accessed = 2 * (4 * N * P * Cin + 16 * Cin * Cout + N * L * Cout)
    if use_ln:
        bytes_accessed += 4 * (2 * L * Cout + L)

    out = pl.pallas_call(
        functools.partial(_conv_ln_lrelu_kernel, Ho=Ho, Wo=Wo,
                          use_ln=use_ln, slope=LRELU_SLOPE, eps=LN_EPS),
        grid=(N,),
        in_specs=in_specs,
        out_specs=pl.BlockSpec((1, L, Cout), lambda n: (n, 0, 0)),
        out_shape=jax.ShapeDtypeStruct((N, L, Cout), jnp.bfloat16),
        compiler_params=pltpu.CompilerParams(
            dimension_semantics=("parallel",),
            vmem_limit_bytes=VMEM_LIMIT_BYTES),
        cost_estimate=pl.CostEstimate(flops=flops,
                                      transcendentals=N if use_ln else 0,
                                      bytes_accessed=bytes_accessed),
    )(*inputs)

    if not trim:
        return out                            # raw slab, garbage column kept

    out = out.reshape(N, Ho, Wo + 1, Cout)    # free reshape in HBM
    return out[:, :, :Wo, :]                  # drop the garbage column


# ----------------------------------------------------------------------------
# Kernel 2: fused adv+aux heads — K-tiled GEMM, bias + selective sigmoid epilogue
# ----------------------------------------------------------------------------
def _heads_kernel(x_ref, w_ref, b_ref, o_ref, acc_ref, *, n_adv):
    k = pl.program_id(0)

    @pl.when(k == 0)
    def _():
        acc_ref[...] = jnp.zeros_like(acc_ref)

    acc_ref[...] += jnp.dot(x_ref[...], w_ref[...],
                            preferred_element_type=jnp.float32)

    @pl.when(k == pl.num_programs(0) - 1)
    def _():
        y = acc_ref[...] + b_ref[...]
        col = jax.lax.broadcasted_iota(jnp.int32, y.shape, 1)
        y = jnp.where(col < n_adv, y, jax.nn.sigmoid(y))
        o_ref[...] = y.astype(o_ref.dtype)


def pallas_heads(feat, w, b, n_adv=1):
    """feat: (M, K) ; w: (K, Nout) bf16 ; b: (1, Nout) f32 -> (M, Nout) f32."""
    M, K = feat.shape
    Nout = w.shape[1]
    feat = feat.astype(jnp.bfloat16)

    tk = min(K, 1024)
    KP = ((K + tk - 1) // tk) * tk
    if KP != K:
        feat = jnp.pad(feat, ((0, 0), (0, KP - K)))
        w = jnp.pad(w, ((0, KP - K), (0, 0)))
    nk = KP // tk

    return pl.pallas_call(
        functools.partial(_heads_kernel, n_adv=n_adv),
        grid=(nk,),
        in_specs=[pl.BlockSpec((M, tk), lambda k: (0, k)),
                  pl.BlockSpec((tk, Nout), lambda k: (k, 0)),
                  pl.BlockSpec((1, Nout), lambda k: (0, 0))],
        out_specs=pl.BlockSpec((M, Nout), lambda k: (0, 0)),
        out_shape=jax.ShapeDtypeStruct((M, Nout), jnp.float32),
        scratch_shapes=[pltpu.VMEM((M, Nout), jnp.float32)],
        compiler_params=pltpu.CompilerParams(
            dimension_semantics=("arbitrary",),
            vmem_limit_bytes=VMEM_LIMIT_BYTES),
        cost_estimate=pl.CostEstimate(
            flops=2 * M * KP * Nout,
            transcendentals=M * Nout,
            bytes_accessed=2 * (M * KP + KP * Nout) + 4 * (M * Nout + Nout)),
    )(feat, w, b)


# ----------------------------------------------------------------------------
# Parameter preparation (done once, outside the per-forward path)
# ----------------------------------------------------------------------------
def prepare_params(params):
    def conv_w(w):  # (Cout, Cin, 4, 4) -> (4, 4, Cin, Cout) bf16
        return jnp.transpose(w, (2, 3, 1, 0)).astype(jnp.bfloat16)

    def ln_params(g, b):  # (C, H, W) -> (H*(W+1), C) f32 each + (H*(W+1), 1) mask
        C, H, W = g.shape

        def t(a):
            a = jnp.transpose(a, (1, 2, 0))                # (H, W, C)
            a = jnp.pad(a, ((0, 0), (0, 1), (0, 0)))       # (H, W+1, C), zeros on garbage
            return a.reshape(H * (W + 1), C).astype(jnp.float32)

        mask = jnp.pad(jnp.ones((H, W, 1), jnp.float32),
                       ((0, 0), (0, 1), (0, 0))).reshape(H * (W + 1), 1)
        return t(g), t(b), mask

    g2, b2, m2 = ln_params(params["ln2_g"], params["ln2_b"])
    g3, b3, m3 = ln_params(params["ln3_g"], params["ln3_b"])
    g4, b4, m4 = ln_params(params["ln4_g"], params["ln4_b"])

    # Fused heads: concat adv+aux, permute columns from PyTorch (c,h,w) flatten
    # order to our NHWC (h,w,c) flatten order, insert ZERO rows at the conv4
    # "garbage column" positions (so the raw untrimmed conv4 slab can be consumed
    # directly), and pre-transpose to (S*(S+1)*C4, 1+n_classes).
    C4, S, _ = params["ln4_g"].shape
    w_all = jnp.concatenate([params["adv_w"], params["aux_w"]], axis=0)   # (1+nc, F)
    w_all = w_all.reshape(-1, C4, S, S).transpose(0, 2, 3, 1)             # (1+nc, S, S, C4)
    w_all = jnp.pad(w_all, ((0, 0), (0, 0), (0, 1), (0, 0)))              # garbage col -> 0
    w_all = w_all.reshape(w_all.shape[0], -1)                             # (1+nc, S*(S+1)*C4)
    head_w = jnp.transpose(w_all, (1, 0)).astype(jnp.bfloat16)            # (Kpad, 1+nc)
    head_b = jnp.concatenate([params["adv_b"], params["aux_b"]])[None, :].astype(jnp.float32)

    return {
        "w1": conv_w(params["conv1_w"]),
        "w2": conv_w(params["conv2_w"]), "g2": g2, "b2": b2, "m2": m2,
        "w3": conv_w(params["conv3_w"]), "g3": g3, "b3": b3, "m3": m3,
        "w4": conv_w(params["conv4_w"]), "g4": g4, "b4": b4, "m4": m4,
        "head_w": head_w, "head_b": head_b,
    }


# ----------------------------------------------------------------------------
# Discriminator forward (Pallas path)
# ----------------------------------------------------------------------------
def discriminator_forward(pp, x):
    h = jnp.transpose(x, (0, 2, 3, 1))                               # NCHW -> NHWC once
    h = conv_block(h, pp["w1"])                                      # conv1 + LeakyReLU
    h = conv_block(h, pp["w2"], pp["g2"], pp["b2"], pp["m2"])        # conv2 + LN + LReLU
    h = conv_block(h, pp["w3"], pp["g3"], pp["b3"], pp["m3"])        # conv3 + LN + LReLU
    h = conv_block(h, pp["w4"], pp["g4"], pp["b4"], pp["m4"],
                   trim=False)                                       # conv4 + LN + LReLU (raw slab)
    feat = h.reshape(h.shape[0], -1)                                 # (N, S*(S+1)*C4), free reshape
    out = pallas_heads(feat, pp["head_w"], pp["head_b"], n_adv=1)    # fused adv + aux
    return out[:, :1], out[:, 1:]


# ----------------------------------------------------------------------------
# Pure-JAX reference (f32, PyTorch-layout params) for a sanity check
# ----------------------------------------------------------------------------
def reference_forward(params, x):
    def conv(x, w):
        return jax.lax.conv_general_dilated(
            x, w, window_strides=(2, 2), padding=((1, 1), (1, 1)),
            dimension_numbers=("NCHW", "OIHW", "NCHW"))

    def ln(x, g, b):
        mean = jnp.mean(x, axis=(1, 2, 3), keepdims=True)
        var = jnp.mean(jnp.square(x - mean), axis=(1, 2, 3), keepdims=True)
        return (x - mean) / jnp.sqrt(var + LN_EPS) * g[None] + b[None]

    def lrelu(x):
        return jnp.where(x > 0, x, LRELU_SLOPE * x)

    h = lrelu(conv(x, params["conv1_w"]))
    h = lrelu(ln(conv(h, params["conv2_w"]), params["ln2_g"], params["ln2_b"]))
    h = lrelu(ln(conv(h, params["conv3_w"]), params["ln3_g"], params["ln3_b"]))
    h = lrelu(ln(conv(h, params["conv4_w"]), params["ln4_g"], params["ln4_b"]))
    feat = h.reshape(h.shape[0], -1)
    v = feat @ params["adv_w"].T + params["adv_b"]
    c = jax.nn.sigmoid(feat @ params["aux_w"].T + params["aux_b"])
    return v, c


# ----------------------------------------------------------------------------
# Params / main
# ----------------------------------------------------------------------------
def make_params(key, ndf, n_channels, image_size, n_classes):
    ks = jax.random.split(key, 12)
    feat_dim = ndf * 8 * (image_size // 16) ** 2
    s4, s8, s16 = image_size // 4, image_size // 8, image_size // 16
    n = lambda k, shape: (0.05 * jax.random.normal(k, shape)).astype(jnp.float32)
    return {
        "conv1_w": n(ks[0], (ndf, n_channels, 4, 4)),
        "conv2_w": n(ks[1], (ndf * 2, ndf, 4, 4)),
        "ln2_g": 1.0 + n(ks[2], (ndf * 2, s4, s4)),
        "ln2_b": n(ks[3], (ndf * 2, s4, s4)),
        "conv3_w": n(ks[4], (ndf * 4, ndf * 2, 4, 4)),
        "ln3_g": 1.0 + n(ks[5], (ndf * 4, s8, s8)),
        "ln3_b": n(ks[6], (ndf * 4, s8, s8)),
        "conv4_w": n(ks[7], (ndf * 8, ndf * 4, 4, 4)),
        "ln4_g": 1.0 + n(ks[8], (ndf * 8, s16, s16)),
        "ln4_b": n(ks[9], (ndf * 8, s16, s16)),
        "adv_w": n(ks[10], (1, feat_dim)),
        "adv_b": jnp.zeros((1,), jnp.float32),
        "aux_w": n(ks[11], (n_classes, feat_dim)),
        "aux_b": jnp.zeros((n_classes,), jnp.float32),
    }


if __name__ == "__main__":
    ndf, n_channels, image_size, n_classes, batch = 8, 3, 16, 4, 2

    key = jax.random.PRNGKey(0)
    kx, kp = jax.random.split(key)
    x = jax.random.normal(kx, (batch, n_channels, image_size, image_size),
                          dtype=jnp.float32)
    params = make_params(kp, ndf, n_channels, image_size, n_classes)
    pp = prepare_params(params)

    v, c = jax.jit(discriminator_forward)(pp, x)
    jax.block_until_ready((v, c))

    v_ref, c_ref = reference_forward(params, x)
    assert v.shape == (batch, 1) and c.shape == (batch, n_classes)
    # bf16 activations/weights in the Pallas path -> slightly looser tolerance.
    assert jnp.allclose(v, v_ref, atol=1e-1, rtol=1e-1), (v, v_ref)
    assert jnp.allclose(c, c_ref, atol=1e-1, rtol=1e-1), (c, c_ref)

    print("KERNEL_OK")
</pallas_src>

<mosaic_0001>
module attributes {stable_mosaic.version = 11 : i64} {
  func.func @_conv_ln_lrelu_kernel(%arg0: i32, %arg1: memref<1x82x3xbf16, #tpu.memory_space<vmem>>, %arg2: memref<1x82x3xbf16, #tpu.memory_space<vmem>>, %arg3: memref<1x82x3xbf16, #tpu.memory_space<vmem>>, %arg4: memref<1x82x3xbf16, #tpu.memory_space<vmem>>, %arg5: memref<4x4x3x8xbf16, #tpu.memory_space<vmem>>, %arg6: memref<1x72x8xbf16, #tpu.memory_space<vmem>>) attributes {dimension_semantics = [#tpu.dimension_semantics<parallel>], iteration_bounds = array<i64: 2>, scalar_prefetch = 0 : i64, scratch_operands = 0 : i64, tpu.core_type = #tpu.core_type<tc>, window_params = [{transform_indices = @transform_0, window_bounds = array<i64: 1, 82, 3>}, {transform_indices = @transform_1, window_bounds = array<i64: 1, 82, 3>}, {transform_indices = @transform_2, window_bounds = array<i64: 1, 82, 3>}, {transform_indices = @transform_3, window_bounds = array<i64: 1, 82, 3>}, {pipeline_mode = #tpu.pipeline_mode<synchronous>, transform_indices = @transform_4, window_bounds = array<i64: 4, 4, 3, 8>}, {transform_indices = @transform_5, window_bounds = array<i64: 1, 72, 8>}]} {
    %cst = arith.constant 0.000000e+00 : f32
    %0 = vector.broadcast %cst : f32 to vector<72x8xf32>
    %c0 = arith.constant 0 : index
    %c0_0 = arith.constant 0 : index
    %c0_1 = arith.constant 0 : index
    %1 = vector.load %arg1[%c0, %c0_0, %c0_1] : memref<1x82x3xbf16, #tpu.memory_space<vmem>>, vector<1x72x3xbf16>
    %2 = vector.shape_cast %1 : vector<1x72x3xbf16> to vector<72x3xbf16>
    %c0_2 = arith.constant 0 : index
    %c0_3 = arith.constant 0 : index
    %c0_4 = arith.constant 0 : index
    %c0_5 = arith.constant 0 : index
    %3 = vector.load %arg5[%c0_2, %c0_3, %c0_4, %c0_5] : memref<4x4x3x8xbf16, #tpu.memory_space<vmem>>, vector<1x1x3x8xbf16>
    %4 = vector.shape_cast %3 : vector<1x1x3x8xbf16> to vector<3x8xbf16>
    %cst_6 = arith.constant dense<0.000000e+00> : vector<72x8xf32>
    %5 = tpu.matmul %2, %4, %cst_6 {dimension_numbers = #tpu.dot_dimension_numbers<[1], [0], [0], [1], [0, 0, 1, 1], [], []>} : vector<72x3xbf16>, vector<3x8xbf16>, vector<72x8xf32> -> vector<72x8xf32>
    %6 = arith.addf %0, %5 : vector<72x8xf32>
    %c0_7 = arith.constant 0 : index
    %c0_8 = arith.constant 0 : index
    %c0_9 = arith.constant 0 : index
    %7 = vector.load %arg2[%c0_7, %c0_8, %c0_9] : memref<1x82x3xbf16, #tpu.memory_space<vmem>>, vector<1x72x3xbf16>
    %8 = vector.shape_cast %7 : vector<1x72x3xbf16> to vector<72x3xbf16>
    %c0_10 = arith.constant 0 : index
    %c1 = arith.constant 1 : index
    %c0_11 = arith.constant 0 : index
    %c0_12 = arith.constant 0 : index
    %9 = vector.load %arg5[%c0_10, %c1, %c0_11, %c0_12] : memref<4x4x3x8xbf16, #tpu.memory_space<vmem>>, vector<1x1x3x8xbf16>
    %10 = vector.shape_cast %9 : vector<1x1x3x8xbf16> to vector<3x8xbf16>
    %cst_13 = arith.constant dense<0.000000e+00> : vector<72x8xf32>
    %11 = tpu.matmul %8, %10, %cst_13 {dimension_numbers = #tpu.dot_dimension_numbers<[1], [0], [0], [1], [0, 0, 1, 1], [], []>} : vector<72x3xbf16>, vector<3x8xbf16>, vector<72x8xf32> -> vector<72x8xf32>
    %12 = arith.addf %6, %11 : vector<72x8xf32>
    %c0_14 = arith.constant 0 : index
    %c1_15 = arith.constant 1 : index
    %c0_16 = arith.constant 0 : index
    %13 = vector.load %arg1[%c0_14, %c1_15, %c0_16] : memref<1x82x3xbf16, #tpu.memory_space<vmem>>, vector<1x72x3xbf16>
    %14 = vector.shape_cast %13 : vector<1x72x3xbf16> to vector<72x3xbf16>
    %c0_17 = arith.constant 0 : index
    %c2 = arith.constant 2 : index
    %c0_18 = arith.constant 0 : index
    %c0_19 = arith.constant 0 : index
    %15 = vector.load %arg5[%c0_17, %c2, %c0_18, %c0_19] : memref<4x4x3x8xbf16, #tpu.memory_space<vmem>>, vector<1x1x3x8xbf16>
    %16 = vector.shape_cast %15 : vector<1x1x3x8xbf16> to vector<3x8xbf16>
    %cst_20 = arith.constant dense<0.000000e+00> : vector<72x8xf32>
    %17 = tpu.matmul %14, %16, %cst_20 {dimension_numbers = #tpu.dot_dimension_numbers<[1], [0], [0], [1], [0, 0, 1, 1], [], []>} : vector<72x3xbf16>, vector<3x8xbf16>, vector<72x8xf32> -> vector<72x8xf32>
    %18 = arith.addf %12, %17 : vector<72x8xf32>
    %c0_21 = arith.constant 0 : index
    %c1_22 = arith.constant 1 : index
    %c0_23 = arith.constant 0 : index
    %19 = vector.load %arg2[%c0_21, %c1_22, %c0_23] : memref<1x82x3xbf16, #tpu.memory_space<vmem>>, vector<1x72x3xbf16>
    %20 = vector.shape_cast %19 : vector<1x72x3xbf16> to vector<72x3xbf16>
    %c0_24 = arith.constant 0 : index
    %c3 = arith.constant 3 : index
    %c0_25 = arith.constant 0 : index
    %c0_26 = arith.constant 0 : index
    %21 = vector.load %arg5[%c0_24, %c3, %c0_25, %c0_26] : memref<4x4x3x8xbf16, #tpu.memory_space<vmem>>, vector<1x1x3x8xbf16>
    %22 = vector.shape_cast %21 : vector<1x1x3x8xbf16> to vector<3x8xbf16>
    %cst_27 = arith.constant dense<0.000000e+00> : vector<72x8xf32>
    %23 = tpu.matmul %20, %22, %cst_27 {dimension_numbers = #tpu.dot_dimension_numbers<[1], [0], [0], [1], [0, 0, 1, 1], [], []>} : vector<72x3xbf16>, vector<3x8xbf16>, vector<72x8xf32> -> vector<72x8xf32>
    %24 = arith.addf %18, %23 : vector<72x8xf32>
    %c0_28 = arith.constant 0 : index
    %c0_29 = arith.constant 0 : index
    %c0_30 = arith.constant 0 : index
    %25 = vector.load %arg3[%c0_28, %c0_29, %c0_30] : memref<1x82x3xbf16, #tpu.memory_space<vmem>>, vector<1x72x3xbf16>
    %26 = vector.shape_cast %25 : vector<1x72x3xbf16> to vector<72x3xbf16>
    %c1_31 = arith.constant 1 : index
    %c0_32 = arith.constant 0 : index
    %c0_33 = arith.constant 0 : index
    %c0_34 = arith.constant 0 : index
    %27 = vector.load %arg5[%c1_31, %c0_32, %c0_33, %c0_34] : memref<4x4x3x8xbf16, #tpu.memory_space<vmem>>, vector<1x1x3x8xbf16>
    %28 = vector.shape_cast %27 : vector<1x1x3x8xbf16> to vector<3x8xbf16>
    %cst_35 = arith.constant dense<0.000000e+00> : vector<72x8xf32>
    %29 = tpu.matmul %26, %28, %cst_35 {dimension_numbers = #tpu.dot_dimension_numbers<[1], [0], [0], [1], [0, 0, 1, 1], [], []>} : vector<72x3xbf16>, vector<3x8xbf16>, vector<72x8xf32> -> vector<72x8xf32>
    %30 = arith.addf %24, %29 : vector<72x8xf32>
    %c0_36 = arith.constant 0 : index
    %c0_37 = arith.constant 0 : index
    %c0_38 = arith.constant 0 : index
    %31 = vector.load %arg4[%c0_36, %c0_37, %c0_38] : memref<1x82x3xbf16, #tpu.memory_space<vmem>>, vector<1x72x3xbf16>
    %32 = vector.shape_cast %31 : vector<1x72x3xbf16> to vector<72x3xbf16>
    %c1_39 = arith.constant 1 : index
    %c1_40 = arith.constant 1 : index
    %c0_41 = arith.constant 0 : index
    %c0_42 = arith.constant 0 : index
    %33 = vector.load %arg5[%c1_39, %c1_40, %c0_41, %c0_42] : memref<4x4x3x8xbf16, #tpu.memory_space<vmem>>, vector<1x1x3x8xbf16>
    %34 = vector.shape_cast %33 : vector<1x1x3x8xbf16> to vector<3x8xbf16>
    %cst_43 = arith.constant dense<0.000000e+00> : vector<72x8xf32>
    %35 = tpu.matmul %32, %34, %cst_43 {dimension_numbers = #tpu.dot_dimension_numbers<[1], [0], [0], [1], [0, 0, 1, 1], [], []>} : vector<72x3xbf16>, vector<3x8xbf16>, vector<72x8xf32> -> vector<72x8xf32>
    %36 = arith.addf %30, %35 : vector<72x8xf32>
    %c0_44 = arith.constant 0 : index
    %c1_45 = arith.constant 1 : index
    %c0_46 = arith.constant 0 : index
    %37 = vector.load %arg3[%c0_44, %c1_45, %c0_46] : memref<1x82x3xbf16, #tpu.memory_space<vmem>>, vector<1x72x3xbf16>
    %38 = vector.shape_cast %37 : vector<1x72x3xbf16> to vector<72x3xbf16>
    %c1_47 = arith.constant 1 : index
    %c2_48 = arith.constant 2 : index
    %c0_49 = arith.constant 0 : index
    %c0_50 = arith.constant 0 : index
    %39 = vector.load %arg5[%c1_47, %c2_48, %c0_49, %c0_50] : memref<4x4x3x8xbf16, #tpu.memory_space<vmem>>, vector<1x1x3x8xbf16>
    %40 = vector.shape_cast %39 : vector<1x1x3x8xbf16> to vector<3x8xbf16>
    %cst_51 = arith.constant dense<0.000000e+00> : vector<72x8xf32>
    %41 = tpu.matmul %38, %40, %cst_51 {dimension_numbers = #tpu.dot_dimension_numbers<[1], [0], [0], [1], [0, 0, 1, 1], [], []>} : vector<72x3xbf16>, vector<3x8xbf16>, vector<72x8xf32> -> vector<72x8xf32>
    %42 = arith.addf %36, %41 : vector<72x8xf32>
    %c0_52 = arith.constant 0 : index
    %c1_53 = arith.constant 1 : index
    %c0_54 = arith.constant 0 : index
    %43 = vector.load %arg4[%c0_52, %c1_53, %c0_54] : memref<1x82x3xbf16, #tpu.memory_space<vmem>>, vector<1x72x3xbf16>
    %44 = vector.shape_cast %43 : vector<1x72x3xbf16> to vector<72x3xbf16>
    %c1_55 = arith.constant 1 : index
    %c3_56 = arith.constant 3 : index
    %c0_57 = arith.constant 0 : index
    %c0_58 = arith.constant 0 : index
    %45 = vector.load %arg5[%c1_55, %c3_56, %c0_57, %c0_58] : memref<4x4x3x8xbf16, #tpu.memory_space<vmem>>, vector<1x1x3x8xbf16>
    %46 = vector.shape_cast %45 : vector<1x1x3x8xbf16> to vector<3x8xbf16>
    %cst_59 = arith.constant dense<0.000000e+00> : vector<72x8xf32>
    %47 = tpu.matmul %44, %46, %cst_59 {dimension_numbers = #tpu.dot_dimension_numbers<[1], [0], [0], [1], [0, 0, 1, 1], [], []>} : vector<72x3xbf16>, vector<3x8xbf16>, vector<72x8xf32> -> vector<72x8xf32>
    %48 = arith.addf %42, %47 : vector<72x8xf32>
    %c0_60 = arith.constant 0 : index
    %c9 = arith.constant 9 : index
    %c0_61 = arith.constant 0 : index
    %49 = vector.load %arg1[%c0_60, %c9, %c0_61] : memref<1x82x3xbf16, #tpu.memory_space<vmem>>, vector<1x72x3xbf16>
    %50 = vector.shape_cast %49 : vector<1x72x3xbf16> to vector<72x3xbf16>
    %c2_62 = arith.constant 2 : index
    %c0_63 = arith.constant 0 : index
    %c0_64 = arith.constant 0 : index
    %c0_65 = arith.constant 0 : index
    %51 = vector.load %arg5[%c2_62, %c0_63, %c0_64, %c0_65] : memref<4x4x3x8xbf16, #tpu.memory_space<vmem>>, vector<1x1x3x8xbf16>
    %52 = vector.shape_cast %51 : vector<1x1x3x8xbf16> to vector<3x8xbf16>
    %cst_66 = arith.constant dense<0.000000e+00> : vector<72x8xf32>
    %53 = tpu.matmul %50, %52, %cst_66 {dimension_numbers = #tpu.dot_dimension_numbers<[1], [0], [0], [1], [0, 0, 1, 1], [], []>} : vector<72x3xbf16>, vector<3x8xbf16>, vector<72x8xf32> -> vector<72x8xf32>
    %54 = arith.addf %48, %53 : vector<72x8xf32>
    %c0_67 = arith.constant 0 : index
    %c9_68 = arith.constant 9 : index
    %c0_69 = arith.constant 0 : index
    %55 = vector.load %arg2[%c0_67, %c9_68, %c0_69] : memref<1x82x3xbf16, #tpu.memory_space<vmem>>, vector<1x72x3xbf16>
    %56 = vector.shape_cast %55 : vector<1x72x3xbf16> to vector<72x3xbf16>
    %c2_70 = arith.constant 2 : index
    %c1_71 = arith.constant 1 : index
    %c0_72 = arith.constant 0 : index
    %c0_73 = arith.constant 0 : index
    %57 = vector.load %arg5[%c2_70, %c1_71, %c0_72, %c0_73] : memref<4x4x3x8xbf16, #tpu.memory_space<vmem>>, vector<1x1x3x8xbf16>
    %58 = vector.shape_cast %57 : vector<1x1x3x8xbf16> to vector<3x8xbf16>
    %cst_74 = arith.constant dense<0.000000e+00> : vector<72x8xf32>
    %59 = tpu.matmul %56, %58, %cst_74 {dimension_numbers = #tpu.dot_dimension_numbers<[1], [0], [0], [1], [0, 0, 1, 1], [], []>} : vector<72x3xbf16>, vector<3x8xbf16>, vector<72x8xf32> -> vector<72x8xf32>
    %60 = arith.addf %54, %59 : vector<72x8xf32>
    %c0_75 = arith.constant 0 : index
    %c10 = arith.constant 10 : index
    %c0_76 = arith.constant 0 : index
    %61 = vector.load %arg1[%c0_75, %c10, %c0_76] : memref<1x82x3xbf16, #tpu.memory_space<vmem>>, vector<1x72x3xbf16>
    %62 = vector.shape_cast %61 : vector<1x72x3xbf16> to vector<72x3xbf16>
    %c2_77 = arith.constant 2 : index
    %c2_78 = arith.constant 2 : index
    %c0_79 = arith.constant 0 : index
    %c0_80 = arith.constant 0 : index
    %63 = vector.load %arg5[%c2_77, %c2_78, %c0_79, %c0_80] : memref<4x4x3x8xbf16, #tpu.memory_space<vmem>>, vector<1x1x3x8xbf16>
    %64 = vector.shape_cast %63 : vector<1x1x3x8xbf16> to vector<3x8xbf16>
    %cst_81 = arith.constant dense<0.000000e+00> : vector<72x8xf32>
    %65 = tpu.matmul %62, %64, %cst_81 {dimension_numbers = #tpu.dot_dimension_numbers<[1], [0], [0], [1], [0, 0, 1, 1], [], []>} : vector<72x3xbf16>, vector<3x8xbf16>, vector<72x8xf32> -> vector<72x8xf32>
    %66 = arith.addf %60, %65 : vector<72x8xf32>
    %c0_82 = arith.constant 0 : index
    %c10_83 = arith.constant 10 : index
    %c0_84 = arith.constant 0 : index
    %67 = vector.load %arg2[%c0_82, %c10_83, %c0_84] : memref<1x82x3xbf16, #tpu.memory_space<vmem>>, vector<1x72x3xbf16>
    %68 = vector.shape_cast %67 : vector<1x72x3xbf16> to vector<72x3xbf16>
    %c2_85 = arith.constant 2 : index
    %c3_86 = arith.constant 3 : index
    %c0_87 = arith.constant 0 : index
    %c0_88 = arith.constant 0 : index
    %69 = vector.load %arg5[%c2_85, %c3_86, %c0_87, %c0_88] : memref<4x4x3x8xbf16, #tpu.memory_space<vmem>>, vector<1x1x3x8xbf16>
    %70 = vector.shape_cast %69 : vector<1x1x3x8xbf16> to vector<3x8xbf16>
    %cst_89 = arith.constant dense<0.000000e+00> : vector<72x8xf32>
    %71 = tpu.matmul %68, %70, %cst_89 {dimension_numbers = #tpu.dot_dimension_numbers<[1], [0], [0], [1], [0, 0, 1, 1], [], []>} : vector<72x3xbf16>, vector<3x8xbf16>, vector<72x8xf32> -> vector<72x8xf32>
    %72 = arith.addf %66, %71 : vector<72x8xf32>
    %c0_90 = arith.constant 0 : index
    %c9_91 = arith.constant 9 : index
    %c0_92 = arith.constant 0 : index
    %73 = vector.load %arg3[%c0_90, %c9_91, %c0_92] : memref<1x82x3xbf16, #tpu.memory_space<vmem>>, vector<1x72x3xbf16>
    %74 = vector.shape_cast %73 : vector<1x72x3xbf16> to vector<72x3xbf16>
    %c3_93 = arith.constant 3 : index
    %c0_94 = arith.constant 0 : index
    %c0_95 = arith.constant 0 : index
    %c0_96 = arith.constant 0 : index
    %75 = vector.load %arg5[%c3_93, %c0_94, %c0_95, %c0_96] : memref<4x4x3x8xbf16, #tpu.memory_space<vmem>>, vector<1x1x3x8xbf16>
    %76 = vector.shape_cast %75 : vector<1x1x3x8xbf16> to vector<3x8xbf16>
    %cst_97 = arith.constant dense<0.000000e+00> : vector<72x8xf32>
    %77 = tpu.matmul %74, %76, %cst_97 {dimension_numbers = #tpu.dot_dimension_numbers<[1], [0], [0], [1], [0, 0, 1, 1], [], []>} : vector<72x3xbf16>, vector<3x8xbf16>, vector<72x8xf32> -> vector<72x8xf32>
    %78 = arith.addf %72, %77 : vector<72x8xf32>
    %c0_98 = arith.constant 0 : index
    %c9_99 = arith.constant 9 : index
    %c0_100 = arith.constant 0 : index
    %79 = vector.load %arg4[%c0_98, %c9_99, %c0_100] : memref<1x82x3xbf16, #tpu.memory_space<vmem>>, vector<1x72x3xbf16>
    %80 = vector.shape_cast %79 : vector<1x72x3xbf16> to vector<72x3xbf16>
    %c3_101 = arith.constant 3 : index
    %c1_102 = arith.constant 1 : index
    %c0_103 = arith.constant 0 : index
    %c0_104 = arith.constant 0 : index
    %81 = vector.load %arg5[%c3_101, %c1_102, %c0_103, %c0_104] : memref<4x4x3x8xbf16, #tpu.memory_space<vmem>>, vector<1x1x3x8xbf16>
    %82 = vector.shape_cast %81 : vector<1x1x3x8xbf16> to vector<3x8xbf16>
    %cst_105 = arith.constant dense<0.000000e+00> : vector<72x8xf32>
    %83 = tpu.matmul %80, %82, %cst_105 {dimension_numbers = #tpu.dot_dimension_numbers<[1], [0], [0], [1], [0, 0, 1, 1], [], []>} : vector<72x3xbf16>, vector<3x8xbf16>, vector<72x8xf32> -> vector<72x8xf32>
    %84 = arith.addf %78, %83 : vector<72x8xf32>
    %c0_106 = arith.constant 0 : index
    %c10_107 = arith.constant 10 : index
    %c0_108 = arith.constant 0 : index
    %85 = vector.load %arg3[%c0_106, %c10_107, %c0_108] : memref<1x82x3xbf16, #tpu.memory_space<vmem>>, vector<1x72x3xbf16>
    %86 = vector.shape_cast %85 : vector<1x72x3xbf16> to vector<72x3xbf16>
    %c3_109 = arith.constant 3 : index
    %c2_110 = arith.constant 2 : index
    %c0_111 = arith.constant 0 : index
    %c0_112 = arith.constant 0 : index
    %87 = vector.load %arg5[%c3_109, %c2_110, %c0_111, %c0_112] : memref<4x4x3x8xbf16, #tpu.memory_space<vmem>>, vector<1x1x3x8xbf16>
    %88 = vector.shape_cast %87 : vector<1x1x3x8xbf16> to vector<3x8xbf16>
    %cst_113 = arith.constant dense<0.000000e+00> : vector<72x8xf32>
    %89 = tpu.matmul %86, %88, %cst_113 {dimension_numbers = #tpu.dot_dimension_numbers<[1], [0], [0], [1], [0, 0, 1, 1], [], []>} : vector<72x3xbf16>, vector<3x8xbf16>, vector<72x8xf32> -> vector<72x8xf32>
    %90 = arith.addf %84, %89 : vector<72x8xf32>
    %c0_114 = arith.constant 0 : index
    %c10_115 = arith.constant 10 : index
    %c0_116 = arith.constant 0 : index
    %91 = vector.load %arg4[%c0_114, %c10_115, %c0_116] : memref<1x82x3xbf16, #tpu.memory_space<vmem>>, vector<1x72x3xbf16>
    %92 = vector.shape_cast %91 : vector<1x72x3xbf16> to vector<72x3xbf16>
    %c3_117 = arith.constant 3 : index
    %c3_118 = arith.constant 3 : index
    %c0_119 = arith.constant 0 : index
    %c0_120 = arith.constant 0 : index
    %93 = vector.load %arg5[%c3_117, %c3_118, %c0_119, %c0_120] : memref<4x4x3x8xbf16, #tpu.memory_space<vmem>>, vector<1x1x3x8xbf16>
    %94 = vector.shape_cast %93 : vector<1x1x3x8xbf16> to vector<3x8xbf16>
    %cst_121 = arith.constant dense<0.000000e+00> : vector<72x8xf32>
    %95 = tpu.matmul %92, %94, %cst_121 {dimension_numbers = #tpu.dot_dimension_numbers<[1], [0], [0], [1], [0, 0, 1, 1], [], []>} : vector<72x3xbf16>, vector<3x8xbf16>, vector<72x8xf32> -> vector<72x8xf32>
    %96 = arith.addf %90, %95 : vector<72x8xf32>
    %cst_122 = arith.constant 0.000000e+00 : f32
    %97 = vector.broadcast %cst_122 : f32 to vector<72x8xf32>
    %98 = arith.cmpf ogt, %96, %97 : vector<72x8xf32>
    %cst_123 = arith.constant 2.000000e-01 : f32
    %99 = vector.broadcast %cst_123 : f32 to vector<72x8xf32>
    %100 = arith.mulf %99, %96 : vector<72x8xf32>
    %101 = arith.select %98, %96, %100 : vector<72x8xi1>, vector<72x8xf32>
    %102 = arith.truncf %101 : vector<72x8xf32> to vector<72x8xbf16>
    %c0_124 = arith.constant 0 : index
    %c0_125 = arith.constant 0 : index
    %c0_126 = arith.constant 0 : index
    %103 = vector.load %arg6[%c0_124, %c0_125, %c0_126] : memref<1x72x8xbf16, #tpu.memory_space<vmem>>, vector<1x72x8xbf16>
    %104 = vector.shape_cast %103 : vector<1x72x8xbf16> to vector<72x8xbf16>
    %105 = vector.shape_cast %102 : vector<72x8xbf16> to vector<1x72x8xbf16>
    tpu.vector_store %arg6[%c0_124, %c0_125, %c0_126], %105 {strides = array<i32>} : memref<1x72x8xbf16, #tpu.memory_space<vmem>>, vector<1x72x8xbf16>,
    return
  }
  func.func @transform_0(%arg0: i32) -> (i32, i32, i32) {
    %c0_i32 = arith.constant 0 : i32
    %c0_i32_0 = arith.constant 0 : i32
    %c0_i32_1 = arith.constant 0 : i32
    return %arg0, %c0_i32, %c0_i32_0 : i32, i32, i32
  }
  func.func @transform_1(%arg0: i32) -> (i32, i32, i32) {
    %c0_i32 = arith.constant 0 : i32
    %c0_i32_0 = arith.constant 0 : i32
    %c0_i32_1 = arith.constant 0 : i32
    return %arg0, %c0_i32, %c0_i32_0 : i32, i32, i32
  }
  func.func @transform_2(%arg0: i32) -> (i32, i32, i32) {
    %c0_i32 = arith.constant 0 : i32
    %c0_i32_0 = arith.constant 0 : i32
    %c0_i32_1 = arith.constant 0 : i32
    return %arg0, %c0_i32, %c0_i32_0 : i32, i32, i32
  }
  func.func @transform_3(%arg0: i32) -> (i32, i32, i32) {
    %c0_i32 = arith.constant 0 : i32
    %c0_i32_0 = arith.constant 0 : i32
    %c0_i32_1 = arith.constant 0 : i32
    return %arg0, %c0_i32, %c0_i32_0 : i32, i32, i32
  }
  func.func @transform_4(%arg0: i32) -> (i32, i32, i32, i32) {
    %c0_i32 = arith.constant 0 : i32
    %c0_i32_0 = arith.constant 0 : i32
    %c0_i32_1 = arith.constant 0 : i32
    %c0_i32_2 = arith.constant 0 : i32
    %c0_i32_3 = arith.constant 0 : i32
    return %c0_i32, %c0_i32_0, %c0_i32_1, %c0_i32_2 : i32, i32, i32, i32
  }
  func.func @transform_5(%arg0: i32) -> (i32, i32, i32) {
    %c0_i32 = arith.constant 0 : i32
    %c0_i32_0 = arith.constant 0 : i32
    %c0_i32_1 = arith.constant 0 : i32
    return %arg0, %c0_i32, %c0_i32_0 : i32, i32, i32
  }
}

module attributes {stable_mosaic.version = 11 : i64} {
  func.func @_conv_ln_lrelu_kernel(%arg0: i32, %arg1: memref<1x26x8xbf16, #tpu.memory_space<vmem>>, %arg2: memref<1x26x8xbf16, #tpu.memory_space<vmem>>, %arg3: memref<1x26x8xbf16, #tpu.memory_space<vmem>>, %arg4: memref<1x26x8xbf16, #tpu.memory_space<vmem>>, %arg5: memref<4x4x8x16xbf16, #tpu.memory_space<vmem>>, %arg6: memref<20x16xf32, #tpu.memory_space<vmem>>, %arg7: memref<20x16xf32, #tpu.memory_space<vmem>>, %arg8: memref<20x1xf32, #tpu.memory_space<vmem>>, %arg9: memref<1x20x16xbf16, #tpu.memory_space<vmem>>) attributes {dimension_semantics = [#tpu.dimension_semantics<parallel>], iteration_bounds = array<i64: 2>, scalar_prefetch = 0 : i64, scratch_operands = 0 : i64, tpu.core_type = #tpu.core_type<tc>, window_params = [{transform_indices = @transform_0, window_bounds = array<i64: 1, 26, 8>}, {transform_indices = @transform_1, window_bounds = array<i64: 1, 26, 8>}, {transform_indices = @transform_2, window_bounds = array<i64: 1, 26, 8>}, {transform_indices = @transform_3, window_bounds = array<i64: 1, 26, 8>}, {pipeline_mode = #tpu.pipeline_mode<synchronous>, transform_indices = @transform_4, window_bounds = array<i64: 4, 4, 8, 16>}, {pipeline_mode = #tpu.pipeline_mode<synchronous>, transform_indices = @transform_5, window_bounds = array<i64: 20, 16>}, {pipeline_mode = #tpu.pipeline_mode<synchronous>, transform_indices = @transform_6, window_bounds = array<i64: 20, 16>}, {pipeline_mode = #tpu.pipeline_mode<synchronous>, transform_indices = @transform_7, window_bounds = array<i64: 20, 1>}, {transform_indices = @transform_8, window_bounds = array<i64: 1, 20, 16>}]} {
    %cst = arith.constant 0.000000e+00 : f32
    %0 = vector.broadcast %cst : f32 to vector<20x16xf32>
    %c0 = arith.constant 0 : index
    %c0_0 = arith.constant 0 : index
    %c0_1 = arith.constant 0 : index
    %1 = vector.load %arg1[%c0, %c0_0, %c0_1] : memref<1x26x8xbf16, #tpu.memory_space<vmem>>, vector<1x20x8xbf16>
    %2 = vector.shape_cast %1 : vector<1x20x8xbf16> to vector<20x8xbf16>
    %c0_2 = arith.constant 0 : index
    %c0_3 = arith.constant 0 : index
    %c0_4 = arith.constant 0 : index
    %c0_5 = arith.constant 0 : index
    %3 = vector.load %arg5[%c0_2, %c0_3, %c0_4, %c0_5] : memref<4x4x8x16xbf16, #tpu.memory_space<vmem>>, vector<1x1x8x16xbf16>
    %4 = vector.shape_cast %3 : vector<1x1x8x16xbf16> to vector<8x16xbf16>
    %cst_6 = arith.constant dense<0.000000e+00> : vector<20x16xf32>
    %5 = tpu.matmul %2, %4, %cst_6 {dimension_numbers = #tpu.dot_dimension_numbers<[1], [0], [0], [1], [0, 0, 1, 1], [], []>} : vector<20x8xbf16>, vector<8x16xbf16>, vector<20x16xf32> -> vector<20x16xf32>
    %6 = arith.addf %0, %5 : vector<20x16xf32>
    %c0_7 = arith.constant 0 : index
    %c0_8 = arith.constant 0 : index
    %c0_9 = arith.constant 0 : index
    %7 = vector.load %arg2[%c0_7, %c0_8, %c0_9] : memref<1x26x8xbf16, #tpu.memory_space<vmem>>, vector<1x20x8xbf16>
    %8 = vector.shape_cast %7 : vector<1x20x8xbf16> to vector<20x8xbf16>
    %c0_10 = arith.constant 0 : index
    %c1 = arith.constant 1 : index
    %c0_11 = arith.constant 0 : index
    %c0_12 = arith.constant 0 : index
    %9 = vector.load %arg5[%c0_10, %c1, %c0_11, %c0_12] : memref<4x4x8x16xbf16, #tpu.memory_space<vmem>>, vector<1x1x8x16xbf16>
    %10 = vector.shape_cast %9 : vector<1x1x8x16xbf16> to vector<8x16xbf16>
    %cst_13 = arith.constant dense<0.000000e+00> : vector<20x16xf32>
    %11 = tpu.matmul %8, %10, %cst_13 {dimension_numbers = #tpu.dot_dimension_numbers<[1], [0], [0], [1], [0, 0, 1, 1], [], []>} : vector<20x8xbf16>, vector<8x16xbf16>, vector<20x16xf32> -> vector<20x16xf32>
    %12 = arith.addf %6, %11 : vector<20x16xf32>
    %c0_14 = arith.constant 0 : index
    %c1_15 = arith.constant 1 : index
    %c0_16 = arith.constant 0 : index
    %13 = vector.load %arg1[%c0_14, %c1_15, %c0_16] : memref<1x26x8xbf16, #tpu.memory_space<vmem>>, vector<1x20x8xbf16>
    %14 = vector.shape_cast %13 : vector<1x20x8xbf16> to vector<20x8xbf16>
    %c0_17 = arith.constant 0 : index
    %c2 = arith.constant 2 : index
    %c0_18 = arith.constant 0 : index
    %c0_19 = arith.constant 0 : index
    %15 = vector.load %arg5[%c0_17, %c2, %c0_18, %c0_19] : memref<4x4x8x16xbf16, #tpu.memory_space<vmem>>, vector<1x1x8x16xbf16>
    %16 = vector.shape_cast %15 : vector<1x1x8x16xbf16> to vector<8x16xbf16>
    %cst_20 = arith.constant dense<0.000000e+00> : vector<20x16xf32>
    %17 = tpu.matmul %14, %16, %cst_20 {dimension_numbers = #tpu.dot_dimension_numbers<[1], [0], [0], [1], [0, 0, 1, 1], [], []>} : vector<20x8xbf16>, vector<8x16xbf16>, vector<20x16xf32> -> vector<20x16xf32>
    %18 = arith.addf %12, %17 : vector<20x16xf32>
    %c0_21 = arith.constant 0 : index
    %c1_22 = arith.constant 1 : index
    %c0_23 = arith.constant 0 : index
    %19 = vector.load %arg2[%c0_21, %c1_22, %c0_23] : memref<1x26x8xbf16, #tpu.memory_space<vmem>>, vector<1x20x8xbf16>
    %20 = vector.shape_cast %19 : vector<1x20x8xbf16> to vector<20x8xbf16>
    %c0_24 = arith.constant 0 : index
    %c3 = arith.constant 3 : index
    %c0_25 = arith.constant 0 : index
    %c0_26 = arith.constant 0 : index
    %21 = vector.load %arg5[%c0_24, %c3, %c0_25, %c0_26] : memref<4x4x8x16xbf16, #tpu.memory_space<vmem>>, vector<1x1x8x16xbf16>
    %22 = vector.shape_cast %21 : vector<1x1x8x16xbf16> to vector<8x16xbf16>
    %cst_27 = arith.constant dense<0.000000e+00> : vector<20x16xf32>
    %23 = tpu.matmul %20, %22, %cst_27 {dimension_numbers = #tpu.dot_dimension_numbers<[1], [0], [0], [1], [0, 0, 1, 1], [], []>} : vector<20x8xbf16>, vector<8x16xbf16>, vector<20x16xf32> -> vector<20x16xf32>
    %24 = arith.addf %18, %23 : vector<20x16xf32>
    %c0_28 = arith.constant 0 : index
    %c0_29 = arith.constant 0 : index
    %c0_30 = arith.constant 0 : index
    %25 = vector.load %arg3[%c0_28, %c0_29, %c0_30] : memref<1x26x8xbf16, #tpu.memory_space<vmem>>, vector<1x20x8xbf16>
    %26 = vector.shape_cast %25 : vector<1x20x8xbf16> to vector<20x8xbf16>
    %c1_31 = arith.constant 1 : index
    %c0_32 = arith.constant 0 : index
    %c0_33 = arith.constant 0 : index
    %c0_34 = arith.constant 0 : index
    %27 = vector.load %arg5[%c1_31, %c0_32, %c0_33, %c0_34] : memref<4x4x8x16xbf16, #tpu.memory_space<vmem>>, vector<1x1x8x16xbf16>
    %28 = vector.shape_cast %27 : vector<1x1x8x16xbf16> to vector<8x16xbf16>
    %cst_35 = arith.constant dense<0.000000e+00> : vector<20x16xf32>
    %29 = tpu.matmul %26, %28, %cst_35 {dimension_numbers = #tpu.dot_dimension_numbers<[1], [0], [0], [1], [0, 0, 1, 1], [], []>} : vector<20x8xbf16>, vector<8x16xbf16>, vector<20x16xf32> -> vector<20x16xf32>
    %30 = arith.addf %24, %29 : vector<20x16xf32>
    %c0_36 = arith.constant 0 : index
    %c0_37 = arith.constant 0 : index
    %c0_38 = arith.constant 0 : index
    %31 = vector.load %arg4[%c0_36, %c0_37, %c0_38] : memref<1x26x8xbf16, #tpu.memory_space<vmem>>, vector<1x20x8xbf16>
    %32 = vector.shape_cast %31 : vector<1x20x8xbf16> to vector<20x8xbf16>
    %c1_39 = arith.constant 1 : index
    %c1_40 = arith.constant 1 : index
    %c0_41 = arith.constant 0 : index
    %c0_42 = arith.constant 0 : index
    %33 = vector.load %arg5[%c1_39, %c1_40, %c0_41, %c0_42] : memref<4x4x8x16xbf16, #tpu.memory_space<vmem>>, vector<1x1x8x16xbf16>
    %34 = vector.shape_cast %33 : vector<1x1x8x16xbf16> to vector<8x16xbf16>
    %cst_43 = arith.constant dense<0.000000e+00> : vector<20x16xf32>
    %35 = tpu.matmul %32, %34, %cst_43 {dimension_numbers = #tpu.dot_dimension_numbers<[1], [0], [0], [1], [0, 0, 1, 1], [], []>} : vector<20x8xbf16>, vector<8x16xbf16>, vector<20x16xf32> -> vector<20x16xf32>
    %36 = arith.addf %30, %35 : vector<20x16xf32>
    %c0_44 = arith.constant 0 : index
    %c1_45 = arith.constant 1 : index
    %c0_46 = arith.constant 0 : index
    %37 = vector.load %arg3[%c0_44, %c1_45, %c0_46] : memref<1x26x8xbf16, #tpu.memory_space<vmem>>, vector<1x20x8xbf16>
    %38 = vector.shape_cast %37 : vector<1x20x8xbf16> to vector<20x8xbf16>
    %c1_47 = arith.constant 1 : index
    %c2_48 = arith.constant 2 : index
    %c0_49 = arith.constant 0 : index
    %c0_50 = arith.constant 0 : index
    %39 = vector.load %arg5[%c1_47, %c2_48, %c0_49, %c0_50] : memref<4x4x8x16xbf16, #tpu.memory_space<vmem>>, vector<1x1x8x16xbf16>
    %40 = vector.shape_cast %39 : vector<1x1x8x16xbf16> to vector<8x16xbf16>
    %cst_51 = arith.constant dense<0.000000e+00> : vector<20x16xf32>
    %41 = tpu.matmul %38, %40, %cst_51 {dimension_numbers = #tpu.dot_dimension_numbers<[1], [0], [0], [1], [0, 0, 1, 1], [], []>} : vector<20x8xbf16>, vector<8x16xbf16>, vector<20x16xf32> -> vector<20x16xf32>
    %42 = arith.addf %36, %41 : vector<20x16xf32>
    %c0_52 = arith.constant 0 : index
    %c1_53 = arith.constant 1 : index
    %c0_54 = arith.constant 0 : index
    %43 = vector.load %arg4[%c0_52, %c1_53, %c0_54] : memref<1x26x8xbf16, #tpu.memory_space<vmem>>, vector<1x20x8xbf16>
    %44 = vector.shape_cast %43 : vector<1x20x8xbf16> to vector<20x8xbf16>
    %c1_55 = arith.constant 1 : index
    %c3_56 = arith.constant 3 : index
    %c0_57 = arith.constant 0 : index
    %c0_58 = arith.constant 0 : index
    %45 = vector.load %arg5[%c1_55, %c3_56, %c0_57, %c0_58] : memref<4x4x8x16xbf16, #tpu.memory_space<vmem>>, vector<1x1x8x16xbf16>
    %46 = vector.shape_cast %45 : vector<1x1x8x16xbf16> to vector<8x16xbf16>
    %cst_59 = arith.constant dense<0.000000e+00> : vector<20x16xf32>
    %47 = tpu.matmul %44, %46, %cst_59 {dimension_numbers = #tpu.dot_dimension_numbers<[1], [0], [0], [1], [0, 0, 1, 1], [], []>} : vector<20x8xbf16>, vector<8x16xbf16>, vector<20x16xf32> -> vector<20x16xf32>
    %48 = arith.addf %42, %47 : vector<20x16xf32>
    %c0_60 = arith.constant 0 : index
    %c5 = arith.constant 5 : index
    %c0_61 = arith.constant 0 : index
    %49 = vector.load %arg1[%c0_60, %c5, %c0_61] : memref<1x26x8xbf16, #tpu.memory_space<vmem>>, vector<1x20x8xbf16>
    %50 = vector.shape_cast %49 : vector<1x20x8xbf16> to vector<20x8xbf16>
    %c2_62 = arith.constant 2 : index
    %c0_63 = arith.constant 0 : index
    %c0_64 = arith.constant 0 : index
    %c0_65 = arith.constant 0 : index
    %51 = vector.load %arg5[%c2_62, %c0_63, %c0_64, %c0_65] : memref<4x4x8x16xbf16, #tpu.memory_space<vmem>>, vector<1x1x8x16xbf16>
    %52 = vector.shape_cast %51 : vector<1x1x8x16xbf16> to vector<8x16xbf16>
    %cst_66 = arith.constant dense<0.000000e+00> : vector<20x16xf32>
    %53 = tpu.matmul %50, %52, %cst_66 {dimension_numbers = #tpu.dot_dimension_numbers<[1], [0], [0], [1], [0, 0, 1, 1], [], []>} : vector<20x8xbf16>, vector<8x16xbf16>, vector<20x16xf32> -> vector<20x16xf32>
    %54 = arith.addf %48, %53 : vector<20x16xf32>
    %c0_67 = arith.constant 0 : index
    %c5_68 = arith.constant 5 : index
    %c0_69 = arith.constant 0 : index
    %55 = vector.load %arg2[%c0_67, %c5_68, %c0_69] : memref<1x26x8xbf16, #tpu.memory_space<vmem>>, vector<1x20x8xbf16>
    %56 = vector.shape_cast %55 : vector<1x20x8xbf16> to vector<20x8xbf16>
    %c2_70 = arith.constant 2 : index
    %c1_71 = arith.constant 1 : index
    %c0_72 = arith.constant 0 : index
    %c0_73 = arith.constant 0 : index
    %57 = vector.load %arg5[%c2_70, %c1_71, %c0_72, %c0_73] : memref<4x4x8x16xbf16, #tpu.memory_space<vmem>>, vector<1x1x8x16xbf16>
    %58 = vector.shape_cast %57 : vector<1x1x8x16xbf16> to vector<8x16xbf16>
    %cst_74 = arith.constant dense<0.000000e+00> : vector<20x16xf32>
    %59 = tpu.matmul %56, %58, %cst_74 {dimension_numbers = #tpu.dot_dimension_numbers<[1], [0], [0], [1], [0, 0, 1, 1], [], []>} : vector<20x8xbf16>, vector<8x16xbf16>, vector<20x16xf32> -> vector<20x16xf32>
    %60 = arith.addf %54, %59 : vector<20x16xf32>
    %c0_75 = arith.constant 0 : index
    %c6 = arith.constant 6 : index
    %c0_76 = arith.constant 0 : index
    %61 = vector.load %arg1[%c0_75, %c6, %c0_76] : memref<1x26x8xbf16, #tpu.memory_space<vmem>>, vector<1x20x8xbf16>
    %62 = vector.shape_cast %61 : vector<1x20x8xbf16> to vector<20x8xbf16>
    %c2_77 = arith.constant 2 : index
    %c2_78 = arith.constant 2 : index
    %c0_79 = arith.constant 0 : index
    %c0_80 = arith.constant 0 : index
    %63 = vector.load %arg5[%c2_77, %c2_78, %c0_79, %c0_80] : memref<4x4x8x16xbf16, #tpu.memory_space<vmem>>, vector<1x1x8x16xbf16>
    %64 = vector.shape_cast %63 : vector<1x1x8x16xbf16> to vector<8x16xbf16>
    %cst_81 = arith.constant dense<0.000000e+00> : vector<20x16xf32>
    %65 = tpu.matmul %62, %64, %cst_81 {dimension_numbers = #tpu.dot_dimension_numbers<[1], [0], [0], [1], [0, 0, 1, 1], [], []>} : vector<20x8xbf16>, vector<8x16xbf16>, vector<20x16xf32> -> vector<20x16xf32>
    %66 = arith.addf %60, %65 : vector<20x16xf32>
    %c0_82 = arith.constant 0 : index
    %c6_83 = arith.constant 6 : index
    %c0_84 = arith.constant 0 : index
    %67 = vector.load %arg2[%c0_82, %c6_83, %c0_84] : memref<1x26x8xbf16, #tpu.memory_space<vmem>>, vector<1x20x8xbf16>
    %68 = vector.shape_cast %67 : vector<1x20x8xbf16> to vector<20x8xbf16>
    %c2_85 = arith.constant 2 : index
    %c3_86 = arith.constant 3 : index
    %c0_87 = arith.constant 0 : index
    %c0_88 = arith.constant 0 : index
    %69 = vector.load %arg5[%c2_85, %c3_86, %c0_87, %c0_88] : memref<4x4x8x16xbf16, #tpu.memory_space<vmem>>, vector<1x1x8x16xbf16>
    %70 = vector.shape_cast %69 : vector<1x1x8x16xbf16> to vector<8x16xbf16>
    %cst_89 = arith.constant dense<0.000000e+00> : vector<20x16xf32>
    %71 = tpu.matmul %68, %70, %cst_89 {dimension_numbers = #tpu.dot_dimension_numbers<[1], [0], [0], [1], [0, 0, 1, 1], [], []>} : vector<20x8xbf16>, vector<8x16xbf16>, vector<20x16xf32> -> vector<20x16xf32>
    %72 = arith.addf %66, %71 : vector<20x16xf32>
    %c0_90 = arith.constant 0 : index
    %c5_91 = arith.constant 5 : index
    %c0_92 = arith.constant 0 : index
    %73 = vector.load %arg3[%c0_90, %c5_91, %c0_92] : memref<1x26x8xbf16, #tpu.memory_space<vmem>>, vector<1x20x8xbf16>
    %74 = vector.shape_cast %73 : vector<1x20x8xbf16> to vector<20x8xbf16>
    %c3_93 = arith.constant 3 : index
    %c0_94 = arith.constant 0 : index
    %c0_95 = arith.constant 0 : index
    %c0_96 = arith.constant 0 : index
    %75 = vector.load %arg5[%c3_93, %c0_94, %c0_95, %c0_96] : memref<4x4x8x16xbf16, #tpu.memory_space<vmem>>, vector<1x1x8x16xbf16>
    %76 = vector.shape_cast %75 : vector<1x1x8x16xbf16> to vector<8x16xbf16>
    %cst_97 = arith.constant dense<0.000000e+00> : vector<20x16xf32>
    %77 = tpu.matmul %74, %76, %cst_97 {dimension_numbers = #tpu.dot_dimension_numbers<[1], [0], [0], [1], [0, 0, 1, 1], [], []>} : vector<20x8xbf16>, vector<8x16xbf16>, vector<20x16xf32> -> vector<20x16xf32>
    %78 = arith.addf %72, %77 : vector<20x16xf32>
    %c0_98 = arith.constant 0 : index
    %c5_99 = arith.constant 5 : index
    %c0_100 = arith.constant 0 : index
    %79 = vector.load %arg4[%c0_98, %c5_99, %c0_100] : memref<1x26x8xbf16, #tpu.memory_space<vmem>>, vector<1x20x8xbf16>
    %80 = vector.shape_cast %79 : vector<1x20x8xbf16> to vector<20x8xbf16>
    %c3_101 = arith.constant 3 : index
    %c1_102 = arith.constant 1 : index
    %c0_103 = arith.constant 0 : index
    %c0_104 = arith.constant 0 : index
    %81 = vector.load %arg5[%c3_101, %c1_102, %c0_103, %c0_104] : memref<4x4x8x16xbf16, #tpu.memory_space<vmem>>, vector<1x1x8x16xbf16>
    %82 = vector.shape_cast %81 : vector<1x1x8x16xbf16> to vector<8x16xbf16>
    %cst_105 = arith.constant dense<0.000000e+00> : vector<20x16xf32>
    %83 = tpu.matmul %80, %82, %cst_105 {dimension_numbers = #tpu.dot_dimension_numbers<[1], [0], [0], [1], [0, 0, 1, 1], [], []>} : vector<20x8xbf16>, vector<8x16xbf16>, vector<20x16xf32> -> vector<20x16xf32>
    %84 = arith.addf %78, %83 : vector<20x16xf32>
    %c0_106 = arith.constant 0 : index
    %c6_107 = arith.constant 6 : index
    %c0_108 = arith.constant 0 : index
    %85 = vector.load %arg3[%c0_106, %c6_107, %c0_108] : memref<1x26x8xbf16, #tpu.memory_space<vmem>>, vector<1x20x8xbf16>
    %86 = vector.shape_cast %85 : vector<1x20x8xbf16> to vector<20x8xbf16>
    %c3_109 = arith.constant 3 : index
    %c2_110 = arith.constant 2 : index
    %c0_111 = arith.constant 0 : index
    %c0_112 = arith.constant 0 : index
    %87 = vector.load %arg5[%c3_109, %c2_110, %c0_111, %c0_112] : memref<4x4x8x16xbf16, #tpu.memory_space<vmem>>, vector<1x1x8x16xbf16>
    %88 = vector.shape_cast %87 : vector<1x1x8x16xbf16> to vector<8x16xbf16>
    %cst_113 = arith.constant dense<0.000000e+00> : vector<20x16xf32>
    %89 = tpu.matmul %86, %88, %cst_113 {dimension_numbers = #tpu.dot_dimension_numbers<[1], [0], [0], [1], [0, 0, 1, 1], [], []>} : vector<20x8xbf16>, vector<8x16xbf16>, vector<20x16xf32> -> vector<20x16xf32>
    %90 = arith.addf %84, %89 : vector<20x16xf32>
    %c0_114 = arith.constant 0 : index
    %c6_115 = arith.constant 6 : index
    %c0_116 = arith.constant 0 : index
    %91 = vector.load %arg4[%c0_114, %c6_115, %c0_116] : memref<1x26x8xbf16, #tpu.memory_space<vmem>>, vector<1x20x8xbf16>
    %92 = vector.shape_cast %91 : vector<1x20x8xbf16> to vector<20x8xbf16>
    %c3_117 = arith.constant 3 : index
    %c3_118 = arith.constant 3 : index
    %c0_119 = arith.constant 0 : index
    %c0_120 = arith.constant 0 : index
    %93 = vector.load %arg5[%c3_117, %c3_118, %c0_119, %c0_120] : memref<4x4x8x16xbf16, #tpu.memory_space<vmem>>, vector<1x1x8x16xbf16>
    %94 = vector.shape_cast %93 : vector<1x1x8x16xbf16> to vector<8x16xbf16>
    %cst_121 = arith.constant dense<0.000000e+00> : vector<20x16xf32>
    %95 = tpu.matmul %92, %94, %cst_121 {dimension_numbers = #tpu.dot_dimension_numbers<[1], [0], [0], [1], [0, 0, 1, 1], [], []>} : vector<20x8xbf16>, vector<8x16xbf16>, vector<20x16xf32> -> vector<20x16xf32>
    %96 = arith.addf %90, %95 : vector<20x16xf32>
    %c0_122 = arith.constant 0 : index
    %c0_123 = arith.constant 0 : index
    %97 = vector.load %arg8[%c0_122, %c0_123] : memref<20x1xf32, #tpu.memory_space<vmem>>, vector<20x1xf32>
    %98 = vector.broadcast %97 : vector<20x1xf32> to vector<20x16xf32>
    %99 = arith.mulf %96, %98 : vector<20x16xf32>
    %100 = vector.shape_cast %99 : vector<20x16xf32> to vector<1x20x16xf32>
    %cst_124 = arith.constant dense<0.000000e+00> : vector<1xf32>
    %101 = vector.multi_reduction <add>, %100, %cst_124 [1, 2] : vector<1x20x16xf32> to vector<1xf32>
    %102 = vector.shape_cast %101 : vector<1xf32> to vector<1x1x1xf32>
    %103 = vector.extract %102[0, 0, 0] : f32 from vector<1x1x1xf32>
    %104 = vector.broadcast %103 : f32 to vector<1x1xf32>
    %cst_125 = arith.constant 3.906250e-03 : f32
    %105 = vector.broadcast %cst_125 : f32 to vector<1x1xf32>
    %106 = arith.mulf %104, %105 : vector<1x1xf32>
    %107 = vector.broadcast %106 : vector<1x1xf32> to vector<20x16xf32>
    %108 = arith.subf %96, %107 : vector<20x16xf32>
    %109 = vector.broadcast %97 : vector<20x1xf32> to vector<20x16xf32>
    %110 = arith.mulf %108, %109 : vector<20x16xf32>
    %111 = arith.mulf %110, %110 : vector<20x16xf32>
    %112 = vector.shape_cast %111 : vector<20x16xf32> to vector<1x20x16xf32>
    %cst_126 = arith.constant dense<0.000000e+00> : vector<1xf32>
    %113 = vector.multi_reduction <add>, %112, %cst_126 [1, 2] : vector<1x20x16xf32> to vector<1xf32>
    %114 = vector.shape_cast %113 : vector<1xf32> to vector<1x1x1xf32>
    %115 = vector.extract %114[0, 0, 0] : f32 from vector<1x1x1xf32>
    %116 = vector.broadcast %115 : f32 to vector<1x1xf32>
    %cst_127 = arith.constant 3.906250e-03 : f32
    %117 = vector.broadcast %cst_127 : f32 to vector<1x1xf32>
    %118 = arith.mulf %116, %117 : vector<1x1xf32>
    %119 = vector.broadcast %106 : vector<1x1xf32> to vector<20x16xf32>
    %120 = arith.subf %96, %119 : vector<20x16xf32>
    %cst_128 = arith.constant 9.99999974E-6 : f32
    %121 = vector.broadcast %cst_128 : f32 to vector<1x1xf32>
    %122 = arith.addf %118, %121 : vector<1x1xf32>
    %123 = math.rsqrt %122 : vector<1x1xf32>
    %124 = vector.broadcast %123 : vector<1x1xf32> to vector<20x16xf32>
    %125 = arith.mulf %120, %124 : vector<20x16xf32>
    %c0_129 = arith.constant 0 : index
    %c0_130 = arith.constant 0 : index
    %126 = vector.load %arg6[%c0_129, %c0_130] : memref<20x16xf32, #tpu.memory_space<vmem>>, vector<20x16xf32>
    %127 = arith.mulf %125, %126 : vector<20x16xf32>
    %c0_131 = arith.constant 0 : index
    %c0_132 = arith.constant 0 : index
    %128 = vector.load %arg7[%c0_131, %c0_132] : memref<20x16xf32, #tpu.memory_space<vmem>>, vector<20x16xf32>
    %129 = arith.addf %127, %128 : vector<20x16xf32>
    %cst_133 = arith.constant 0.000000e+00 : f32
    %130 = vector.broadcast %cst_133 : f32 to vector<20x16xf32>
    %131 = arith.cmpf ogt, %129, %130 : vector<20x16xf32>
    %cst_134 = arith.constant 2.000000e-01 : f32
    %132 = vector.broadcast %cst_134 : f32 to vector<20x16xf32>
    %133 = arith.mulf %132, %129 : vector<20x16xf32>
    %134 = arith.select %131, %129, %133 : vector<20x16xi1>, vector<20x16xf32>
    %135 = arith.truncf %134 : vector<20x16xf32> to vector<20x16xbf16>
    %c0_135 = arith.constant 0 : index
    %c0_136 = arith.constant 0 : index
    %c0_137 = arith.constant 0 : index
    %136 = vector.load %arg9[%c0_135, %c0_136, %c0_137] : memref<1x20x16xbf16, #tpu.memory_space<vmem>>, vector<1x20x16xbf16>
    %137 = vector.shape_cast %136 : vector<1x20x16xbf16> to vector<20x16xbf16>
    %138 = vector.shape_cast %135 : vector<20x16xbf16> to vector<1x20x16xbf16>
    tpu.vector_store %arg9[%c0_135, %c0_136, %c0_137], %138 {strides = array<i32>} : memref<1x20x16xbf16, #tpu.memory_space<vmem>>, vector<1x20x16xbf16>,
    return
  }
  func.func @transform_0(%arg0: i32) -> (i32, i32, i32) {
    %c0_i32 = arith.constant 0 : i32
    %c0_i32_0 = arith.constant 0 : i32
    %c0_i32_1 = arith.constant 0 : i32
    return %arg0, %c0_i32, %c0_i32_0 : i32, i32, i32
  }
  func.func @transform_1(%arg0: i32) -> (i32, i32, i32) {
    %c0_i32 = arith.constant 0 : i32
    %c0_i32_0 = arith.constant 0 : i32
    %c0_i32_1 = arith.constant 0 : i32
    return %arg0, %c0_i32, %c0_i32_0 : i32, i32, i32
  }
  func.func @transform_2(%arg0: i32) -> (i32, i32, i32) {
    %c0_i32 = arith.constant 0 : i32
    %c0_i32_0 = arith.constant 0 : i32
    %c0_i32_1 = arith.constant 0 : i32
    return %arg0, %c0_i32, %c0_i32_0 : i32, i32, i32
  }
  func.func @transform_3(%arg0: i32) -> (i32, i32, i32) {
    %c0_i32 = arith.constant 0 : i32
    %c0_i32_0 = arith.constant 0 : i32
    %c0_i32_1 = arith.constant 0 : i32
    return %arg0, %c0_i32, %c0_i32_0 : i32, i32, i32
  }
  func.func @transform_4(%arg0: i32) -> (i32, i32, i32, i32) {
    %c0_i32 = arith.constant 0 : i32
    %c0_i32_0 = arith.constant 0 : i32
    %c0_i32_1 = arith.constant 0 : i32
    %c0_i32_2 = arith.constant 0 : i32
    %c0_i32_3 = arith.constant 0 : i32
    return %c0_i32, %c0_i32_0, %c0_i32_1, %c0_i32_2 : i32, i32, i32, i32
  }
  func.func @transform_5(%arg0: i32) -> (i32, i32) {
    %c0_i32 = arith.constant 0 : i32
    %c0_i32_0 = arith.constant 0 : i32
    %c0_i32_1 = arith.constant 0 : i32
    return %c0_i32, %c0_i32_0 : i32, i32
  }
  func.func @transform_6(%arg0: i32) -> (i32, i32) {
    %c0_i32 = arith.constant 0 : i32
    %c0_i32_0 = arith.constant 0 : i32
    %c0_i32_1 = arith.constant 0 : i32
    return %c0_i32, %c0_i32_0 : i32, i32
  }
  func.func @transform_7(%arg0: i32) -> (i32, i32) {
    %c0_i32 = arith.constant 0 : i32
    %c0_i32_0 = arith.constant 0 : i32
    %c0_i32_1 = arith.constant 0 : i32
    return %c0_i32, %c0_i32_0 : i32, i32
  }
  func.func @transform_8(%arg0: i32) -> (i32, i32, i32) {
    %c0_i32 = arith.constant 0 : i32
    %c0_i32_0 = arith.constant 0 : i32
    %c0_i32_1 = arith.constant 0 : i32
    return %arg0, %c0_i32, %c0_i32_0 : i32, i32, i32
  }
}

module attributes {stable_mosaic.version = 11 : i64} {
  func.func @_conv_ln_lrelu_kernel(%arg0: i32, %arg1: memref<1x10x16xbf16, #tpu.memory_space<vmem>>, %arg2: memref<1x10x16xbf16, #tpu.memory_space<vmem>>, %arg3: memref<1x10x16xbf16, #tpu.memory_space<vmem>>, %arg4: memref<1x10x16xbf16, #tpu.memory_space<vmem>>, %arg5: memref<4x4x16x32xbf16, #tpu.memory_space<vmem>>, %arg6: memref<6x32xf32, #tpu.memory_space<vmem>>, %arg7: memref<6x32xf32, #tpu.memory_space<vmem>>, %arg8: memref<6x1xf32, #tpu.memory_space<vmem>>, %arg9: memref<1x6x32xbf16, #tpu.memory_space<vmem>>) attributes {dimension_semantics = [#tpu.dimension_semantics<parallel>], iteration_bounds = array<i64: 2>, scalar_prefetch = 0 : i64, scratch_operands = 0 : i64, tpu.core_type = #tpu.core_type<tc>, window_params = [{transform_indices = @transform_0, window_bounds = array<i64: 1, 10, 16>}, {transform_indices = @transform_1, window_bounds = array<i64: 1, 10, 16>}, {transform_indices = @transform_2, window_bounds = array<i64: 1, 10, 16>}, {transform_indices = @transform_3, window_bounds = array<i64: 1, 10, 16>}, {pipeline_mode = #tpu.pipeline_mode<synchronous>, transform_indices = @transform_4, window_bounds = array<i64: 4, 4, 16, 32>}, {pipeline_mode = #tpu.pipeline_mode<synchronous>, transform_indices = @transform_5, window_bounds = array<i64: 6, 32>}, {pipeline_mode = #tpu.pipeline_mode<synchronous>, transform_indices = @transform_6, window_bounds = array<i64: 6, 32>}, {pipeline_mode = #tpu.pipeline_mode<synchronous>, transform_indices = @transform_7, window_bounds = array<i64: 6, 1>}, {transform_indices = @transform_8, window_bounds = array<i64: 1, 6, 32>}]} {
    %cst = arith.constant 0.000000e+00 : f32
    %0 = vector.broadcast %cst : f32 to vector<6x32xf32>
    %c0 = arith.constant 0 : index
    %c0_0 = arith.constant 0 : index
    %c0_1 = arith.constant 0 : index
    %1 = vector.load %arg1[%c0, %c0_0, %c0_1] : memref<1x10x16xbf16, #tpu.memory_space<vmem>>, vector<1x6x16xbf16>
    %2 = vector.shape_cast %1 : vector<1x6x16xbf16> to vector<6x16xbf16>
    %c0_2 = arith.constant 0 : index
    %c0_3 = arith.constant 0 : index
    %c0_4 = arith.constant 0 : index
    %c0_5 = arith.constant 0 : index
    %3 = vector.load %arg5[%c0_2, %c0_3, %c0_4, %c0_5] : memref<4x4x16x32xbf16, #tpu.memory_space<vmem>>, vector<1x1x16x32xbf16>
    %4 = vector.shape_cast %3 : vector<1x1x16x32xbf16> to vector<16x32xbf16>
    %cst_6 = arith.constant dense<0.000000e+00> : vector<6x32xf32>
    %5 = tpu.matmul %2, %4, %cst_6 {dimension_numbers = #tpu.dot_dimension_numbers<[1], [0], [0], [1], [0, 0, 1, 1], [], []>} : vector<6x16xbf16>, vector<16x32xbf16>, vector<6x32xf32> -> vector<6x32xf32>
    %6 = arith.addf %0, %5 : vector<6x32xf32>
    %c0_7 = arith.constant 0 : index
    %c0_8 = arith.constant 0 : index
    %c0_9 = arith.constant 0 : index
    %7 = vector.load %arg2[%c0_7, %c0_8, %c0_9] : memref<1x10x16xbf16, #tpu.memory_space<vmem>>, vector<1x6x16xbf16>
    %8 = vector.shape_cast %7 : vector<1x6x16xbf16> to vector<6x16xbf16>
    %c0_10 = arith.constant 0 : index
    %c1 = arith.constant 1 : index
    %c0_11 = arith.constant 0 : index
    %c0_12 = arith.constant 0 : index
    %9 = vector.load %arg5[%c0_10, %c1, %c0_11, %c0_12] : memref<4x4x16x32xbf16, #tpu.memory_space<vmem>>, vector<1x1x16x32xbf16>
    %10 = vector.shape_cast %9 : vector<1x1x16x32xbf16> to vector<16x32xbf16>
    %cst_13 = arith.constant dense<0.000000e+00> : vector<6x32xf32>
    %11 = tpu.matmul %8, %10, %cst_13 {dimension_numbers = #tpu.dot_dimension_numbers<[1], [0], [0], [1], [0, 0, 1, 1], [], []>} : vector<6x16xbf16>, vector<16x32xbf16>, vector<6x32xf32> -> vector<6x32xf32>
    %12 = arith.addf %6, %11 : vector<6x32xf32>
    %c0_14 = arith.constant 0 : index
    %c1_15 = arith.constant 1 : index
    %c0_16 = arith.constant 0 : index
    %13 = vector.load %arg1[%c0_14, %c1_15, %c0_16] : memref<1x10x16xbf16, #tpu.memory_space<vmem>>, vector<1x6x16xbf16>
    %14 = vector.shape_cast %13 : vector<1x6x16xbf16> to vector<6x16xbf16>
    %c0_17 = arith.constant 0 : index
    %c2 = arith.constant 2 : index
    %c0_18 = arith.constant 0 : index
    %c0_19 = arith.constant 0 : index
    %15 = vector.load %arg5[%c0_17, %c2, %c0_18, %c0_19] : memref<4x4x16x32xbf16, #tpu.memory_space<vmem>>, vector<1x1x16x32xbf16>
    %16 = vector.shape_cast %15 : vector<1x1x16x32xbf16> to vector<16x32xbf16>
    %cst_20 = arith.constant dense<0.000000e+00> : vector<6x32xf32>
    %17 = tpu.matmul %14, %16, %cst_20 {dimension_numbers = #tpu.dot_dimension_numbers<[1], [0], [0], [1], [0, 0, 1, 1], [], []>} : vector<6x16xbf16>, vector<16x32xbf16>, vector<6x32xf32> -> vector<6x32xf32>
    %18 = arith.addf %12, %17 : vector<6x32xf32>
    %c0_21 = arith.constant 0 : index
    %c1_22 = arith.constant 1 : index
    %c0_23 = arith.constant 0 : index
    %19 = vector.load %arg2[%c0_21, %c1_22, %c0_23] : memref<1x10x16xbf16, #tpu.memory_space<vmem>>, vector<1x6x16xbf16>
    %20 = vector.shape_cast %19 : vector<1x6x16xbf16> to vector<6x16xbf16>
    %c0_24 = arith.constant 0 : index
    %c3 = arith.constant 3 : index
    %c0_25 = arith.constant 0 : index
    %c0_26 = arith.constant 0 : index
    %21 = vector.load %arg5[%c0_24, %c3, %c0_25, %c0_26] : memref<4x4x16x32xbf16, #tpu.memory_space<vmem>>, vector<1x1x16x32xbf16>
    %22 = vector.shape_cast %21 : vector<1x1x16x32xbf16> to vector<16x32xbf16>
    %cst_27 = arith.constant dense<0.000000e+00> : vector<6x32xf32>
    %23 = tpu.matmul %20, %22, %cst_27 {dimension_numbers = #tpu.dot_dimension_numbers<[1], [0], [0], [1], [0, 0, 1, 1], [], []>} : vector<6x16xbf16>, vector<16x32xbf16>, vector<6x32xf32> -> vector<6x32xf32>
    %24 = arith.addf %18, %23 : vector<6x32xf32>
    %c0_28 = arith.constant 0 : index
    %c0_29 = arith.constant 0 : index
    %c0_30 = arith.constant 0 : index
    %25 = vector.load %arg3[%c0_28, %c0_29, %c0_30] : memref<1x10x16xbf16, #tpu.memory_space<vmem>>, vector<1x6x16xbf16>
    %26 = vector.shape_cast %25 : vector<1x6x16xbf16> to vector<6x16xbf16>
    %c1_31 = arith.constant 1 : index
    %c0_32 = arith.constant 0 : index
    %c0_33 = arith.constant 0 : index
    %c0_34 = arith.constant 0 : index
    %27 = vector.load %arg5[%c1_31, %c0_32, %c0_33, %c0_34] : memref<4x4x16x32xbf16, #tpu.memory_space<vmem>>, vector<1x1x16x32xbf16>
    %28 = vector.shape_cast %27 : vector<1x1x16x32xbf16> to vector<16x32xbf16>
    %cst_35 = arith.constant dense<0.000000e+00> : vector<6x32xf32>
    %29 = tpu.matmul %26, %28, %cst_35 {dimension_numbers = #tpu.dot_dimension_numbers<[1], [0], [0], [1], [0, 0, 1, 1], [], []>} : vector<6x16xbf16>, vector<16x32xbf16>, vector<6x32xf32> -> vector<6x32xf32>
    %30 = arith.addf %24, %29 : vector<6x32xf32>
    %c0_36 = arith.constant 0 : index
    %c0_37 = arith.constant 0 : index
    %c0_38 = arith.constant 0 : index
    %31 = vector.load %arg4[%c0_36, %c0_37, %c0_38] : memref<1x10x16xbf16, #tpu.memory_space<vmem>>, vector<1x6x16xbf16>
    %32 = vector.shape_cast %31 : vector<1x6x16xbf16> to vector<6x16xbf16>
    %c1_39 = arith.constant 1 : index
    %c1_40 = arith.constant 1 : index
    %c0_41 = arith.constant 0 : index
    %c0_42 = arith.constant 0 : index
    %33 = vector.load %arg5[%c1_39, %c1_40, %c0_41, %c0_42] : memref<4x4x16x32xbf16, #tpu.memory_space<vmem>>, vector<1x1x16x32xbf16>
    %34 = vector.shape_cast %33 : vector<1x1x16x32xbf16> to vector<16x32xbf16>
    %cst_43 = arith.constant dense<0.000000e+00> : vector<6x32xf32>
    %35 = tpu.matmul %32, %34, %cst_43 {dimension_numbers = #tpu.dot_dimension_numbers<[1], [0], [0], [1], [0, 0, 1, 1], [], []>} : vector<6x16xbf16>, vector<16x32xbf16>, vector<6x32xf32> -> vector<6x32xf32>
    %36 = arith.addf %30, %35 : vector<6x32xf32>
    %c0_44 = arith.constant 0 : index
    %c1_45 = arith.constant 1 : index
    %c0_46 = arith.constant 0 : index
    %37 = vector.load %arg3[%c0_44, %c1_45, %c0_46] : memref<1x10x16xbf16, #tpu.memory_space<vmem>>, vector<1x6x16xbf16>
    %38 = vector.shape_cast %37 : vector<1x6x16xbf16> to vector<6x16xbf16>
    %c1_47 = arith.constant 1 : index
    %c2_48 = arith.constant 2 : index
    %c0_49 = arith.constant 0 : index
    %c0_50 = arith.constant 0 : index
    %39 = vector.load %arg5[%c1_47, %c2_48, %c0_49, %c0_50] : memref<4x4x16x32xbf16, #tpu.memory_space<vmem>>, vector<1x1x16x32xbf16>
    %40 = vector.shape_cast %39 : vector<1x1x16x32xbf16> to vector<16x32xbf16>
    %cst_51 = arith.constant dense<0.000000e+00> : vector<6x32xf32>
    %41 = tpu.matmul %38, %40, %cst_51 {dimension_numbers = #tpu.dot_dimension_numbers<[1], [0], [0], [1], [0, 0, 1, 1], [], []>} : vector<6x16xbf16>, vector<16x32xbf16>, vector<6x32xf32> -> vector<6x32xf32>
    %42 = arith.addf %36, %41 : vector<6x32xf32>
    %c0_52 = arith.constant 0 : index
    %c1_53 = arith.constant 1 : index
    %c0_54 = arith.constant 0 : index
    %43 = vector.load %arg4[%c0_52, %c1_53, %c0_54] : memref<1x10x16xbf16, #tpu.memory_space<vmem>>, vector<1x6x16xbf16>
    %44 = vector.shape_cast %43 : vector<1x6x16xbf16> to vector<6x16xbf16>
    %c1_55 = arith.constant 1 : index
    %c3_56 = arith.constant 3 : index
    %c0_57 = arith.constant 0 : index
    %c0_58 = arith.constant 0 : index
    %45 = vector.load %arg5[%c1_55, %c3_56, %c0_57, %c0_58] : memref<4x4x16x32xbf16, #tpu.memory_space<vmem>>, vector<1x1x16x32xbf16>
    %46 = vector.shape_cast %45 : vector<1x1x16x32xbf16> to vector<16x32xbf16>
    %cst_59 = arith.constant dense<0.000000e+00> : vector<6x32xf32>
    %47 = tpu.matmul %44, %46, %cst_59 {dimension_numbers = #tpu.dot_dimension_numbers<[1], [0], [0], [1], [0, 0, 1, 1], [], []>} : vector<6x16xbf16>, vector<16x32xbf16>, vector<6x32xf32> -> vector<6x32xf32>
    %48 = arith.addf %42, %47 : vector<6x32xf32>
    %c0_60 = arith.constant 0 : index
    %c3_61 = arith.constant 3 : index
    %c0_62 = arith.constant 0 : index
    %49 = vector.load %arg1[%c0_60, %c3_61, %c0_62] : memref<1x10x16xbf16, #tpu.memory_space<vmem>>, vector<1x6x16xbf16>
    %50 = vector.shape_cast %49 : vector<1x6x16xbf16> to vector<6x16xbf16>
    %c2_63 = arith.constant 2 : index
    %c0_64 = arith.constant 0 : index
    %c0_65 = arith.constant 0 : index
    %c0_66 = arith.constant 0 : index
    %51 = vector.load %arg5[%c2_63, %c0_64, %c0_65, %c0_66] : memref<4x4x16x32xbf16, #tpu.memory_space<vmem>>, vector<1x1x16x32xbf16>
    %52 = vector.shape_cast %51 : vector<1x1x16x32xbf16> to vector<16x32xbf16>
    %cst_67 = arith.constant dense<0.000000e+00> : vector<6x32xf32>
    %53 = tpu.matmul %50, %52, %cst_67 {dimension_numbers = #tpu.dot_dimension_numbers<[1], [0], [0], [1], [0, 0, 1, 1], [], []>} : vector<6x16xbf16>, vector<16x32xbf16>, vector<6x32xf32> -> vector<6x32xf32>
    %54 = arith.addf %48, %53 : vector<6x32xf32>
    %c0_68 = arith.constant 0 : index
    %c3_69 = arith.constant 3 : index
    %c0_70 = arith.constant 0 : index
    %55 = vector.load %arg2[%c0_68, %c3_69, %c0_70] : memref<1x10x16xbf16, #tpu.memory_space<vmem>>, vector<1x6x16xbf16>
    %56 = vector.shape_cast %55 : vector<1x6x16xbf16> to vector<6x16xbf16>
    %c2_71 = arith.constant 2 : index
    %c1_72 = arith.constant 1 : index
    %c0_73 = arith.constant 0 : index
    %c0_74 = arith.constant 0 : index
    %57 = vector.load %arg5[%c2_71, %c1_72, %c0_73, %c0_74] : memref<4x4x16x32xbf16, #tpu.memory_space<vmem>>, vector<1x1x16x32xbf16>
    %58 = vector.shape_cast %57 : vector<1x1x16x32xbf16> to vector<16x32xbf16>
    %cst_75 = arith.constant dense<0.000000e+00> : vector<6x32xf32>
    %59 = tpu.matmul %56, %58, %cst_75 {dimension_numbers = #tpu.dot_dimension_numbers<[1], [0], [0], [1], [0, 0, 1, 1], [], []>} : vector<6x16xbf16>, vector<16x32xbf16>, vector<6x32xf32> -> vector<6x32xf32>
    %60 = arith.addf %54, %59 : vector<6x32xf32>
    %c0_76 = arith.constant 0 : index
    %c4 = arith.constant 4 : index
    %c0_77 = arith.constant 0 : index
    %61 = vector.load %arg1[%c0_76, %c4, %c0_77] : memref<1x10x16xbf16, #tpu.memory_space<vmem>>, vector<1x6x16xbf16>
    %62 = vector.shape_cast %61 : vector<1x6x16xbf16> to vector<6x16xbf16>
    %c2_78 = arith.constant 2 : index
    %c2_79 = arith.constant 2 : index
    %c0_80 = arith.constant 0 : index
    %c0_81 = arith.constant 0 : index
    %63 = vector.load %arg5[%c2_78, %c2_79, %c0_80, %c0_81] : memref<4x4x16x32xbf16, #tpu.memory_space<vmem>>, vector<1x1x16x32xbf16>
    %64 = vector.shape_cast %63 : vector<1x1x16x32xbf16> to vector<16x32xbf16>
    %cst_82 = arith.constant dense<0.000000e+00> : vector<6x32xf32>
    %65 = tpu.matmul %62, %64, %cst_82 {dimension_numbers = #tpu.dot_dimension_numbers<[1], [0], [0], [1], [0, 0, 1, 1], [], []>} : vector<6x16xbf16>, vector<16x32xbf16>, vector<6x32xf32> -> vector<6x32xf32>
    %66 = arith.addf %60, %65 : vector<6x32xf32>
    %c0_83 = arith.constant 0 : index
    %c4_84 = arith.constant 4 : index
    %c0_85 = arith.constant 0 : index
    %67 = vector.load %arg2[%c0_83, %c4_84, %c0_85] : memref<1x10x16xbf16, #tpu.memory_space<vmem>>, vector<1x6x16xbf16>
    %68 = vector.shape_cast %67 : vector<1x6x16xbf16> to vector<6x16xbf16>
    %c2_86 = arith.constant 2 : index
    %c3_87 = arith.constant 3 : index
    %c0_88 = arith.constant 0 : index
    %c0_89 = arith.constant 0 : index
    %69 = vector.load %arg5[%c2_86, %c3_87, %c0_88, %c0_89] : memref<4x4x16x32xbf16, #tpu.memory_space<vmem>>, vector<1x1x16x32xbf16>
    %70 = vector.shape_cast %69 : vector<1x1x16x32xbf16> to vector<16x32xbf16>
    %cst_90 = arith.constant dense<0.000000e+00> : vector<6x32xf32>
    %71 = tpu.matmul %68, %70, %cst_90 {dimension_numbers = #tpu.dot_dimension_numbers<[1], [0], [0], [1], [0, 0, 1, 1], [], []>} : vector<6x16xbf16>, vector<16x32xbf16>, vector<6x32xf32> -> vector<6x32xf32>
    %72 = arith.addf %66, %71 : vector<6x32xf32>
    %c0_91 = arith.constant 0 : index
    %c3_92 = arith.constant 3 : index
    %c0_93 = arith.constant 0 : index
    %73 = vector.load %arg3[%c0_91, %c3_92, %c0_93] : memref<1x10x16xbf16, #tpu.memory_space<vmem>>, vector<1x6x16xbf16>
    %74 = vector.shape_cast %73 : vector<1x6x16xbf16> to vector<6x16xbf16>
    %c3_94 = arith.constant 3 : index
    %c0_95 = arith.constant 0 : index
    %c0_96 = arith.constant 0 : index
    %c0_97 = arith.constant 0 : index
    %75 = vector.load %arg5[%c3_94, %c0_95, %c0_96, %c0_97] : memref<4x4x16x32xbf16, #tpu.memory_space<vmem>>, vector<1x1x16x32xbf16>
    %76 = vector.shape_cast %75 : vector<1x1x16x32xbf16> to vector<16x32xbf16>
    %cst_98 = arith.constant dense<0.000000e+00> : vector<6x32xf32>
    %77 = tpu.matmul %74, %76, %cst_98 {dimension_numbers = #tpu.dot_dimension_numbers<[1], [0], [0], [1], [0, 0, 1, 1], [], []>} : vector<6x16xbf16>, vector<16x32xbf16>, vector<6x32xf32> -> vector<6x32xf32>
    %78 = arith.addf %72, %77 : vector<6x32xf32>
    %c0_99 = arith.constant 0 : index
    %c3_100 = arith.constant 3 : index
    %c0_101 = arith.constant 0 : index
    %79 = vector.load %arg4[%c0_99, %c3_100, %c0_101] : memref<1x10x16xbf16, #tpu.memory_space<vmem>>, vector<1x6x16xbf16>
    %80 = vector.shape_cast %79 : vector<1x6x16xbf16> to vector<6x16xbf16>
    %c3_102 = arith.constant 3 : index
    %c1_103 = arith.constant 1 : index
    %c0_104 = arith.constant 0 : index
    %c0_105 = arith.constant 0 : index
    %81 = vector.load %arg5[%c3_102, %c1_103, %c0_104, %c0_105] : memref<4x4x16x32xbf16, #tpu.memory_space<vmem>>, vector<1x1x16x32xbf16>
    %82 = vector.shape_cast %81 : vector<1x1x16x32xbf16> to vector<16x32xbf16>
    %cst_106 = arith.constant dense<0.000000e+00> : vector<6x32xf32>
    %83 = tpu.matmul %80, %82, %cst_106 {dimension_numbers = #tpu.dot_dimension_numbers<[1], [0], [0], [1], [0, 0, 1, 1], [], []>} : vector<6x16xbf16>, vector<16x32xbf16>, vector<6x32xf32> -> vector<6x32xf32>
    %84 = arith.addf %78, %83 : vector<6x32xf32>
    %c0_107 = arith.constant 0 : index
    %c4_108 = arith.constant 4 : index
    %c0_109 = arith.constant 0 : index
    %85 = vector.load %arg3[%c0_107, %c4_108, %c0_109] : memref<1x10x16xbf16, #tpu.memory_space<vmem>>, vector<1x6x16xbf16>
    %86 = vector.shape_cast %85 : vector<1x6x16xbf16> to vector<6x16xbf16>
    %c3_110 = arith.constant 3 : index
    %c2_111 = arith.constant 2 : index
    %c0_112 = arith.constant 0 : index
    %c0_113 = arith.constant 0 : index
    %87 = vector.load %arg5[%c3_110, %c2_111, %c0_112, %c0_113] : memref<4x4x16x32xbf16, #tpu.memory_space<vmem>>, vector<1x1x16x32xbf16>
    %88 = vector.shape_cast %87 : vector<1x1x16x32xbf16> to vector<16x32xbf16>
    %cst_114 = arith.constant dense<0.000000e+00> : vector<6x32xf32>
    %89 = tpu.matmul %86, %88, %cst_114 {dimension_numbers = #tpu.dot_dimension_numbers<[1], [0], [0], [1], [0, 0, 1, 1], [], []>} : vector<6x16xbf16>, vector<16x32xbf16>, vector<6x32xf32> -> vector<6x32xf32>
    %90 = arith.addf %84, %89 : vector<6x32xf32>
    %c0_115 = arith.constant 0 : index
    %c4_116 = arith.constant 4 : index
    %c0_117 = arith.constant 0 : index
    %91 = vector.load %arg4[%c0_115, %c4_116, %c0_117] : memref<1x10x16xbf16, #tpu.memory_space<vmem>>, vector<1x6x16xbf16>
    %92 = vector.shape_cast %91 : vector<1x6x16xbf16> to vector<6x16xbf16>
    %c3_118 = arith.constant 3 : index
    %c3_119 = arith.constant 3 : index
    %c0_120 = arith.constant 0 : index
    %c0_121 = arith.constant 0 : index
    %93 = vector.load %arg5[%c3_118, %c3_119, %c0_120, %c0_121] : memref<4x4x16x32xbf16, #tpu.memory_space<vmem>>, vector<1x1x16x32xbf16>
    %94 = vector.shape_cast %93 : vector<1x1x16x32xbf16> to vector<16x32xbf16>
    %cst_122 = arith.constant dense<0.000000e+00> : vector<6x32xf32>
    %95 = tpu.matmul %92, %94, %cst_122 {dimension_numbers = #tpu.dot_dimension_numbers<[1], [0], [0], [1], [0, 0, 1, 1], [], []>} : vector<6x16xbf16>, vector<16x32xbf16>, vector<6x32xf32> -> vector<6x32xf32>
    %96 = arith.addf %90, %95 : vector<6x32xf32>
    %c0_123 = arith.constant 0 : index
    %c0_124 = arith.constant 0 : index
    %97 = vector.load %arg8[%c0_123, %c0_124] : memref<6x1xf32, #tpu.memory_space<vmem>>, vector<6x1xf32>
    %98 = vector.broadcast %97 : vector<6x1xf32> to vector<6x32xf32>
    %99 = arith.mulf %96, %98 : vector<6x32xf32>
    %100 = vector.shape_cast %99 : vector<6x32xf32> to vector<1x6x32xf32>
    %cst_125 = arith.constant dense<0.000000e+00> : vector<1xf32>
    %101 = vector.multi_reduction <add>, %100, %cst_125 [1, 2] : vector<1x6x32xf32> to vector<1xf32>
    %102 = vector.shape_cast %101 : vector<1xf32> to vector<1x1x1xf32>
    %103 = vector.extract %102[0, 0, 0] : f32 from vector<1x1x1xf32>
    %104 = vector.broadcast %103 : f32 to vector<1x1xf32>
    %cst_126 = arith.constant 7.812500e-03 : f32
    %105 = vector.broadcast %cst_126 : f32 to vector<1x1xf32>
    %106 = arith.mulf %104, %105 : vector<1x1xf32>
    %107 = vector.broadcast %106 : vector<1x1xf32> to vector<6x32xf32>
    %108 = arith.subf %96, %107 : vector<6x32xf32>
    %109 = vector.broadcast %97 : vector<6x1xf32> to vector<6x32xf32>
    %110 = arith.mulf %108, %109 : vector<6x32xf32>
    %111 = arith.mulf %110, %110 : vector<6x32xf32>
    %112 = vector.shape_cast %111 : vector<6x32xf32> to vector<1x6x32xf32>
    %cst_127 = arith.constant dense<0.000000e+00> : vector<1xf32>
    %113 = vector.multi_reduction <add>, %112, %cst_127 [1, 2] : vector<1x6x32xf32> to vector<1xf32>
    %114 = vector.shape_cast %113 : vector<1xf32> to vector<1x1x1xf32>
    %115 = vector.extract %114[0, 0, 0] : f32 from vector<1x1x1xf32>
    %116 = vector.broadcast %115 : f32 to vector<1x1xf32>
    %cst_128 = arith.constant 7.812500e-03 : f32
    %117 = vector.broadcast %cst_128 : f32 to vector<1x1xf32>
    %118 = arith.mulf %116, %117 : vector<1x1xf32>
    %119 = vector.broadcast %106 : vector<1x1xf32> to vector<6x32xf32>
    %120 = arith.subf %96, %119 : vector<6x32xf32>
    %cst_129 = arith.constant 9.99999974E-6 : f32
    %121 = vector.broadcast %cst_129 : f32 to vector<1x1xf32>
    %122 = arith.addf %118, %121 : vector<1x1xf32>
    %123 = math.rsqrt %122 : vector<1x1xf32>
    %124 = vector.broadcast %123 : vector<1x1xf32> to vector<6x32xf32>
    %125 = arith.mulf %120, %124 : vector<6x32xf32>
    %c0_130 = arith.constant 0 : index
    %c0_131 = arith.constant 0 : index
    %126 = vector.load %arg6[%c0_130, %c0_131] : memref<6x32xf32, #tpu.memory_space<vmem>>, vector<6x32xf32>
    %127 = arith.mulf %125, %126 : vector<6x32xf32>
    %c0_132 = arith.constant 0 : index
    %c0_133 = arith.constant 0 : index
    %128 = vector.load %arg7[%c0_132, %c0_133] : memref<6x32xf32, #tpu.memory_space<vmem>>, vector<6x32xf32>
    %129 = arith.addf %127, %128 : vector<6x32xf32>
    %cst_134 = arith.constant 0.000000e+00 : f32
    %130 = vector.broadcast %cst_134 : f32 to vector<6x32xf32>
    %131 = arith.cmpf ogt, %129, %130 : vector<6x32xf32>
    %cst_135 = arith.constant 2.000000e-01 : f32
    %132 = vector.broadcast %cst_135 : f32 to vector<6x32xf32>
    %133 = arith.mulf %132, %129 : vector<6x32xf32>
    %134 = arith.select %131, %129, %133 : vector<6x32xi1>, vector<6x32xf32>
    %135 = arith.truncf %134 : vector<6x32xf32> to vector<6x32xbf16>
    %c0_136 = arith.constant 0 : index
    %c0_137 = arith.constant 0 : index
    %c0_138 = arith.constant 0 : index
    %136 = vector.load %arg9[%c0_136, %c0_137, %c0_138] : memref<1x6x32xbf16, #tpu.memory_space<vmem>>, vector<1x6x32xbf16>
    %137 = vector.shape_cast %136 : vector<1x6x32xbf16> to vector<6x32xbf16>
    %138 = vector.shape_cast %135 : vector<6x32xbf16> to vector<1x6x32xbf16>
    tpu.vector_store %arg9[%c0_136, %c0_137, %c0_138], %138 {strides = array<i32>} : memref<1x6x32xbf16, #tpu.memory_space<vmem>>, vector<1x6x32xbf16>,
    return
  }
  func.func @transform_0(%arg0: i32) -> (i32, i32, i32) {
    %c0_i32 = arith.constant 0 : i32
    %c0_i32_0 = arith.constant 0 : i32
    %c0_i32_1 = arith.constant 0 : i32
    return %arg0, %c0_i32, %c0_i32_0 : i32, i32, i32
  }
  func.func @transform_1(%arg0: i32) -> (i32, i32, i32) {
    %c0_i32 = arith.constant 0 : i32
    %c0_i32_0 = arith.constant 0 : i32
    %c0_i32_1 = arith.constant 0 : i32
    return %arg0, %c0_i32, %c0_i32_0 : i32, i32, i32
  }
  func.func @transform_2(%arg0: i32) -> (i32, i32, i32) {
    %c0_i32 = arith.constant 0 : i32
    %c0_i32_0 = arith.constant 0 : i32
    %c0_i32_1 = arith.constant 0 : i32
    return %arg0, %c0_i32, %c0_i32_0 : i32, i32, i32
  }
  func.func @transform_3(%arg0: i32) -> (i32, i32, i32) {
    %c0_i32 = arith.constant 0 : i32
    %c0_i32_0 = arith.constant 0 : i32
    %c0_i32_1 = arith.constant 0 : i32
    return %arg0, %c0_i32, %c0_i32_0 : i32, i32, i32
  }
  func.func @transform_4(%arg0: i32) -> (i32, i32, i32, i32) {
    %c0_i32 = arith.constant 0 : i32
    %c0_i32_0 = arith.constant 0 : i32
    %c0_i32_1 = arith.constant 0 : i32
    %c0_i32_2 = arith.constant 0 : i32
    %c0_i32_3 = arith.constant 0 : i32
    return %c0_i32, %c0_i32_0, %c0_i32_1, %c0_i32_2 : i32, i32, i32, i32
  }
  func.func @transform_5(%arg0: i32) -> (i32, i32) {
    %c0_i32 = arith.constant 0 : i32
    %c0_i32_0 = arith.constant 0 : i32
    %c0_i32_1 = arith.constant 0 : i32
    return %c0_i32, %c0_i32_0 : i32, i32
  }
  func.func @transform_6(%arg0: i32) -> (i32, i32) {
    %c0_i32 = arith.constant 0 : i32
    %c0_i32_0 = arith.constant 0 : i32
    %c0_i32_1 = arith.constant 0 : i32
    return %c0_i32, %c0_i32_0 : i32, i32
  }
  func.func @transform_7(%arg0: i32) -> (i32, i32) {
    %c0_i32 = arith.constant 0 : i32
    %c0_i32_0 = arith.constant 0 : i32
    %c0_i32_1 = arith.constant 0 : i32
    return %c0_i32, %c0_i32_0 : i32, i32
  }
  func.func @transform_8(%arg0: i32) -> (i32, i32, i32) {
    %c0_i32 = arith.constant 0 : i32
    %c0_i32_0 = arith.constant 0 : i32
    %c0_i32_1 = arith.constant 0 : i32
    return %arg0, %c0_i32, %c0_i32_0 : i32, i32, i32
  }
}

module attributes {stable_mosaic.version = 11 : i64} {
  func.func @_conv_ln_lrelu_kernel(%arg0: i32, %arg1: memref<1x5x32xbf16, #tpu.memory_space<vmem>>, %arg2: memref<1x5x32xbf16, #tpu.memory_space<vmem>>, %arg3: memref<1x5x32xbf16, #tpu.memory_space<vmem>>, %arg4: memref<1x5x32xbf16, #tpu.memory_space<vmem>>, %arg5: memref<4x4x32x64xbf16, #tpu.memory_space<vmem>>, %arg6: memref<2x64xf32, #tpu.memory_space<vmem>>, %arg7: memref<2x64xf32, #tpu.memory_space<vmem>>, %arg8: memref<2x1xf32, #tpu.memory_space<vmem>>, %arg9: memref<1x2x64xbf16, #tpu.memory_space<vmem>>) attributes {dimension_semantics = [#tpu.dimension_semantics<parallel>], iteration_bounds = array<i64: 2>, scalar_prefetch = 0 : i64, scratch_operands = 0 : i64, tpu.core_type = #tpu.core_type<tc>, window_params = [{transform_indices = @transform_0, window_bounds = array<i64: 1, 5, 32>}, {transform_indices = @transform_1, window_bounds = array<i64: 1, 5, 32>}, {transform_indices = @transform_2, window_bounds = array<i64: 1, 5, 32>}, {transform_indices = @transform_3, window_bounds = array<i64: 1, 5, 32>}, {pipeline_mode = #tpu.pipeline_mode<synchronous>, transform_indices = @transform_4, window_bounds = array<i64: 4, 4, 32, 64>}, {pipeline_mode = #tpu.pipeline_mode<synchronous>, transform_indices = @transform_5, window_bounds = array<i64: 2, 64>}, {pipeline_mode = #tpu.pipeline_mode<synchronous>, transform_indices = @transform_6, window_bounds = array<i64: 2, 64>}, {pipeline_mode = #tpu.pipeline_mode<synchronous>, transform_indices = @transform_7, window_bounds = array<i64: 2, 1>}, {transform_indices = @transform_8, window_bounds = array<i64: 1, 2, 64>}]} {
    %cst = arith.constant 0.000000e+00 : f32
    %0 = vector.broadcast %cst : f32 to vector<2x64xf32>
    %c0 = arith.constant 0 : index
    %c0_0 = arith.constant 0 : index
    %c0_1 = arith.constant 0 : index
    %1 = vector.load %arg1[%c0, %c0_0, %c0_1] : memref<1x5x32xbf16, #tpu.memory_space<vmem>>, vector<1x2x32xbf16>
    %2 = vector.shape_cast %1 : vector<1x2x32xbf16> to vector<2x32xbf16>
    %c0_2 = arith.constant 0 : index
    %c0_3 = arith.constant 0 : index
    %c0_4 = arith.constant 0 : index
    %c0_5 = arith.constant 0 : index
    %3 = vector.load %arg5[%c0_2, %c0_3, %c0_4, %c0_5] : memref<4x4x32x64xbf16, #tpu.memory_space<vmem>>, vector<1x1x32x64xbf16>
    %4 = vector.shape_cast %3 : vector<1x1x32x64xbf16> to vector<32x64xbf16>
    %cst_6 = arith.constant dense<0.000000e+00> : vector<2x64xf32>
    %5 = tpu.matmul %2, %4, %cst_6 {dimension_numbers = #tpu.dot_dimension_numbers<[1], [0], [0], [1], [0, 0, 1, 1], [], []>} : vector<2x32xbf16>, vector<32x64xbf16>, vector<2x64xf32> -> vector<2x64xf32>
    %6 = arith.addf %0, %5 : vector<2x64xf32>
    %c0_7 = arith.constant 0 : index
    %c0_8 = arith.constant 0 : index
    %c0_9 = arith.constant 0 : index
    %7 = vector.load %arg2[%c0_7, %c0_8, %c0_9] : memref<1x5x32xbf16, #tpu.memory_space<vmem>>, vector<1x2x32xbf16>
    %8 = vector.shape_cast %7 : vector<1x2x32xbf16> to vector<2x32xbf16>
    %c0_10 = arith.constant 0 : index
    %c1 = arith.constant 1 : index
    %c0_11 = arith.constant 0 : index
    %c0_12 = arith.constant 0 : index
    %9 = vector.load %arg5[%c0_10, %c1, %c0_11, %c0_12] : memref<4x4x32x64xbf16, #tpu.memory_space<vmem>>, vector<1x1x32x64xbf16>
    %10 = vector.shape_cast %9 : vector<1x1x32x64xbf16> to vector<32x64xbf16>
    %cst_13 = arith.constant dense<0.000000e+00> : vector<2x64xf32>
    %11 = tpu.matmul %8, %10, %cst_13 {dimension_numbers = #tpu.dot_dimension_numbers<[1], [0], [0], [1], [0, 0, 1, 1], [], []>} : vector<2x32xbf16>, vector<32x64xbf16>, vector<2x64xf32> -> vector<2x64xf32>
    %12 = arith.addf %6, %11 : vector<2x64xf32>
    %c0_14 = arith.constant 0 : index
    %c1_15 = arith.constant 1 : index
    %c0_16 = arith.constant 0 : index
    %13 = vector.load %arg1[%c0_14, %c1_15, %c0_16] : memref<1x5x32xbf16, #tpu.memory_space<vmem>>, vector<1x2x32xbf16>
    %14 = vector.shape_cast %13 : vector<1x2x32xbf16> to vector<2x32xbf16>
    %c0_17 = arith.constant 0 : index
    %c2 = arith.constant 2 : index
    %c0_18 = arith.constant 0 : index
    %c0_19 = arith.constant 0 : index
    %15 = vector.load %arg5[%c0_17, %c2, %c0_18, %c0_19] : memref<4x4x32x64xbf16, #tpu.memory_space<vmem>>, vector<1x1x32x64xbf16>
    %16 = vector.shape_cast %15 : vector<1x1x32x64xbf16> to vector<32x64xbf16>
    %cst_20 = arith.constant dense<0.000000e+00> : vector<2x64xf32>
    %17 = tpu.matmul %14, %16, %cst_20 {dimension_numbers = #tpu.dot_dimension_numbers<[1], [0], [0], [1], [0, 0, 1, 1], [], []>} : vector<2x32xbf16>, vector<32x64xbf16>, vector<2x64xf32> -> vector<2x64xf32>
    %18 = arith.addf %12, %17 : vector<2x64xf32>
    %c0_21 = arith.constant 0 : index
    %c1_22 = arith.constant 1 : index
    %c0_23 = arith.constant 0 : index
    %19 = vector.load %arg2[%c0_21, %c1_22, %c0_23] : memref<1x5x32xbf16, #tpu.memory_space<vmem>>, vector<1x2x32xbf16>
    %20 = vector.shape_cast %19 : vector<1x2x32xbf16> to vector<2x32xbf16>
    %c0_24 = arith.constant 0 : index
    %c3 = arith.constant 3 : index
    %c0_25 = arith.constant 0 : index
    %c0_26 = arith.constant 0 : index
    %21 = vector.load %arg5[%c0_24, %c3, %c0_25, %c0_26] : memref<4x4x32x64xbf16, #tpu.memory_space<vmem>>, vector<1x1x32x64xbf16>
    %22 = vector.shape_cast %21 : vector<1x1x32x64xbf16> to vector<32x64xbf16>
    %cst_27 = arith.constant dense<0.000000e+00> : vector<2x64xf32>
    %23 = tpu.matmul %20, %22, %cst_27 {dimension_numbers = #tpu.dot_dimension_numbers<[1], [0], [0], [1], [0, 0, 1, 1], [], []>} : vector<2x32xbf16>, vector<32x64xbf16>, vector<2x64xf32> -> vector<2x64xf32>
    %24 = arith.addf %18, %23 : vector<2x64xf32>
    %c0_28 = arith.constant 0 : index
    %c0_29 = arith.constant 0 : index
    %c0_30 = arith.constant 0 : index
    %25 = vector.load %arg3[%c0_28, %c0_29, %c0_30] : memref<1x5x32xbf16, #tpu.memory_space<vmem>>, vector<1x2x32xbf16>
    %26 = vector.shape_cast %25 : vector<1x2x32xbf16> to vector<2x32xbf16>
    %c1_31 = arith.constant 1 : index
    %c0_32 = arith.constant 0 : index
    %c0_33 = arith.constant 0 : index
    %c0_34 = arith.constant 0 : index
    %27 = vector.load %arg5[%c1_31, %c0_32, %c0_33, %c0_34] : memref<4x4x32x64xbf16, #tpu.memory_space<vmem>>, vector<1x1x32x64xbf16>
    %28 = vector.shape_cast %27 : vector<1x1x32x64xbf16> to vector<32x64xbf16>
    %cst_35 = arith.constant dense<0.000000e+00> : vector<2x64xf32>
    %29 = tpu.matmul %26, %28, %cst_35 {dimension_numbers = #tpu.dot_dimension_numbers<[1], [0], [0], [1], [0, 0, 1, 1], [], []>} : vector<2x32xbf16>, vector<32x64xbf16>, vector<2x64xf32> -> vector<2x64xf32>
    %30 = arith.addf %24, %29 : vector<2x64xf32>
    %c0_36 = arith.constant 0 : index
    %c0_37 = arith.constant 0 : index
    %c0_38 = arith.constant 0 : index
    %31 = vector.load %arg4[%c0_36, %c0_37, %c0_38] : memref<1x5x32xbf16, #tpu.memory_space<vmem>>, vector<1x2x32xbf16>
    %32 = vector.shape_cast %31 : vector<1x2x32xbf16> to vector<2x32xbf16>
    %c1_39 = arith.constant 1 : index
    %c1_40 = arith.constant 1 : index
    %c0_41 = arith.constant 0 : index
    %c0_42 = arith.constant 0 : index
    %33 = vector.load %arg5[%c1_39, %c1_40, %c0_41, %c0_42] : memref<4x4x32x64xbf16, #tpu.memory_space<vmem>>, vector<1x1x32x64xbf16>
    %34 = vector.shape_cast %33 : vector<1x1x32x64xbf16> to vector<32x64xbf16>
    %cst_43 = arith.constant dense<0.000000e+00> : vector<2x64xf32>
    %35 = tpu.matmul %32, %34, %cst_43 {dimension_numbers = #tpu.dot_dimension_numbers<[1], [0], [0], [1], [0, 0, 1, 1], [], []>} : vector<2x32xbf16>, vector<32x64xbf16>, vector<2x64xf32> -> vector<2x64xf32>
    %36 = arith.addf %30, %35 : vector<2x64xf32>
    %c0_44 = arith.constant 0 : index
    %c1_45 = arith.constant 1 : index
    %c0_46 = arith.constant 0 : index
    %37 = vector.load %arg3[%c0_44, %c1_45, %c0_46] : memref<1x5x32xbf16, #tpu.memory_space<vmem>>, vector<1x2x32xbf16>
    %38 = vector.shape_cast %37 : vector<1x2x32xbf16> to vector<2x32xbf16>
    %c1_47 = arith.constant 1 : index
    %c2_48 = arith.constant 2 : index
    %c0_49 = arith.constant 0 : index
    %c0_50 = arith.constant 0 : index
    %39 = vector.load %arg5[%c1_47, %c2_48, %c0_49, %c0_50] : memref<4x4x32x64xbf16, #tpu.memory_space<vmem>>, vector<1x1x32x64xbf16>
    %40 = vector.shape_cast %39 : vector<1x1x32x64xbf16> to vector<32x64xbf16>
    %cst_51 = arith.constant dense<0.000000e+00> : vector<2x64xf32>
    %41 = tpu.matmul %38, %40, %cst_51 {dimension_numbers = #tpu.dot_dimension_numbers<[1], [0], [0], [1], [0, 0, 1, 1], [], []>} : vector<2x32xbf16>, vector<32x64xbf16>, vector<2x64xf32> -> vector<2x64xf32>
    %42 = arith.addf %36, %41 : vector<2x64xf32>
    %c0_52 = arith.constant 0 : index
    %c1_53 = arith.constant 1 : index
    %c0_54 = arith.constant 0 : index
    %43 = vector.load %arg4[%c0_52, %c1_53, %c0_54] : memref<1x5x32xbf16, #tpu.memory_space<vmem>>, vector<1x2x32xbf16>
    %44 = vector.shape_cast %43 : vector<1x2x32xbf16> to vector<2x32xbf16>
    %c1_55 = arith.constant 1 : index
    %c3_56 = arith.constant 3 : index
    %c0_57 = arith.constant 0 : index
    %c0_58 = arith.constant 0 : index
    %45 = vector.load %arg5[%c1_55, %c3_56, %c0_57, %c0_58] : memref<4x4x32x64xbf16, #tpu.memory_space<vmem>>, vector<1x1x32x64xbf16>
    %46 = vector.shape_cast %45 : vector<1x1x32x64xbf16> to vector<32x64xbf16>
    %cst_59 = arith.constant dense<0.000000e+00> : vector<2x64xf32>
    %47 = tpu.matmul %44, %46, %cst_59 {dimension_numbers = #tpu.dot_dimension_numbers<[1], [0], [0], [1], [0, 0, 1, 1], [], []>} : vector<2x32xbf16>, vector<32x64xbf16>, vector<2x64xf32> -> vector<2x64xf32>
    %48 = arith.addf %42, %47 : vector<2x64xf32>
    %c0_60 = arith.constant 0 : index
    %c2_61 = arith.constant 2 : index
    %c0_62 = arith.constant 0 : index
    %49 = vector.load %arg1[%c0_60, %c2_61, %c0_62] : memref<1x5x32xbf16, #tpu.memory_space<vmem>>, vector<1x2x32xbf16>
    %50 = vector.shape_cast %49 : vector<1x2x32xbf16> to vector<2x32xbf16>
    %c2_63 = arith.constant 2 : index
    %c0_64 = arith.constant 0 : index
    %c0_65 = arith.constant 0 : index
    %c0_66 = arith.constant 0 : index
    %51 = vector.load %arg5[%c2_63, %c0_64, %c0_65, %c0_66] : memref<4x4x32x64xbf16, #tpu.memory_space<vmem>>, vector<1x1x32x64xbf16>
    %52 = vector.shape_cast %51 : vector<1x1x32x64xbf16> to vector<32x64xbf16>
    %cst_67 = arith.constant dense<0.000000e+00> : vector<2x64xf32>
    %53 = tpu.matmul %50, %52, %cst_67 {dimension_numbers = #tpu.dot_dimension_numbers<[1], [0], [0], [1], [0, 0, 1, 1], [], []>} : vector<2x32xbf16>, vector<32x64xbf16>, vector<2x64xf32> -> vector<2x64xf32>
    %54 = arith.addf %48, %53 : vector<2x64xf32>
    %c0_68 = arith.constant 0 : index
    %c2_69 = arith.constant 2 : index
    %c0_70 = arith.constant 0 : index
    %55 = vector.load %arg2[%c0_68, %c2_69, %c0_70] : memref<1x5x32xbf16, #tpu.memory_space<vmem>>, vector<1x2x32xbf16>
    %56 = vector.shape_cast %55 : vector<1x2x32xbf16> to vector<2x32xbf16>
    %c2_71 = arith.constant 2 : index
    %c1_72 = arith.constant 1 : index
    %c0_73 = arith.constant 0 : index
    %c0_74 = arith.constant 0 : index
    %57 = vector.load %arg5[%c2_71, %c1_72, %c0_73, %c0_74] : memref<4x4x32x64xbf16, #tpu.memory_space<vmem>>, vector<1x1x32x64xbf16>
    %58 = vector.shape_cast %57 : vector<1x1x32x64xbf16> to vector<32x64xbf16>
    %cst_75 = arith.constant dense<0.000000e+00> : vector<2x64xf32>
    %59 = tpu.matmul %56, %58, %cst_75 {dimension_numbers = #tpu.dot_dimension_numbers<[1], [0], [0], [1], [0, 0, 1, 1], [], []>} : vector<2x32xbf16>, vector<32x64xbf16>, vector<2x64xf32> -> vector<2x64xf32>
    %60 = arith.addf %54, %59 : vector<2x64xf32>
    %c0_76 = arith.constant 0 : index
    %c3_77 = arith.constant 3 : index
    %c0_78 = arith.constant 0 : index
    %61 = vector.load %arg1[%c0_76, %c3_77, %c0_78] : memref<1x5x32xbf16, #tpu.memory_space<vmem>>, vector<1x2x32xbf16>
    %62 = vector.shape_cast %61 : vector<1x2x32xbf16> to vector<2x32xbf16>
    %c2_79 = arith.constant 2 : index
    %c2_80 = arith.constant 2 : index
    %c0_81 = arith.constant 0 : index
    %c0_82 = arith.constant 0 : index
    %63 = vector.load %arg5[%c2_79, %c2_80, %c0_81, %c0_82] : memref<4x4x32x64xbf16, #tpu.memory_space<vmem>>, vector<1x1x32x64xbf16>
    %64 = vector.shape_cast %63 : vector<1x1x32x64xbf16> to vector<32x64xbf16>
    %cst_83 = arith.constant dense<0.000000e+00> : vector<2x64xf32>
    %65 = tpu.matmul %62, %64, %cst_83 {dimension_numbers = #tpu.dot_dimension_numbers<[1], [0], [0], [1], [0, 0, 1, 1], [], []>} : vector<2x32xbf16>, vector<32x64xbf16>, vector<2x64xf32> -> vector<2x64xf32>
    %66 = arith.addf %60, %65 : vector<2x64xf32>
    %c0_84 = arith.constant 0 : index
    %c3_85 = arith.constant 3 : index
    %c0_86 = arith.constant 0 : index
    %67 = vector.load %arg2[%c0_84, %c3_85, %c0_86] : memref<1x5x32xbf16, #tpu.memory_space<vmem>>, vector<1x2x32xbf16>
    %68 = vector.shape_cast %67 : vector<1x2x32xbf16> to vector<2x32xbf16>
    %c2_87 = arith.constant 2 : index
    %c3_88 = arith.constant 3 : index
    %c0_89 = arith.constant 0 : index
    %c0_90 = arith.constant 0 : index
    %69 = vector.load %arg5[%c2_87, %c3_88, %c0_89, %c0_90] : memref<4x4x32x64xbf16, #tpu.memory_space<vmem>>, vector<1x1x32x64xbf16>
    %70 = vector.shape_cast %69 : vector<1x1x32x64xbf16> to vector<32x64xbf16>
    %cst_91 = arith.constant dense<0.000000e+00> : vector<2x64xf32>
    %71 = tpu.matmul %68, %70, %cst_91 {dimension_numbers = #tpu.dot_dimension_numbers<[1], [0], [0], [1], [0, 0, 1, 1], [], []>} : vector<2x32xbf16>, vector<32x64xbf16>, vector<2x64xf32> -> vector<2x64xf32>
    %72 = arith.addf %66, %71 : vector<2x64xf32>
    %c0_92 = arith.constant 0 : index
    %c2_93 = arith.constant 2 : index
    %c0_94 = arith.constant 0 : index
    %73 = vector.load %arg3[%c0_92, %c2_93, %c0_94] : memref<1x5x32xbf16, #tpu.memory_space<vmem>>, vector<1x2x32xbf16>
    %74 = vector.shape_cast %73 : vector<1x2x32xbf16> to vector<2x32xbf16>
    %c3_95 = arith.constant 3 : index
    %c0_96 = arith.constant 0 : index
    %c0_97 = arith.constant 0 : index
    %c0_98 = arith.constant 0 : index
    %75 = vector.load %arg5[%c3_95, %c0_96, %c0_97, %c0_98] : memref<4x4x32x64xbf16, #tpu.memory_space<vmem>>, vector<1x1x32x64xbf16>
    %76 = vector.shape_cast %75 : vector<1x1x32x64xbf16> to vector<32x64xbf16>
    %cst_99 = arith.constant dense<0.000000e+00> : vector<2x64xf32>
    %77 = tpu.matmul %74, %76, %cst_99 {dimension_numbers = #tpu.dot_dimension_numbers<[1], [0], [0], [1], [0, 0, 1, 1], [], []>} : vector<2x32xbf16>, vector<32x64xbf16>, vector<2x64xf32> -> vector<2x64xf32>
    %78 = arith.addf %72, %77 : vector<2x64xf32>
    %c0_100 = arith.constant 0 : index
    %c2_101 = arith.constant 2 : index
    %c0_102 = arith.constant 0 : index
    %79 = vector.load %arg4[%c0_100, %c2_101, %c0_102] : memref<1x5x32xbf16, #tpu.memory_space<vmem>>, vector<1x2x32xbf16>
    %80 = vector.shape_cast %79 : vector<1x2x32xbf16> to vector<2x32xbf16>
    %c3_103 = arith.constant 3 : index
    %c1_104 = arith.constant 1 : index
    %c0_105 = arith.constant 0 : index
    %c0_106 = arith.constant 0 : index
    %81 = vector.load %arg5[%c3_103, %c1_104, %c0_105, %c0_106] : memref<4x4x32x64xbf16, #tpu.memory_space<vmem>>, vector<1x1x32x64xbf16>
    %82 = vector.shape_cast %81 : vector<1x1x32x64xbf16> to vector<32x64xbf16>
    %cst_107 = arith.constant dense<0.000000e+00> : vector<2x64xf32>
    %83 = tpu.matmul %80, %82, %cst_107 {dimension_numbers = #tpu.dot_dimension_numbers<[1], [0], [0], [1], [0, 0, 1, 1], [], []>} : vector<2x32xbf16>, vector<32x64xbf16>, vector<2x64xf32> -> vector<2x64xf32>
    %84 = arith.addf %78, %83 : vector<2x64xf32>
    %c0_108 = arith.constant 0 : index
    %c3_109 = arith.constant 3 : index
    %c0_110 = arith.constant 0 : index
    %85 = vector.load %arg3[%c0_108, %c3_109, %c0_110] : memref<1x5x32xbf16, #tpu.memory_space<vmem>>, vector<1x2x32xbf16>
    %86 = vector.shape_cast %85 : vector<1x2x32xbf16> to vector<2x32xbf16>
    %c3_111 = arith.constant 3 : index
    %c2_112 = arith.constant 2 : index
    %c0_113 = arith.constant 0 : index
    %c0_114 = arith.constant 0 : index
    %87 = vector.load %arg5[%c3_111, %c2_112, %c0_113, %c0_114] : memref<4x4x32x64xbf16, #tpu.memory_space<vmem>>, vector<1x1x32x64xbf16>
    %88 = vector.shape_cast %87 : vector<1x1x32x64xbf16> to vector<32x64xbf16>
    %cst_115 = arith.constant dense<0.000000e+00> : vector<2x64xf32>
    %89 = tpu.matmul %86, %88, %cst_115 {dimension_numbers = #tpu.dot_dimension_numbers<[1], [0], [0], [1], [0, 0, 1, 1], [], []>} : vector<2x32xbf16>, vector<32x64xbf16>, vector<2x64xf32> -> vector<2x64xf32>
    %90 = arith.addf %84, %89 : vector<2x64xf32>
    %c0_116 = arith.constant 0 : index
    %c3_117 = arith.constant 3 : index
    %c0_118 = arith.constant 0 : index
    %91 = vector.load %arg4[%c0_116, %c3_117, %c0_118] : memref<1x5x32xbf16, #tpu.memory_space<vmem>>, vector<1x2x32xbf16>
    %92 = vector.shape_cast %91 : vector<1x2x32xbf16> to vector<2x32xbf16>
    %c3_119 = arith.constant 3 : index
    %c3_120 = arith.constant 3 : index
    %c0_121 = arith.constant 0 : index
    %c0_122 = arith.constant 0 : index
    %93 = vector.load %arg5[%c3_119, %c3_120, %c0_121, %c0_122] : memref<4x4x32x64xbf16, #tpu.memory_space<vmem>>, vector<1x1x32x64xbf16>
    %94 = vector.shape_cast %93 : vector<1x1x32x64xbf16> to vector<32x64xbf16>
    %cst_123 = arith.constant dense<0.000000e+00> : vector<2x64xf32>
    %95 = tpu.matmul %92, %94, %cst_123 {dimension_numbers = #tpu.dot_dimension_numbers<[1], [0], [0], [1], [0, 0, 1, 1], [], []>} : vector<2x32xbf16>, vector<32x64xbf16>, vector<2x64xf32> -> vector<2x64xf32>
    %96 = arith.addf %90, %95 : vector<2x64xf32>
    %c0_124 = arith.constant 0 : index
    %c0_125 = arith.constant 0 : index
    %97 = vector.load %arg8[%c0_124, %c0_125] : memref<2x1xf32, #tpu.memory_space<vmem>>, vector<2x1xf32>
    %98 = vector.broadcast %97 : vector<2x1xf32> to vector<2x64xf32>
    %99 = arith.mulf %96, %98 : vector<2x64xf32>
    %100 = vector.shape_cast %99 : vector<2x64xf32> to vector<1x2x64xf32>
    %cst_126 = arith.constant dense<0.000000e+00> : vector<1xf32>
    %101 = vector.multi_reduction <add>, %100, %cst_126 [1, 2] : vector<1x2x64xf32> to vector<1xf32>
    %102 = vector.shape_cast %101 : vector<1xf32> to vector<1x1x1xf32>
    %103 = vector.extract %102[0, 0, 0] : f32 from vector<1x1x1xf32>
    %104 = vector.broadcast %103 : f32 to vector<1x1xf32>
    %cst_127 = arith.constant 1.562500e-02 : f32
    %105 = vector.broadcast %cst_127 : f32 to vector<1x1xf32>
    %106 = arith.mulf %104, %105 : vector<1x1xf32>
    %107 = vector.broadcast %106 : vector<1x1xf32> to vector<2x64xf32>
    %108 = arith.subf %96, %107 : vector<2x64xf32>
    %109 = vector.broadcast %97 : vector<2x1xf32> to vector<2x64xf32>
    %110 = arith.mulf %108, %109 : vector<2x64xf32>
    %111 = arith.mulf %110, %110 : vector<2x64xf32>
    %112 = vector.shape_cast %111 : vector<2x64xf32> to vector<1x2x64xf32>
    %cst_128 = arith.constant dense<0.000000e+00> : vector<1xf32>
    %113 = vector.multi_reduction <add>, %112, %cst_128 [1, 2] : vector<1x2x64xf32> to vector<1xf32>
    %114 = vector.shape_cast %113 : vector<1xf32> to vector<1x1x1xf32>
    %115 = vector.extract %114[0, 0, 0] : f32 from vector<1x1x1xf32>
    %116 = vector.broadcast %115 : f32 to vector<1x1xf32>
    %cst_129 = arith.constant 1.562500e-02 : f32
    %117 = vector.broadcast %cst_129 : f32 to vector<1x1xf32>
    %118 = arith.mulf %116, %117 : vector<1x1xf32>
    %119 = vector.broadcast %106 : vector<1x1xf32> to vector<2x64xf32>
    %120 = arith.subf %96, %119 : vector<2x64xf32>
    %cst_130 = arith.constant 9.99999974E-6 : f32
    %121 = vector.broadcast %cst_130 : f32 to vector<1x1xf32>
    %122 = arith.addf %118, %121 : vector<1x1xf32>
    %123 = math.rsqrt %122 : vector<1x1xf32>
    %124 = vector.broadcast %123 : vector<1x1xf32> to vector<2x64xf32>
    %125 = arith.mulf %120, %124 : vector<2x64xf32>
    %c0_131 = arith.constant 0 : index
    %c0_132 = arith.constant 0 : index
    %126 = vector.load %arg6[%c0_131, %c0_132] : memref<2x64xf32, #tpu.memory_space<vmem>>, vector<2x64xf32>
    %127 = arith.mulf %125, %126 : vector<2x64xf32>
    %c0_133 = arith.constant 0 : index
    %c0_134 = arith.constant 0 : index
    %128 = vector.load %arg7[%c0_133, %c0_134] : memref<2x64xf32, #tpu.memory_space<vmem>>, vector<2x64xf32>
    %129 = arith.addf %127, %128 : vector<2x64xf32>
    %cst_135 = arith.constant 0.000000e+00 : f32
    %130 = vector.broadcast %cst_135 : f32 to vector<2x64xf32>
    %131 = arith.cmpf ogt, %129, %130 : vector<2x64xf32>
    %cst_136 = arith.constant 2.000000e-01 : f32
    %132 = vector.broadcast %cst_136 : f32 to vector<2x64xf32>
    %133 = arith.mulf %132, %129 : vector<2x64xf32>
    %134 = arith.select %131, %129, %133 : vector<2x64xi1>, vector<2x64xf32>
    %135 = arith.truncf %134 : vector<2x64xf32> to vector<2x64xbf16>
    %c0_137 = arith.constant 0 : index
    %c0_138 = arith.constant 0 : index
    %c0_139 = arith.constant 0 : index
    %136 = vector.load %arg9[%c0_137, %c0_138, %c0_139] : memref<1x2x64xbf16, #tpu.memory_space<vmem>>, vector<1x2x64xbf16>
    %137 = vector.shape_cast %136 : vector<1x2x64xbf16> to vector<2x64xbf16>
    %138 = vector.shape_cast %135 : vector<2x64xbf16> to vector<1x2x64xbf16>
    tpu.vector_store %arg9[%c0_137, %c0_138, %c0_139], %138 {strides = array<i32>} : memref<1x2x64xbf16, #tpu.memory_space<vmem>>, vector<1x2x64xbf16>,
    return
  }
  func.func @transform_0(%arg0: i32) -> (i32, i32, i32) {
    %c0_i32 = arith.constant 0 : i32
    %c0_i32_0 = arith.constant 0 : i32
    %c0_i32_1 = arith.constant 0 : i32
    return %arg0, %c0_i32, %c0_i32_0 : i32, i32, i32
  }
  func.func @transform_1(%arg0: i32) -> (i32, i32, i32) {
    %c0_i32 = arith.constant 0 : i32
    %c0_i32_0 = arith.constant 0 : i32
    %c0_i32_1 = arith.constant 0 : i32
    return %arg0, %c0_i32, %c0_i32_0 : i32, i32, i32
  }
  func.func @transform_2(%arg0: i32) -> (i32, i32, i32) {
    %c0_i32 = arith.constant 0 : i32
    %c0_i32_0 = arith.constant 0 : i32
    %c0_i32_1 = arith.constant 0 : i32
    return %arg0, %c0_i32, %c0_i32_0 : i32, i32, i32
  }
  func.func @transform_3(%arg0: i32) -> (i32, i32, i32) {
    %c0_i32 = arith.constant 0 : i32
    %c0_i32_0 = arith.constant 0 : i32
    %c0_i32_1 = arith.constant 0 : i32
    return %arg0, %c0_i32, %c0_i32_0 : i32, i32, i32
  }
  func.func @transform_4(%arg0: i32) -> (i32, i32, i32, i32) {
    %c0_i32 = arith.constant 0 : i32
    %c0_i32_0 = arith.constant 0 : i32
    %c0_i32_1 = arith.constant 0 : i32
    %c0_i32_2 = arith.constant 0 : i32
    %c0_i32_3 = arith.constant 0 : i32
    return %c0_i32, %c0_i32_0, %c0_i32_1, %c0_i32_2 : i32, i32, i32, i32
  }
  func.func @transform_5(%arg0: i32) -> (i32, i32) {
    %c0_i32 = arith.constant 0 : i32
    %c0_i32_0 = arith.constant 0 : i32
    %c0_i32_1 = arith.constant 0 : i32
    return %c0_i32, %c0_i32_0 : i32, i32
  }
  func.func @transform_6(%arg0: i32) -> (i32, i32) {
    %c0_i32 = arith.constant 0 : i32
    %c0_i32_0 = arith.constant 0 : i32
    %c0_i32_1 = arith.constant 0 : i32
    return %c0_i32, %c0_i32_0 : i32, i32
  }
  func.func @transform_7(%arg0: i32) -> (i32, i32) {
    %c0_i32 = arith.constant 0 : i32
    %c0_i32_0 = arith.constant 0 : i32
    %c0_i32_1 = arith.constant 0 : i32
    return %c0_i32, %c0_i32_0 : i32, i32
  }
  func.func @transform_8(%arg0: i32) -> (i32, i32, i32) {
    %c0_i32 = arith.constant 0 : i32
    %c0_i32_0 = arith.constant 0 : i32
    %c0_i32_1 = arith.constant 0 : i32
    return %arg0, %c0_i32, %c0_i32_0 : i32, i32, i32
  }
}

module attributes {stable_mosaic.version = 11 : i64} {
  func.func @_heads_kernel(%arg0: i32, %arg1: memref<2x128xbf16, #tpu.memory_space<vmem>>, %arg2: memref<128x5xbf16, #tpu.memory_space<vmem>>, %arg3: memref<1x5xf32, #tpu.memory_space<vmem>>, %arg4: memref<2x5xf32, #tpu.memory_space<vmem>>, %arg5: memref<2x5xf32, #tpu.memory_space<vmem>>) attributes {dimension_semantics = [#tpu.dimension_semantics<arbitrary>], iteration_bounds = array<i64: 1>, scalar_prefetch = 0 : i64, scratch_operands = 1 : i64, tpu.core_type = #tpu.core_type<tc>, window_params = [{transform_indices = @transform_0, window_bounds = array<i64: 2, 128>}, {transform_indices = @transform_1, window_bounds = array<i64: 128, 5>}, {pipeline_mode = #tpu.pipeline_mode<synchronous>, transform_indices = @transform_2, window_bounds = array<i64: 1, 5>}, {pipeline_mode = #tpu.pipeline_mode<synchronous>, transform_indices = @transform_3, window_bounds = array<i64: 2, 5>}]} {
    %c0_i32 = arith.constant 0 : i32
    %0 = arith.cmpi eq, %arg0, %c0_i32 : i32
    %1 = arith.extui %0 : i1 to i32
    %c0_i32_0 = arith.constant 0 : i32
    %2 = arith.cmpi ne, %1, %c0_i32_0 : i32
    scf.if %2 {
      %cst_10 = arith.constant 0.000000e+00 : f32
      %12 = vector.broadcast %cst_10 : f32 to vector<2x5xf32>
      %c0_11 = arith.constant 0 : index
      %c0_12 = arith.constant 0 : index
      %13 = vector.load %arg5[%c0_11, %c0_12] : memref<2x5xf32, #tpu.memory_space<vmem>>, vector<2x5xf32>
      tpu.vector_store %arg5[%c0_11, %c0_12], %12 {strides = array<i32>} : memref<2x5xf32, #tpu.memory_space<vmem>>, vector<2x5xf32>,
    } else {
    }
    %c0 = arith.constant 0 : index
    %c0_1 = arith.constant 0 : index
    %3 = vector.load %arg5[%c0, %c0_1] : memref<2x5xf32, #tpu.memory_space<vmem>>, vector<2x5xf32>
    %c0_2 = arith.constant 0 : index
    %c0_3 = arith.constant 0 : index
    %4 = vector.load %arg1[%c0_2, %c0_3] : memref<2x128xbf16, #tpu.memory_space<vmem>>, vector<2x128xbf16>
    %c0_4 = arith.constant 0 : index
    %c0_5 = arith.constant 0 : index
    %5 = vector.load %arg2[%c0_4, %c0_5] : memref<128x5xbf16, #tpu.memory_space<vmem>>, vector<128x5xbf16>
    %cst = arith.constant dense<0.000000e+00> : vector<2x5xf32>
    %6 = tpu.matmul %4, %5, %cst {dimension_numbers = #tpu.dot_dimension_numbers<[1], [0], [0], [1], [0, 0, 1, 1], [], []>} : vector<2x128xbf16>, vector<128x5xbf16>, vector<2x5xf32> -> vector<2x5xf32>
    %7 = arith.addf %3, %6 : vector<2x5xf32>
    %c0_6 = arith.constant 0 : index
    %c0_7 = arith.constant 0 : index
    %8 = vector.load %arg5[%c0_6, %c0_7] : memref<2x5xf32, #tpu.memory_space<vmem>>, vector<2x5xf32>
    tpu.vector_store %arg5[%c0_6, %c0_7], %7 {strides = array<i32>} : memref<2x5xf32, #tpu.memory_space<vmem>>, vector<2x5xf32>,
    %c0_i32_8 = arith.constant 0 : i32
    %9 = arith.cmpi eq, %arg0, %c0_i32_8 : i32
    %10 = arith.extui %9 : i1 to i32
    %c0_i32_9 = arith.constant 0 : i32
    %11 = arith.cmpi ne, %10, %c0_i32_9 : i32
    scf.if %11 {
      %c0_10 = arith.constant 0 : index
      %c0_11 = arith.constant 0 : index
      %12 = vector.load %arg5[%c0_10, %c0_11] : memref<2x5xf32, #tpu.memory_space<vmem>>, vector<2x5xf32>
      %c0_12 = arith.constant 0 : index
      %c0_13 = arith.constant 0 : index
      %13 = vector.load %arg3[%c0_12, %c0_13] : memref<1x5xf32, #tpu.memory_space<vmem>>, vector<1x5xf32>
      %14 = vector.broadcast %13 : vector<1x5xf32> to vector<2x5xf32>
      %15 = arith.addf %12, %14 : vector<2x5xf32>
      %16 = tpu.iota {dimensions = array<i32: 1>} : vector<2x5xi32>
      %c1_i32 = arith.constant 1 : i32
      %17 = vector.broadcast %c1_i32 : i32 to vector<2x5xi32>
      %18 = arith.cmpi slt, %16, %17 : vector<2x5xi32>
      %19 = arith.negf %15 : vector<2x5xf32>
      %20 = math.exp %19 : vector<2x5xf32>
      %cst_14 = arith.constant 1.000000e+00 : f32
      %21 = vector.broadcast %cst_14 : f32 to vector<2x5xf32>
      %22 = arith.addf %21, %20 : vector<2x5xf32>
      %23 = arith.divf %21, %22 : vector<2x5xf32>
      %24 = arith.select %18, %15, %23 : vector<2x5xi1>, vector<2x5xf32>
      %c0_15 = arith.constant 0 : index
      %c0_16 = arith.constant 0 : index
      %25 = vector.load %arg4[%c0_15, %c0_16] : memref<2x5xf32, #tpu.memory_space<vmem>>, vector<2x5xf32>
      tpu.vector_store %arg4[%c0_15, %c0_16], %24 {strides = array<i32>} : memref<2x5xf32, #tpu.memory_space<vmem>>, vector<2x5xf32>,
    } else {
    }
    return
  }
  func.func @transform_0(%arg0: i32) -> (i32, i32) {
    %c0_i32 = arith.constant 0 : i32
    %c0_i32_0 = arith.constant 0 : i32
    return %c0_i32, %arg0 : i32, i32
  }
  func.func @transform_1(%arg0: i32) -> (i32, i32) {
    %c0_i32 = arith.constant 0 : i32
    %c0_i32_0 = arith.constant 0 : i32
    return %arg0, %c0_i32 : i32, i32
  }
  func.func @transform_2(%arg0: i32) -> (i32, i32) {
    %c0_i32 = arith.constant 0 : i32
    %c0_i32_0 = arith.constant 0 : i32
    %c0_i32_1 = arith.constant 0 : i32
    return %c0_i32, %c0_i32_0 : i32, i32
  }
  func.func @transform_3(%arg0: i32) -> (i32, i32) {
    %c0_i32 = arith.constant 0 : i32
    %c0_i32_0 = arith.constant 0 : i32
    %c0_i32_1 = arith.constant 0 : i32
    return %c0_i32, %c0_i32_0 : i32, i32
  }
}

</mosaic_0001>

<llo_original>
// kernel: discriminator_forward.7
$region0: #{discriminator_forward.7}
  #allocation0 [shape = 'u32[]', space=smem, size = 0x4, offset = 0x4, fixed_abs, tag = 'smem constant byte address 0x4 - core index']
  #allocation1 [shape = 'u32[72,128]{1,0:T(1,128)}', space=vmem, size = 0x9000, scoped, tag = 'internal scratch']
  %s0 = inlined_call_operand.vmem [shape: bf16[2,10,16], index: 0, kind: input, shape index: {}]
  %s1 = inlined_call_operand.vmem [shape: bf16[2,10,16], index: 1, kind: input, shape index: {}]
  %s2 = inlined_call_operand.vmem [shape: bf16[2,10,16], index: 2, kind: input, shape index: {}]
  %s3 = inlined_call_operand.vmem [shape: bf16[2,10,16], index: 3, kind: input, shape index: {}]
  %s4 = inlined_call_operand.vmem [shape: bf16[4,4,16,32], index: 4, kind: input, shape index: {}]
  %s5 = inlined_call_operand.vmem [shape: f32[6,32], index: 5, kind: input, shape index: {}]
  %s6 = inlined_call_operand.vmem [shape: f32[6,32], index: 6, kind: input, shape index: {}]
  %s7 = inlined_call_operand.vmem [shape: f32[6,1], index: 7, kind: input, shape index: {}]
  %s8 = inlined_call_operand.vmem [shape: bf16[2,6,32], index: 8, kind: output, shape index: {}]
  %s9 = sld [smem:[#allocation0]]
  $region65: #{discriminator_forward.7} parent=0
    _
  %s11 = ssub.s32 1, %s9
  %s12 = scalar_select 0, %s11, %s9
  loop: start=0, step=1, limit=4
  $region2: #{discriminator_forward.7} parent=0 // loop_pre_header
    _
  $region3: #{discriminator_forward.7} parent=0 // loop_header
    %s14 = sphi 0, %s18
    %p15 = scmp.ge.s32.totalorder %s14, 4
    %s24 = sphi 0, %s26
    %s27 = sphi 0, %s24
    %s28 = sphi 0, %s27
    %s44 = sphi 0, %s28
    %s50 = sphi 0, %s52
    %s53 = sphi 0, %s50
    %s54 = sphi 0, %s53
    %s70 = sphi 0, %s54
    %s76 = sphi 0, %s78
    %s79 = sphi 0, %s76
    %s80 = sphi 0, %s79
    %s96 = sphi 0, %s80
    %s102 = sphi 0, %s104
    %s105 = sphi 0, %s102
    %s106 = sphi 0, %s105
    %s122 = sphi 0, %s106
    %s126 = sphi 0, %s126
    %s128 = sphi 0, %s126
    %s129 = sphi 0, %s128
    %s143 = sphi 0, %s129
    %s147 = sphi 0, %s147
    %s149 = sphi 0, %s147
    %s150 = sphi 0, %s149
    %s164 = sphi 0, %s150
    %s168 = sphi 0, %s168
    %s170 = sphi 0, %s168
    %s171 = sphi 0, %s170
    %s185 = sphi 0, %s171
    %s189 = sphi 0, %s189
    %s191 = sphi 0, %s189
    %s192 = sphi 0, %s191
    %s206 = sphi 0, %s192
    %s212 = sphi 0, %s214
    %s215 = sphi 0, %s212
    %s216 = sphi 0, %s215
    %s232 = sphi 0, %s216
  $region4: #{discriminator_forward.7} parent=0 // loop_header_branch
    %17 = sbr.rel (%p15) target = $region8
  $region5: #{discriminator_forward.7} parent=0 // loop_body
    %s19 = ssub.s32 %s14, 1
    %s20 = ssub.s32 %s14, 2
    %s21 = sadd.s32 %s14, 1
    %s22 = ssub.s32 %s14, %s21
    %p23 = scmp.eq.s32.totalorder %s22, 0
    %s25 = sadd.s32 %s24, 1
    %s26 = scalar_select %p23, %s24, %s25
    %p29 = pneg %p23
    %p30 = scmp.eq.s32.totalorder %s14, 1
    %p31 = por %p29, %p30
    %p32 = scmp.ne.s32.totalorder %s24, %s27
    %p33 = scmp.eq.s32.totalorder %s14, 0
    %p34 = por %p32, %p33
    %p35 = scmp.ne.s32.totalorder %s24, %s27
    %p36 = scmp.eq.s32.totalorder %s19, 1
    %p37 = por %p35, %p36
    %p38 = scmp.ne.s32.totalorder %s27, %s28
    %p39 = scmp.eq.s32.totalorder %s19, 0
    %p40 = por %p38, %p39
    %p41 = scmp.ne.s32.totalorder %s27, %s28
    %p42 = scmp.eq.s32.totalorder %s20, 1
    %p43 = por %p41, %p42
    %p45 = scmp.ne.s32.totalorder %s28, %s44
    %p46 = scmp.eq.s32.totalorder %s20, 0
    %p47 = por %p45, %p46
    %s48 = ssub.s32 %s14, %s21
    %p49 = scmp.eq.s32.totalorder %s48, 0
    %s51 = sadd.s32 %s50, 1
    %s52 = scalar_select %p49, %s50, %s51
    %p55 = pneg %p49
    %p56 = scmp.eq.s32.totalorder %s14, 1
    %p57 = por %p55, %p56
    %p58 = scmp.ne.s32.totalorder %s50, %s53
    %p59 = scmp.eq.s32.totalorder %s14, 0
    %p60 = por %p58, %p59
    %p61 = scmp.ne.s32.totalorder %s50, %s53
    %p62 = scmp.eq.s32.totalorder %s19, 1
    %p63 = por %p61, %p62
    %p64 = scmp.ne.s32.totalorder %s53, %s54
    %p65 = scmp.eq.s32.totalorder %s19, 0
    %p66 = por %p64, %p65
    %p67 = scmp.ne.s32.totalorder %s53, %s54
    %p68 = scmp.eq.s32.totalorder %s20, 1
    %p69 = por %p67, %p68
    %p71 = scmp.ne.s32.totalorder %s54, %s70
    %p72 = scmp.eq.s32.totalorder %s20, 0
    %p73 = por %p71, %p72
    %s74 = ssub.s32 %s14, %s21
    %p75 = scmp.eq.s32.totalorder %s74, 0
    %s77 = sadd.s32 %s76, 1
    %s78 = scalar_select %p75, %s76, %s77
    %p81 = pneg %p75
    %p82 = scmp.eq.s32.totalorder %s14, 1
    %p83 = por %p81, %p82
    %p84 = scmp.ne.s32.totalorder %s76, %s79
    %p85 = scmp.eq.s32.totalorder %s14, 0
    %p86 = por %p84, %p85
    %p87 = scmp.ne.s32.totalorder %s76, %s79
    %p88 = scmp.eq.s32.totalorder %s19, 1
    %p89 = por %p87, %p88
    %p90 = scmp.ne.s32.totalorder %s79, %s80
    %p91 = scmp.eq.s32.totalorder %s19, 0
    %p92 = por %p90, %p91
    %p93 = scmp.ne.s32.totalorder %s79, %s80
    %p94 = scmp.eq.s32.totalorder %s20, 1
    %p95 = por %p93, %p94
    %p97 = scmp.ne.s32.totalorder %s80, %s96
    %p98 = scmp.eq.s32.totalorder %s20, 0
    %p99 = por %p97, %p98
    %s100 = ssub.s32 %s14, %s21
    %p101 = scmp.eq.s32.totalorder %s100, 0
    %s103 = sadd.s32 %s102, 1
    %s104 = scalar_select %p101, %s102, %s103
    %p107 = pneg %p101
    %p108 = scmp.eq.s32.totalorder %s14, 1
    %p109 = por %p107, %p108
    %p110 = scmp.ne.s32.totalorder %s102, %s105
    %p111 = scmp.eq.s32.totalorder %s14, 0
    %p112 = por %p110, %p111
    %p113 = scmp.ne.s32.totalorder %s102, %s105
    %p114 = scmp.eq.s32.totalorder %s19, 1
    %p115 = por %p113, %p114
    %p116 = scmp.ne.s32.totalorder %s105, %s106
    %p117 = scmp.eq.s32.totalorder %s19, 0
    %p118 = por %p116, %p117
    %p119 = scmp.ne.s32.totalorder %s105, %s106
    %p120 = scmp.eq.s32.totalorder %s20, 1
    %p121 = por %p119, %p120
    %p123 = scmp.ne.s32.totalorder %s106, %s122
    %p124 = scmp.eq.s32.totalorder %s20, 0
    %p125 = por %p123, %p124
    %s127 = sadd.s32 %s126, 1
    %p130 = scmp.eq.s32.totalorder %s14, 1
    %p131 = scmp.ne.s32.totalorder %s126, %s128
    %p132 = scmp.eq.s32.totalorder %s14, 0
    %p133 = por %p131, %p132
    %p134 = scmp.ne.s32.totalorder %s126, %s128
    %p135 = scmp.eq.s32.totalorder %s19, 1
    %p136 = por %p134, %p135
    %p137 = scmp.ne.s32.totalorder %s128, %s129
    %p138 = scmp.eq.s32.totalorder %s19, 0
    %p139 = por %p137, %p138
    %p140 = scmp.ne.s32.totalorder %s128, %s129
    %p141 = scmp.eq.s32.totalorder %s20, 1
    %p142 = por %p140, %p141
    %p144 = scmp.ne.s32.totalorder %s129, %s143
    %p145 = scmp.eq.s32.totalorder %s20, 0
    %p146 = por %p144, %p145
    %s148 = sadd.s32 %s147, 1
    %p151 = scmp.eq.s32.totalorder %s14, 1
    %p152 = scmp.ne.s32.totalorder %s147, %s149
    %p153 = scmp.eq.s32.totalorder %s14, 0
    %p154 = por %p152, %p153
    %p155 = scmp.ne.s32.totalorder %s147, %s149
    %p156 = scmp.eq.s32.totalorder %s19, 1
    %p157 = por %p155, %p156
    %p158 = scmp.ne.s32.totalorder %s149, %s150
    %p159 = scmp.eq.s32.totalorder %s19, 0
    %p160 = por %p158, %p159
    %p161 = scmp.ne.s32.totalorder %s149, %s150
    %p162 = scmp.eq.s32.totalorder %s20, 1
    %p163 = por %p161, %p162
    %p165 = scmp.ne.s32.totalorder %s150, %s164
    %p166 = scmp.eq.s32.totalorder %s20, 0
    %p167 = por %p165, %p166
    %s169 = sadd.s32 %s168, 1
    %p172 = scmp.eq.s32.totalorder %s14, 1
    %p173 = scmp.ne.s32.totalorder %s168, %s170
    %p174 = scmp.eq.s32.totalorder %s14, 0
    %p175 = por %p173, %p174
    %p176 = scmp.ne.s32.totalorder %s168, %s170
    %p177 = scmp.eq.s32.totalorder %s19, 1
    %p178 = por %p176, %p177
    %p179 = scmp.ne.s32.totalorder %s170, %s171
    %p180 = scmp.eq.s32.totalorder %s19, 0
    %p181 = por %p179, %p180
    %p182 = scmp.ne.s32.totalorder %s170, %s171
    %p183 = scmp.eq.s32.totalorder %s20, 1
    %p184 = por %p182, %p183
    %p186 = scmp.ne.s32.totalorder %s171, %s185
    %p187 = scmp.eq.s32.totalorder %s20, 0
    %p188 = por %p186, %p187
    %s190 = sadd.s32 %s189, 1
    %p193 = scmp.eq.s32.totalorder %s14, 1
    %p194 = scmp.ne.s32.totalorder %s189, %s191
    %p195 = scmp.eq.s32.totalorder %s14, 0
    %p196 = por %p194, %p195
    %p197 = scmp.ne.s32.totalorder %s189, %s191
    %p198 = scmp.eq.s32.totalorder %s19, 1
    %p199 = por %p197, %p198
    %p200 = scmp.ne.s32.totalorder %s191, %s192
    %p201 = scmp.eq.s32.totalorder %s19, 0
    %p202 = por %p200, %p201
    %p203 = scmp.ne.s32.totalorder %s191, %s192
    %p204 = scmp.eq.s32.totalorder %s20, 1
    %p205 = por %p203, %p204
    %p207 = scmp.ne.s32.totalorder %s192, %s206
    %p208 = scmp.eq.s32.totalorder %s20, 0
    %p209 = por %p207, %p208
    %s210 = ssub.s32 %s14, %s21
    %p211 = scmp.eq.s32.totalorder %s210, 0
    %s213 = sadd.s32 %s212, 1
    %s214 = scalar_select %p211, %s212, %s213
    %p217 = pneg %p211
    %p218 = scmp.eq.s32.totalorder %s14, 1
    %p219 = por %p217, %p218
    %p220 = scmp.ne.s32.totalorder %s212, %s215
    %p221 = scmp.eq.s32.totalorder %s14, 0
    %p222 = por %p220, %p221
    %p223 = scmp.ne.s32.totalorder %s212, %s215
    %p224 = scmp.eq.s32.totalorder %s19, 1
    %p225 = por %p223, %p224
    %p226 = scmp.ne.s32.totalorder %s215, %s216
    %p227 = scmp.eq.s32.totalorder %s19, 0
    %p228 = por %p226, %p227
    %p229 = scmp.ne.s32.totalorder %s215, %s216
    %p230 = scmp.eq.s32.totalorder %s20, 1
    %p231 = por %p229, %p230
    %p233 = scmp.ne.s32.totalorder %s216, %s232
    %p234 = scmp.eq.s32.totalorder %s20, 0
    %p235 = por %p233, %p234
    %p236 = scmp.le.s32.totalorder 1, %s14
    %p237 = scmp.lt.s32.totalorder %s14, 3
    %p238 = pnand %p236, %p237
    %p239 = pneg %p238
    // Predicated region
    $region9: #{discriminator_forward.7} parent=5 // pred_check
      _
    $region10: #{discriminator_forward.7} parent=5 // pred_check_branch
      %241 = sbr.rel (%p238) target = $region12
    $region11: #{discriminator_forward.7} parent=5 // pred_region
      %s242 = ssub.s32 %s14, 1
      // Predicated region
      $region13: #{discriminator_forward.7} parent=11 // pred_check
        %p243 = pneg %p139
      $region14: #{discriminator_forward.7} parent=11 // pred_check_branch
        %245 = sbr.rel (%p243) target = $region16
      $region15: #{discriminator_forward.7} parent=11 // pred_region
        _
      $region16: #{discriminator_forward.7} parent=11 // pred_fallthru
        _
      // Predicated region
      $region17: #{discriminator_forward.7} parent=11 // pred_check
        %p246 = pneg %p160
      $region18: #{discriminator_forward.7} parent=11 // pred_check_branch
        %248 = sbr.rel (%p246) target = $region20
      $region19: #{discriminator_forward.7} parent=11 // pred_region
        _
      $region20: #{discriminator_forward.7} parent=11 // pred_fallthru
        _
      // Predicated region
      $region21: #{discriminator_forward.7} parent=11 // pred_check
        %p249 = pneg %p181
      $region22: #{discriminator_forward.7} parent=11 // pred_check_branch
        %251 = sbr.rel (%p249) target = $region24
      $region23: #{discriminator_forward.7} parent=11 // pred_region
        _
      $region24: #{discriminator_forward.7} parent=11 // pred_fallthru
        _
      // Predicated region
      $region25: #{discriminator_forward.7} parent=11 // pred_check
        %p252 = pneg %p202
      $region26: #{discriminator_forward.7} parent=11 // pred_check_branch
        %254 = sbr.rel (%p252) target = $region28
      $region27: #{discriminator_forward.7} parent=11 // pred_region
        _
      $region28: #{discriminator_forward.7} parent=11 // pred_fallthru
        _
    $region12: #{discriminator_forward.7} parent=5 // pred_fallthru
      _
    %p255 = scmp.lt.s32.totalorder %s14, 2
    // Predicated region
    $region29: #{discriminator_forward.7} parent=5 // pred_check
      %p256 = pneg %p255
    $region30: #{discriminator_forward.7} parent=5 // pred_check_branch
      %258 = sbr.rel (%p256) target = $region32
    $region31: #{discriminator_forward.7} parent=5 // pred_region
      // Predicated region
      $region33: #{discriminator_forward.7} parent=31 // pred_check
        %p259 = pneg %p34
      $region34: #{discriminator_forward.7} parent=31 // pred_check_branch
        %261 = sbr.rel (%p259) target = $region36
      $region35: #{discriminator_forward.7} parent=31 // pred_region
        %p262 = scmp.lt.s32.totalorder %s14, 1
        %s263 = scalar_select %p262, %s14, 1
        %s264 = smul.addr %s263, 2
        %s265 = smul.addr %s264, 4
        %s266 = scalar_lea.vmem %s0, %s265
      $region36: #{discriminator_forward.7} parent=31 // pred_fallthru
        _
      // Predicated region
      $region37: #{discriminator_forward.7} parent=31 // pred_check
        %p267 = pneg %p60
      $region38: #{discriminator_forward.7} parent=31 // pred_check_branch
        %269 = sbr.rel (%p267) target = $region40
      $region39: #{discriminator_forward.7} parent=31 // pred_region
        %p270 = scmp.lt.s32.totalorder %s14, 1
        %s271 = scalar_select %p270, %s14, 1
        %s272 = smul.addr %s271, 2
        %s273 = smul.addr %s272, 4
        %s274 = scalar_lea.vmem %s1, %s273
      $region40: #{discriminator_forward.7} parent=31 // pred_fallthru
        _
      // Predicated region
      $region41: #{discriminator_forward.7} parent=31 // pred_check
        %p275 = pneg %p86
      $region42: #{discriminator_forward.7} parent=31 // pred_check_branch
        %277 = sbr.rel (%p275) target = $region44
      $region43: #{discriminator_forward.7} parent=31 // pred_region
        %p278 = scmp.lt.s32.totalorder %s14, 1
        %s279 = scalar_select %p278, %s14, 1
        %s280 = smul.addr %s279, 2
        %s281 = smul.addr %s280, 4
        %s282 = scalar_lea.vmem %s2, %s281
      $region44: #{discriminator_forward.7} parent=31 // pred_fallthru
        _
      // Predicated region
      $region45: #{discriminator_forward.7} parent=31 // pred_check
        %p283 = pneg %p112
      $region46: #{discriminator_forward.7} parent=31 // pred_check_branch
        %285 = sbr.rel (%p283) target = $region48
      $region47: #{discriminator_forward.7} parent=31 // pred_region
        %p286 = scmp.lt.s32.totalorder %s14, 1
        %s287 = scalar_select %p286, %s14, 1
        %s288 = smul.addr %s287, 2
        %s289 = smul.addr %s288, 4
        %s290 = scalar_lea.vmem %s3, %s289
      $region48: #{discriminator_forward.7} parent=31 // pred_fallthru
        _
    $region32: #{discriminator_forward.7} parent=5 // pred_fallthru
      _
    %p291 = scmp.le.s32.totalorder 1, %s14
    %p292 = scmp.lt.s32.totalorder %s14, 3
    %p293 = pnand %p291, %p292
    %p294 = pneg %p293
    // Predicated region
    $region49: #{discriminator_forward.7} parent=5 // pred_check
      _
    $region50: #{discriminator_forward.7} parent=5 // pred_check_branch
      %296 = sbr.rel (%p293) target = $region52
    $region51: #{discriminator_forward.7} parent=5 // pred_region
      %s297 = ssub.s32 %s14, 1
      %p298 = scmp.lt.s32.totalorder %s19, 1
      %s299 = scalar_select %p298, %s19, 1
      %s300 = smul.addr %s299, 2
      %s301 = smul.addr %s300, 4
      %s302 = scalar_lea.vmem %s0, %s301
      %p303 = pneg %p40
      %p304 = pneg %p37
      %p305 = scmp.lt.s32.totalorder %s19, 1
      %s306 = scalar_select %p305, %s19, 1
      %s307 = smul.addr %s306, 2
      %s308 = smul.addr %s307, 4
      %s309 = scalar_lea.vmem %s1, %s308
      %p310 = pneg %p66
      %p311 = pneg %p63
      %p312 = scmp.lt.s32.totalorder %s19, 1
      %s313 = scalar_select %p312, %s19, 1
      %s314 = smul.addr %s313, 2
      %s315 = smul.addr %s314, 4
      %s316 = scalar_lea.vmem %s2, %s315
      %p317 = pneg %p92
      %p318 = pneg %p89
      %p319 = scmp.lt.s32.totalorder %s19, 1
      %s320 = scalar_select %p319, %s19, 1
      %s321 = smul.addr %s320, 2
      %s322 = smul.addr %s321, 4
      %s323 = scalar_lea.vmem %s3, %s322
      %p324 = pneg %p118
      %p325 = pneg %p115
      %p326 = pneg %p139
      %p327 = pneg %p136
      %p328 = pneg %p160
      %p329 = pneg %p157
      %p330 = pneg %p181
      %p331 = pneg %p178
      %p332 = pneg %p202
      %p333 = pneg %p199
      %p334 = pneg %p228
      %p335 = pneg %p225
      %p336 = scmp.lt.s32.totalorder %s19, 1
      %s337 = scalar_select %p336, %s19, 1
      %s338 = smul.addr %s337, 4
      %s339 = scalar_lea.vmem %s8, %s338
      %p340 = scmp.lt.s32.totalorder %s19, 1
      %s341 = scalar_select %p340, %s19, 1
      %s342 = smul.addr %s341, 2
      %s343 = smul.addr %s342, 4
      %s344 = scalar_lea.vmem %s0, %s343
      %p345 = scmp.lt.s32.totalorder %s19, 1
      %s346 = scalar_select %p345, %s19, 1
      %s347 = smul.addr %s346, 2
      %s348 = smul.addr %s347, 4
      %s349 = scalar_lea.vmem %s1, %s348
      %p350 = scmp.lt.s32.totalorder %s19, 1
      %s351 = scalar_select %p350, %s19, 1
      %s352 = smul.addr %s351, 2
      %s353 = smul.addr %s352, 4
      %s354 = scalar_lea.vmem %s2, %s353
      %p355 = scmp.lt.s32.totalorder %s19, 1
      %s356 = scalar_select %p355, %s19, 1
      %s357 = smul.addr %s356, 2
      %s358 = smul.addr %s357, 4
      %s359 = scalar_lea.vmem %s3, %s358
      %p360 = scmp.lt.s32.totalorder %s19, 1
      %s361 = scalar_select %p360, %s19, 1
      %s362 = smul.addr %s361, 4
      %s363 = scalar_lea.vmem %s8, %s362
      %v365 = vld [vmem:[%s344] sm:$0x7]
      %v366 = vld [vmem:[%s4] sm:$0xf]
      %v367 = vld [vmem:[%s4 + $0x4] sm:$0xf]
      %v368 = vld [vmem:[%s349] sm:$0x7]
      %s369 = scalar_lea.vmem %s4, 8
      %v370 = vld [vmem:[%s369] sm:$0xf]
      %v371 = vld [vmem:[%s369 + $0x4] sm:$0xf]
      %v374 = vunpack.c.l.b16 %v370
      %v375 = vunpack.c.l.b16 %v371
      %v376 = vpack.c.b16 %v375, %v374
      %vm378 = vcmask 130048
      %v380 = vsel %vm378, %v368, 0
      %382 = vmatpush.bf16.msra.mxu0 0
      %383 = vmatpush.bf16.msra.mxu0 0
      %384 = vmatpush.bf16.msra.mxu0 0
      %385 = vmatpush.bf16.msra.mxu0 0
      %386 = vmatpush.bf16.msra.mxu0 0
      %387 = vmatpush.bf16.msra.mxu0 0
      %388 = vmatpush.bf16.msra.mxu0 0
      %389 = vmatpush.bf16.msra.mxu0 %v376
      %390 = vmatmul.bf16.gmra.mxu0 %v380
      %v391 = vpop.f32.mrf.mxu0
      %v392 = vadd.f32 0.0, %v391
      %v393 = vpop.f32.mrf.mxu0
      %394 = vdwg.mxu0
      %v397 = vunpack.c.l.b16 %v366
      %v398 = vunpack.c.l.b16 %v367
      %v399 = vpack.c.b16 %v398, %v397
      %v402 = vsel %vm378, %v365, 0
      %404 = vmatpush.bf16.msra.mxu0 0
      %405 = vmatpush.bf16.msra.mxu0 0
      %406 = vmatpush.bf16.msra.mxu0 0
      %407 = vmatpush.bf16.msra.mxu0 0
      %408 = vmatpush.bf16.msra.mxu0 0
      %409 = vmatpush.bf16.msra.mxu0 0
      %410 = vmatpush.bf16.msra.mxu0 0
      %411 = vmatpush.bf16.msra.mxu0 %v399
      %412 = vmatmul.bf16.gmra.mxu0 %v402
      %v413 = vpop.f32.mrf.mxu0
      %v414 = vadd.f32 %v392, %v413
      %v415 = vpop.f32.mrf.mxu0
      %416 = vdwg.mxu0
      %v417 = vld [vmem:[%s344] sm:$0xf]
      %s418 = scalar_lea.vmem %s4, 16
      %v419 = vld [vmem:[%s418] sm:$0xf]
      %v420 = vld [vmem:[%s418 + $0x4] sm:$0xf]
      %v422 = vunpack.c.l.b16 %v417
      %v423 = vpack.c.b16 %v422, %v422
      %v425 = vshrl.u32 %v423, 16
      %v427 = vshll.u32 %v423, 16
      %v429 = vrot.slane %v427, 1
      %v430 = vor.u32 %v425, %v429
      %v433 = vunpack.c.l.b16 %v419
      %v434 = vunpack.c.l.b16 %v420
      %v435 = vpack.c.b16 %v434, %v433
      %v438 = vsel %vm378, %v430, 0
      %440 = vmatpush.bf16.msra.mxu0 0
      %441 = vmatpush.bf16.msra.mxu0 0
      %442 = vmatpush.bf16.msra.mxu0 0
      %443 = vmatpush.bf16.msra.mxu0 0
      %444 = vmatpush.bf16.msra.mxu0 0
      %445 = vmatpush.bf16.msra.mxu0 0
      %446 = vmatpush.bf16.msra.mxu0 0
      %447 = vmatpush.bf16.msra.mxu0 %v435
      %448 = vmatmul.bf16.gmra.mxu0 %v438
      %v449 = vpop.f32.mrf.mxu0
      %v450 = vadd.f32 0.0, %v449
      %v451 = vpop.f32.mrf.mxu0
      %452 = vdwg.mxu0
      %v453 = vadd.f32 %v414, %v450
      %v454 = vld [vmem:[%s349] sm:$0xf]
      %s455 = scalar_lea.vmem %s4, 24
      %v456 = vld [vmem:[%s455] sm:$0xf]
      %v457 = vld [vmem:[%s455 + $0x4] sm:$0xf]
      %v459 = vunpack.c.l.b16 %v454
      %v460 = vpack.c.b16 %v459, %v459
      %v462 = vshrl.u32 %v460, 16
      %v464 = vshll.u32 %v460, 16
      %v466 = vrot.slane %v464, 1
      %v467 = vor.u32 %v462, %v466
      %v470 = vunpack.c.l.b16 %v456
      %v471 = vunpack.c.l.b16 %v457
      %v472 = vpack.c.b16 %v471, %v470
      %v475 = vsel %vm378, %v467, 0
      %477 = vmatpush.bf16.msra.mxu0 0
      %478 = vmatpush.bf16.msra.mxu0 0
      %479 = vmatpush.bf16.msra.mxu0 0
      %480 = vmatpush.bf16.msra.mxu0 0
      %481 = vmatpush.bf16.msra.mxu0 0
      %482 = vmatpush.bf16.msra.mxu0 0
      %483 = vmatpush.bf16.msra.mxu0 0
      %484 = vmatpush.bf16.msra.mxu0 %v472
      %485 = vmatmul.bf16.gmra.mxu0 %v475
      %v486 = vpop.f32.mrf.mxu0
      %v487 = vadd.f32 0.0, %v486
      %v488 = vpop.f32.mrf.mxu0
      %489 = vdwg.mxu0
      %v490 = vadd.f32 %v453, %v487
      %v491 = vld [vmem:[%s354] sm:$0x7]
      %s492 = scalar_lea.vmem %s4, 32
      %v493 = vld [vmem:[%s492] sm:$0xf]
      %v494 = vld [vmem:[%s492 + $0x4] sm:$0xf]
      %v497 = vunpack.c.l.b16 %v493
      %v498 = vunpack.c.l.b16 %v494
      %v499 = vpack.c.b16 %v498, %v497
      %v502 = vsel %vm378, %v491, 0
      %504 = vmatpush.bf16.msra.mxu0 0
      %505 = vmatpush.bf16.msra.mxu0 0
      %506 = vmatpush.bf16.msra.mxu0 0
      %507 = vmatpush.bf16.msra.mxu0 0
      %508 = vmatpush.bf16.msra.mxu0 0
      %509 = vmatpush.bf16.msra.mxu0 0
      %510 = vmatpush.bf16.msra.mxu0 0
      %511 = vmatpush.bf16.msra.mxu0 %v499
      %512 = vmatmul.bf16.gmra.mxu0 %v502
      %v513 = vpop.f32.mrf.mxu0
      %v514 = vadd.f32 0.0, %v513
      %v515 = vpop.f32.mrf.mxu0
      %516 = vdwg.mxu0
      %v517 = vadd.f32 %v490, %v514
      %v518 = vld [vmem:[%s359] sm:$0x7]
      %s519 = scalar_lea.vmem %s4, 40
      %v520 = vld [vmem:[%s519] sm:$0xf]
      %v521 = vld [vmem:[%s519 + $0x4] sm:$0xf]
      %v524 = vunpack.c.l.b16 %v520
      %v525 = vunpack.c.l.b16 %v521
      %v526 = vpack.c.b16 %v525, %v524
      %v529 = vsel %vm378, %v518, 0
      %531 = vmatpush.bf16.msra.mxu0 0
      %532 = vmatpush.bf16.msra.mxu0 0
      %533 = vmatpush.bf16.msra.mxu0 0
      %534 = vmatpush.bf16.msra.mxu0 0
      %535 = vmatpush.bf16.msra.mxu0 0
      %536 = vmatpush.bf16.msra.mxu0 0
      %537 = vmatpush.bf16.msra.mxu0 0
      %538 = vmatpush.bf16.msra.mxu0 %v526
      %539 = vmatmul.bf16.gmra.mxu0 %v529
      %v540 = vpop.f32.mrf.mxu0
      %v541 = vadd.f32 0.0, %v540
      %v542 = vpop.f32.mrf.mxu0
      %543 = vdwg.mxu0
      %v544 = vadd.f32 %v517, %v541
      %v545 = vld [vmem:[%s354] sm:$0xf]
      %s546 = scalar_lea.vmem %s4, 48
      %v547 = vld [vmem:[%s546] sm:$0xf]
      %v548 = vld [vmem:[%s546 + $0x4] sm:$0xf]
      %v550 = vunpack.c.l.b16 %v545
      %v551 = vpack.c.b16 %v550, %v550
      %v553 = vshrl.u32 %v551, 16
      %v555 = vshll.u32 %v551, 16
      %v557 = vrot.slane %v555, 1
      %v558 = vor.u32 %v553, %v557
      %v561 = vunpack.c.l.b16 %v547
      %v562 = vunpack.c.l.b16 %v548
      %v563 = vpack.c.b16 %v562, %v561
      %v566 = vsel %vm378, %v558, 0
      %568 = vmatpush.bf16.msra.mxu0 0
      %569 = vmatpush.bf16.msra.mxu0 0
      %570 = vmatpush.bf16.msra.mxu0 0
      %571 = vmatpush.bf16.msra.mxu0 0
      %572 = vmatpush.bf16.msra.mxu0 0
      %573 = vmatpush.bf16.msra.mxu0 0
      %574 = vmatpush.bf16.msra.mxu0 0
      %575 = vmatpush.bf16.msra.mxu0 %v563
      %576 = vmatmul.bf16.gmra.mxu0 %v566
      %v577 = vpop.f32.mrf.mxu0
      %v578 = vadd.f32 0.0, %v577
      %v579 = vpop.f32.mrf.mxu0
      %580 = vdwg.mxu0
      %v581 = vadd.f32 %v544, %v578
      %v582 = vld [vmem:[%s359] sm:$0xf]
      %s583 = scalar_lea.vmem %s4, 56
      %v584 = vld [vmem:[%s583] sm:$0xf]
      %v585 = vld [vmem:[%s583 + $0x4] sm:$0xf]
      %v587 = vunpack.c.l.b16 %v582
      %v588 = vpack.c.b16 %v587, %v587
      %v590 = vshrl.u32 %v588, 16
      %v592 = vshll.u32 %v588, 16
      %v594 = vrot.slane %v592, 1
      %v595 = vor.u32 %v590, %v594
      %v598 = vunpack.c.l.b16 %v584
      %v599 = vunpack.c.l.b16 %v585
      %v600 = vpack.c.b16 %v599, %v598
      %v603 = vsel %vm378, %v595, 0
      %605 = vmatpush.bf16.msra.mxu0 0
      %606 = vmatpush.bf16.msra.mxu0 0
      %607 = vmatpush.bf16.msra.mxu0 0
      %608 = vmatpush.bf16.msra.mxu0 0
      %609 = vmatpush.bf16.msra.mxu0 0
      %610 = vmatpush.bf16.msra.mxu0 0
      %611 = vmatpush.bf16.msra.mxu0 0
      %612 = vmatpush.bf16.msra.mxu0 %v600
      %613 = vmatmul.bf16.gmra.mxu0 %v603
      %v614 = vpop.f32.mrf.mxu0
      %v615 = vadd.f32 0.0, %v614
      %v616 = vpop.f32.mrf.mxu0
      %617 = vdwg.mxu0
      %v618 = vadd.f32 %v581, %v615
      %v619 = vld [vmem:[%s344] sm:$0xe]
      %v620 = vld [vmem:[%s344 + $0x4] sm:$0x1]
      %s621 = scalar_lea.vmem %s4, 64
      %v622 = vld [vmem:[%s621] sm:$0xf]
      %v623 = vld [vmem:[%s621 + $0x4] sm:$0xf]
      %v626 = vunpack.c.l.b16 %v619
      %v627 = vunpack.c.l.b16 %v620
      %v628 = vpack.c.b16 %v627, %v626
      %v630 = vshrl.u32 %v628, 16
      %v632 = vrot.slane %v630, 1
      %v633 = vshll.u32 %v628, 16
      %v635 = vrot.slane %v633, 2
      %v636 = vor.u32 %v632, %v635
      %v639 = vunpack.c.l.b16 %v622
      %v640 = vunpack.c.l.b16 %v623
      %v641 = vpack.c.b16 %v640, %v639
      %v644 = vsel %vm378, %v636, 0
      %646 = vmatpush.bf16.msra.mxu0 0
      %647 = vmatpush.bf16.msra.mxu0 0
      %648 = vmatpush.bf16.msra.mxu0 0
      %649 = vmatpush.bf16.msra.mxu0 0
      %650 = vmatpush.bf16.msra.mxu0 0
      %651 = vmatpush.bf16.msra.mxu0 0
      %652 = vmatpush.bf16.msra.mxu0 0
      %653 = vmatpush.bf16.msra.mxu0 %v641
      %654 = vmatmul.bf16.gmra.mxu0 %v644
      %v655 = vpop.f32.mrf.mxu0
      %v656 = vadd.f32 0.0, %v655
      %v657 = vpop.f32.mrf.mxu0
      %658 = vdwg.mxu0
      %v659 = vadd.f32 %v618, %v656
      %v660 = vld [vmem:[%s349] sm:$0xe]
      %v661 = vld [vmem:[%s349 + $0x4] sm:$0x1]
      %s662 = scalar_lea.vmem %s4, 72
      %v663 = vld [vmem:[%s662] sm:$0xf]
      %v664 = vld [vmem:[%s662 + $0x4] sm:$0xf]
      %v667 = vunpack.c.l.b16 %v660
      %v668 = vunpack.c.l.b16 %v661
      %v669 = vpack.c.b16 %v668, %v667
      %v671 = vshrl.u32 %v669, 16
      %v673 = vrot.slane %v671, 1
      %v674 = vshll.u32 %v669, 16
      %v676 = vrot.slane %v674, 2
      %v677 = vor.u32 %v673, %v676
      %v680 = vunpack.c.l.b16 %v663
      %v681 = vunpack.c.l.b16 %v664
      %v682 = vpack.c.b16 %v681, %v680
      %v685 = vsel %vm378, %v677, 0
      %687 = vmatpush.bf16.msra.mxu0 0
      %688 = vmatpush.bf16.msra.mxu0 0
      %689 = vmatpush.bf16.msra.mxu0 0
      %690 = vmatpush.bf16.msra.mxu0 0
      %691 = vmatpush.bf16.msra.mxu0 0
      %692 = vmatpush.bf16.msra.mxu0 0
      %693 = vmatpush.bf16.msra.mxu0 0
      %694 = vmatpush.bf16.msra.mxu0 %v682
      %695 = vmatmul.bf16.gmra.mxu0 %v685
      %v696 = vpop.f32.mrf.mxu0
      %v697 = vadd.f32 0.0, %v696
      %v698 = vpop.f32.mrf.mxu0
      %699 = vdwg.mxu0
      %v700 = vadd.f32 %v659, %v697
      %v701 = vld [vmem:[%s344] sm:$0xc]
      %s702 = scalar_lea.vmem %s4, 80
      %v703 = vld [vmem:[%s702] sm:$0xf]
      %v704 = vld [vmem:[%s702 + $0x4] sm:$0xf]
      %v706 = vunpack.c.l.b16 %v701
      %v707 = vpack.c.b16 %v627, %v706
      %v708 = vrot.slane %v707, 2
      %v711 = vunpack.c.l.b16 %v703
      %v712 = vunpack.c.l.b16 %v704
      %v713 = vpack.c.b16 %v712, %v711
      %v716 = vsel %vm378, %v708, 0
      %718 = vmatpush.bf16.msra.mxu0 0
      %719 = vmatpush.bf16.msra.mxu0 0
      %720 = vmatpush.bf16.msra.mxu0 0
      %721 = vmatpush.bf16.msra.mxu0 0
      %722 = vmatpush.bf16.msra.mxu0 0
      %723 = vmatpush.bf16.msra.mxu0 0
      %724 = vmatpush.bf16.msra.mxu0 0
      %725 = vmatpush.bf16.msra.mxu0 %v713
      %726 = vmatmul.bf16.gmra.mxu0 %v716
      %v727 = vpop.f32.mrf.mxu0
      %v728 = vadd.f32 0.0, %v727
      %v729 = vpop.f32.mrf.mxu0
      %730 = vdwg.mxu0
      %v731 = vadd.f32 %v700, %v728
      %v732 = vld [vmem:[%s349] sm:$0xc]
      %s733 = scalar_lea.vmem %s4, 88
      %v734 = vld [vmem:[%s733] sm:$0xf]
      %v735 = vld [vmem:[%s733 + $0x4] sm:$0xf]
      %v737 = vunpack.c.l.b16 %v732
      %v738 = vpack.c.b16 %v668, %v737
      %v739 = vrot.slane %v738, 2
      %v742 = vunpack.c.l.b16 %v734
      %v743 = vunpack.c.l.b16 %v735
      %v744 = vpack.c.b16 %v743, %v742
      %v747 = vsel %vm378, %v739, 0
      %749 = vmatpush.bf16.msra.mxu0 0
      %750 = vmatpush.bf16.msra.mxu0 0
      %751 = vmatpush.bf16.msra.mxu0 0
      %752 = vmatpush.bf16.msra.mxu0 0
      %753 = vmatpush.bf16.msra.mxu0 0
      %754 = vmatpush.bf16.msra.mxu0 0
      %755 = vmatpush.bf16.msra.mxu0 0
      %756 = vmatpush.bf16.msra.mxu0 %v744
      %757 = vmatmul.bf16.gmra.mxu0 %v747
      %v758 = vpop.f32.mrf.mxu0
      %v759 = vadd.f32 0.0, %v758
      %v760 = vpop.f32.mrf.mxu0
      %761 = vdwg.mxu0
      %v762 = vadd.f32 %v731, %v759
      %v763 = vld [vmem:[%s354] sm:$0xe]
      %v764 = vld [vmem:[%s354 + $0x4] sm:$0x1]
      %s765 = scalar_lea.vmem %s4, 96
      %v766 = vld [vmem:[%s765] sm:$0xf]
      %v767 = vld [vmem:[%s765 + $0x4] sm:$0xf]
      %v770 = vunpack.c.l.b16 %v763
      %v771 = vunpack.c.l.b16 %v764
      %v772 = vpack.c.b16 %v771, %v770
      %v774 = vshrl.u32 %v772, 16
      %v776 = vrot.slane %v774, 1
      %v777 = vshll.u32 %v772, 16
      %v779 = vrot.slane %v777, 2
      %v780 = vor.u32 %v776, %v779
      %v783 = vunpack.c.l.b16 %v766
      %v784 = vunpack.c.l.b16 %v767
      %v785 = vpack.c.b16 %v784, %v783
      %v788 = vsel %vm378, %v780, 0
      %790 = vmatpush.bf16.msra.mxu0 0
      %791 = vmatpush.bf16.msra.mxu0 0
      %792 = vmatpush.bf16.msra.mxu0 0
      %793 = vmatpush.bf16.msra.mxu0 0
      %794 = vmatpush.bf16.msra.mxu0 0
      %795 = vmatpush.bf16.msra.mxu0 0
      %796 = vmatpush.bf16.msra.mxu0 0
      %797 = vmatpush.bf16.msra.mxu0 %v785
      %798 = vmatmul.bf16.gmra.mxu0 %v788
      %v799 = vpop.f32.mrf.mxu0
      %v800 = vadd.f32 0.0, %v799
      %v801 = vpop.f32.mrf.mxu0
      %802 = vdwg.mxu0
      %v803 = vadd.f32 %v762, %v800
      %v804 = vld [vmem:[%s359] sm:$0xe]
      %v805 = vld [vmem:[%s359 + $0x4] sm:$0x1]
      %s806 = scalar_lea.vmem %s4, 104
      %v807 = vld [vmem:[%s806] sm:$0xf]
      %v808 = vld [vmem:[%s806 + $0x4] sm:$0xf]
      %v811 = vunpack.c.l.b16 %v804
      %v812 = vunpack.c.l.b16 %v805
      %v813 = vpack.c.b16 %v812, %v811
      %v815 = vshrl.u32 %v813, 16
      %v817 = vrot.slane %v815, 1
      %v818 = vshll.u32 %v813, 16
      %v820 = vrot.slane %v818, 2
      %v821 = vor.u32 %v817, %v820
      %v824 = vunpack.c.l.b16 %v807
      %v825 = vunpack.c.l.b16 %v808
      %v826 = vpack.c.b16 %v825, %v824
      %v829 = vsel %vm378, %v821, 0
      %831 = vmatpush.bf16.msra.mxu0 0
      %832 = vmatpush.bf16.msra.mxu0 0
      %833 = vmatpush.bf16.msra.mxu0 0
      %834 = vmatpush.bf16.msra.mxu0 0
      %835 = vmatpush.bf16.msra.mxu0 0
      %836 = vmatpush.bf16.msra.mxu0 0
      %837 = vmatpush.bf16.msra.mxu0 0
      %838 = vmatpush.bf16.msra.mxu0 %v826
      %839 = vmatmul.bf16.gmra.mxu0 %v829
      %v840 = vpop.f32.mrf.mxu0
      %v841 = vadd.f32 0.0, %v840
      %v842 = vpop.f32.mrf.mxu0
      %843 = vdwg.mxu0
      %v844 = vadd.f32 %v803, %v841
      %v845 = vld [vmem:[%s354] sm:$0xc]
      %s846 = scalar_lea.vmem %s4, 112
      %v847 = vld [vmem:[%s846] sm:$0xf]
      %v848 = vld [vmem:[%s846 + $0x4] sm:$0xf]
      %v850 = vunpack.c.l.b16 %v845
      %v851 = vpack.c.b16 %v771, %v850
      %v852 = vrot.slane %v851, 2
      %v855 = vunpack.c.l.b16 %v847
      %v856 = vunpack.c.l.b16 %v848
      %v857 = vpack.c.b16 %v856, %v855
      %v860 = vsel %vm378, %v852, 0
      %862 = vmatpush.bf16.msra.mxu0 0
      %863 = vmatpush.bf16.msra.mxu0 0
      %864 = vmatpush.bf16.msra.mxu0 0
      %865 = vmatpush.bf16.msra.mxu0 0
      %866 = vmatpush.bf16.msra.mxu0 0
      %867 = vmatpush.bf16.msra.mxu0 0
      %868 = vmatpush.bf16.msra.mxu0 0
      %869 = vmatpush.bf16.msra.mxu0 %v857
      %870 = vmatmul.bf16.gmra.mxu0 %v860
      %v871 = vpop.f32.mrf.mxu0
      %v872 = vadd.f32 0.0, %v871
      %v873 = vpop.f32.mrf.mxu0
      %874 = vdwg.mxu0
      %v875 = vadd.f32 %v844, %v872
      %v876 = vld [vmem:[%s359] sm:$0xc]
      %s877 = scalar_lea.vmem %s4, 120
      %v878 = vld [vmem:[%s877] sm:$0xf]
      %v879 = vld [vmem:[%s877 + $0x4] sm:$0xf]
      %v881 = vunpack.c.l.b16 %v876
      %v882 = vpack.c.b16 %v812, %v881
      %v883 = vrot.slane %v882, 2
      %v886 = vunpack.c.l.b16 %v878
      %v887 = vunpack.c.l.b16 %v879
      %v888 = vpack.c.b16 %v887, %v886
      %v891 = vsel %vm378, %v883, 0
      %893 = vmatpush.bf16.msra.mxu0 0
      %894 = vmatpush.bf16.msra.mxu0 0
      %895 = vmatpush.bf16.msra.mxu0 0
      %896 = vmatpush.bf16.msra.mxu0 0
      %897 = vmatpush.bf16.msra.mxu0 0
      %898 = vmatpush.bf16.msra.mxu0 0
      %899 = vmatpush.bf16.msra.mxu0 0
      %900 = vmatpush.bf16.msra.mxu0 %v888
      %901 = vmatmul.bf16.gmra.mxu0 %v891
      %v902 = vpop.f32.mrf.mxu0
      %v903 = vadd.f32 0.0, %v902
      %v904 = vpop.f32.mrf.mxu0
      %905 = vdwg.mxu0
      %v906 = vadd.f32 %v875, %v903
      %v907 = vld [vmem:[%s7] sm:$0x3f]
      %909 = vset.pattern.permute.xlu0 0
      %910 = vperm.xlu0 %909, %v907
      %v911 = vpop.permute.xlu0 %910
      %v913 = vmul.f32 %v906, %v911
      %vm914 = vcmask 259072
      %v915 = vsel %vm914, %v913, 0.0
      %916 = vadd.xlane.f32.xlu0 %v915
      %v917 = vpop.xlane.xlu0 %916
      %v918 = vrot.slane %v917, 4
      %v919 = vadd.f32 %v917, %v918
      %v920 = vrot.slane %v919, 2
      %v921 = vadd.f32 %v919, %v920
      %v922 = vrot.slane %v921, 1
      %v923 = vadd.f32 %v921, %v922
      %s924 = vtos %v923
      %v925 = vstv %s924
      %v926 = vmul.f32 %v925, 0.0078125
      %v927 = vsub.f32 %v906, %v926
      %v928 = vmul.f32 %v927, %v911
      %v929 = vmul.f32 %v928, %v928
      %v930 = vsel %vm914, %v929, 0.0
      %931 = vadd.xlane.f32.xlu0 %v930
      %v932 = vpop.xlane.xlu0 %931
      %v933 = vrot.slane %v932, 4
      %v934 = vadd.f32 %v932, %v933
      %v935 = vrot.slane %v934, 2
      %v936 = vadd.f32 %v934, %v935
      %v937 = vrot.slane %v936, 1
      %v938 = vadd.f32 %v936, %v937
      %s939 = vtos %v938
      %v940 = vstv %s939
      %v941 = vmul.f32 %v940, 0.0078125
      %v942 = vadd.f32 %v941, 1e-05
      %v943 = vrsqrt.pop %v942
      %v944 = vmul.f32 %v943, %v942
      %v945 = vmul.f32 %v944, %v943
      %v946 = vmul.f32 0.5, %v945
      %v947 = vsub.f32 1.5, %v946
      %v948 = vmul.f32 %v943, %v947
      %vm949 = vweird.f32 %v942
      %vm950 = vweird.f32 %v943
      %vm951 = vmor %vm949, %vm950
      %v952 = vsel %vm951, %v943, %v948
      %v953 = vmul.f32 %v927, %v952
      %v954 = vld [vmem:[%s5] sm:$0x3f]
      %v955 = vmul.f32 %v953, %v954
      %v956 = vld [vmem:[%s6] sm:$0x3f]
      %v957 = vadd.f32 %v955, %v956
      %vm958 = vcmp.gt.f32.partialorder %v957, 0.0
      %v959 = vmul.f32 %v957, 0.2
      %v960 = vsel %vm958, %v957, %v959
      %v961 = vpack.c.bf16 %v960, %v960
      %vm962 = vcmask 256000
      %963 = vst.msk [vmem:[%s363] sm:$0x7] %vm962, %v961
      %p964 = scmp.lt.s32.totalorder %s19, 1
      %s965 = scalar_select %p964, %s19, 1
      %s966 = smul.addr %s965, 4
      %s967 = scalar_lea.vmem %s8, %s966
      // Predicated region
      $region53: #{discriminator_forward.7} parent=51 // pred_check
        %p968 = pneg %p225
      $region54: #{discriminator_forward.7} parent=51 // pred_check_branch
        %970 = sbr.rel (%p968) target = $region56
      $region55: #{discriminator_forward.7} parent=51 // pred_region
        _
      $region56: #{discriminator_forward.7} parent=51 // pred_fallthru
        _
    $region52: #{discriminator_forward.7} parent=5 // pred_fallthru
      _
    %p971 = scmp.le.s32.totalorder 2, %s14
    // Predicated region
    $region57: #{discriminator_forward.7} parent=5 // pred_check
      %p972 = pneg %p971
    $region58: #{discriminator_forward.7} parent=5 // pred_check_branch
      %974 = sbr.rel (%p972) target = $region60
    $region59: #{discriminator_forward.7} parent=5 // pred_region
      %s975 = ssub.s32 %s14, 2
      // Predicated region
      $region61: #{discriminator_forward.7} parent=59 // pred_check
        %p976 = pneg %p231
      $region62: #{discriminator_forward.7} parent=59 // pred_check_branch
        %978 = sbr.rel (%p976) target = $region64
      $region63: #{discriminator_forward.7} parent=59 // pred_region
        %p979 = scmp.lt.s32.totalorder %s20, 1
        %s980 = scalar_select %p979, %s20, 1
        %s981 = smul.addr %s980, 4
        %s982 = scalar_lea.vmem %s8, %s981
      $region64: #{discriminator_forward.7} parent=59 // pred_fallthru
        _
    $region60: #{discriminator_forward.7} parent=5 // pred_fallthru
      _
  $region6: #{discriminator_forward.7} parent=0 // loop_footer
    %s18 = sadd.s32 1, %s14
  $region7: #{discriminator_forward.7} parent=0 // loop_footer_branch
    %13 = sbr.rel target = $region3
  $region8: #{discriminator_forward.7} parent=0 // loop_exit
    _

// kernel: discriminator_forward.5
$region0: #{discriminator_forward.5}
  #allocation0 [shape = 'u32[]', space=smem, size = 0x4, offset = 0x4, fixed_abs, tag = 'smem constant byte address 0x4 - core index']
  #allocation1 [shape = 'u32[72,128]{1,0:T(1,128)}', space=vmem, size = 0x9000, scoped, tag = 'internal scratch']
  %s0 = inlined_call_operand.vmem [shape: bf16[2,82,3], index: 0, kind: input, shape index: {}]
  %s1 = inlined_call_operand.vmem [shape: bf16[2,82,3], index: 1, kind: input, shape index: {}]
  %s2 = inlined_call_operand.vmem [shape: bf16[2,82,3], index: 2, kind: input, shape index: {}]
  %s3 = inlined_call_operand.vmem [shape: bf16[2,82,3], index: 3, kind: input, shape index: {}]
  %s4 = inlined_call_operand.vmem [shape: bf16[4,4,3,8], index: 4, kind: input, shape index: {}]
  %s5 = inlined_call_operand.vmem [shape: bf16[2,72,8], index: 5, kind: output, shape index: {}]
  %s6 = sld [smem:[#allocation0]]
  $region53: #{discriminator_forward.5} parent=0
    _
  %s8 = ssub.s32 1, %s6
  %s9 = scalar_select 0, %s8, %s6
  loop: start=0, step=1, limit=4
  $region2: #{discriminator_forward.5} parent=0 // loop_pre_header
    _
  $region3: #{discriminator_forward.5} parent=0 // loop_header
    %s11 = sphi 0, %s15
    %p12 = scmp.ge.s32.totalorder %s11, 4
    %s21 = sphi 0, %s23
    %s24 = sphi 0, %s21
    %s25 = sphi 0, %s24
    %s41 = sphi 0, %s25
    %s47 = sphi 0, %s49
    %s50 = sphi 0, %s47
    %s51 = sphi 0, %s50
    %s67 = sphi 0, %s51
    %s73 = sphi 0, %s75
    %s76 = sphi 0, %s73
    %s77 = sphi 0, %s76
    %s93 = sphi 0, %s77
    %s99 = sphi 0, %s101
    %s102 = sphi 0, %s99
    %s103 = sphi 0, %s102
    %s119 = sphi 0, %s103
    %s123 = sphi 0, %s123
    %s125 = sphi 0, %s123
    %s126 = sphi 0, %s125
    %s140 = sphi 0, %s126
    %s146 = sphi 0, %s148
    %s149 = sphi 0, %s146
    %s150 = sphi 0, %s149
    %s166 = sphi 0, %s150
  $region4: #{discriminator_forward.5} parent=0 // loop_header_branch
    %14 = sbr.rel (%p12) target = $region8
  $region5: #{discriminator_forward.5} parent=0 // loop_body
    %s16 = ssub.s32 %s11, 1
    %s17 = ssub.s32 %s11, 2
    %s18 = sadd.s32 %s11, 1
    %s19 = ssub.s32 %s11, %s18
    %p20 = scmp.eq.s32.totalorder %s19, 0
    %s22 = sadd.s32 %s21, 1
    %s23 = scalar_select %p20, %s21, %s22
    %p26 = pneg %p20
    %p27 = scmp.eq.s32.totalorder %s11, 1
    %p28 = por %p26, %p27
    %p29 = scmp.ne.s32.totalorder %s21, %s24
    %p30 = scmp.eq.s32.totalorder %s11, 0
    %p31 = por %p29, %p30
    %p32 = scmp.ne.s32.totalorder %s21, %s24
    %p33 = scmp.eq.s32.totalorder %s16, 1
    %p34 = por %p32, %p33
    %p35 = scmp.ne.s32.totalorder %s24, %s25
    %p36 = scmp.eq.s32.totalorder %s16, 0
    %p37 = por %p35, %p36
    %p38 = scmp.ne.s32.totalorder %s24, %s25
    %p39 = scmp.eq.s32.totalorder %s17, 1
    %p40 = por %p38, %p39
    %p42 = scmp.ne.s32.totalorder %s25, %s41
    %p43 = scmp.eq.s32.totalorder %s17, 0
    %p44 = por %p42, %p43
    %s45 = ssub.s32 %s11, %s18
    %p46 = scmp.eq.s32.totalorder %s45, 0
    %s48 = sadd.s32 %s47, 1
    %s49 = scalar_select %p46, %s47, %s48
    %p52 = pneg %p46
    %p53 = scmp.eq.s32.totalorder %s11, 1
    %p54 = por %p52, %p53
    %p55 = scmp.ne.s32.totalorder %s47, %s50
    %p56 = scmp.eq.s32.totalorder %s11, 0
    %p57 = por %p55, %p56
    %p58 = scmp.ne.s32.totalorder %s47, %s50
    %p59 = scmp.eq.s32.totalorder %s16, 1
    %p60 = por %p58, %p59
    %p61 = scmp.ne.s32.totalorder %s50, %s51
    %p62 = scmp.eq.s32.totalorder %s16, 0
    %p63 = por %p61, %p62
    %p64 = scmp.ne.s32.totalorder %s50, %s51
    %p65 = scmp.eq.s32.totalorder %s17, 1
    %p66 = por %p64, %p65
    %p68 = scmp.ne.s32.totalorder %s51, %s67
    %p69 = scmp.eq.s32.totalorder %s17, 0
    %p70 = por %p68, %p69
    %s71 = ssub.s32 %s11, %s18
    %p72 = scmp.eq.s32.totalorder %s71, 0
    %s74 = sadd.s32 %s73, 1
    %s75 = scalar_select %p72, %s73, %s74
    %p78 = pneg %p72
    %p79 = scmp.eq.s32.totalorder %s11, 1
    %p80 = por %p78, %p79
    %p81 = scmp.ne.s32.totalorder %s73, %s76
    %p82 = scmp.eq.s32.totalorder %s11, 0
    %p83 = por %p81, %p82
    %p84 = scmp.ne.s32.totalorder %s73, %s76
    %p85 = scmp.eq.s32.totalorder %s16, 1
    %p86 = por %p84, %p85
    %p87 = scmp.ne.s32.totalorder %s76, %s77
    %p88 = scmp.eq.s32.totalorder %s16, 0
    %p89 = por %p87, %p88
    %p90 = scmp.ne.s32.totalorder %s76, %s77
    %p91 = scmp.eq.s32.totalorder %s17, 1
    %p92 = por %p90, %p91
    %p94 = scmp.ne.s32.totalorder %s77, %s93
    %p95 = scmp.eq.s32.totalorder %s17, 0
    %p96 = por %p94, %p95
    %s97 = ssub.s32 %s11, %s18
    %p98 = scmp.eq.s32.totalorder %s97, 0
    %s100 = sadd.s32 %s99, 1
    %s101 = scalar_select %p98, %s99, %s100
    %p104 = pneg %p98
    %p105 = scmp.eq.s32.totalorder %s11, 1
    %p106 = por %p104, %p105
    %p107 = scmp.ne.s32.totalorder %s99, %s102
    %p108 = scmp.eq.s32.totalorder %s11, 0
    %p109 = por %p107, %p108
    %p110 = scmp.ne.s32.totalorder %s99, %s102
    %p111 = scmp.eq.s32.totalorder %s16, 1
    %p112 = por %p110, %p111
    %p113 = scmp.ne.s32.totalorder %s102, %s103
    %p114 = scmp.eq.s32.totalorder %s16, 0
    %p115 = por %p113, %p114
    %p116 = scmp.ne.s32.totalorder %s102, %s103
    %p117 = scmp.eq.s32.totalorder %s17, 1
    %p118 = por %p116, %p117
    %p120 = scmp.ne.s32.totalorder %s103, %s119
    %p121 = scmp.eq.s32.totalorder %s17, 0
    %p122 = por %p120, %p121
    %s124 = sadd.s32 %s123, 1
    %p127 = scmp.eq.s32.totalorder %s11, 1
    %p128 = scmp.ne.s32.totalorder %s123, %s125
    %p129 = scmp.eq.s32.totalorder %s11, 0
    %p130 = por %p128, %p129
    %p131 = scmp.ne.s32.totalorder %s123, %s125
    %p132 = scmp.eq.s32.totalorder %s16, 1
    %p133 = por %p131, %p132
    %p134 = scmp.ne.s32.totalorder %s125, %s126
    %p135 = scmp.eq.s32.totalorder %s16, 0
    %p136 = por %p134, %p135
    %p137 = scmp.ne.s32.totalorder %s125, %s126
    %p138 = scmp.eq.s32.totalorder %s17, 1
    %p139 = por %p137, %p138
    %p141 = scmp.ne.s32.totalorder %s126, %s140
    %p142 = scmp.eq.s32.totalorder %s17, 0
    %p143 = por %p141, %p142
    %s144 = ssub.s32 %s11, %s18
    %p145 = scmp.eq.s32.totalorder %s144, 0
    %s147 = sadd.s32 %s146, 1
    %s148 = scalar_select %p145, %s146, %s147
    %p151 = pneg %p145
    %p152 = scmp.eq.s32.totalorder %s11, 1
    %p153 = por %p151, %p152
    %p154 = scmp.ne.s32.totalorder %s146, %s149
    %p155 = scmp.eq.s32.totalorder %s11, 0
    %p156 = por %p154, %p155
    %p157 = scmp.ne.s32.totalorder %s146, %s149
    %p158 = scmp.eq.s32.totalorder %s16, 1
    %p159 = por %p157, %p158
    %p160 = scmp.ne.s32.totalorder %s149, %s150
    %p161 = scmp.eq.s32.totalorder %s16, 0
    %p162 = por %p160, %p161
    %p163 = scmp.ne.s32.totalorder %s149, %s150
    %p164 = scmp.eq.s32.totalorder %s17, 1
    %p165 = por %p163, %p164
    %p167 = scmp.ne.s32.totalorder %s150, %s166
    %p168 = scmp.eq.s32.totalorder %s17, 0
    %p169 = por %p167, %p168
    %p170 = scmp.le.s32.totalorder 1, %s11
    %p171 = scmp.lt.s32.totalorder %s11, 3
    %p172 = pnand %p170, %p171
    %p173 = pneg %p172
    // Predicated region
    $region9: #{discriminator_forward.5} parent=5 // pred_check
      _
    $region10: #{discriminator_forward.5} parent=5 // pred_check_branch
      %175 = sbr.rel (%p172) target = $region12
    $region11: #{discriminator_forward.5} parent=5 // pred_region
      %s176 = ssub.s32 %s11, 1
      // Predicated region
      $region13: #{discriminator_forward.5} parent=11 // pred_check
        %p177 = pneg %p136
      $region14: #{discriminator_forward.5} parent=11 // pred_check_branch
        %179 = sbr.rel (%p177) target = $region16
      $region15: #{discriminator_forward.5} parent=11 // pred_region
        _
      $region16: #{discriminator_forward.5} parent=11 // pred_fallthru
        _
    $region12: #{discriminator_forward.5} parent=5 // pred_fallthru
      _
    %p180 = scmp.lt.s32.totalorder %s11, 2
    // Predicated region
    $region17: #{discriminator_forward.5} parent=5 // pred_check
      %p181 = pneg %p180
    $region18: #{discriminator_forward.5} parent=5 // pred_check_branch
      %183 = sbr.rel (%p181) target = $region20
    $region19: #{discriminator_forward.5} parent=5 // pred_region
      // Predicated region
      $region21: #{discriminator_forward.5} parent=19 // pred_check
        %p184 = pneg %p31
      $region22: #{discriminator_forward.5} parent=19 // pred_check_branch
        %186 = sbr.rel (%p184) target = $region24
      $region23: #{discriminator_forward.5} parent=19 // pred_region
        %p187 = scmp.lt.s32.totalorder %s11, 1
        %s188 = scalar_select %p187, %s11, 1
        %s189 = smul.addr %s188, 11
        %s190 = smul.addr %s189, 4
        %s191 = scalar_lea.vmem %s0, %s190
      $region24: #{discriminator_forward.5} parent=19 // pred_fallthru
        _
      // Predicated region
      $region25: #{discriminator_forward.5} parent=19 // pred_check
        %p192 = pneg %p57
      $region26: #{discriminator_forward.5} parent=19 // pred_check_branch
        %194 = sbr.rel (%p192) target = $region28
      $region27: #{discriminator_forward.5} parent=19 // pred_region
        %p195 = scmp.lt.s32.totalorder %s11, 1
        %s196 = scalar_select %p195, %s11, 1
        %s197 = smul.addr %s196, 11
        %s198 = smul.addr %s197, 4
        %s199 = scalar_lea.vmem %s1, %s198
      $region28: #{discriminator_forward.5} parent=19 // pred_fallthru
        _
      // Predicated region
      $region29: #{discriminator_forward.5} parent=19 // pred_check
        %p200 = pneg %p83
      $region30: #{discriminator_forward.5} parent=19 // pred_check_branch
        %202 = sbr.rel (%p200) target = $region32
      $region31: #{discriminator_forward.5} parent=19 // pred_region
        %p203 = scmp.lt.s32.totalorder %s11, 1
        %s204 = scalar_select %p203, %s11, 1
        %s205 = smul.addr %s204, 11
        %s206 = smul.addr %s205, 4
        %s207 = scalar_lea.vmem %s2, %s206
      $region32: #{discriminator_forward.5} parent=19 // pred_fallthru
        _
      // Predicated region
      $region33: #{discriminator_forward.5} parent=19 // pred_check
        %p208 = pneg %p109
      $region34: #{discriminator_forward.5} parent=19 // pred_check_branch
        %210 = sbr.rel (%p208) target = $region36
      $region35: #{discriminator_forward.5} parent=19 // pred_region
        %p211 = scmp.lt.s32.totalorder %s11, 1
        %s212 = scalar_select %p211, %s11, 1
        %s213 = smul.addr %s212, 11
        %s214 = smul.addr %s213, 4
        %s215 = scalar_lea.vmem %s3, %s214
      $region36: #{discriminator_forward.5} parent=19 // pred_fallthru
        _
    $region20: #{discriminator_forward.5} parent=5 // pred_fallthru
      _
    %p216 = scmp.le.s32.totalorder 1, %s11
    %p217 = scmp.lt.s32.totalorder %s11, 3
    %p218 = pnand %p216, %p217
    %p219 = pneg %p218
    // Predicated region
    $region37: #{discriminator_forward.5} parent=5 // pred_check
      _
    $region38: #{discriminator_forward.5} parent=5 // pred_check_branch
      %221 = sbr.rel (%p218) target = $region40
    $region39: #{discriminator_forward.5} parent=5 // pred_region
      %s222 = ssub.s32 %s11, 1
      %p223 = scmp.lt.s32.totalorder %s16, 1
      %s224 = scalar_select %p223, %s16, 1
      %s225 = smul.addr %s224, 11
      %s226 = smul.addr %s225, 4
      %s227 = scalar_lea.vmem %s0, %s226
      %p228 = pneg %p37
      %p229 = pneg %p34
      %p230 = scmp.lt.s32.totalorder %s16, 1
      %s231 = scalar_select %p230, %s16, 1
      %s232 = smul.addr %s231, 11
      %s233 = smul.addr %s232, 4
      %s234 = scalar_lea.vmem %s1, %s233
      %p235 = pneg %p63
      %p236 = pneg %p60
      %p237 = scmp.lt.s32.totalorder %s16, 1
      %s238 = scalar_select %p237, %s16, 1
      %s239 = smul.addr %s238, 11
      %s240 = smul.addr %s239, 4
      %s241 = scalar_lea.vmem %s2, %s240
      %p242 = pneg %p89
      %p243 = pneg %p86
      %p244 = scmp.lt.s32.totalorder %s16, 1
      %s245 = scalar_select %p244, %s16, 1
      %s246 = smul.addr %s245, 11
      %s247 = smul.addr %s246, 4
      %s248 = scalar_lea.vmem %s3, %s247
      %p249 = pneg %p115
      %p250 = pneg %p112
      %p251 = pneg %p136
      %p252 = pneg %p133
      %p253 = pneg %p162
      %p254 = pneg %p159
      %p255 = scmp.lt.s32.totalorder %s16, 1
      %s256 = scalar_select %p255, %s16, 1
      %s257 = smul.addr %s256, 9
      %s258 = smul.addr %s257, 4
      %s259 = scalar_lea.vmem %s5, %s258
      %p260 = scmp.lt.s32.totalorder %s16, 1
      %s261 = scalar_select %p260, %s16, 1
      %s262 = smul.addr %s261, 11
      %s263 = smul.addr %s262, 4
      %s264 = scalar_lea.vmem %s0, %s263
      %p265 = scmp.lt.s32.totalorder %s16, 1
      %s266 = scalar_select %p265, %s16, 1
      %s267 = smul.addr %s266, 11
      %s268 = smul.addr %s267, 4
      %s269 = scalar_lea.vmem %s1, %s268
      %p270 = scmp.lt.s32.totalorder %s16, 1
      %s271 = scalar_select %p270, %s16, 1
      %s272 = smul.addr %s271, 11
      %s273 = smul.addr %s272, 4
      %s274 = scalar_lea.vmem %s2, %s273
      %p275 = scmp.lt.s32.totalorder %s16, 1
      %s276 = scalar_select %p275, %s16, 1
      %s277 = smul.addr %s276, 11
      %s278 = smul.addr %s277, 4
      %s279 = scalar_lea.vmem %s3, %s278
      %p280 = scmp.lt.s32.totalorder %s16, 1
      %s281 = scalar_select %p280, %s16, 1
      %s282 = smul.addr %s281, 9
      %s283 = smul.addr %s282, 4
      %s284 = scalar_lea.vmem %s5, %s283
      %v286 = vld [vmem:[%s264] sm:$0xf]
      %v287 = vld [vmem:[%s264 + $0x4] sm:$0xf]
      %v288 = vld [vmem:[%s264 + $0x8] sm:$0xf]
      %v289 = vld [vmem:[%s264 + $0xc] sm:$0xf]
      %v290 = vld [vmem:[%s264 + $0x10] sm:$0xf]
      %v291 = vld [vmem:[%s264 + $0x14] sm:$0xf]
      %v292 = vld [vmem:[%s264 + $0x18] sm:$0xf]
      %v293 = vld [vmem:[%s264 + $0x1c] sm:$0xf]
      %v294 = vld [vmem:[%s264 + $0x20] sm:$0xf]
      %v295 = vld [vmem:[%s4] sm:$0x3]
      %v296 = vld [vmem:[%s269] sm:$0xf]
      %v297 = vld [vmem:[%s269 + $0x4] sm:$0xf]
      %v298 = vld [vmem:[%s269 + $0x8] sm:$0xf]
      %v299 = vld [vmem:[%s269 + $0xc] sm:$0xf]
      %v300 = vld [vmem:[%s269 + $0x10] sm:$0xf]
      %v301 = vld [vmem:[%s269 + $0x14] sm:$0xf]
      %v302 = vld [vmem:[%s269 + $0x18] sm:$0xf]
      %v303 = vld [vmem:[%s269 + $0x1c] sm:$0xf]
      %v304 = vld [vmem:[%s269 + $0x20] sm:$0xf]
      %s305 = scalar_lea.vmem %s4, 2
      %v306 = vld [vmem:[%s305] sm:$0x3]
      %v316 = vunpack.c.l.b16 %v296
      %v317 = vunpack.c.l.b16 %v297
      %v318 = vunpack.c.l.b16 %v298
      %v319 = vunpack.c.l.b16 %v299
      %v320 = vunpack.c.l.b16 %v300
      %v321 = vunpack.c.l.b16 %v301
      %v322 = vunpack.c.l.b16 %v302
      %v323 = vunpack.c.l.b16 %v303
      %v324 = vunpack.c.l.b16 %v304
      %v325 = vpack.c.b16 %v317, %v316
      %v326 = vpack.c.b16 %v319, %v318
      %v327 = vpack.c.b16 %v321, %v320
      %v328 = vpack.c.b16 %v323, %v322
      %v329 = vpack.c.b16 %v324, %v324
      %vm330 = vcmask 23552
      %v332 = vsel %vm330, %v325, 0
      %v335 = vsel %vm330, %v326, 0
      %v338 = vsel %vm330, %v327, 0
      %v341 = vsel %vm330, %v328, 0
      %v344 = vsel %vm330, %v329, 0
      %vm346 = vcmask 1040384
      %vm347 = vcmask 1041408
      %v348 = vsel %vm346, 4294967295, 65535
      %v349 = vsel %vm347, %v348, 0
      %v351 = vand.u32 %v306, %v349
      %353 = vmatpush.bf16.msra.mxu0 0
      %354 = vmatpush.bf16.msra.mxu0 0
      %355 = vmatpush.bf16.msra.mxu0 0
      %356 = vmatpush.bf16.msra.mxu0 0
      %357 = vmatpush.bf16.msra.mxu0 0
      %358 = vmatpush.bf16.msra.mxu0 0
      %359 = vmatpush.bf16.msra.mxu0 0
      %360 = vmatpush.bf16.msra.mxu0 %v351
      %361 = vmatmul.bf16.gmra.mxu0 %v332
      %v362 = vpop.f32.mrf.mxu0
      %v363 = vadd.f32 0.0, %v362
      %v364 = vpop.f32.mrf.mxu0
      %v365 = vadd.f32 0.0, %v364
      %366 = vmatmul.bf16.gmra.mxu0 %v335
      %v367 = vpop.f32.mrf.mxu0
      %v368 = vadd.f32 0.0, %v367
      %v369 = vpop.f32.mrf.mxu0
      %v370 = vadd.f32 0.0, %v369
      %371 = vmatmul.bf16.gmra.mxu0 %v338
      %v372 = vpop.f32.mrf.mxu0
      %v373 = vadd.f32 0.0, %v372
      %v374 = vpop.f32.mrf.mxu0
      %v375 = vadd.f32 0.0, %v374
      %376 = vmatmul.bf16.gmra.mxu0 %v341
      %v377 = vpop.f32.mrf.mxu0
      %v378 = vadd.f32 0.0, %v377
      %v379 = vpop.f32.mrf.mxu0
      %v380 = vadd.f32 0.0, %v379
      %381 = vmatmul.bf16.gmra.mxu0 %v344
      %v382 = vpop.f32.mrf.mxu0
      %v383 = vadd.f32 0.0, %v382
      %v384 = vpop.f32.mrf.mxu0
      %385 = vdwg.mxu0
      %v395 = vunpack.c.l.b16 %v286
      %v396 = vunpack.c.l.b16 %v287
      %v397 = vunpack.c.l.b16 %v288
      %v398 = vunpack.c.l.b16 %v289
      %v399 = vunpack.c.l.b16 %v290
      %v400 = vunpack.c.l.b16 %v291
      %v401 = vunpack.c.l.b16 %v292
      %v402 = vunpack.c.l.b16 %v293
      %v403 = vunpack.c.l.b16 %v294
      %v404 = vpack.c.b16 %v396, %v395
      %v405 = vpack.c.b16 %v398, %v397
      %v406 = vpack.c.b16 %v400, %v399
      %v407 = vpack.c.b16 %v402, %v401
      %v408 = vpack.c.b16 %v403, %v403
      %v410 = vsel %vm330, %v404, 0
      %v413 = vsel %vm330, %v405, 0
      %v416 = vsel %vm330, %v406, 0
      %v419 = vsel %vm330, %v407, 0
      %v422 = vsel %vm330, %v408, 0
      %v425 = vand.u32 %v295, %v349
      %427 = vmatpush.bf16.msra.mxu0 0
      %428 = vmatpush.bf16.msra.mxu0 0
      %429 = vmatpush.bf16.msra.mxu0 0
      %430 = vmatpush.bf16.msra.mxu0 0
      %431 = vmatpush.bf16.msra.mxu0 0
      %432 = vmatpush.bf16.msra.mxu0 0
      %433 = vmatpush.bf16.msra.mxu0 0
      %434 = vmatpush.bf16.msra.mxu0 %v425
      %435 = vmatmul.bf16.gmra.mxu0 %v410
      %v436 = vpop.f32.mrf.mxu0
      %v437 = vadd.f32 %v363, %v436
      %v438 = vpop.f32.mrf.mxu0
      %v439 = vadd.f32 %v365, %v438
      %440 = vmatmul.bf16.gmra.mxu0 %v413
      %v441 = vpop.f32.mrf.mxu0
      %v442 = vadd.f32 %v368, %v441
      %v443 = vpop.f32.mrf.mxu0
      %v444 = vadd.f32 %v370, %v443
      %445 = vmatmul.bf16.gmra.mxu0 %v416
      %v446 = vpop.f32.mrf.mxu0
      %v447 = vadd.f32 %v373, %v446
      %v448 = vpop.f32.mrf.mxu0
      %v449 = vadd.f32 %v375, %v448
      %450 = vmatmul.bf16.gmra.mxu0 %v419
      %v451 = vpop.f32.mrf.mxu0
      %v452 = vadd.f32 %v378, %v451
      %v453 = vpop.f32.mrf.mxu0
      %v454 = vadd.f32 %v380, %v453
      %455 = vmatmul.bf16.gmra.mxu0 %v422
      %v456 = vpop.f32.mrf.mxu0
      %v457 = vadd.f32 %v383, %v456
      %v458 = vpop.f32.mrf.mxu0
      %459 = vdwg.mxu0
      %v460 = vld [vmem:[%s264] sm:$0xf]
      %v461 = vld [vmem:[%s264 + $0x4] sm:$0xf]
      %v462 = vld [vmem:[%s264 + $0x8] sm:$0xf]
      %v463 = vld [vmem:[%s264 + $0xc] sm:$0xf]
      %v464 = vld [vmem:[%s264 + $0x10] sm:$0xf]
      %v465 = vld [vmem:[%s264 + $0x14] sm:$0xf]
      %v466 = vld [vmem:[%s264 + $0x18] sm:$0xf]
      %v467 = vld [vmem:[%s264 + $0x1c] sm:$0xf]
      %v468 = vld [vmem:[%s264 + $0x20] sm:$0xf]
      %v469 = vld [vmem:[%s264 + $0x24] sm:$0x1]
      %s470 = scalar_lea.vmem %s4, 4
      %v471 = vld [vmem:[%s470] sm:$0x3]
      %v482 = vunpack.c.l.b16 %v460
      %v483 = vunpack.c.l.b16 %v461
      %v484 = vunpack.c.l.b16 %v462
      %v485 = vunpack.c.l.b16 %v463
      %v486 = vunpack.c.l.b16 %v464
      %v487 = vunpack.c.l.b16 %v465
      %v488 = vunpack.c.l.b16 %v466
      %v489 = vunpack.c.l.b16 %v467
      %v490 = vunpack.c.l.b16 %v468
      %v491 = vunpack.c.l.b16 %v469
      %v492 = vpack.c.b16 %v483, %v482
      %v493 = vpack.c.b16 %v485, %v484
      %v494 = vpack.c.b16 %v487, %v486
      %v495 = vpack.c.b16 %v489, %v488
      %v496 = vpack.c.b16 %v491, %v490
      %vm497 = vsmask.f32 7424
      %v499 = vshrl.u32 %v492, 16
      %v501 = vshll.u32 %v492, 16
      %v503 = vrot.slane %v501, 1
      %v504 = vor.u32 %v499, %v503
      %v506 = vshll.u32 %v493, 16
      %v508 = vrot.slane %v506, 1
      %v509 = vsel %vm497, %v504, %v508
      %v510 = vshrl.u32 %v493, 16
      %v512 = vor.u32 %v510, %v508
      %v514 = vshll.u32 %v494, 16
      %v516 = vrot.slane %v514, 1
      %v517 = vsel %vm497, %v512, %v516
      %v518 = vshrl.u32 %v494, 16
      %v520 = vor.u32 %v518, %v516
      %v522 = vshll.u32 %v495, 16
      %v524 = vrot.slane %v522, 1
      %v525 = vsel %vm497, %v520, %v524
      %v526 = vshrl.u32 %v495, 16
      %v528 = vor.u32 %v526, %v524
      %v530 = vshll.u32 %v496, 16
      %v532 = vrot.slane %v530, 1
      %v533 = vsel %vm497, %v528, %v532
      %v534 = vshrl.u32 %v496, 16
      %v536 = vor.u32 %v534, %v532
      %v538 = vsel %vm330, %v509, 0
      %v541 = vsel %vm330, %v517, 0
      %v544 = vsel %vm330, %v525, 0
      %v547 = vsel %vm330, %v533, 0
      %v550 = vsel %vm330, %v536, 0
      %v553 = vand.u32 %v471, %v349
      %555 = vmatpush.bf16.msra.mxu0 0
      %556 = vmatpush.bf16.msra.mxu0 0
      %557 = vmatpush.bf16.msra.mxu0 0
      %558 = vmatpush.bf16.msra.mxu0 0
      %559 = vmatpush.bf16.msra.mxu0 0
      %560 = vmatpush.bf16.msra.mxu0 0
      %561 = vmatpush.bf16.msra.mxu0 0
      %562 = vmatpush.bf16.msra.mxu0 %v553
      %563 = vmatmul.bf16.gmra.mxu0 %v538
      %v564 = vpop.f32.mrf.mxu0
      %v565 = vadd.f32 0.0, %v564
      %v566 = vpop.f32.mrf.mxu0
      %v567 = vadd.f32 0.0, %v566
      %568 = vmatmul.bf16.gmra.mxu0 %v541
      %v569 = vpop.f32.mrf.mxu0
      %v570 = vadd.f32 0.0, %v569
      %v571 = vpop.f32.mrf.mxu0
      %v572 = vadd.f32 0.0, %v571
      %573 = vmatmul.bf16.gmra.mxu0 %v544
      %v574 = vpop.f32.mrf.mxu0
      %v575 = vadd.f32 0.0, %v574
      %v576 = vpop.f32.mrf.mxu0
      %v577 = vadd.f32 0.0, %v576
      %578 = vmatmul.bf16.gmra.mxu0 %v547
      %v579 = vpop.f32.mrf.mxu0
      %v580 = vadd.f32 0.0, %v579
      %v581 = vpop.f32.mrf.mxu0
      %v582 = vadd.f32 0.0, %v581
      %583 = vmatmul.bf16.gmra.mxu0 %v550
      %v584 = vpop.f32.mrf.mxu0
      %v585 = vadd.f32 0.0, %v584
      %v586 = vpop.f32.mrf.mxu0
      %587 = vdwg.mxu0
      %v588 = vadd.f32 %v437, %v565
      %v589 = vadd.f32 %v439, %v567
      %v590 = vadd.f32 %v442, %v570
      %v591 = vadd.f32 %v444, %v572
      %v592 = vadd.f32 %v447, %v575
      %v593 = vadd.f32 %v449, %v577
      %v594 = vadd.f32 %v452, %v580
      %v595 = vadd.f32 %v454, %v582
      %v596 = vadd.f32 %v457, %v585
      %v597 = vld [vmem:[%s269] sm:$0xf]
      %v598 = vld [vmem:[%s269 + $0x4] sm:$0xf]
      %v599 = vld [vmem:[%s269 + $0x8] sm:$0xf]
      %v600 = vld [vmem:[%s269 + $0xc] sm:$0xf]
      %v601 = vld [vmem:[%s269 + $0x10] sm:$0xf]
      %v602 = vld [vmem:[%s269 + $0x14] sm:$0xf]
      %v603 = vld [vmem:[%s269 + $0x18] sm:$0xf]
      %v604 = vld [vmem:[%s269 + $0x1c] sm:$0xf]
      %v605 = vld [vmem:[%s269 + $0x20] sm:$0xf]
      %v606 = vld [vmem:[%s269 + $0x24] sm:$0x1]
      %s607 = scalar_lea.vmem %s4, 6
      %v608 = vld [vmem:[%s607] sm:$0x3]
      %v619 = vunpack.c.l.b16 %v597
      %v620 = vunpack.c.l.b16 %v598
      %v621 = vunpack.c.l.b16 %v599
      %v622 = vunpack.c.l.b16 %v600
      %v623 = vunpack.c.l.b16 %v601
      %v624 = vunpack.c.l.b16 %v602
      %v625 = vunpack.c.l.b16 %v603
      %v626 = vunpack.c.l.b16 %v604
      %v627 = vunpack.c.l.b16 %v605
      %v628 = vunpack.c.l.b16 %v606
      %v629 = vpack.c.b16 %v620, %v619
      %v630 = vpack.c.b16 %v622, %v621
      %v631 = vpack.c.b16 %v624, %v623
      %v632 = vpack.c.b16 %v626, %v625
      %v633 = vpack.c.b16 %v628, %v627
      %v635 = vshrl.u32 %v629, 16
      %v637 = vshll.u32 %v629, 16
      %v639 = vrot.slane %v637, 1
      %v640 = vor.u32 %v635, %v639
      %v642 = vshll.u32 %v630, 16
      %v644 = vrot.slane %v642, 1
      %v645 = vsel %vm497, %v640, %v644
      %v646 = vshrl.u32 %v630, 16
      %v648 = vor.u32 %v646, %v644
      %v650 = vshll.u32 %v631, 16
      %v652 = vrot.slane %v650, 1
      %v653 = vsel %vm497, %v648, %v652
      %v654 = vshrl.u32 %v631, 16
      %v656 = vor.u32 %v654, %v652
      %v658 = vshll.u32 %v632, 16
      %v660 = vrot.slane %v658, 1
      %v661 = vsel %vm497, %v656, %v660
      %v662 = vshrl.u32 %v632, 16
      %v664 = vor.u32 %v662, %v660
      %v666 = vshll.u32 %v633, 16
      %v668 = vrot.slane %v666, 1
      %v669 = vsel %vm497, %v664, %v668
      %v670 = vshrl.u32 %v633, 16
      %v672 = vor.u32 %v670, %v668
      %v674 = vsel %vm330, %v645, 0
      %v677 = vsel %vm330, %v653, 0
      %v680 = vsel %vm330, %v661, 0
      %v683 = vsel %vm330, %v669, 0
      %v686 = vsel %vm330, %v672, 0
      %v689 = vand.u32 %v608, %v349
      %691 = vmatpush.bf16.msra.mxu0 0
      %692 = vmatpush.bf16.msra.mxu0 0
      %693 = vmatpush.bf16.msra.mxu0 0
      %694 = vmatpush.bf16.msra.mxu0 0
      %695 = vmatpush.bf16.msra.mxu0 0
      %696 = vmatpush.bf16.msra.mxu0 0
      %697 = vmatpush.bf16.msra.mxu0 0
      %698 = vmatpush.bf16.msra.mxu0 %v689
      %699 = vmatmul.bf16.gmra.mxu0 %v674
      %v700 = vpop.f32.mrf.mxu0
      %v701 = vadd.f32 0.0, %v700
      %v702 = vpop.f32.mrf.mxu0
      %v703 = vadd.f32 0.0, %v702
      %704 = vmatmul.bf16.gmra.mxu0 %v677
      %v705 = vpop.f32.mrf.mxu0
      %v706 = vadd.f32 0.0, %v705
      %v707 = vpop.f32.mrf.mxu0
      %v708 = vadd.f32 0.0, %v707
      %709 = vmatmul.bf16.gmra.mxu0 %v680
      %v710 = vpop.f32.mrf.mxu0
      %v711 = vadd.f32 0.0, %v710
      %v712 = vpop.f32.mrf.mxu0
      %v713 = vadd.f32 0.0, %v712
      %714 = vmatmul.bf16.gmra.mxu0 %v683
      %v715 = vpop.f32.mrf.mxu0
      %v716 = vadd.f32 0.0, %v715
      %v717 = vpop.f32.mrf.mxu0
      %v718 = vadd.f32 0.0, %v717
      %719 = vmatmul.bf16.gmra.mxu0 %v686
      %v720 = vpop.f32.mrf.mxu0
      %v721 = vadd.f32 0.0, %v720
      %v722 = vpop.f32.mrf.mxu0
      %723 = vdwg.mxu0
      %v724 = vadd.f32 %v588, %v701
      %v725 = vadd.f32 %v589, %v703
      %v726 = vadd.f32 %v590, %v706
      %v727 = vadd.f32 %v591, %v708
      %v728 = vadd.f32 %v592, %v711
      %v729 = vadd.f32 %v593, %v713
      %v730 = vadd.f32 %v594, %v716
      %v731 = vadd.f32 %v595, %v718
      %v732 = vadd.f32 %v596, %v721
      %v733 = vld [vmem:[%s274] sm:$0xf]
      %v734 = vld [vmem:[%s274 + $0x4] sm:$0xf]
      %v735 = vld [vmem:[%s274 + $0x8] sm:$0xf]
      %v736 = vld [vmem:[%s274 + $0xc] sm:$0xf]
      %v737 = vld [vmem:[%s274 + $0x10] sm:$0xf]
      %v738 = vld [vmem:[%s274 + $0x14] sm:$0xf]
      %v739 = vld [vmem:[%s274 + $0x18] sm:$0xf]
      %v740 = vld [vmem:[%s274 + $0x1c] sm:$0xf]
      %v741 = vld [vmem:[%s274 + $0x20] sm:$0xf]
      %s742 = scalar_lea.vmem %s4, 8
      %v743 = vld [vmem:[%s742] sm:$0x3]
      %v753 = vunpack.c.l.b16 %v733
      %v754 = vunpack.c.l.b16 %v734
      %v755 = vunpack.c.l.b16 %v735
      %v756 = vunpack.c.l.b16 %v736
      %v757 = vunpack.c.l.b16 %v737
      %v758 = vunpack.c.l.b16 %v738
      %v759 = vunpack.c.l.b16 %v739
      %v760 = vunpack.c.l.b16 %v740
      %v761 = vunpack.c.l.b16 %v741
      %v762 = vpack.c.b16 %v754, %v753
      %v763 = vpack.c.b16 %v756, %v755
      %v764 = vpack.c.b16 %v758, %v757
      %v765 = vpack.c.b16 %v760, %v759
      %v766 = vpack.c.b16 %v761, %v761
      %v768 = vsel %vm330, %v762, 0
      %v771 = vsel %vm330, %v763, 0
      %v774 = vsel %vm330, %v764, 0
      %v777 = vsel %vm330, %v765, 0
      %v780 = vsel %vm330, %v766, 0
      %v783 = vand.u32 %v743, %v349
      %785 = vmatpush.bf16.msra.mxu0 0
      %786 = vmatpush.bf16.msra.mxu0 0
      %787 = vmatpush.bf16.msra.mxu0 0
      %788 = vmatpush.bf16.msra.mxu0 0
      %789 = vmatpush.bf16.msra.mxu0 0
      %790 = vmatpush.bf16.msra.mxu0 0
      %791 = vmatpush.bf16.msra.mxu0 0
      %792 = vmatpush.bf16.msra.mxu0 %v783
      %793 = vmatmul.bf16.gmra.mxu0 %v768
      %v794 = vpop.f32.mrf.mxu0
      %v795 = vadd.f32 0.0, %v794
      %v796 = vpop.f32.mrf.mxu0
      %v797 = vadd.f32 0.0, %v796
      %798 = vmatmul.bf16.gmra.mxu0 %v771
      %v799 = vpop.f32.mrf.mxu0
      %v800 = vadd.f32 0.0, %v799
      %v801 = vpop.f32.mrf.mxu0
      %v802 = vadd.f32 0.0, %v801
      %803 = vmatmul.bf16.gmra.mxu0 %v774
      %v804 = vpop.f32.mrf.mxu0
      %v805 = vadd.f32 0.0, %v804
      %v806 = vpop.f32.mrf.mxu0
      %v807 = vadd.f32 0.0, %v806
      %808 = vmatmul.bf16.gmra.mxu0 %v777
      %v809 = vpop.f32.mrf.mxu0
      %v810 = vadd.f32 0.0, %v809
      %v811 = vpop.f32.mrf.mxu0
      %v812 = vadd.f32 0.0, %v811
      %813 = vmatmul.bf16.gmra.mxu0 %v780
      %v814 = vpop.f32.mrf.mxu0
      %v815 = vadd.f32 0.0, %v814
      %v816 = vpop.f32.mrf.mxu0
      %817 = vdwg.mxu0
      %v818 = vadd.f32 %v724, %v795
      %v819 = vadd.f32 %v725, %v797
      %v820 = vadd.f32 %v726, %v800
      %v821 = vadd.f32 %v727, %v802
      %v822 = vadd.f32 %v728, %v805
      %v823 = vadd.f32 %v729, %v807
      %v824 = vadd.f32 %v730, %v810
      %v825 = vadd.f32 %v731, %v812
      %v826 = vadd.f32 %v732, %v815
      %v827 = vld [vmem:[%s279] sm:$0xf]
      %v828 = vld [vmem:[%s279 + $0x4] sm:$0xf]
      %v829 = vld [vmem:[%s279 + $0x8] sm:$0xf]
      %v830 = vld [vmem:[%s279 + $0xc] sm:$0xf]
      %v831 = vld [vmem:[%s279 + $0x10] sm:$0xf]
      %v832 = vld [vmem:[%s279 + $0x14] sm:$0xf]
      %v833 = vld [vmem:[%s279 + $0x18] sm:$0xf]
      %v834 = vld [vmem:[%s279 + $0x1c] sm:$0xf]
      %v835 = vld [vmem:[%s279 + $0x20] sm:$0xf]
      %s836 = scalar_lea.vmem %s4, 10
      %v837 = vld [vmem:[%s836] sm:$0x3]
      %v847 = vunpack.c.l.b16 %v827
      %v848 = vunpack.c.l.b16 %v828
      %v849 = vunpack.c.l.b16 %v829
      %v850 = vunpack.c.l.b16 %v830
      %v851 = vunpack.c.l.b16 %v831
      %v852 = vunpack.c.l.b16 %v832
      %v853 = vunpack.c.l.b16 %v833
      %v854 = vunpack.c.l.b16 %v834
      %v855 = vunpack.c.l.b16 %v835
      %v856 = vpack.c.b16 %v848, %v847
      %v857 = vpack.c.b16 %v850, %v849
      %v858 = vpack.c.b16 %v852, %v851
      %v859 = vpack.c.b16 %v854, %v853
      %v860 = vpack.c.b16 %v855, %v855
      %v862 = vsel %vm330, %v856, 0
      %v865 = vsel %vm330, %v857, 0
      %v868 = vsel %vm330, %v858, 0
      %v871 = vsel %vm330, %v859, 0
      %v874 = vsel %vm330, %v860, 0
      %v877 = vand.u32 %v837, %v349
      %879 = vmatpush.bf16.msra.mxu0 0
      %880 = vmatpush.bf16.msra.mxu0 0
      %881 = vmatpush.bf16.msra.mxu0 0
      %882 = vmatpush.bf16.msra.mxu0 0
      %883 = vmatpush.bf16.msra.mxu0 0
      %884 = vmatpush.bf16.msra.mxu0 0
      %885 = vmatpush.bf16.msra.mxu0 0
      %886 = vmatpush.bf16.msra.mxu0 %v877
      %887 = vmatmul.bf16.gmra.mxu0 %v862
      %v888 = vpop.f32.mrf.mxu0
      %v889 = vadd.f32 0.0, %v888
      %v890 = vpop.f32.mrf.mxu0
      %v891 = vadd.f32 0.0, %v890
      %892 = vmatmul.bf16.gmra.mxu0 %v865
      %v893 = vpop.f32.mrf.mxu0
      %v894 = vadd.f32 0.0, %v893
      %v895 = vpop.f32.mrf.mxu0
      %v896 = vadd.f32 0.0, %v895
      %897 = vmatmul.bf16.gmra.mxu0 %v868
      %v898 = vpop.f32.mrf.mxu0
      %v899 = vadd.f32 0.0, %v898
      %v900 = vpop.f32.mrf.mxu0
      %v901 = vadd.f32 0.0, %v900
      %902 = vmatmul.bf16.gmra.mxu0 %v871
      %v903 = vpop.f32.mrf.mxu0
      %v904 = vadd.f32 0.0, %v903
      %v905 = vpop.f32.mrf.mxu0
      %v906 = vadd.f32 0.0, %v905
      %907 = vmatmul.bf16.gmra.mxu0 %v874
      %v908 = vpop.f32.mrf.mxu0
      %v909 = vadd.f32 0.0, %v908
      %v910 = vpop.f32.mrf.mxu0
      %911 = vdwg.mxu0
      %v912 = vadd.f32 %v818, %v889
      %v913 = vadd.f32 %v819, %v891
      %v914 = vadd.f32 %v820, %v894
      %v915 = vadd.f32 %v821, %v896
      %v916 = vadd.f32 %v822, %v899
      %v917 = vadd.f32 %v823, %v901
      %v918 = vadd.f32 %v824, %v904
      %v919 = vadd.f32 %v825, %v906
      %v920 = vadd.f32 %v826, %v909
      %v921 = vld [vmem:[%s274] sm:$0xf]
      %v922 = vld [vmem:[%s274 + $0x4] sm:$0xf]
      %v923 = vld [vmem:[%s274 + $0x8] sm:$0xf]
      %v924 = vld [vmem:[%s274 + $0xc] sm:$0xf]
      %v925 = vld [vmem:[%s274 + $0x10] sm:$0xf]
      %v926 = vld [vmem:[%s274 + $0x14] sm:$0xf]
      %v927 = vld [vmem:[%s274 + $0x18] sm:$0xf]
      %v928 = vld [vmem:[%s274 + $0x1c] sm:$0xf]
      %v929 = vld [vmem:[%s274 + $0x20] sm:$0xf]
      %v930 = vld [vmem:[%s274 + $0x24] sm:$0x1]
      %s931 = scalar_lea.vmem %s4, 12
      %v932 = vld [vmem:[%s931] sm:$0x3]
      %v943 = vunpack.c.l.b16 %v921
      %v944 = vunpack.c.l.b16 %v922
      %v945 = vunpack.c.l.b16 %v923
      %v946 = vunpack.c.l.b16 %v924
      %v947 = vunpack.c.l.b16 %v925
      %v948 = vunpack.c.l.b16 %v926
      %v949 = vunpack.c.l.b16 %v927
      %v950 = vunpack.c.l.b16 %v928
      %v951 = vunpack.c.l.b16 %v929
      %v952 = vunpack.c.l.b16 %v930
      %v953 = vpack.c.b16 %v944, %v943
      %v954 = vpack.c.b16 %v946, %v945
      %v955 = vpack.c.b16 %v948, %v947
      %v956 = vpack.c.b16 %v950, %v949
      %v957 = vpack.c.b16 %v952, %v951
      %v959 = vshrl.u32 %v953, 16
      %v961 = vshll.u32 %v953, 16
      %v963 = vrot.slane %v961, 1
      %v964 = vor.u32 %v959, %v963
      %v966 = vshll.u32 %v954, 16
      %v968 = vrot.slane %v966, 1
      %v969 = vsel %vm497, %v964, %v968
      %v970 = vshrl.u32 %v954, 16
      %v972 = vor.u32 %v970, %v968
      %v974 = vshll.u32 %v955, 16
      %v976 = vrot.slane %v974, 1
      %v977 = vsel %vm497, %v972, %v976
      %v978 = vshrl.u32 %v955, 16
      %v980 = vor.u32 %v978, %v976
      %v982 = vshll.u32 %v956, 16
      %v984 = vrot.slane %v982, 1
      %v985 = vsel %vm497, %v980, %v984
      %v986 = vshrl.u32 %v956, 16
      %v988 = vor.u32 %v986, %v984
      %v990 = vshll.u32 %v957, 16
      %v992 = vrot.slane %v990, 1
      %v993 = vsel %vm497, %v988, %v992
      %v994 = vshrl.u32 %v957, 16
      %v996 = vor.u32 %v994, %v992
      %v998 = vsel %vm330, %v969, 0
      %v1001 = vsel %vm330, %v977, 0
      %v1004 = vsel %vm330, %v985, 0
      %v1007 = vsel %vm330, %v993, 0
      %v1010 = vsel %vm330, %v996, 0
      %v1013 = vand.u32 %v932, %v349
      %1015 = vmatpush.bf16.msra.mxu0 0
      %1016 = vmatpush.bf16.msra.mxu0 0
      %1017 = vmatpush.bf16.msra.mxu0 0
      %1018 = vmatpush.bf16.msra.mxu0 0
      %1019 = vmatpush.bf16.msra.mxu0 0
      %1020 = vmatpush.bf16.msra.mxu0 0
      %1021 = vmatpush.bf16.msra.mxu0 0
      %1022 = vmatpush.bf16.msra.mxu0 %v1013
      %1023 = vmatmul.bf16.gmra.mxu0 %v998
      %v1024 = vpop.f32.mrf.mxu0
      %v1025 = vadd.f32 0.0, %v1024
      %v1026 = vpop.f32.mrf.mxu0
      %v1027 = vadd.f32 0.0, %v1026
      %1028 = vmatmul.bf16.gmra.mxu0 %v1001
      %v1029 = vpop.f32.mrf.mxu0
      %v1030 = vadd.f32 0.0, %v1029
      %v1031 = vpop.f32.mrf.mxu0
      %v1032 = vadd.f32 0.0, %v1031
      %1033 = vmatmul.bf16.gmra.mxu0 %v1004
      %v1034 = vpop.f32.mrf.mxu0
      %v1035 = vadd.f32 0.0, %v1034
      %v1036 = vpop.f32.mrf.mxu0
      %v1037 = vadd.f32 0.0, %v1036
      %1038 = vmatmul.bf16.gmra.mxu0 %v1007
      %v1039 = vpop.f32.mrf.mxu0
      %v1040 = vadd.f32 0.0, %v1039
      %v1041 = vpop.f32.mrf.mxu0
      %v1042 = vadd.f32 0.0, %v1041
      %1043 = vmatmul.bf16.gmra.mxu0 %v1010
      %v1044 = vpop.f32.mrf.mxu0
      %v1045 = vadd.f32 0.0, %v1044
      %v1046 = vpop.f32.mrf.mxu0
      %1047 = vdwg.mxu0
      %v1048 = vadd.f32 %v912, %v1025
      %v1049 = vadd.f32 %v913, %v1027
      %v1050 = vadd.f32 %v914, %v1030
      %v1051 = vadd.f32 %v915, %v1032
      %v1052 = vadd.f32 %v916, %v1035
      %v1053 = vadd.f32 %v917, %v1037
      %v1054 = vadd.f32 %v918, %v1040
      %v1055 = vadd.f32 %v919, %v1042
      %v1056 = vadd.f32 %v920, %v1045
      %v1057 = vld [vmem:[%s279] sm:$0xf]
      %v1058 = vld [vmem:[%s279 + $0x4] sm:$0xf]
      %v1059 = vld [vmem:[%s279 + $0x8] sm:$0xf]
      %v1060 = vld [vmem:[%s279 + $0xc] sm:$0xf]
      %v1061 = vld [vmem:[%s279 + $0x10] sm:$0xf]
      %v1062 = vld [vmem:[%s279 + $0x14] sm:$0xf]
      %v1063 = vld [vmem:[%s279 + $0x18] sm:$0xf]
      %v1064 = vld [vmem:[%s279 + $0x1c] sm:$0xf]
      %v1065 = vld [vmem:[%s279 + $0x20] sm:$0xf]
      %v1066 = vld [vmem:[%s279 + $0x24] sm:$0x1]
      %s1067 = scalar_lea.vmem %s4, 14
      %v1068 = vld [vmem:[%s1067] sm:$0x3]
      %v1079 = vunpack.c.l.b16 %v1057
      %v1080 = vunpack.c.l.b16 %v1058
      %v1081 = vunpack.c.l.b16 %v1059
      %v1082 = vunpack.c.l.b16 %v1060
      %v1083 = vunpack.c.l.b16 %v1061
      %v1084 = vunpack.c.l.b16 %v1062
      %v1085 = vunpack.c.l.b16 %v1063
      %v1086 = vunpack.c.l.b16 %v1064
      %v1087 = vunpack.c.l.b16 %v1065
      %v1088 = vunpack.c.l.b16 %v1066
      %v1089 = vpack.c.b16 %v1080, %v1079
      %v1090 = vpack.c.b16 %v1082, %v1081
      %v1091 = vpack.c.b16 %v1084, %v1083
      %v1092 = vpack.c.b16 %v1086, %v1085
      %v1093 = vpack.c.b16 %v1088, %v1087
      %v1095 = vshrl.u32 %v1089, 16
      %v1097 = vshll.u32 %v1089, 16
      %v1099 = vrot.slane %v1097, 1
      %v1100 = vor.u32 %v1095, %v1099
      %v1102 = vshll.u32 %v1090, 16
      %v1104 = vrot.slane %v1102, 1
      %v1105 = vsel %vm497, %v1100, %v1104
      %v1106 = vshrl.u32 %v1090, 16
      %v1108 = vor.u32 %v1106, %v1104
      %v1110 = vshll.u32 %v1091, 16
      %v1112 = vrot.slane %v1110, 1
      %v1113 = vsel %vm497, %v1108, %v1112
      %v1114 = vshrl.u32 %v1091, 16
      %v1116 = vor.u32 %v1114, %v1112
      %v1118 = vshll.u32 %v1092, 16
      %v1120 = vrot.slane %v1118, 1
      %v1121 = vsel %vm497, %v1116, %v1120
      %v1122 = vshrl.u32 %v1092, 16
      %v1124 = vor.u32 %v1122, %v1120
      %v1126 = vshll.u32 %v1093, 16
      %v1128 = vrot.slane %v1126, 1
      %v1129 = vsel %vm497, %v1124, %v1128
      %v1130 = vshrl.u32 %v1093, 16
      %v1132 = vor.u32 %v1130, %v1128
      %v1134 = vsel %vm330, %v1105, 0
      %v1137 = vsel %vm330, %v1113, 0
      %v1140 = vsel %vm330, %v1121, 0
      %v1143 = vsel %vm330, %v1129, 0
      %v1146 = vsel %vm330, %v1132, 0
      %v1149 = vand.u32 %v1068, %v349
      %1151 = vmatpush.bf16.msra.mxu0 0
      %1152 = vmatpush.bf16.msra.mxu0 0
      %1153 = vmatpush.bf16.msra.mxu0 0
      %1154 = vmatpush.bf16.msra.mxu0 0
      %1155 = vmatpush.bf16.msra.mxu0 0
      %1156 = vmatpush.bf16.msra.mxu0 0
      %1157 = vmatpush.bf16.msra.mxu0 0
      %1158 = vmatpush.bf16.msra.mxu0 %v1149
      %1159 = vmatmul.bf16.gmra.mxu0 %v1134
      %v1160 = vpop.f32.mrf.mxu0
      %v1161 = vadd.f32 0.0, %v1160
      %v1162 = vpop.f32.mrf.mxu0
      %v1163 = vadd.f32 0.0, %v1162
      %1164 = vmatmul.bf16.gmra.mxu0 %v1137
      %v1165 = vpop.f32.mrf.mxu0
      %v1166 = vadd.f32 0.0, %v1165
      %v1167 = vpop.f32.mrf.mxu0
      %v1168 = vadd.f32 0.0, %v1167
      %1169 = vmatmul.bf16.gmra.mxu0 %v1140
      %v1170 = vpop.f32.mrf.mxu0
      %v1171 = vadd.f32 0.0, %v1170
      %v1172 = vpop.f32.mrf.mxu0
      %v1173 = vadd.f32 0.0, %v1172
      %1174 = vmatmul.bf16.gmra.mxu0 %v1143
      %v1175 = vpop.f32.mrf.mxu0
      %v1176 = vadd.f32 0.0, %v1175
      %v1177 = vpop.f32.mrf.mxu0
      %v1178 = vadd.f32 0.0, %v1177
      %1179 = vmatmul.bf16.gmra.mxu0 %v1146
      %v1180 = vpop.f32.mrf.mxu0
      %v1181 = vadd.f32 0.0, %v1180
      %v1182 = vpop.f32.mrf.mxu0
      %1183 = vdwg.mxu0
      %v1184 = vadd.f32 %v1048, %v1161
      %v1185 = vadd.f32 %v1049, %v1163
      %v1186 = vadd.f32 %v1050, %v1166
      %v1187 = vadd.f32 %v1051, %v1168
      %v1188 = vadd.f32 %v1052, %v1171
      %v1189 = vadd.f32 %v1053, %v1173
      %v1190 = vadd.f32 %v1054, %v1176
      %v1191 = vadd.f32 %v1055, %v1178
      %v1192 = vadd.f32 %v1056, %v1181
      %v1193 = vld [vmem:[%s264 + $0x4] sm:$0xf]
      %v1194 = vld [vmem:[%s264 + $0x8] sm:$0xf]
      %v1195 = vld [vmem:[%s264 + $0xc] sm:$0xf]
      %v1196 = vld [vmem:[%s264 + $0x10] sm:$0xf]
      %v1197 = vld [vmem:[%s264 + $0x14] sm:$0xf]
      %v1198 = vld [vmem:[%s264 + $0x18] sm:$0xf]
      %v1199 = vld [vmem:[%s264 + $0x1c] sm:$0xf]
      %v1200 = vld [vmem:[%s264 + $0x20] sm:$0xf]
      %v1201 = vld [vmem:[%s264 + $0x24] sm:$0xf]
      %v1202 = vld [vmem:[%s264 + $0x28] sm:$0x1]
      %s1203 = scalar_lea.vmem %s4, 16
      %v1204 = vld [vmem:[%s1203] sm:$0x3]
      %v1215 = vunpack.c.l.b16 %v1193
      %v1216 = vunpack.c.l.b16 %v1194
      %v1217 = vunpack.c.l.b16 %v1195
      %v1218 = vunpack.c.l.b16 %v1196
      %v1219 = vunpack.c.l.b16 %v1197
      %v1220 = vunpack.c.l.b16 %v1198
      %v1221 = vunpack.c.l.b16 %v1199
      %v1222 = vunpack.c.l.b16 %v1200
      %v1223 = vunpack.c.l.b16 %v1201
      %v1224 = vunpack.c.l.b16 %v1202
      %v1225 = vpack.c.b16 %v1216, %v1215
      %v1226 = vpack.c.b16 %v1218, %v1217
      %v1227 = vpack.c.b16 %v1220, %v1219
      %v1228 = vpack.c.b16 %v1222, %v1221
      %v1229 = vpack.c.b16 %v1224, %v1223
      %v1231 = vshrl.u32 %v1225, 16
      %v1233 = vshll.u32 %v1225, 16
      %v1235 = vrot.slane %v1233, 1
      %v1236 = vor.u32 %v1231, %v1235
      %v1238 = vshll.u32 %v1226, 16
      %v1240 = vrot.slane %v1238, 1
      %v1241 = vsel %vm497, %v1236, %v1240
      %v1242 = vshrl.u32 %v1226, 16
      %v1244 = vor.u32 %v1242, %v1240
      %v1246 = vshll.u32 %v1227, 16
      %v1248 = vrot.slane %v1246, 1
      %v1249 = vsel %vm497, %v1244, %v1248
      %v1250 = vshrl.u32 %v1227, 16
      %v1252 = vor.u32 %v1250, %v1248
      %v1254 = vshll.u32 %v1228, 16
      %v1256 = vrot.slane %v1254, 1
      %v1257 = vsel %vm497, %v1252, %v1256
      %v1258 = vshrl.u32 %v1228, 16
      %v1260 = vor.u32 %v1258, %v1256
      %v1262 = vshll.u32 %v1229, 16
      %v1264 = vrot.slane %v1262, 1
      %v1265 = vsel %vm497, %v1260, %v1264
      %v1266 = vshrl.u32 %v1229, 16
      %v1268 = vor.u32 %v1266, %v1264
      %v1270 = vsel %vm330, %v1241, 0
      %v1273 = vsel %vm330, %v1249, 0
      %v1276 = vsel %vm330, %v1257, 0
      %v1279 = vsel %vm330, %v1265, 0
      %v1282 = vsel %vm330, %v1268, 0
      %v1285 = vand.u32 %v1204, %v349
      %1287 = vmatpush.bf16.msra.mxu0 0
      %1288 = vmatpush.bf16.msra.mxu0 0
      %1289 = vmatpush.bf16.msra.mxu0 0
      %1290 = vmatpush.bf16.msra.mxu0 0
      %1291 = vmatpush.bf16.msra.mxu0 0
      %1292 = vmatpush.bf16.msra.mxu0 0
      %1293 = vmatpush.bf16.msra.mxu0 0
      %1294 = vmatpush.bf16.msra.mxu0 %v1285
      %1295 = vmatmul.bf16.gmra.mxu0 %v1270
      %v1296 = vpop.f32.mrf.mxu0
      %v1297 = vadd.f32 0.0, %v1296
      %v1298 = vpop.f32.mrf.mxu0
      %v1299 = vadd.f32 0.0, %v1298
      %1300 = vmatmul.bf16.gmra.mxu0 %v1273
      %v1301 = vpop.f32.mrf.mxu0
      %v1302 = vadd.f32 0.0, %v1301
      %v1303 = vpop.f32.mrf.mxu0
      %v1304 = vadd.f32 0.0, %v1303
      %1305 = vmatmul.bf16.gmra.mxu0 %v1276
      %v1306 = vpop.f32.mrf.mxu0
      %v1307 = vadd.f32 0.0, %v1306
      %v1308 = vpop.f32.mrf.mxu0
      %v1309 = vadd.f32 0.0, %v1308
      %1310 = vmatmul.bf16.gmra.mxu0 %v1279
      %v1311 = vpop.f32.mrf.mxu0
      %v1312 = vadd.f32 0.0, %v1311
      %v1313 = vpop.f32.mrf.mxu0
      %v1314 = vadd.f32 0.0, %v1313
      %1315 = vmatmul.bf16.gmra.mxu0 %v1282
      %v1316 = vpop.f32.mrf.mxu0
      %v1317 = vadd.f32 0.0, %v1316
      %v1318 = vpop.f32.mrf.mxu0
      %1319 = vdwg.mxu0
      %v1320 = vadd.f32 %v1184, %v1297
      %v1321 = vadd.f32 %v1185, %v1299
      %v1322 = vadd.f32 %v1186, %v1302
      %v1323 = vadd.f32 %v1187, %v1304
      %v1324 = vadd.f32 %v1188, %v1307
      %v1325 = vadd.f32 %v1189, %v1309
      %v1326 = vadd.f32 %v1190, %v1312
      %v1327 = vadd.f32 %v1191, %v1314
      %v1328 = vadd.f32 %v1192, %v1317
      %v1329 = vld [vmem:[%s269 + $0x4] sm:$0xf]
      %v1330 = vld [vmem:[%s269 + $0x8] sm:$0xf]
      %v1331 = vld [vmem:[%s269 + $0xc] sm:$0xf]
      %v1332 = vld [vmem:[%s269 + $0x10] sm:$0xf]
      %v1333 = vld [vmem:[%s269 + $0x14] sm:$0xf]
      %v1334 = vld [vmem:[%s269 + $0x18] sm:$0xf]
      %v1335 = vld [vmem:[%s269 + $0x1c] sm:$0xf]
      %v1336 = vld [vmem:[%s269 + $0x20] sm:$0xf]
      %v1337 = vld [vmem:[%s269 + $0x24] sm:$0xf]
      %v1338 = vld [vmem:[%s269 + $0x28] sm:$0x1]
      %s1339 = scalar_lea.vmem %s4, 18
      %v1340 = vld [vmem:[%s1339] sm:$0x3]
      %v1351 = vunpack.c.l.b16 %v1329
      %v1352 = vunpack.c.l.b16 %v1330
      %v1353 = vunpack.c.l.b16 %v1331
      %v1354 = vunpack.c.l.b16 %v1332
      %v1355 = vunpack.c.l.b16 %v1333
      %v1356 = vunpack.c.l.b16 %v1334
      %v1357 = vunpack.c.l.b16 %v1335
      %v1358 = vunpack.c.l.b16 %v1336
      %v1359 = vunpack.c.l.b16 %v1337
      %v1360 = vunpack.c.l.b16 %v1338
      %v1361 = vpack.c.b16 %v1352, %v1351
      %v1362 = vpack.c.b16 %v1354, %v1353
      %v1363 = vpack.c.b16 %v1356, %v1355
      %v1364 = vpack.c.b16 %v1358, %v1357
      %v1365 = vpack.c.b16 %v1360, %v1359
      %v1367 = vshrl.u32 %v1361, 16
      %v1369 = vshll.u32 %v1361, 16
      %v1371 = vrot.slane %v1369, 1
      %v1372 = vor.u32 %v1367, %v1371
      %v1374 = vshll.u32 %v1362, 16
      %v1376 = vrot.slane %v1374, 1
      %v1377 = vsel %vm497, %v1372, %v1376
      %v1378 = vshrl.u32 %v1362, 16
      %v1380 = vor.u32 %v1378, %v1376
      %v1382 = vshll.u32 %v1363, 16
      %v1384 = vrot.slane %v1382, 1
      %v1385 = vsel %vm497, %v1380, %v1384
      %v1386 = vshrl.u32 %v1363, 16
      %v1388 = vor.u32 %v1386, %v1384
      %v1390 = vshll.u32 %v1364, 16
      %v1392 = vrot.slane %v1390, 1
      %v1393 = vsel %vm497, %v1388, %v1392
      %v1394 = vshrl.u32 %v1364, 16
      %v1396 = vor.u32 %v1394, %v1392
      %v1398 = vshll.u32 %v1365, 16
      %v1400 = vrot.slane %v1398, 1
      %v1401 = vsel %vm497, %v1396, %v1400
      %v1402 = vshrl.u32 %v1365, 16
      %v1404 = vor.u32 %v1402, %v1400
      %v1406 = vsel %vm330, %v1377, 0
      %v1409 = vsel %vm330, %v1385, 0
      %v1412 = vsel %vm330, %v1393, 0
      %v1415 = vsel %vm330, %v1401, 0
      %v1418 = vsel %vm330, %v1404, 0
      %v1421 = vand.u32 %v1340, %v349
      %1423 = vmatpush.bf16.msra.mxu0 0
      %1424 = vmatpush.bf16.msra.mxu0 0
      %1425 = vmatpush.bf16.msra.mxu0 0
      %1426 = vmatpush.bf16.msra.mxu0 0
      %1427 = vmatpush.bf16.msra.mxu0 0
      %1428 = vmatpush.bf16.msra.mxu0 0
      %1429 = vmatpush.bf16.msra.mxu0 0
      %1430 = vmatpush.bf16.msra.mxu0 %v1421
      %1431 = vmatmul.bf16.gmra.mxu0 %v1406
      %v1432 = vpop.f32.mrf.mxu0
      %v1433 = vadd.f32 0.0, %v1432
      %v1434 = vpop.f32.mrf.mxu0
      %v1435 = vadd.f32 0.0, %v1434
      %1436 = vmatmul.bf16.gmra.mxu0 %v1409
      %v1437 = vpop.f32.mrf.mxu0
      %v1438 = vadd.f32 0.0, %v1437
      %v1439 = vpop.f32.mrf.mxu0
      %v1440 = vadd.f32 0.0, %v1439
      %1441 = vmatmul.bf16.gmra.mxu0 %v1412
      %v1442 = vpop.f32.mrf.mxu0
      %v1443 = vadd.f32 0.0, %v1442
      %v1444 = vpop.f32.mrf.mxu0
      %v1445 = vadd.f32 0.0, %v1444
      %1446 = vmatmul.bf16.gmra.mxu0 %v1415
      %v1447 = vpop.f32.mrf.mxu0
      %v1448 = vadd.f32 0.0, %v1447
      %v1449 = vpop.f32.mrf.mxu0
      %v1450 = vadd.f32 0.0, %v1449
      %1451 = vmatmul.bf16.gmra.mxu0 %v1418
      %v1452 = vpop.f32.mrf.mxu0
      %v1453 = vadd.f32 0.0, %v1452
      %v1454 = vpop.f32.mrf.mxu0
      %1455 = vdwg.mxu0
      %v1456 = vadd.f32 %v1320, %v1433
      %v1457 = vadd.f32 %v1321, %v1435
      %v1458 = vadd.f32 %v1322, %v1438
      %v1459 = vadd.f32 %v1323, %v1440
      %v1460 = vadd.f32 %v1324, %v1443
      %v1461 = vadd.f32 %v1325, %v1445
      %v1462 = vadd.f32 %v1326, %v1448
      %v1463 = vadd.f32 %v1327, %v1450
      %v1464 = vadd.f32 %v1328, %v1453
      %v1465 = vld [vmem:[%s264 + $0x4] sm:$0xe]
      %s1466 = scalar_lea.vmem %s4, 20
      %v1467 = vld [vmem:[%s1466] sm:$0x3]
      %v1469 = vunpack.c.l.b16 %v1465
      %v1470 = vpack.c.b16 %v1216, %v1469
      %vm1471 = vcmask 1046528
      %v1472 = vrot.slane %v1470, 1
      %v1473 = vrot.slane %v1226, 1
      %v1474 = vsel %vm1471, %v1472, %v1473
      %v1475 = vrot.slane %v1227, 1
      %v1476 = vsel %vm1471, %v1473, %v1475
      %v1477 = vrot.slane %v1228, 1
      %v1478 = vsel %vm1471, %v1475, %v1477
      %v1479 = vrot.slane %v1229, 1
      %v1480 = vsel %vm1471, %v1477, %v1479
      %v1482 = vsel %vm330, %v1474, 0
      %v1485 = vsel %vm330, %v1476, 0
      %v1488 = vsel %vm330, %v1478, 0
      %v1491 = vsel %vm330, %v1480, 0
      %v1494 = vsel %vm330, %v1479, 0
      %v1497 = vand.u32 %v1467, %v349
      %1499 = vmatpush.bf16.msra.mxu0 0
      %1500 = vmatpush.bf16.msra.mxu0 0
      %1501 = vmatpush.bf16.msra.mxu0 0
      %1502 = vmatpush.bf16.msra.mxu0 0
      %1503 = vmatpush.bf16.msra.mxu0 0
      %1504 = vmatpush.bf16.msra.mxu0 0
      %1505 = vmatpush.bf16.msra.mxu0 0
      %1506 = vmatpush.bf16.msra.mxu0 %v1497
      %1507 = vmatmul.bf16.gmra.mxu0 %v1482
      %v1508 = vpop.f32.mrf.mxu0
      %v1509 = vadd.f32 0.0, %v1508
      %v1510 = vpop.f32.mrf.mxu0
      %v1511 = vadd.f32 0.0, %v1510
      %1512 = vmatmul.bf16.gmra.mxu0 %v1485
      %v1513 = vpop.f32.mrf.mxu0
      %v1514 = vadd.f32 0.0, %v1513
      %v1515 = vpop.f32.mrf.mxu0
      %v1516 = vadd.f32 0.0, %v1515
      %1517 = vmatmul.bf16.gmra.mxu0 %v1488
      %v1518 = vpop.f32.mrf.mxu0
      %v1519 = vadd.f32 0.0, %v1518
      %v1520 = vpop.f32.mrf.mxu0
      %v1521 = vadd.f32 0.0, %v1520
      %1522 = vmatmul.bf16.gmra.mxu0 %v1491
      %v1523 = vpop.f32.mrf.mxu0
      %v1524 = vadd.f32 0.0, %v1523
      %v1525 = vpop.f32.mrf.mxu0
      %v1526 = vadd.f32 0.0, %v1525
      %1527 = vmatmul.bf16.gmra.mxu0 %v1494
      %v1528 = vpop.f32.mrf.mxu0
      %v1529 = vadd.f32 0.0, %v1528
      %v1530 = vpop.f32.mrf.mxu0
      %1531 = vdwg.mxu0
      %v1532 = vadd.f32 %v1456, %v1509
      %v1533 = vadd.f32 %v1457, %v1511
      %v1534 = vadd.f32 %v1458, %v1514
      %v1535 = vadd.f32 %v1459, %v1516
      %v1536 = vadd.f32 %v1460, %v1519
      %v1537 = vadd.f32 %v1461, %v1521
      %v1538 = vadd.f32 %v1462, %v1524
      %v1539 = vadd.f32 %v1463, %v1526
      %v1540 = vadd.f32 %v1464, %v1529
      %v1541 = vld [vmem:[%s269 + $0x4] sm:$0xe]
      %s1542 = scalar_lea.vmem %s4, 22
      %v1543 = vld [vmem:[%s1542] sm:$0x3]
      %v1545 = vunpack.c.l.b16 %v1541
      %v1546 = vpack.c.b16 %v1352, %v1545
      %v1547 = vrot.slane %v1546, 1
      %v1548 = vrot.slane %v1362, 1
      %v1549 = vsel %vm1471, %v1547, %v1548
      %v1550 = vrot.slane %v1363, 1
      %v1551 = vsel %vm1471, %v1548, %v1550
      %v1552 = vrot.slane %v1364, 1
      %v1553 = vsel %vm1471, %v1550, %v1552
      %v1554 = vrot.slane %v1365, 1
      %v1555 = vsel %vm1471, %v1552, %v1554
      %v1557 = vsel %vm330, %v1549, 0
      %v1560 = vsel %vm330, %v1551, 0
      %v1563 = vsel %vm330, %v1553, 0
      %v1566 = vsel %vm330, %v1555, 0
      %v1569 = vsel %vm330, %v1554, 0
      %v1572 = vand.u32 %v1543, %v349
      %1574 = vmatpush.bf16.msra.mxu0 0
      %1575 = vmatpush.bf16.msra.mxu0 0
      %1576 = vmatpush.bf16.msra.mxu0 0
      %1577 = vmatpush.bf16.msra.mxu0 0
      %1578 = vmatpush.bf16.msra.mxu0 0
      %1579 = vmatpush.bf16.msra.mxu0 0
      %1580 = vmatpush.bf16.msra.mxu0 0
      %1581 = vmatpush.bf16.msra.mxu0 %v1572
      %1582 = vmatmul.bf16.gmra.mxu0 %v1557
      %v1583 = vpop.f32.mrf.mxu0
      %v1584 = vadd.f32 0.0, %v1583
      %v1585 = vpop.f32.mrf.mxu0
      %v1586 = vadd.f32 0.0, %v1585
      %1587 = vmatmul.bf16.gmra.mxu0 %v1560
      %v1588 = vpop.f32.mrf.mxu0
      %v1589 = vadd.f32 0.0, %v1588
      %v1590 = vpop.f32.mrf.mxu0
      %v1591 = vadd.f32 0.0, %v1590
      %1592 = vmatmul.bf16.gmra.mxu0 %v1563
      %v1593 = vpop.f32.mrf.mxu0
      %v1594 = vadd.f32 0.0, %v1593
      %v1595 = vpop.f32.mrf.mxu0
      %v1596 = vadd.f32 0.0, %v1595
      %1597 = vmatmul.bf16.gmra.mxu0 %v1566
      %v1598 = vpop.f32.mrf.mxu0
      %v1599 = vadd.f32 0.0, %v1598
      %v1600 = vpop.f32.mrf.mxu0
      %v1601 = vadd.f32 0.0, %v1600
      %1602 = vmatmul.bf16.gmra.mxu0 %v1569
      %v1603 = vpop.f32.mrf.mxu0
      %v1604 = vadd.f32 0.0, %v1603
      %v1605 = vpop.f32.mrf.mxu0
      %1606 = vdwg.mxu0
      %v1607 = vadd.f32 %v1532, %v1584
      %v1608 = vadd.f32 %v1533, %v1586
      %v1609 = vadd.f32 %v1534, %v1589
      %v1610 = vadd.f32 %v1535, %v1591
      %v1611 = vadd.f32 %v1536, %v1594
      %v1612 = vadd.f32 %v1537, %v1596
      %v1613 = vadd.f32 %v1538, %v1599
      %v1614 = vadd.f32 %v1539, %v1601
      %v1615 = vadd.f32 %v1540, %v1604
      %v1616 = vld [vmem:[%s274 + $0x4] sm:$0xf]
      %v1617 = vld [vmem:[%s274 + $0x8] sm:$0xf]
      %v1618 = vld [vmem:[%s274 + $0xc] sm:$0xf]
      %v1619 = vld [vmem:[%s274 + $0x10] sm:$0xf]
      %v1620 = vld [vmem:[%s274 + $0x14] sm:$0xf]
      %v1621 = vld [vmem:[%s274 + $0x18] sm:$0xf]
      %v1622 = vld [vmem:[%s274 + $0x1c] sm:$0xf]
      %v1623 = vld [vmem:[%s274 + $0x20] sm:$0xf]
      %v1624 = vld [vmem:[%s274 + $0x24] sm:$0xf]
      %v1625 = vld [vmem:[%s274 + $0x28] sm:$0x1]
      %s1626 = scalar_lea.vmem %s4, 24
      %v1627 = vld [vmem:[%s1626] sm:$0x3]
      %v1638 = vunpack.c.l.b16 %v1616
      %v1639 = vunpack.c.l.b16 %v1617
      %v1640 = vunpack.c.l.b16 %v1618
      %v1641 = vunpack.c.l.b16 %v1619
      %v1642 = vunpack.c.l.b16 %v1620
      %v1643 = vunpack.c.l.b16 %v1621
      %v1644 = vunpack.c.l.b16 %v1622
      %v1645 = vunpack.c.l.b16 %v1623
      %v1646 = vunpack.c.l.b16 %v1624
      %v1647 = vunpack.c.l.b16 %v1625
      %v1648 = vpack.c.b16 %v1639, %v1638
      %v1649 = vpack.c.b16 %v1641, %v1640
      %v1650 = vpack.c.b16 %v1643, %v1642
      %v1651 = vpack.c.b16 %v1645, %v1644
      %v1652 = vpack.c.b16 %v1647, %v1646
      %v1654 = vshrl.u32 %v1648, 16
      %v1656 = vshll.u32 %v1648, 16
      %v1658 = vrot.slane %v1656, 1
      %v1659 = vor.u32 %v1654, %v1658
      %v1661 = vshll.u32 %v1649, 16
      %v1663 = vrot.slane %v1661, 1
      %v1664 = vsel %vm497, %v1659, %v1663
      %v1665 = vshrl.u32 %v1649, 16
      %v1667 = vor.u32 %v1665, %v1663
      %v1669 = vshll.u32 %v1650, 16
      %v1671 = vrot.slane %v1669, 1
      %v1672 = vsel %vm497, %v1667, %v1671
      %v1673 = vshrl.u32 %v1650, 16
      %v1675 = vor.u32 %v1673, %v1671
      %v1677 = vshll.u32 %v1651, 16
      %v1679 = vrot.slane %v1677, 1
      %v1680 = vsel %vm497, %v1675, %v1679
      %v1681 = vshrl.u32 %v1651, 16
      %v1683 = vor.u32 %v1681, %v1679
      %v1685 = vshll.u32 %v1652, 16
      %v1687 = vrot.slane %v1685, 1
      %v1688 = vsel %vm497, %v1683, %v1687
      %v1689 = vshrl.u32 %v1652, 16
      %v1691 = vor.u32 %v1689, %v1687
      %v1693 = vsel %vm330, %v1664, 0
      %v1696 = vsel %vm330, %v1672, 0
      %v1699 = vsel %vm330, %v1680, 0
      %v1702 = vsel %vm330, %v1688, 0
      %v1705 = vsel %vm330, %v1691, 0
      %v1708 = vand.u32 %v1627, %v349
      %1710 = vmatpush.bf16.msra.mxu0 0
      %1711 = vmatpush.bf16.msra.mxu0 0
      %1712 = vmatpush.bf16.msra.mxu0 0
      %1713 = vmatpush.bf16.msra.mxu0 0
      %1714 = vmatpush.bf16.msra.mxu0 0
      %1715 = vmatpush.bf16.msra.mxu0 0
      %1716 = vmatpush.bf16.msra.mxu0 0
      %1717 = vmatpush.bf16.msra.mxu0 %v1708
      %1718 = vmatmul.bf16.gmra.mxu0 %v1693
      %v1719 = vpop.f32.mrf.mxu0
      %v1720 = vadd.f32 0.0, %v1719
      %v1721 = vpop.f32.mrf.mxu0
      %v1722 = vadd.f32 0.0, %v1721
      %1723 = vmatmul.bf16.gmra.mxu0 %v1696
      %v1724 = vpop.f32.mrf.mxu0
      %v1725 = vadd.f32 0.0, %v1724
      %v1726 = vpop.f32.mrf.mxu0
      %v1727 = vadd.f32 0.0, %v1726
      %1728 = vmatmul.bf16.gmra.mxu0 %v1699
      %v1729 = vpop.f32.mrf.mxu0
      %v1730 = vadd.f32 0.0, %v1729
      %v1731 = vpop.f32.mrf.mxu0
      %v1732 = vadd.f32 0.0, %v1731
      %1733 = vmatmul.bf16.gmra.mxu0 %v1702
      %v1734 = vpop.f32.mrf.mxu0
      %v1735 = vadd.f32 0.0, %v1734
      %v1736 = vpop.f32.mrf.mxu0
      %v1737 = vadd.f32 0.0, %v1736
      %1738 = vmatmul.bf16.gmra.mxu0 %v1705
      %v1739 = vpop.f32.mrf.mxu0
      %v1740 = vadd.f32 0.0, %v1739
      %v1741 = vpop.f32.mrf.mxu0
      %1742 = vdwg.mxu0
      %v1743 = vadd.f32 %v1607, %v1720
      %v1744 = vadd.f32 %v1608, %v1722
      %v1745 = vadd.f32 %v1609, %v1725
      %v1746 = vadd.f32 %v1610, %v1727
      %v1747 = vadd.f32 %v1611, %v1730
      %v1748 = vadd.f32 %v1612, %v1732
      %v1749 = vadd.f32 %v1613, %v1735
      %v1750 = vadd.f32 %v1614, %v1737
      %v1751 = vadd.f32 %v1615, %v1740
      %v1752 = vld [vmem:[%s279 + $0x4] sm:$0xf]
      %v1753 = vld [vmem:[%s279 + $0x8] sm:$0xf]
      %v1754 = vld [vmem:[%s279 + $0xc] sm:$0xf]
      %v1755 = vld [vmem:[%s279 + $0x10] sm:$0xf]
      %v1756 = vld [vmem:[%s279 + $0x14] sm:$0xf]
      %v1757 = vld [vmem:[%s279 + $0x18] sm:$0xf]
      %v1758 = vld [vmem:[%s279 + $0x1c] sm:$0xf]
      %v1759 = vld [vmem:[%s279 + $0x20] sm:$0xf]
      %v1760 = vld [vmem:[%s279 + $0x24] sm:$0xf]
      %v1761 = vld [vmem:[%s279 + $0x28] sm:$0x1]
      %s1762 = scalar_lea.vmem %s4, 26
      %v1763 = vld [vmem:[%s1762] sm:$0x3]
      %v1774 = vunpack.c.l.b16 %v1752
      %v1775 = vunpack.c.l.b16 %v1753
      %v1776 = vunpack.c.l.b16 %v1754
      %v1777 = vunpack.c.l.b16 %v1755
      %v1778 = vunpack.c.l.b16 %v1756
      %v1779 = vunpack.c.l.b16 %v1757
      %v1780 = vunpack.c.l.b16 %v1758
      %v1781 = vunpack.c.l.b16 %v1759
      %v1782 = vunpack.c.l.b16 %v1760
      %v1783 = vunpack.c.l.b16 %v1761
      %v1784 = vpack.c.b16 %v1775, %v1774
      %v1785 = vpack.c.b16 %v1777, %v1776
      %v1786 = vpack.c.b16 %v1779, %v1778
      %v1787 = vpack.c.b16 %v1781, %v1780
      %v1788 = vpack.c.b16 %v1783, %v1782
      %v1790 = vshrl.u32 %v1784, 16
      %v1792 = vshll.u32 %v1784, 16
      %v1794 = vrot.slane %v1792, 1
      %v1795 = vor.u32 %v1790, %v1794
      %v1797 = vshll.u32 %v1785, 16
      %v1799 = vrot.slane %v1797, 1
      %v1800 = vsel %vm497, %v1795, %v1799
      %v1801 = vshrl.u32 %v1785, 16
      %v1803 = vor.u32 %v1801, %v1799
      %v1805 = vshll.u32 %v1786, 16
      %v1807 = vrot.slane %v1805, 1
      %v1808 = vsel %vm497, %v1803, %v1807
      %v1809 = vshrl.u32 %v1786, 16
      %v1811 = vor.u32 %v1809, %v1807
      %v1813 = vshll.u32 %v1787, 16
      %v1815 = vrot.slane %v1813, 1
      %v1816 = vsel %vm497, %v1811, %v1815
      %v1817 = vshrl.u32 %v1787, 16
      %v1819 = vor.u32 %v1817, %v1815
      %v1821 = vshll.u32 %v1788, 16
      %v1823 = vrot.slane %v1821, 1
      %v1824 = vsel %vm497, %v1819, %v1823
      %v1825 = vshrl.u32 %v1788, 16
      %v1827 = vor.u32 %v1825, %v1823
      %v1829 = vsel %vm330, %v1800, 0
      %v1832 = vsel %vm330, %v1808, 0
      %v1835 = vsel %vm330, %v1816, 0
      %v1838 = vsel %vm330, %v1824, 0
      %v1841 = vsel %vm330, %v1827, 0
      %v1844 = vand.u32 %v1763, %v349
      %1846 = vmatpush.bf16.msra.mxu0 0
      %1847 = vmatpush.bf16.msra.mxu0 0
      %1848 = vmatpush.bf16.msra.mxu0 0
      %1849 = vmatpush.bf16.msra.mxu0 0
      %1850 = vmatpush.bf16.msra.mxu0 0
      %1851 = vmatpush.bf16.msra.mxu0 0
      %1852 = vmatpush.bf16.msra.mxu0 0
      %1853 = vmatpush.bf16.msra.mxu0 %v1844
      %1854 = vmatmul.bf16.gmra.mxu0 %v1829
      %v1855 = vpop.f32.mrf.mxu0
      %v1856 = vadd.f32 0.0, %v1855
      %v1857 = vpop.f32.mrf.mxu0
      %v1858 = vadd.f32 0.0, %v1857
      %1859 = vmatmul.bf16.gmra.mxu0 %v1832
      %v1860 = vpop.f32.mrf.mxu0
      %v1861 = vadd.f32 0.0, %v1860
      %v1862 = vpop.f32.mrf.mxu0
      %v1863 = vadd.f32 0.0, %v1862
      %1864 = vmatmul.bf16.gmra.mxu0 %v1835
      %v1865 = vpop.f32.mrf.mxu0
      %v1866 = vadd.f32 0.0, %v1865
      %v1867 = vpop.f32.mrf.mxu0
      %v1868 = vadd.f32 0.0, %v1867
      %1869 = vmatmul.bf16.gmra.mxu0 %v1838
      %v1870 = vpop.f32.mrf.mxu0
      %v1871 = vadd.f32 0.0, %v1870
      %v1872 = vpop.f32.mrf.mxu0
      %v1873 = vadd.f32 0.0, %v1872
      %1874 = vmatmul.bf16.gmra.mxu0 %v1841
      %v1875 = vpop.f32.mrf.mxu0
      %v1876 = vadd.f32 0.0, %v1875
      %v1877 = vpop.f32.mrf.mxu0
      %1878 = vdwg.mxu0
      %v1879 = vadd.f32 %v1743, %v1856
      %v1880 = vadd.f32 %v1744, %v1858
      %v1881 = vadd.f32 %v1745, %v1861
      %v1882 = vadd.f32 %v1746, %v1863
      %v1883 = vadd.f32 %v1747, %v1866
      %v1884 = vadd.f32 %v1748, %v1868
      %v1885 = vadd.f32 %v1749, %v1871
      %v1886 = vadd.f32 %v1750, %v1873
      %v1887 = vadd.f32 %v1751, %v1876
      %v1888 = vld [vmem:[%s274 + $0x4] sm:$0xe]
      %s1889 = scalar_lea.vmem %s4, 28
      %v1890 = vld [vmem:[%s1889] sm:$0x3]
      %v1892 = vunpack.c.l.b16 %v1888
      %v1893 = vpack.c.b16 %v1639, %v1892
      %v1894 = vrot.slane %v1893, 1
      %v1895 = vrot.slane %v1649, 1
      %v1896 = vsel %vm1471, %v1894, %v1895
      %v1897 = vrot.slane %v1650, 1
      %v1898 = vsel %vm1471, %v1895, %v1897
      %v1899 = vrot.slane %v1651, 1
      %v1900 = vsel %vm1471, %v1897, %v1899
      %v1901 = vrot.slane %v1652, 1
      %v1902 = vsel %vm1471, %v1899, %v1901
      %v1904 = vsel %vm330, %v1896, 0
      %v1907 = vsel %vm330, %v1898, 0
      %v1910 = vsel %vm330, %v1900, 0
      %v1913 = vsel %vm330, %v1902, 0
      %v1916 = vsel %vm330, %v1901, 0
      %v1919 = vand.u32 %v1890, %v349
      %1921 = vmatpush.bf16.msra.mxu0 0
      %1922 = vmatpush.bf16.msra.mxu0 0
      %1923 = vmatpush.bf16.msra.mxu0 0
      %1924 = vmatpush.bf16.msra.mxu0 0
      %1925 = vmatpush.bf16.msra.mxu0 0
      %1926 = vmatpush.bf16.msra.mxu0 0
      %1927 = vmatpush.bf16.msra.mxu0 0
      %1928 = vmatpush.bf16.msra.mxu0 %v1919
      %1929 = vmatmul.bf16.gmra.mxu0 %v1904
      %v1930 = vpop.f32.mrf.mxu0
      %v1931 = vadd.f32 0.0, %v1930
      %v1932 = vpop.f32.mrf.mxu0
      %v1933 = vadd.f32 0.0, %v1932
      %1934 = vmatmul.bf16.gmra.mxu0 %v1907
      %v1935 = vpop.f32.mrf.mxu0
      %v1936 = vadd.f32 0.0, %v1935
      %v1937 = vpop.f32.mrf.mxu0
      %v1938 = vadd.f32 0.0, %v1937
      %1939 = vmatmul.bf16.gmra.mxu0 %v1910
      %v1940 = vpop.f32.mrf.mxu0
      %v1941 = vadd.f32 0.0, %v1940
      %v1942 = vpop.f32.mrf.mxu0
      %v1943 = vadd.f32 0.0, %v1942
      %1944 = vmatmul.bf16.gmra.mxu0 %v1913
      %v1945 = vpop.f32.mrf.mxu0
      %v1946 = vadd.f32 0.0, %v1945
      %v1947 = vpop.f32.mrf.mxu0
      %v1948 = vadd.f32 0.0, %v1947
      %1949 = vmatmul.bf16.gmra.mxu0 %v1916
      %v1950 = vpop.f32.mrf.mxu0
      %v1951 = vadd.f32 0.0, %v1950
      %v1952 = vpop.f32.mrf.mxu0
      %1953 = vdwg.mxu0
      %v1954 = vadd.f32 %v1879, %v1931
      %v1955 = vadd.f32 %v1880, %v1933
      %v1956 = vadd.f32 %v1881, %v1936
      %v1957 = vadd.f32 %v1882, %v1938
      %v1958 = vadd.f32 %v1883, %v1941
      %v1959 = vadd.f32 %v1884, %v1943
      %v1960 = vadd.f32 %v1885, %v1946
      %v1961 = vadd.f32 %v1886, %v1948
      %v1962 = vadd.f32 %v1887, %v1951
      %v1963 = vld [vmem:[%s279 + $0x4] sm:$0xe]
      %s1964 = scalar_lea.vmem %s4, 30
      %v1965 = vld [vmem:[%s1964] sm:$0x3]
      %v1967 = vunpack.c.l.b16 %v1963
      %v1968 = vpack.c.b16 %v1775, %v1967
      %v1969 = vrot.slane %v1968, 1
      %v1970 = vrot.slane %v1785, 1
      %v1971 = vsel %vm1471, %v1969, %v1970
      %v1972 = vrot.slane %v1786, 1
      %v1973 = vsel %vm1471, %v1970, %v1972
      %v1974 = vrot.slane %v1787, 1
      %v1975 = vsel %vm1471, %v1972, %v1974
      %v1976 = vrot.slane %v1788, 1
      %v1977 = vsel %vm1471, %v1974, %v1976
      %v1979 = vsel %vm330, %v1971, 0
      %v1982 = vsel %vm330, %v1973, 0
      %v1985 = vsel %vm330, %v1975, 0
      %v1988 = vsel %vm330, %v1977, 0
      %v1991 = vsel %vm330, %v1976, 0
      %v1994 = vand.u32 %v1965, %v349
      %1996 = vmatpush.bf16.msra.mxu0 0
      %1997 = vmatpush.bf16.msra.mxu0 0
      %1998 = vmatpush.bf16.msra.mxu0 0
      %1999 = vmatpush.bf16.msra.mxu0 0
      %2000 = vmatpush.bf16.msra.mxu0 0
      %2001 = vmatpush.bf16.msra.mxu0 0
      %2002 = vmatpush.bf16.msra.mxu0 0
      %2003 = vmatpush.bf16.msra.mxu0 %v1994
      %2004 = vmatmul.bf16.gmra.mxu0 %v1979
      %v2005 = vpop.f32.mrf.mxu0
      %v2006 = vadd.f32 0.0, %v2005
      %v2007 = vpop.f32.mrf.mxu0
      %v2008 = vadd.f32 0.0, %v2007
      %2009 = vmatmul.bf16.gmra.mxu0 %v1982
      %v2010 = vpop.f32.mrf.mxu0
      %v2011 = vadd.f32 0.0, %v2010
      %v2012 = vpop.f32.mrf.mxu0
      %v2013 = vadd.f32 0.0, %v2012
      %2014 = vmatmul.bf16.gmra.mxu0 %v1985
      %v2015 = vpop.f32.mrf.mxu0
      %v2016 = vadd.f32 0.0, %v2015
      %v2017 = vpop.f32.mrf.mxu0
      %v2018 = vadd.f32 0.0, %v2017
      %2019 = vmatmul.bf16.gmra.mxu0 %v1988
      %v2020 = vpop.f32.mrf.mxu0
      %v2021 = vadd.f32 0.0, %v2020
      %v2022 = vpop.f32.mrf.mxu0
      %v2023 = vadd.f32 0.0, %v2022
      %2024 = vmatmul.bf16.gmra.mxu0 %v1991
      %v2025 = vpop.f32.mrf.mxu0
      %v2026 = vadd.f32 0.0, %v2025
      %v2027 = vpop.f32.mrf.mxu0
      %2028 = vdwg.mxu0
      %v2029 = vadd.f32 %v1954, %v2006
      %v2030 = vadd.f32 %v1955, %v2008
      %v2031 = vadd.f32 %v1956, %v2011
      %v2032 = vadd.f32 %v1957, %v2013
      %v2033 = vadd.f32 %v1958, %v2016
      %v2034 = vadd.f32 %v1959, %v2018
      %v2035 = vadd.f32 %v1960, %v2021
      %v2036 = vadd.f32 %v1961, %v2023
      %v2037 = vadd.f32 %v1962, %v2026
      %vm2038 = vcmp.gt.f32.partialorder %v2029, 0.0
      %vm2039 = vcmp.gt.f32.partialorder %v2030, 0.0
      %vm2040 = vcmp.gt.f32.partialorder %v2031, 0.0
      %vm2041 = vcmp.gt.f32.partialorder %v2032, 0.0
      %vm2042 = vcmp.gt.f32.partialorder %v2033, 0.0
      %vm2043 = vcmp.gt.f32.partialorder %v2034, 0.0
      %vm2044 = vcmp.gt.f32.partialorder %v2035, 0.0
      %vm2045 = vcmp.gt.f32.partialorder %v2036, 0.0
      %vm2046 = vcmp.gt.f32.partialorder %v2037, 0.0
      %v2047 = vmul.f32 %v2029, 0.2
      %v2048 = vmul.f32 %v2030, 0.2
      %v2049 = vmul.f32 %v2031, 0.2
      %v2050 = vmul.f32 %v2032, 0.2
      %v2051 = vmul.f32 %v2033, 0.2
      %v2052 = vmul.f32 %v2034, 0.2
      %v2053 = vmul.f32 %v2035, 0.2
      %v2054 = vmul.f32 %v2036, 0.2
      %v2055 = vmul.f32 %v2037, 0.2
      %v2056 = vsel %vm2038, %v2029, %v2047
      %v2057 = vsel %vm2039, %v2030, %v2048
      %v2058 = vsel %vm2040, %v2031, %v2049
      %v2059 = vsel %vm2041, %v2032, %v2050
      %v2060 = vsel %vm2042, %v2033, %v2051
      %v2061 = vsel %vm2043, %v2034, %v2052
      %v2062 = vsel %vm2044, %v2035, %v2053
      %v2063 = vsel %vm2045, %v2036, %v2054
      %v2064 = vsel %vm2046, %v2037, %v2055
      %v2065 = vpack.c.bf16 %v2056, %v2056
      %v2066 = vpack.c.bf16 %v2057, %v2057
      %v2067 = vpack.c.bf16 %v2058, %v2058
      %v2068 = vpack.c.bf16 %v2059, %v2059
      %v2069 = vpack.c.bf16 %v2060, %v2060
      %v2070 = vpack.c.bf16 %v2061, %v2061
      %v2071 = vpack.c.bf16 %v2062, %v2062
      %v2072 = vpack.c.bf16 %v2063, %v2063
      %v2073 = vpack.c.bf16 %v2064, %v2064
      %vm2074 = vcmask 60416
      %2075 = vst.msk [vmem:[%s284] sm:$0xf] %vm2074, %v2065
      %2076 = vst.msk [vmem:[%s284 + $0x4] sm:$0xf] %vm2074, %v2066
      %2077 = vst.msk [vmem:[%s284 + $0x8] sm:$0xf] %vm2074, %v2067
      %2078 = vst.msk [vmem:[%s284 + $0xc] sm:$0xf] %vm2074, %v2068
      %2079 = vst.msk [vmem:[%s284 + $0x10] sm:$0xf] %vm2074, %v2069
      %2080 = vst.msk [vmem:[%s284 + $0x14] sm:$0xf] %vm2074, %v2070
      %2081 = vst.msk [vmem:[%s284 + $0x18] sm:$0xf] %vm2074, %v2071
      %2082 = vst.msk [vmem:[%s284 + $0x1c] sm:$0xf] %vm2074, %v2072
      %2083 = vst.msk [vmem:[%s284 + $0x20] sm:$0xf] %vm2074, %v2073
      %p2084 = scmp.lt.s32.totalorder %s16, 1
      %s2085 = scalar_select %p2084, %s16, 1
      %s2086 = smul.addr %s2085, 9
      %s2087 = smul.addr %s2086, 4
      %s2088 = scalar_lea.vmem %s5, %s2087
      // Predicated region
      $region41: #{discriminator_forward.5} parent=39 // pred_check
        %p2089 = pneg %p159
      $region42: #{discriminator_forward.5} parent=39 // pred_check_branch
        %2091 = sbr.rel (%p2089) target = $region44
      $region43: #{discriminator_forward.5} parent=39 // pred_region
        _
      $region44: #{discriminator_forward.5} parent=39 // pred_fallthru
        _
    $region40: #{discriminator_forward.5} parent=5 // pred_fallthru
      _
    %p2092 = scmp.le.s32.totalorder 2, %s11
    // Predicated region
    $region45: #{discriminator_forward.5} parent=5 // pred_check
      %p2093 = pneg %p2092
    $region46: #{discriminator_forward.5} parent=5 // pred_check_branch
      %2095 = sbr.rel (%p2093) target = $region48
    $region47: #{discriminator_forward.5} parent=5 // pred_region
      %s2096 = ssub.s32 %s11, 2
      // Predicated region
      $region49: #{discriminator_forward.5} parent=47 // pred_check
        %p2097 = pneg %p165
      $region50: #{discriminator_forward.5} parent=47 // pred_check_branch
        %2099 = sbr.rel (%p2097) target = $region52
      $region51: #{discriminator_forward.5} parent=47 // pred_region
        %p2100 = scmp.lt.s32.totalorder %s17, 1
        %s2101 = scalar_select %p2100, %s17, 1
        %s2102 = smul.addr %s2101, 9
        %s2103 = smul.addr %s2102, 4
        %s2104 = scalar_lea.vmem %s5, %s2103
      $region52: #{discriminator_forward.5} parent=47 // pred_fallthru
        _
    $region48: #{discriminator_forward.5} parent=5 // pred_fallthru
      _
  $region6: #{discriminator_forward.5} parent=0 // loop_footer
    %s15 = sadd.s32 1, %s11
  $region7: #{discriminator_forward.5} parent=0 // loop_footer_branch
    %10 = sbr.rel target = $region3
  $region8: #{discriminator_forward.5} parent=0 // loop_exit
    _

// kernel: discriminator_forward.6
$region0: #{discriminator_forward.6}
  #allocation0 [shape = 'u32[]', space=smem, size = 0x4, offset = 0x4, fixed_abs, tag = 'smem constant byte address 0x4 - core index']
  #allocation1 [shape = 'u32[72,128]{1,0:T(1,128)}', space=vmem, size = 0x9000, scoped, tag = 'internal scratch']
  %s0 = inlined_call_operand.vmem [shape: bf16[2,26,8], index: 0, kind: input, shape index: {}]
  %s1 = inlined_call_operand.vmem [shape: bf16[2,26,8], index: 1, kind: input, shape index: {}]
  %s2 = inlined_call_operand.vmem [shape: bf16[2,26,8], index: 2, kind: input, shape index: {}]
  %s3 = inlined_call_operand.vmem [shape: bf16[2,26,8], index: 3, kind: input, shape index: {}]
  %s4 = inlined_call_operand.vmem [shape: bf16[4,4,8,16], index: 4, kind: input, shape index: {}]
  %s5 = inlined_call_operand.vmem [shape: f32[20,16], index: 5, kind: input, shape index: {}]
  %s6 = inlined_call_operand.vmem [shape: f32[20,16], index: 6, kind: input, shape index: {}]
  %s7 = inlined_call_operand.vmem [shape: f32[20,1], index: 7, kind: input, shape index: {}]
  %s8 = inlined_call_operand.vmem [shape: bf16[2,20,16], index: 8, kind: output, shape index: {}]
  %s9 = sld [smem:[#allocation0]]
  $region65: #{discriminator_forward.6} parent=0
    _
  %s11 = ssub.s32 1, %s9
  %s12 = scalar_select 0, %s11, %s9
  loop: start=0, step=1, limit=4
  $region2: #{discriminator_forward.6} parent=0 // loop_pre_header
    _
  $region3: #{discriminator_forward.6} parent=0 // loop_header
    %s14 = sphi 0, %s18
    %p15 = scmp.ge.s32.totalorder %s14, 4
    %s24 = sphi 0, %s26
    %s27 = sphi 0, %s24
    %s28 = sphi 0, %s27
    %s44 = sphi 0, %s28
    %s50 = sphi 0, %s52
    %s53 = sphi 0, %s50
    %s54 = sphi 0, %s53
    %s70 = sphi 0, %s54
    %s76 = sphi 0, %s78
    %s79 = sphi 0, %s76
    %s80 = sphi 0, %s79
    %s96 = sphi 0, %s80
    %s102 = sphi 0, %s104
    %s105 = sphi 0, %s102
    %s106 = sphi 0, %s105
    %s122 = sphi 0, %s106
    %s126 = sphi 0, %s126
    %s128 = sphi 0, %s126
    %s129 = sphi 0, %s128
    %s143 = sphi 0, %s129
    %s147 = sphi 0, %s147
    %s149 = sphi 0, %s147
    %s150 = sphi 0, %s149
    %s164 = sphi 0, %s150
    %s168 = sphi 0, %s168
    %s170 = sphi 0, %s168
    %s171 = sphi 0, %s170
    %s185 = sphi 0, %s171
    %s189 = sphi 0, %s189
    %s191 = sphi 0, %s189
    %s192 = sphi 0, %s191
    %s206 = sphi 0, %s192
    %s212 = sphi 0, %s214
    %s215 = sphi 0, %s212
    %s216 = sphi 0, %s215
    %s232 = sphi 0, %s216
  $region4: #{discriminator_forward.6} parent=0 // loop_header_branch
    %17 = sbr.rel (%p15) target = $region8
  $region5: #{discriminator_forward.6} parent=0 // loop_body
    %s19 = ssub.s32 %s14, 1
    %s20 = ssub.s32 %s14, 2
    %s21 = sadd.s32 %s14, 1
    %s22 = ssub.s32 %s14, %s21
    %p23 = scmp.eq.s32.totalorder %s22, 0
    %s25 = sadd.s32 %s24, 1
    %s26 = scalar_select %p23, %s24, %s25
    %p29 = pneg %p23
    %p30 = scmp.eq.s32.totalorder %s14, 1
    %p31 = por %p29, %p30
    %p32 = scmp.ne.s32.totalorder %s24, %s27
    %p33 = scmp.eq.s32.totalorder %s14, 0
    %p34 = por %p32, %p33
    %p35 = scmp.ne.s32.totalorder %s24, %s27
    %p36 = scmp.eq.s32.totalorder %s19, 1
    %p37 = por %p35, %p36
    %p38 = scmp.ne.s32.totalorder %s27, %s28
    %p39 = scmp.eq.s32.totalorder %s19, 0
    %p40 = por %p38, %p39
    %p41 = scmp.ne.s32.totalorder %s27, %s28
    %p42 = scmp.eq.s32.totalorder %s20, 1
    %p43 = por %p41, %p42
    %p45 = scmp.ne.s32.totalorder %s28, %s44
    %p46 = scmp.eq.s32.totalorder %s20, 0
    %p47 = por %p45, %p46
    %s48 = ssub.s32 %s14, %s21
    %p49 = scmp.eq.s32.totalorder %s48, 0
    %s51 = sadd.s32 %s50, 1
    %s52 = scalar_select %p49, %s50, %s51
    %p55 = pneg %p49
    %p56 = scmp.eq.s32.totalorder %s14, 1
    %p57 = por %p55, %p56
    %p58 = scmp.ne.s32.totalorder %s50, %s53
    %p59 = scmp.eq.s32.totalorder %s14, 0
    %p60 = por %p58, %p59
    %p61 = scmp.ne.s32.totalorder %s50, %s53
    %p62 = scmp.eq.s32.totalorder %s19, 1
    %p63 = por %p61, %p62
    %p64 = scmp.ne.s32.totalorder %s53, %s54
    %p65 = scmp.eq.s32.totalorder %s19, 0
    %p66 = por %p64, %p65
    %p67 = scmp.ne.s32.totalorder %s53, %s54
    %p68 = scmp.eq.s32.totalorder %s20, 1
    %p69 = por %p67, %p68
    %p71 = scmp.ne.s32.totalorder %s54, %s70
    %p72 = scmp.eq.s32.totalorder %s20, 0
    %p73 = por %p71, %p72
    %s74 = ssub.s32 %s14, %s21
    %p75 = scmp.eq.s32.totalorder %s74, 0
    %s77 = sadd.s32 %s76, 1
    %s78 = scalar_select %p75, %s76, %s77
    %p81 = pneg %p75
    %p82 = scmp.eq.s32.totalorder %s14, 1
    %p83 = por %p81, %p82
    %p84 = scmp.ne.s32.totalorder %s76, %s79
    %p85 = scmp.eq.s32.totalorder %s14, 0
    %p86 = por %p84, %p85
    %p87 = scmp.ne.s32.totalorder %s76, %s79
    %p88 = scmp.eq.s32.totalorder %s19, 1
    %p89 = por %p87, %p88
    %p90 = scmp.ne.s32.totalorder %s79, %s80
    %p91 = scmp.eq.s32.totalorder %s19, 0
    %p92 = por %p90, %p91
    %p93 = scmp.ne.s32.totalorder %s79, %s80
    %p94 = scmp.eq.s32.totalorder %s20, 1
    %p95 = por %p93, %p94
    %p97 = scmp.ne.s32.totalorder %s80, %s96
    %p98 = scmp.eq.s32.totalorder %s20, 0
    %p99 = por %p97, %p98
    %s100 = ssub.s32 %s14, %s21
    %p101 = scmp.eq.s32.totalorder %s100, 0
    %s103 = sadd.s32 %s102, 1
    %s104 = scalar_select %p101, %s102, %s103
    %p107 = pneg %p101
    %p108 = scmp.eq.s32.totalorder %s14, 1
    %p109 = por %p107, %p108
    %p110 = scmp.ne.s32.totalorder %s102, %s105
    %p111 = scmp.eq.s32.totalorder %s14, 0
    %p112 = por %p110, %p111
    %p113 = scmp.ne.s32.totalorder %s102, %s105
    %p114 = scmp.eq.s32.totalorder %s19, 1
    %p115 = por %p113, %p114
    %p116 = scmp.ne.s32.totalorder %s105, %s106
    %p117 = scmp.eq.s32.totalorder %s19, 0
    %p118 = por %p116, %p117
    %p119 = scmp.ne.s32.totalorder %s105, %s106
    %p120 = scmp.eq.s32.totalorder %s20, 1
    %p121 = por %p119, %p120
    %p123 = scmp.ne.s32.totalorder %s106, %s122
    %p124 = scmp.eq.s32.totalorder %s20, 0
    %p125 = por %p123, %p124
    %s127 = sadd.s32 %s126, 1
    %p130 = scmp.eq.s32.totalorder %s14, 1
    %p131 = scmp.ne.s32.totalorder %s126, %s128
    %p132 = scmp.eq.s32.totalorder %s14, 0
    %p133 = por %p131, %p132
    %p134 = scmp.ne.s32.totalorder %s126, %s128
    %p135 = scmp.eq.s32.totalorder %s19, 1
    %p136 = por %p134, %p135
    %p137 = scmp.ne.s32.totalorder %s128, %s129
    %p138 = scmp.eq.s32.totalorder %s19, 0
    %p139 = por %p137, %p138
    %p140 = scmp.ne.s32.totalorder %s128, %s129
    %p141 = scmp.eq.s32.totalorder %s20, 1
    %p142 = por %p140, %p141
    %p144 = scmp.ne.s32.totalorder %s129, %s143
    %p145 = scmp.eq.s32.totalorder %s20, 0
    %p146 = por %p144, %p145
    %s148 = sadd.s32 %s147, 1
    %p151 = scmp.eq.s32.totalorder %s14, 1
    %p152 = scmp.ne.s32.totalorder %s147, %s149
    %p153 = scmp.eq.s32.totalorder %s14, 0
    %p154 = por %p152, %p153
    %p155 = scmp.ne.s32.totalorder %s147, %s149
    %p156 = scmp.eq.s32.totalorder %s19, 1
    %p157 = por %p155, %p156
    %p158 = scmp.ne.s32.totalorder %s149, %s150
    %p159 = scmp.eq.s32.totalorder %s19, 0
    %p160 = por %p158, %p159
    %p161 = scmp.ne.s32.totalorder %s149, %s150
    %p162 = scmp.eq.s32.totalorder %s20, 1
    %p163 = por %p161, %p162
    %p165 = scmp.ne.s32.totalorder %s150, %s164
    %p166 = scmp.eq.s32.totalorder %s20, 0
    %p167 = por %p165, %p166
    %s169 = sadd.s32 %s168, 1
    %p172 = scmp.eq.s32.totalorder %s14, 1
    %p173 = scmp.ne.s32.totalorder %s168, %s170
    %p174 = scmp.eq.s32.totalorder %s14, 0
    %p175 = por %p173, %p174
    %p176 = scmp.ne.s32.totalorder %s168, %s170
    %p177 = scmp.eq.s32.totalorder %s19, 1
    %p178 = por %p176, %p177
    %p179 = scmp.ne.s32.totalorder %s170, %s171
    %p180 = scmp.eq.s32.totalorder %s19, 0
    %p181 = por %p179, %p180
    %p182 = scmp.ne.s32.totalorder %s170, %s171
    %p183 = scmp.eq.s32.totalorder %s20, 1
    %p184 = por %p182, %p183
    %p186 = scmp.ne.s32.totalorder %s171, %s185
    %p187 = scmp.eq.s32.totalorder %s20, 0
    %p188 = por %p186, %p187
    %s190 = sadd.s32 %s189, 1
    %p193 = scmp.eq.s32.totalorder %s14, 1
    %p194 = scmp.ne.s32.totalorder %s189, %s191
    %p195 = scmp.eq.s32.totalorder %s14, 0
    %p196 = por %p194, %p195
    %p197 = scmp.ne.s32.totalorder %s189, %s191
    %p198 = scmp.eq.s32.totalorder %s19, 1
    %p199 = por %p197, %p198
    %p200 = scmp.ne.s32.totalorder %s191, %s192
    %p201 = scmp.eq.s32.totalorder %s19, 0
    %p202 = por %p200, %p201
    %p203 = scmp.ne.s32.totalorder %s191, %s192
    %p204 = scmp.eq.s32.totalorder %s20, 1
    %p205 = por %p203, %p204
    %p207 = scmp.ne.s32.totalorder %s192, %s206
    %p208 = scmp.eq.s32.totalorder %s20, 0
    %p209 = por %p207, %p208
    %s210 = ssub.s32 %s14, %s21
    %p211 = scmp.eq.s32.totalorder %s210, 0
    %s213 = sadd.s32 %s212, 1
    %s214 = scalar_select %p211, %s212, %s213
    %p217 = pneg %p211
    %p218 = scmp.eq.s32.totalorder %s14, 1
    %p219 = por %p217, %p218
    %p220 = scmp.ne.s32.totalorder %s212, %s215
    %p221 = scmp.eq.s32.totalorder %s14, 0
    %p222 = por %p220, %p221
    %p223 = scmp.ne.s32.totalorder %s212, %s215
    %p224 = scmp.eq.s32.totalorder %s19, 1
    %p225 = por %p223, %p224
    %p226 = scmp.ne.s32.totalorder %s215, %s216
    %p227 = scmp.eq.s32.totalorder %s19, 0
    %p228 = por %p226, %p227
    %p229 = scmp.ne.s32.totalorder %s215, %s216
    %p230 = scmp.eq.s32.totalorder %s20, 1
    %p231 = por %p229, %p230
    %p233 = scmp.ne.s32.totalorder %s216, %s232
    %p234 = scmp.eq.s32.totalorder %s20, 0
    %p235 = por %p233, %p234
    %p236 = scmp.le.s32.totalorder 1, %s14
    %p237 = scmp.lt.s32.totalorder %s14, 3
    %p238 = pnand %p236, %p237
    %p239 = pneg %p238
    // Predicated region
    $region9: #{discriminator_forward.6} parent=5 // pred_check
      _
    $region10: #{discriminator_forward.6} parent=5 // pred_check_branch
      %241 = sbr.rel (%p238) target = $region12
    $region11: #{discriminator_forward.6} parent=5 // pred_region
      %s242 = ssub.s32 %s14, 1
      // Predicated region
      $region13: #{discriminator_forward.6} parent=11 // pred_check
        %p243 = pneg %p139
      $region14: #{discriminator_forward.6} parent=11 // pred_check_branch
        %245 = sbr.rel (%p243) target = $region16
      $region15: #{discriminator_forward.6} parent=11 // pred_region
        _
      $region16: #{discriminator_forward.6} parent=11 // pred_fallthru
        _
      // Predicated region
      $region17: #{discriminator_forward.6} parent=11 // pred_check
        %p246 = pneg %p160
      $region18: #{discriminator_forward.6} parent=11 // pred_check_branch
        %248 = sbr.rel (%p246) target = $region20
      $region19: #{discriminator_forward.6} parent=11 // pred_region
        _
      $region20: #{discriminator_forward.6} parent=11 // pred_fallthru
        _
      // Predicated region
      $region21: #{discriminator_forward.6} parent=11 // pred_check
        %p249 = pneg %p181
      $region22: #{discriminator_forward.6} parent=11 // pred_check_branch
        %251 = sbr.rel (%p249) target = $region24
      $region23: #{discriminator_forward.6} parent=11 // pred_region
        _
      $region24: #{discriminator_forward.6} parent=11 // pred_fallthru
        _
      // Predicated region
      $region25: #{discriminator_forward.6} parent=11 // pred_check
        %p252 = pneg %p202
      $region26: #{discriminator_forward.6} parent=11 // pred_check_branch
        %254 = sbr.rel (%p252) target = $region28
      $region27: #{discriminator_forward.6} parent=11 // pred_region
        _
      $region28: #{discriminator_forward.6} parent=11 // pred_fallthru
        _
    $region12: #{discriminator_forward.6} parent=5 // pred_fallthru
      _
    %p255 = scmp.lt.s32.totalorder %s14, 2
    // Predicated region
    $region29: #{discriminator_forward.6} parent=5 // pred_check
      %p256 = pneg %p255
    $region30: #{discriminator_forward.6} parent=5 // pred_check_branch
      %258 = sbr.rel (%p256) target = $region32
    $region31: #{discriminator_forward.6} parent=5 // pred_region
      // Predicated region
      $region33: #{discriminator_forward.6} parent=31 // pred_check
        %p259 = pneg %p34
      $region34: #{discriminator_forward.6} parent=31 // pred_check_branch
        %261 = sbr.rel (%p259) target = $region36
      $region35: #{discriminator_forward.6} parent=31 // pred_region
        %p262 = scmp.lt.s32.totalorder %s14, 1
        %s263 = scalar_select %p262, %s14, 1
        %s264 = smul.addr %s263, 4
        %s265 = smul.addr %s264, 4
        %s266 = scalar_lea.vmem %s0, %s265
      $region36: #{discriminator_forward.6} parent=31 // pred_fallthru
        _
      // Predicated region
      $region37: #{discriminator_forward.6} parent=31 // pred_check
        %p267 = pneg %p60
      $region38: #{discriminator_forward.6} parent=31 // pred_check_branch
        %269 = sbr.rel (%p267) target = $region40
      $region39: #{discriminator_forward.6} parent=31 // pred_region
        %p270 = scmp.lt.s32.totalorder %s14, 1
        %s271 = scalar_select %p270, %s14, 1
        %s272 = smul.addr %s271, 4
        %s273 = smul.addr %s272, 4
        %s274 = scalar_lea.vmem %s1, %s273
      $region40: #{discriminator_forward.6} parent=31 // pred_fallthru
        _
      // Predicated region
      $region41: #{discriminator_forward.6} parent=31 // pred_check
        %p275 = pneg %p86
      $region42: #{discriminator_forward.6} parent=31 // pred_check_branch
        %277 = sbr.rel (%p275) target = $region44
      $region43: #{discriminator_forward.6} parent=31 // pred_region
        %p278 = scmp.lt.s32.totalorder %s14, 1
        %s279 = scalar_select %p278, %s14, 1
        %s280 = smul.addr %s279, 4
        %s281 = smul.addr %s280, 4
        %s282 = scalar_lea.vmem %s2, %s281
      $region44: #{discriminator_forward.6} parent=31 // pred_fallthru
        _
      // Predicated region
      $region45: #{discriminator_forward.6} parent=31 // pred_check
        %p283 = pneg %p112
      $region46: #{discriminator_forward.6} parent=31 // pred_check_branch
        %285 = sbr.rel (%p283) target = $region48
      $region47: #{discriminator_forward.6} parent=31 // pred_region
        %p286 = scmp.lt.s32.totalorder %s14, 1
        %s287 = scalar_select %p286, %s14, 1
        %s288 = smul.addr %s287, 4
        %s289 = smul.addr %s288, 4
        %s290 = scalar_lea.vmem %s3, %s289
      $region48: #{discriminator_forward.6} parent=31 // pred_fallthru
        _
    $region32: #{discriminator_forward.6} parent=5 // pred_fallthru
      _
    %p291 = scmp.le.s32.totalorder 1, %s14
    %p292 = scmp.lt.s32.totalorder %s14, 3
    %p293 = pnand %p291, %p292
    %p294 = pneg %p293
    // Predicated region
    $region49: #{discriminator_forward.6} parent=5 // pred_check
      _
    $region50: #{discriminator_forward.6} parent=5 // pred_check_branch
      %296 = sbr.rel (%p293) target = $region52
    $region51: #{discriminator_forward.6} parent=5 // pred_region
      %s297 = ssub.s32 %s14, 1
      %p298 = scmp.lt.s32.totalorder %s19, 1
      %s299 = scalar_select %p298, %s19, 1
      %s300 = smul.addr %s299, 4
      %s301 = smul.addr %s300, 4
      %s302 = scalar_lea.vmem %s0, %s301
      %p303 = pneg %p40
      %p304 = pneg %p37
      %p305 = scmp.lt.s32.totalorder %s19, 1
      %s306 = scalar_select %p305, %s19, 1
      %s307 = smul.addr %s306, 4
      %s308 = smul.addr %s307, 4
      %s309 = scalar_lea.vmem %s1, %s308
      %p310 = pneg %p66
      %p311 = pneg %p63
      %p312 = scmp.lt.s32.totalorder %s19, 1
      %s313 = scalar_select %p312, %s19, 1
      %s314 = smul.addr %s313, 4
      %s315 = smul.addr %s314, 4
      %s316 = scalar_lea.vmem %s2, %s315
      %p317 = pneg %p92
      %p318 = pneg %p89
      %p319 = scmp.lt.s32.totalorder %s19, 1
      %s320 = scalar_select %p319, %s19, 1
      %s321 = smul.addr %s320, 4
      %s322 = smul.addr %s321, 4
      %s323 = scalar_lea.vmem %s3, %s322
      %p324 = pneg %p118
      %p325 = pneg %p115
      %p326 = pneg %p139
      %p327 = pneg %p136
      %p328 = pneg %p160
      %p329 = pneg %p157
      %p330 = pneg %p181
      %p331 = pneg %p178
      %p332 = pneg %p202
      %p333 = pneg %p199
      %p334 = pneg %p228
      %p335 = pneg %p225
      %p336 = scmp.lt.s32.totalorder %s19, 1
      %s337 = scalar_select %p336, %s19, 1
      %s338 = smul.addr %s337, 3
      %s339 = smul.addr %s338, 4
      %s340 = scalar_lea.vmem %s8, %s339
      %p341 = scmp.lt.s32.totalorder %s19, 1
      %s342 = scalar_select %p341, %s19, 1
      %s343 = smul.addr %s342, 4
      %s344 = smul.addr %s343, 4
      %s345 = scalar_lea.vmem %s0, %s344
      %p346 = scmp.lt.s32.totalorder %s19, 1
      %s347 = scalar_select %p346, %s19, 1
      %s348 = smul.addr %s347, 4
      %s349 = smul.addr %s348, 4
      %s350 = scalar_lea.vmem %s1, %s349
      %p351 = scmp.lt.s32.totalorder %s19, 1
      %s352 = scalar_select %p351, %s19, 1
      %s353 = smul.addr %s352, 4
      %s354 = smul.addr %s353, 4
      %s355 = scalar_lea.vmem %s2, %s354
      %p356 = scmp.lt.s32.totalorder %s19, 1
      %s357 = scalar_select %p356, %s19, 1
      %s358 = smul.addr %s357, 4
      %s359 = smul.addr %s358, 4
      %s360 = scalar_lea.vmem %s3, %s359
      %p361 = scmp.lt.s32.totalorder %s19, 1
      %s362 = scalar_select %p361, %s19, 1
      %s363 = smul.addr %s362, 3
      %s364 = smul.addr %s363, 4
      %s365 = scalar_lea.vmem %s8, %s364
      %v367 = vld [vmem:[%s345] sm:$0xf]
      %v368 = vld [vmem:[%s345 + $0x4] sm:$0xf]
      %v369 = vld [vmem:[%s345 + $0x8] sm:$0x3]
      %v370 = vld [vmem:[%s4] sm:$0xf]
      %v371 = vld [vmem:[%s350] sm:$0xf]
      %v372 = vld [vmem:[%s350 + $0x4] sm:$0xf]
      %v373 = vld [vmem:[%s350 + $0x8] sm:$0x3]
      %s374 = scalar_lea.vmem %s4, 4
      %v375 = vld [vmem:[%s374] sm:$0xf]
      %v379 = vunpack.c.l.b16 %v371
      %v380 = vunpack.c.l.b16 %v372
      %v381 = vunpack.c.l.b16 %v373
      %v382 = vpack.c.b16 %v380, %v379
      %v383 = vpack.c.b16 %v381, %v381
      %vm384 = vcmask 64512
      %v386 = vsel %vm384, %v382, 0
      %v389 = vsel %vm384, %v383, 0
      %vm391 = vcmask 1043456
      %v393 = vsel %vm391, %v375, 0
      %395 = vmatpush.bf16.msra.mxu0 0
      %396 = vmatpush.bf16.msra.mxu0 0
      %397 = vmatpush.bf16.msra.mxu0 0
      %398 = vmatpush.bf16.msra.mxu0 0
      %399 = vmatpush.bf16.msra.mxu0 0
      %400 = vmatpush.bf16.msra.mxu0 0
      %401 = vmatpush.bf16.msra.mxu0 0
      %402 = vmatpush.bf16.msra.mxu0 %v393
      %403 = vmatmul.bf16.gmra.mxu0 %v386
      %v404 = vpop.f32.mrf.mxu0
      %v405 = vadd.f32 0.0, %v404
      %v406 = vpop.f32.mrf.mxu0
      %v407 = vadd.f32 0.0, %v406
      %408 = vmatmul.bf16.gmra.mxu0 %v389
      %v409 = vpop.f32.mrf.mxu0
      %v410 = vadd.f32 0.0, %v409
      %v411 = vpop.f32.mrf.mxu0
      %412 = vdwg.mxu0
      %v416 = vunpack.c.l.b16 %v367
      %v417 = vunpack.c.l.b16 %v368
      %v418 = vunpack.c.l.b16 %v369
      %v419 = vpack.c.b16 %v417, %v416
      %v420 = vpack.c.b16 %v418, %v418
      %v422 = vsel %vm384, %v419, 0
      %v425 = vsel %vm384, %v420, 0
      %v428 = vsel %vm391, %v370, 0
      %430 = vmatpush.bf16.msra.mxu0 0
      %431 = vmatpush.bf16.msra.mxu0 0
      %432 = vmatpush.bf16.msra.mxu0 0
      %433 = vmatpush.bf16.msra.mxu0 0
      %434 = vmatpush.bf16.msra.mxu0 0
      %435 = vmatpush.bf16.msra.mxu0 0
      %436 = vmatpush.bf16.msra.mxu0 0
      %437 = vmatpush.bf16.msra.mxu0 %v428
      %438 = vmatmul.bf16.gmra.mxu0 %v422
      %v439 = vpop.f32.mrf.mxu0
      %v440 = vadd.f32 %v405, %v439
      %v441 = vpop.f32.mrf.mxu0
      %v442 = vadd.f32 %v407, %v441
      %443 = vmatmul.bf16.gmra.mxu0 %v425
      %v444 = vpop.f32.mrf.mxu0
      %v445 = vadd.f32 %v410, %v444
      %v446 = vpop.f32.mrf.mxu0
      %447 = vdwg.mxu0
      %v448 = vld [vmem:[%s345 + $0x8] sm:$0x7]
      %s449 = scalar_lea.vmem %s4, 8
      %v450 = vld [vmem:[%s449] sm:$0xf]
      %v452 = vunpack.c.l.b16 %v448
      %v453 = vpack.c.b16 %v452, %v452
      %vm454 = vsmask.f32 7424
      %v455 = vshrl.u32 %v419, 16
      %v457 = vshll.u32 %v419, 16
      %v459 = vrot.slane %v457, 1
      %v460 = vor.u32 %v455, %v459
      %v462 = vshll.u32 %v453, 16
      %v464 = vrot.slane %v462, 1
      %v465 = vsel %vm454, %v460, %v464
      %v466 = vshrl.u32 %v453, 16
      %v468 = vor.u32 %v466, %v464
      %v470 = vsel %vm384, %v465, 0
      %v473 = vsel %vm384, %v468, 0
      %v476 = vsel %vm391, %v450, 0
      %478 = vmatpush.bf16.msra.mxu0 0
      %479 = vmatpush.bf16.msra.mxu0 0
      %480 = vmatpush.bf16.msra.mxu0 0
      %481 = vmatpush.bf16.msra.mxu0 0
      %482 = vmatpush.bf16.msra.mxu0 0
      %483 = vmatpush.bf16.msra.mxu0 0
      %484 = vmatpush.bf16.msra.mxu0 0
      %485 = vmatpush.bf16.msra.mxu0 %v476
      %486 = vmatmul.bf16.gmra.mxu0 %v470
      %v487 = vpop.f32.mrf.mxu0
      %v488 = vadd.f32 0.0, %v487
      %v489 = vpop.f32.mrf.mxu0
      %v490 = vadd.f32 0.0, %v489
      %491 = vmatmul.bf16.gmra.mxu0 %v473
      %v492 = vpop.f32.mrf.mxu0
      %v493 = vadd.f32 0.0, %v492
      %v494 = vpop.f32.mrf.mxu0
      %495 = vdwg.mxu0
      %v496 = vadd.f32 %v440, %v488
      %v497 = vadd.f32 %v442, %v490
      %v498 = vadd.f32 %v445, %v493
      %v499 = vld [vmem:[%s350 + $0x8] sm:$0x7]
      %s500 = scalar_lea.vmem %s4, 12
      %v501 = vld [vmem:[%s500] sm:$0xf]
      %v503 = vunpack.c.l.b16 %v499
      %v504 = vpack.c.b16 %v503, %v503
      %v505 = vshrl.u32 %v382, 16
      %v507 = vshll.u32 %v382, 16
      %v509 = vrot.slane %v507, 1
      %v510 = vor.u32 %v505, %v509
      %v512 = vshll.u32 %v504, 16
      %v514 = vrot.slane %v512, 1
      %v515 = vsel %vm454, %v510, %v514
      %v516 = vshrl.u32 %v504, 16
      %v518 = vor.u32 %v516, %v514
      %v520 = vsel %vm384, %v515, 0
      %v523 = vsel %vm384, %v518, 0
      %v526 = vsel %vm391, %v501, 0
      %528 = vmatpush.bf16.msra.mxu0 0
      %529 = vmatpush.bf16.msra.mxu0 0
      %530 = vmatpush.bf16.msra.mxu0 0
      %531 = vmatpush.bf16.msra.mxu0 0
      %532 = vmatpush.bf16.msra.mxu0 0
      %533 = vmatpush.bf16.msra.mxu0 0
      %534 = vmatpush.bf16.msra.mxu0 0
      %535 = vmatpush.bf16.msra.mxu0 %v526
      %536 = vmatmul.bf16.gmra.mxu0 %v520
      %v537 = vpop.f32.mrf.mxu0
      %v538 = vadd.f32 0.0, %v537
      %v539 = vpop.f32.mrf.mxu0
      %v540 = vadd.f32 0.0, %v539
      %541 = vmatmul.bf16.gmra.mxu0 %v523
      %v542 = vpop.f32.mrf.mxu0
      %v543 = vadd.f32 0.0, %v542
      %v544 = vpop.f32.mrf.mxu0
      %545 = vdwg.mxu0
      %v546 = vadd.f32 %v496, %v538
      %v547 = vadd.f32 %v497, %v540
      %v548 = vadd.f32 %v498, %v543
      %v549 = vld [vmem:[%s355] sm:$0xf]
      %v550 = vld [vmem:[%s355 + $0x4] sm:$0xf]
      %v551 = vld [vmem:[%s355 + $0x8] sm:$0x3]
      %s552 = scalar_lea.vmem %s4, 16
      %v553 = vld [vmem:[%s552] sm:$0xf]
      %v557 = vunpack.c.l.b16 %v549
      %v558 = vunpack.c.l.b16 %v550
      %v559 = vunpack.c.l.b16 %v551
      %v560 = vpack.c.b16 %v558, %v557
      %v561 = vpack.c.b16 %v559, %v559
      %v563 = vsel %vm384, %v560, 0
      %v566 = vsel %vm384, %v561, 0
      %v569 = vsel %vm391, %v553, 0
      %571 = vmatpush.bf16.msra.mxu0 0
      %572 = vmatpush.bf16.msra.mxu0 0
      %573 = vmatpush.bf16.msra.mxu0 0
      %574 = vmatpush.bf16.msra.mxu0 0
      %575 = vmatpush.bf16.msra.mxu0 0
      %576 = vmatpush.bf16.msra.mxu0 0
      %577 = vmatpush.bf16.msra.mxu0 0
      %578 = vmatpush.bf16.msra.mxu0 %v569
      %579 = vmatmul.bf16.gmra.mxu0 %v563
      %v580 = vpop.f32.mrf.mxu0
      %v581 = vadd.f32 0.0, %v580
      %v582 = vpop.f32.mrf.mxu0
      %v583 = vadd.f32 0.0, %v582
      %584 = vmatmul.bf16.gmra.mxu0 %v566
      %v585 = vpop.f32.mrf.mxu0
      %v586 = vadd.f32 0.0, %v585
      %v587 = vpop.f32.mrf.mxu0
      %588 = vdwg.mxu0
      %v589 = vadd.f32 %v546, %v581
      %v590 = vadd.f32 %v547, %v583
      %v591 = vadd.f32 %v548, %v586
      %v592 = vld [vmem:[%s360] sm:$0xf]
      %v593 = vld [vmem:[%s360 + $0x4] sm:$0xf]
      %v594 = vld [vmem:[%s360 + $0x8] sm:$0x3]
      %s595 = scalar_lea.vmem %s4, 20
      %v596 = vld [vmem:[%s595] sm:$0xf]
      %v600 = vunpack.c.l.b16 %v592
      %v601 = vunpack.c.l.b16 %v593
      %v602 = vunpack.c.l.b16 %v594
      %v603 = vpack.c.b16 %v601, %v600
      %v604 = vpack.c.b16 %v602, %v602
      %v606 = vsel %vm384, %v603, 0
      %v609 = vsel %vm384, %v604, 0
      %v612 = vsel %vm391, %v596, 0
      %614 = vmatpush.bf16.msra.mxu0 0
      %615 = vmatpush.bf16.msra.mxu0 0
      %616 = vmatpush.bf16.msra.mxu0 0
      %617 = vmatpush.bf16.msra.mxu0 0
      %618 = vmatpush.bf16.msra.mxu0 0
      %619 = vmatpush.bf16.msra.mxu0 0
      %620 = vmatpush.bf16.msra.mxu0 0
      %621 = vmatpush.bf16.msra.mxu0 %v612
      %622 = vmatmul.bf16.gmra.mxu0 %v606
      %v623 = vpop.f32.mrf.mxu0
      %v624 = vadd.f32 0.0, %v623
      %v625 = vpop.f32.mrf.mxu0
      %v626 = vadd.f32 0.0, %v625
      %627 = vmatmul.bf16.gmra.mxu0 %v609
      %v628 = vpop.f32.mrf.mxu0
      %v629 = vadd.f32 0.0, %v628
      %v630 = vpop.f32.mrf.mxu0
      %631 = vdwg.mxu0
      %v632 = vadd.f32 %v589, %v624
      %v633 = vadd.f32 %v590, %v626
      %v634 = vadd.f32 %v591, %v629
      %v635 = vld [vmem:[%s355 + $0x8] sm:$0x7]
      %s636 = scalar_lea.vmem %s4, 24
      %v637 = vld [vmem:[%s636] sm:$0xf]
      %v639 = vunpack.c.l.b16 %v635
      %v640 = vpack.c.b16 %v639, %v639
      %v641 = vshrl.u32 %v560, 16
      %v643 = vshll.u32 %v560, 16
      %v645 = vrot.slane %v643, 1
      %v646 = vor.u32 %v641, %v645
      %v648 = vshll.u32 %v640, 16
      %v650 = vrot.slane %v648, 1
      %v651 = vsel %vm454, %v646, %v650
      %v652 = vshrl.u32 %v640, 16
      %v654 = vor.u32 %v652, %v650
      %v656 = vsel %vm384, %v651, 0
      %v659 = vsel %vm384, %v654, 0
      %v662 = vsel %vm391, %v637, 0
      %664 = vmatpush.bf16.msra.mxu0 0
      %665 = vmatpush.bf16.msra.mxu0 0
      %666 = vmatpush.bf16.msra.mxu0 0
      %667 = vmatpush.bf16.msra.mxu0 0
      %668 = vmatpush.bf16.msra.mxu0 0
      %669 = vmatpush.bf16.msra.mxu0 0
      %670 = vmatpush.bf16.msra.mxu0 0
      %671 = vmatpush.bf16.msra.mxu0 %v662
      %672 = vmatmul.bf16.gmra.mxu0 %v656
      %v673 = vpop.f32.mrf.mxu0
      %v674 = vadd.f32 0.0, %v673
      %v675 = vpop.f32.mrf.mxu0
      %v676 = vadd.f32 0.0, %v675
      %677 = vmatmul.bf16.gmra.mxu0 %v659
      %v678 = vpop.f32.mrf.mxu0
      %v679 = vadd.f32 0.0, %v678
      %v680 = vpop.f32.mrf.mxu0
      %681 = vdwg.mxu0
      %v682 = vadd.f32 %v632, %v674
      %v683 = vadd.f32 %v633, %v676
      %v684 = vadd.f32 %v634, %v679
      %v685 = vld [vmem:[%s360 + $0x8] sm:$0x7]
      %s686 = scalar_lea.vmem %s4, 28
      %v687 = vld [vmem:[%s686] sm:$0xf]
      %v689 = vunpack.c.l.b16 %v685
      %v690 = vpack.c.b16 %v689, %v689
      %v691 = vshrl.u32 %v603, 16
      %v693 = vshll.u32 %v603, 16
      %v695 = vrot.slane %v693, 1
      %v696 = vor.u32 %v691, %v695
      %v698 = vshll.u32 %v690, 16
      %v700 = vrot.slane %v698, 1
      %v701 = vsel %vm454, %v696, %v700
      %v702 = vshrl.u32 %v690, 16
      %v704 = vor.u32 %v702, %v700
      %v706 = vsel %vm384, %v701, 0
      %v709 = vsel %vm384, %v704, 0
      %v712 = vsel %vm391, %v687, 0
      %714 = vmatpush.bf16.msra.mxu0 0
      %715 = vmatpush.bf16.msra.mxu0 0
      %716 = vmatpush.bf16.msra.mxu0 0
      %717 = vmatpush.bf16.msra.mxu0 0
      %718 = vmatpush.bf16.msra.mxu0 0
      %719 = vmatpush.bf16.msra.mxu0 0
      %720 = vmatpush.bf16.msra.mxu0 0
      %721 = vmatpush.bf16.msra.mxu0 %v712
      %722 = vmatmul.bf16.gmra.mxu0 %v706
      %v723 = vpop.f32.mrf.mxu0
      %v724 = vadd.f32 0.0, %v723
      %v725 = vpop.f32.mrf.mxu0
      %v726 = vadd.f32 0.0, %v725
      %727 = vmatmul.bf16.gmra.mxu0 %v709
      %v728 = vpop.f32.mrf.mxu0
      %v729 = vadd.f32 0.0, %v728
      %v730 = vpop.f32.mrf.mxu0
      %731 = vdwg.mxu0
      %v732 = vadd.f32 %v682, %v724
      %v733 = vadd.f32 %v683, %v726
      %v734 = vadd.f32 %v684, %v729
      %v735 = vld [vmem:[%s345] sm:$0xc]
      %v736 = vld [vmem:[%s345 + $0x4] sm:$0xf]
      %v737 = vld [vmem:[%s345 + $0x8] sm:$0xf]
      %v738 = vld [vmem:[%s345 + $0xc] sm:$0x1]
      %s739 = scalar_lea.vmem %s4, 32
      %v740 = vld [vmem:[%s739] sm:$0xf]
      %v745 = vunpack.c.l.b16 %v735
      %v746 = vunpack.c.l.b16 %v736
      %v747 = vunpack.c.l.b16 %v737
      %v748 = vunpack.c.l.b16 %v738
      %v749 = vpack.c.b16 %v746, %v745
      %v750 = vpack.c.b16 %v748, %v747
      %vm751 = vsmask.f32 5376
      %v753 = vshrl.u32 %v749, 16
      %v755 = vrot.slane %v753, 2
      %v756 = vshll.u32 %v749, 16
      %v758 = vrot.slane %v756, 3
      %v759 = vor.u32 %v755, %v758
      %v761 = vshrl.u32 %v750, 16
      %v763 = vrot.slane %v761, 2
      %v764 = vshll.u32 %v750, 16
      %v766 = vrot.slane %v764, 3
      %v767 = vor.u32 %v763, %v766
      %v768 = vsel %vm751, %v759, %v767
      %v770 = vsel %vm384, %v768, 0
      %v773 = vsel %vm384, %v767, 0
      %v776 = vsel %vm391, %v740, 0
      %778 = vmatpush.bf16.msra.mxu0 0
      %779 = vmatpush.bf16.msra.mxu0 0
      %780 = vmatpush.bf16.msra.mxu0 0
      %781 = vmatpush.bf16.msra.mxu0 0
      %782 = vmatpush.bf16.msra.mxu0 0
      %783 = vmatpush.bf16.msra.mxu0 0
      %784 = vmatpush.bf16.msra.mxu0 0
      %785 = vmatpush.bf16.msra.mxu0 %v776
      %786 = vmatmul.bf16.gmra.mxu0 %v770
      %v787 = vpop.f32.mrf.mxu0
      %v788 = vadd.f32 0.0, %v787
      %v789 = vpop.f32.mrf.mxu0
      %v790 = vadd.f32 0.0, %v789
      %791 = vmatmul.bf16.gmra.mxu0 %v773
      %v792 = vpop.f32.mrf.mxu0
      %v793 = vadd.f32 0.0, %v792
      %v794 = vpop.f32.mrf.mxu0
      %795 = vdwg.mxu0
      %v796 = vadd.f32 %v732, %v788
      %v797 = vadd.f32 %v733, %v790
      %v798 = vadd.f32 %v734, %v793
      %v799 = vld [vmem:[%s350] sm:$0xc]
      %v800 = vld [vmem:[%s350 + $0x4] sm:$0xf]
      %v801 = vld [vmem:[%s350 + $0x8] sm:$0xf]
      %v802 = vld [vmem:[%s350 + $0xc] sm:$0x1]
      %s803 = scalar_lea.vmem %s4, 36
      %v804 = vld [vmem:[%s803] sm:$0xf]
      %v809 = vunpack.c.l.b16 %v799
      %v810 = vunpack.c.l.b16 %v800
      %v811 = vunpack.c.l.b16 %v801
      %v812 = vunpack.c.l.b16 %v802
      %v813 = vpack.c.b16 %v810, %v809
      %v814 = vpack.c.b16 %v812, %v811
      %v816 = vshrl.u32 %v813, 16
      %v818 = vrot.slane %v816, 2
      %v819 = vshll.u32 %v813, 16
      %v821 = vrot.slane %v819, 3
      %v822 = vor.u32 %v818, %v821
      %v824 = vshrl.u32 %v814, 16
      %v826 = vrot.slane %v824, 2
      %v827 = vshll.u32 %v814, 16
      %v829 = vrot.slane %v827, 3
      %v830 = vor.u32 %v826, %v829
      %v831 = vsel %vm751, %v822, %v830
      %v833 = vsel %vm384, %v831, 0
      %v836 = vsel %vm384, %v830, 0
      %v839 = vsel %vm391, %v804, 0
      %841 = vmatpush.bf16.msra.mxu0 0
      %842 = vmatpush.bf16.msra.mxu0 0
      %843 = vmatpush.bf16.msra.mxu0 0
      %844 = vmatpush.bf16.msra.mxu0 0
      %845 = vmatpush.bf16.msra.mxu0 0
      %846 = vmatpush.bf16.msra.mxu0 0
      %847 = vmatpush.bf16.msra.mxu0 0
      %848 = vmatpush.bf16.msra.mxu0 %v839
      %849 = vmatmul.bf16.gmra.mxu0 %v833
      %v850 = vpop.f32.mrf.mxu0
      %v851 = vadd.f32 0.0, %v850
      %v852 = vpop.f32.mrf.mxu0
      %v853 = vadd.f32 0.0, %v852
      %854 = vmatmul.bf16.gmra.mxu0 %v836
      %v855 = vpop.f32.mrf.mxu0
      %v856 = vadd.f32 0.0, %v855
      %v857 = vpop.f32.mrf.mxu0
      %858 = vdwg.mxu0
      %v859 = vadd.f32 %v796, %v851
      %v860 = vadd.f32 %v797, %v853
      %v861 = vadd.f32 %v798, %v856
      %v862 = vld [vmem:[%s345] sm:$0x8]
      %s863 = scalar_lea.vmem %s4, 40
      %v864 = vld [vmem:[%s863] sm:$0xf]
      %v866 = vunpack.c.l.b16 %v862
      %v867 = vpack.c.b16 %v746, %v866
      %vm868 = vcmask 1044480
      %v869 = vrot.slane %v867, 3
      %v870 = vrot.slane %v750, 3
      %v871 = vsel %vm868, %v869, %v870
      %v873 = vsel %vm384, %v871, 0
      %v876 = vsel %vm384, %v870, 0
      %v879 = vsel %vm391, %v864, 0
      %881 = vmatpush.bf16.msra.mxu0 0
      %882 = vmatpush.bf16.msra.mxu0 0
      %883 = vmatpush.bf16.msra.mxu0 0
      %884 = vmatpush.bf16.msra.mxu0 0
      %885 = vmatpush.bf16.msra.mxu0 0
      %886 = vmatpush.bf16.msra.mxu0 0
      %887 = vmatpush.bf16.msra.mxu0 0
      %888 = vmatpush.bf16.msra.mxu0 %v879
      %889 = vmatmul.bf16.gmra.mxu0 %v873
      %v890 = vpop.f32.mrf.mxu0
      %v891 = vadd.f32 0.0, %v890
      %v892 = vpop.f32.mrf.mxu0
      %v893 = vadd.f32 0.0, %v892
      %894 = vmatmul.bf16.gmra.mxu0 %v876
      %v895 = vpop.f32.mrf.mxu0
      %v896 = vadd.f32 0.0, %v895
      %v897 = vpop.f32.mrf.mxu0
      %898 = vdwg.mxu0
      %v899 = vadd.f32 %v859, %v891
      %v900 = vadd.f32 %v860, %v893
      %v901 = vadd.f32 %v861, %v896
      %v902 = vld [vmem:[%s350] sm:$0x8]
      %s903 = scalar_lea.vmem %s4, 44
      %v904 = vld [vmem:[%s903] sm:$0xf]
      %v906 = vunpack.c.l.b16 %v902
      %v907 = vpack.c.b16 %v810, %v906
      %v908 = vrot.slane %v907, 3
      %v909 = vrot.slane %v814, 3
      %v910 = vsel %vm868, %v908, %v909
      %v912 = vsel %vm384, %v910, 0
      %v915 = vsel %vm384, %v909, 0
      %v918 = vsel %vm391, %v904, 0
      %920 = vmatpush.bf16.msra.mxu0 0
      %921 = vmatpush.bf16.msra.mxu0 0
      %922 = vmatpush.bf16.msra.mxu0 0
      %923 = vmatpush.bf16.msra.mxu0 0
      %924 = vmatpush.bf16.msra.mxu0 0
      %925 = vmatpush.bf16.msra.mxu0 0
      %926 = vmatpush.bf16.msra.mxu0 0
      %927 = vmatpush.bf16.msra.mxu0 %v918
      %928 = vmatmul.bf16.gmra.mxu0 %v912
      %v929 = vpop.f32.mrf.mxu0
      %v930 = vadd.f32 0.0, %v929
      %v931 = vpop.f32.mrf.mxu0
      %v932 = vadd.f32 0.0, %v931
      %933 = vmatmul.bf16.gmra.mxu0 %v915
      %v934 = vpop.f32.mrf.mxu0
      %v935 = vadd.f32 0.0, %v934
      %v936 = vpop.f32.mrf.mxu0
      %937 = vdwg.mxu0
      %v938 = vadd.f32 %v899, %v930
      %v939 = vadd.f32 %v900, %v932
      %v940 = vadd.f32 %v901, %v935
      %v941 = vld [vmem:[%s355] sm:$0xc]
      %v942 = vld [vmem:[%s355 + $0x4] sm:$0xf]
      %v943 = vld [vmem:[%s355 + $0x8] sm:$0xf]
      %v944 = vld [vmem:[%s355 + $0xc] sm:$0x1]
      %s945 = scalar_lea.vmem %s4, 48
      %v946 = vld [vmem:[%s945] sm:$0xf]
      %v951 = vunpack.c.l.b16 %v941
      %v952 = vunpack.c.l.b16 %v942
      %v953 = vunpack.c.l.b16 %v943
      %v954 = vunpack.c.l.b16 %v944
      %v955 = vpack.c.b16 %v952, %v951
      %v956 = vpack.c.b16 %v954, %v953
      %v958 = vshrl.u32 %v955, 16
      %v960 = vrot.slane %v958, 2
      %v961 = vshll.u32 %v955, 16
      %v963 = vrot.slane %v961, 3
      %v964 = vor.u32 %v960, %v963
      %v966 = vshrl.u32 %v956, 16
      %v968 = vrot.slane %v966, 2
      %v969 = vshll.u32 %v956, 16
      %v971 = vrot.slane %v969, 3
      %v972 = vor.u32 %v968, %v971
      %v973 = vsel %vm751, %v964, %v972
      %v975 = vsel %vm384, %v973, 0
      %v978 = vsel %vm384, %v972, 0
      %v981 = vsel %vm391, %v946, 0
      %983 = vmatpush.bf16.msra.mxu0 0
      %984 = vmatpush.bf16.msra.mxu0 0
      %985 = vmatpush.bf16.msra.mxu0 0
      %986 = vmatpush.bf16.msra.mxu0 0
      %987 = vmatpush.bf16.msra.mxu0 0
      %988 = vmatpush.bf16.msra.mxu0 0
      %989 = vmatpush.bf16.msra.mxu0 0
      %990 = vmatpush.bf16.msra.mxu0 %v981
      %991 = vmatmul.bf16.gmra.mxu0 %v975
      %v992 = vpop.f32.mrf.mxu0
      %v993 = vadd.f32 0.0, %v992
      %v994 = vpop.f32.mrf.mxu0
      %v995 = vadd.f32 0.0, %v994
      %996 = vmatmul.bf16.gmra.mxu0 %v978
      %v997 = vpop.f32.mrf.mxu0
      %v998 = vadd.f32 0.0, %v997
      %v999 = vpop.f32.mrf.mxu0
      %1000 = vdwg.mxu0
      %v1001 = vadd.f32 %v938, %v993
      %v1002 = vadd.f32 %v939, %v995
      %v1003 = vadd.f32 %v940, %v998
      %v1004 = vld [vmem:[%s360] sm:$0xc]
      %v1005 = vld [vmem:[%s360 + $0x4] sm:$0xf]
      %v1006 = vld [vmem:[%s360 + $0x8] sm:$0xf]
      %v1007 = vld [vmem:[%s360 + $0xc] sm:$0x1]
      %s1008 = scalar_lea.vmem %s4, 52
      %v1009 = vld [vmem:[%s1008] sm:$0xf]
      %v1014 = vunpack.c.l.b16 %v1004
      %v1015 = vunpack.c.l.b16 %v1005
      %v1016 = vunpack.c.l.b16 %v1006
      %v1017 = vunpack.c.l.b16 %v1007
      %v1018 = vpack.c.b16 %v1015, %v1014
      %v1019 = vpack.c.b16 %v1017, %v1016
      %v1021 = vshrl.u32 %v1018, 16
      %v1023 = vrot.slane %v1021, 2
      %v1024 = vshll.u32 %v1018, 16
      %v1026 = vrot.slane %v1024, 3
      %v1027 = vor.u32 %v1023, %v1026
      %v1029 = vshrl.u32 %v1019, 16
      %v1031 = vrot.slane %v1029, 2
      %v1032 = vshll.u32 %v1019, 16
      %v1034 = vrot.slane %v1032, 3
      %v1035 = vor.u32 %v1031, %v1034
      %v1036 = vsel %vm751, %v1027, %v1035
      %v1038 = vsel %vm384, %v1036, 0
      %v1041 = vsel %vm384, %v1035, 0
      %v1044 = vsel %vm391, %v1009, 0
      %1046 = vmatpush.bf16.msra.mxu0 0
      %1047 = vmatpush.bf16.msra.mxu0 0
      %1048 = vmatpush.bf16.msra.mxu0 0
      %1049 = vmatpush.bf16.msra.mxu0 0
      %1050 = vmatpush.bf16.msra.mxu0 0
      %1051 = vmatpush.bf16.msra.mxu0 0
      %1052 = vmatpush.bf16.msra.mxu0 0
      %1053 = vmatpush.bf16.msra.mxu0 %v1044
      %1054 = vmatmul.bf16.gmra.mxu0 %v1038
      %v1055 = vpop.f32.mrf.mxu0
      %v1056 = vadd.f32 0.0, %v1055
      %v1057 = vpop.f32.mrf.mxu0
      %v1058 = vadd.f32 0.0, %v1057
      %1059 = vmatmul.bf16.gmra.mxu0 %v1041
      %v1060 = vpop.f32.mrf.mxu0
      %v1061 = vadd.f32 0.0, %v1060
      %v1062 = vpop.f32.mrf.mxu0
      %1063 = vdwg.mxu0
      %v1064 = vadd.f32 %v1001, %v1056
      %v1065 = vadd.f32 %v1002, %v1058
      %v1066 = vadd.f32 %v1003, %v1061
      %v1067 = vld [vmem:[%s355] sm:$0x8]
      %s1068 = scalar_lea.vmem %s4, 56
      %v1069 = vld [vmem:[%s1068] sm:$0xf]
      %v1071 = vunpack.c.l.b16 %v1067
      %v1072 = vpack.c.b16 %v952, %v1071
      %v1073 = vrot.slane %v1072, 3
      %v1074 = vrot.slane %v956, 3
      %v1075 = vsel %vm868, %v1073, %v1074
      %v1077 = vsel %vm384, %v1075, 0
      %v1080 = vsel %vm384, %v1074, 0
      %v1083 = vsel %vm391, %v1069, 0
      %1085 = vmatpush.bf16.msra.mxu0 0
      %1086 = vmatpush.bf16.msra.mxu0 0
      %1087 = vmatpush.bf16.msra.mxu0 0
      %1088 = vmatpush.bf16.msra.mxu0 0
      %1089 = vmatpush.bf16.msra.mxu0 0
      %1090 = vmatpush.bf16.msra.mxu0 0
      %1091 = vmatpush.bf16.msra.mxu0 0
      %1092 = vmatpush.bf16.msra.mxu0 %v1083
      %1093 = vmatmul.bf16.gmra.mxu0 %v1077
      %v1094 = vpop.f32.mrf.mxu0
      %v1095 = vadd.f32 0.0, %v1094
      %v1096 = vpop.f32.mrf.mxu0
      %v1097 = vadd.f32 0.0, %v1096
      %1098 = vmatmul.bf16.gmra.mxu0 %v1080
      %v1099 = vpop.f32.mrf.mxu0
      %v1100 = vadd.f32 0.0, %v1099
      %v1101 = vpop.f32.mrf.mxu0
      %1102 = vdwg.mxu0
      %v1103 = vadd.f32 %v1064, %v1095
      %v1104 = vadd.f32 %v1065, %v1097
      %v1105 = vadd.f32 %v1066, %v1100
      %v1106 = vld [vmem:[%s360] sm:$0x8]
      %s1107 = scalar_lea.vmem %s4, 60
      %v1108 = vld [vmem:[%s1107] sm:$0xf]
      %v1110 = vunpack.c.l.b16 %v1106
      %v1111 = vpack.c.b16 %v1015, %v1110
      %v1112 = vrot.slane %v1111, 3
      %v1113 = vrot.slane %v1019, 3
      %v1114 = vsel %vm868, %v1112, %v1113
      %v1116 = vsel %vm384, %v1114, 0
      %v1119 = vsel %vm384, %v1113, 0
      %v1122 = vsel %vm391, %v1108, 0
      %1124 = vmatpush.bf16.msra.mxu0 0
      %1125 = vmatpush.bf16.msra.mxu0 0
      %1126 = vmatpush.bf16.msra.mxu0 0
      %1127 = vmatpush.bf16.msra.mxu0 0
      %1128 = vmatpush.bf16.msra.mxu0 0
      %1129 = vmatpush.bf16.msra.mxu0 0
      %1130 = vmatpush.bf16.msra.mxu0 0
      %1131 = vmatpush.bf16.msra.mxu0 %v1122
      %1132 = vmatmul.bf16.gmra.mxu0 %v1116
      %v1133 = vpop.f32.mrf.mxu0
      %v1134 = vadd.f32 0.0, %v1133
      %v1135 = vpop.f32.mrf.mxu0
      %v1136 = vadd.f32 0.0, %v1135
      %1137 = vmatmul.bf16.gmra.mxu0 %v1119
      %v1138 = vpop.f32.mrf.mxu0
      %v1139 = vadd.f32 0.0, %v1138
      %v1140 = vpop.f32.mrf.mxu0
      %1141 = vdwg.mxu0
      %v1142 = vadd.f32 %v1103, %v1134
      %v1143 = vadd.f32 %v1104, %v1136
      %v1144 = vadd.f32 %v1105, %v1139
      %v1145 = vld [vmem:[%s7] sm:$0xff]
      %v1146 = vld [vmem:[%s7 + $0x8] sm:$0xff]
      %v1147 = vld [vmem:[%s7 + $0x10] sm:$0xf]
      %1149 = vset.pattern.permute.xlu0 0
      %1150 = vperm.xlu0 %1149, %v1145
      %v1151 = vpop.permute.xlu0 %1150
      %1154 = vset.pattern.permute.xlu0 0
      %1155 = vperm.xlu0 %1154, %v1146
      %v1156 = vpop.permute.xlu0 %1155
      %1159 = vset.pattern.permute.xlu0 0
      %1160 = vperm.xlu0 %1159, %v1147
      %v1161 = vpop.permute.xlu0 %1160
      %v1163 = vmul.f32 %v1142, %v1151
      %v1164 = vmul.f32 %v1143, %v1156
      %v1165 = vmul.f32 %v1144, %v1161
      %vm1166 = vcmask 130048
      %v1167 = vsel %vm1166, %v1163, 0.0
      %v1168 = vsel %vm1166, %v1164, 0.0
      %v1169 = vadd.f32 %v1167, %v1168
      %vm1170 = vcmask 125952
      %v1171 = vsel %vm1170, %v1165, 0.0
      %v1172 = vadd.f32 %v1169, %v1171
      %1173 = vadd.xlane.f32.xlu0 %v1172
      %v1174 = vpop.xlane.xlu0 %1173
      %v1175 = vrot.slane %v1174, 4
      %v1176 = vadd.f32 %v1174, %v1175
      %v1177 = vrot.slane %v1176, 2
      %v1178 = vadd.f32 %v1176, %v1177
      %v1179 = vrot.slane %v1178, 1
      %v1180 = vadd.f32 %v1178, %v1179
      %s1181 = vtos %v1180
      %v1182 = vstv %s1181
      %v1183 = vmul.f32 %v1182, 0.00390625
      %v1184 = vsub.f32 %v1142, %v1183
      %v1185 = vsub.f32 %v1143, %v1183
      %v1186 = vsub.f32 %v1144, %v1183
      %v1187 = vmul.f32 %v1184, %v1151
      %v1188 = vmul.f32 %v1185, %v1156
      %v1189 = vmul.f32 %v1186, %v1161
      %v1190 = vmul.f32 %v1187, %v1187
      %v1191 = vmul.f32 %v1188, %v1188
      %v1192 = vmul.f32 %v1189, %v1189
      %v1193 = vsel %vm1166, %v1190, 0.0
      %v1194 = vsel %vm1166, %v1191, 0.0
      %v1195 = vadd.f32 %v1193, %v1194
      %v1196 = vsel %vm1170, %v1192, 0.0
      %v1197 = vadd.f32 %v1195, %v1196
      %1198 = vadd.xlane.f32.xlu0 %v1197
      %v1199 = vpop.xlane.xlu0 %1198
      %v1200 = vrot.slane %v1199, 4
      %v1201 = vadd.f32 %v1199, %v1200
      %v1202 = vrot.slane %v1201, 2
      %v1203 = vadd.f32 %v1201, %v1202
      %v1204 = vrot.slane %v1203, 1
      %v1205 = vadd.f32 %v1203, %v1204
      %s1206 = vtos %v1205
      %v1207 = vstv %s1206
      %v1208 = vmul.f32 %v1207, 0.00390625
      %v1209 = vadd.f32 %v1208, 1e-05
      %v1210 = vrsqrt.pop %v1209
      %v1211 = vmul.f32 %v1210, %v1209
      %v1212 = vmul.f32 %v1211, %v1210
      %v1213 = vmul.f32 0.5, %v1212
      %v1214 = vsub.f32 1.5, %v1213
      %v1215 = vmul.f32 %v1210, %v1214
      %vm1216 = vweird.f32 %v1209
      %vm1217 = vweird.f32 %v1210
      %vm1218 = vmor %vm1216, %vm1217
      %v1219 = vsel %vm1218, %v1210, %v1215
      %v1220 = vmul.f32 %v1184, %v1219
      %v1221 = vmul.f32 %v1185, %v1219
      %v1222 = vmul.f32 %v1186, %v1219
      %v1223 = vld [vmem:[%s5] sm:$0xff]
      %v1224 = vld [vmem:[%s5 + $0x8] sm:$0xff]
      %v1225 = vld [vmem:[%s5 + $0x10] sm:$0xf]
      %v1226 = vmul.f32 %v1220, %v1223
      %v1227 = vmul.f32 %v1221, %v1224
      %v1228 = vmul.f32 %v1222, %v1225
      %v1229 = vld [vmem:[%s6] sm:$0xff]
      %v1230 = vld [vmem:[%s6 + $0x8] sm:$0xff]
      %v1231 = vld [vmem:[%s6 + $0x10] sm:$0xf]
      %v1232 = vadd.f32 %v1226, %v1229
      %v1233 = vadd.f32 %v1227, %v1230
      %v1234 = vadd.f32 %v1228, %v1231
      %vm1235 = vcmp.gt.f32.partialorder %v1232, 0.0
      %vm1236 = vcmp.gt.f32.partialorder %v1233, 0.0
      %vm1237 = vcmp.gt.f32.partialorder %v1234, 0.0
      %v1238 = vmul.f32 %v1232, 0.2
      %v1239 = vmul.f32 %v1233, 0.2
      %v1240 = vmul.f32 %v1234, 0.2
      %v1241 = vsel %vm1235, %v1232, %v1238
      %v1242 = vsel %vm1236, %v1233, %v1239
      %v1243 = vsel %vm1237, %v1234, %v1240
      %v1244 = vpack.c.bf16 %v1241, %v1241
      %v1245 = vpack.c.bf16 %v1242, %v1242
      %v1246 = vpack.c.bf16 %v1243, %v1243
      %1247 = vst.msk [vmem:[%s365] sm:$0xf] %vm1170, %v1244
      %1248 = vst.msk [vmem:[%s365 + $0x4] sm:$0xf] %vm1170, %v1245
      %vm1249 = vcmask 123904
      %1250 = vst.msk [vmem:[%s365 + $0x8] sm:$0x3] %vm1249, %v1246
      %p1251 = scmp.lt.s32.totalorder %s19, 1
      %s1252 = scalar_select %p1251, %s19, 1
      %s1253 = smul.addr %s1252, 3
      %s1254 = smul.addr %s1253, 4
      %s1255 = scalar_lea.vmem %s8, %s1254
      // Predicated region
      $region53: #{discriminator_forward.6} parent=51 // pred_check
        %p1256 = pneg %p225
      $region54: #{discriminator_forward.6} parent=51 // pred_check_branch
        %1258 = sbr.rel (%p1256) target = $region56
      $region55: #{discriminator_forward.6} parent=51 // pred_region
        _
      $region56: #{discriminator_forward.6} parent=51 // pred_fallthru
        _
    $region52: #{discriminator_forward.6} parent=5 // pred_fallthru
      _
    %p1259 = scmp.le.s32.totalorder 2, %s14
    // Predicated region
    $region57: #{discriminator_forward.6} parent=5 // pred_check
      %p1260 = pneg %p1259
    $region58: #{discriminator_forward.6} parent=5 // pred_check_branch
      %1262 = sbr.rel (%p1260) target = $region60
    $region59: #{discriminator_forward.6} parent=5 // pred_region
      %s1263 = ssub.s32 %s14, 2
      // Predicated region
      $region61: #{discriminator_forward.6} parent=59 // pred_check
        %p1264 = pneg %p231
      $region62: #{discriminator_forward.6} parent=59 // pred_check_branch
        %1266 = sbr.rel (%p1264) target = $region64
      $region63: #{discriminator_forward.6} parent=59 // pred_region
        %p1267 = scmp.lt.s32.totalorder %s20, 1
        %s1268 = scalar_select %p1267, %s20, 1
        %s1269 = smul.addr %s1268, 3
        %s1270 = smul.addr %s1269, 4
        %s1271 = scalar_lea.vmem %s8, %s1270
      $region64: #{discriminator_forward.6} parent=59 // pred_fallthru
        _
    $region60: #{discriminator_forward.6} parent=5 // pred_fallthru
      _
  $region6: #{discriminator_forward.6} parent=0 // loop_footer
    %s18 = sadd.s32 1, %s14
  $region7: #{discriminator_forward.6} parent=0 // loop_footer_branch
    %13 = sbr.rel target = $region3
  $region8: #{discriminator_forward.6} parent=0 // loop_exit
    _

// kernel: discriminator_forward.8
$region0: #{discriminator_forward.8}
  #allocation0 [shape = 'u32[]', space=smem, size = 0x4, offset = 0x4, fixed_abs, tag = 'smem constant byte address 0x4 - core index']
  #allocation1 [shape = 'u32[72,128]{1,0:T(1,128)}', space=vmem, size = 0x9000, scoped, tag = 'internal scratch']
  %s0 = inlined_call_operand.vmem [shape: bf16[2,5,32], index: 0, kind: input, shape index: {}]
  %s1 = inlined_call_operand.vmem [shape: bf16[2,5,32], index: 1, kind: input, shape index: {}]
  %s2 = inlined_call_operand.vmem [shape: bf16[2,5,32], index: 2, kind: input, shape index: {}]
  %s3 = inlined_call_operand.vmem [shape: bf16[2,5,32], index: 3, kind: input, shape index: {}]
  %s4 = inlined_call_operand.vmem [shape: bf16[4,4,32,64], index: 4, kind: input, shape index: {}]
  %s5 = inlined_call_operand.vmem [shape: f32[2,64], index: 5, kind: input, shape index: {}]
  %s6 = inlined_call_operand.vmem [shape: f32[2,64], index: 6, kind: input, shape index: {}]
  %s7 = inlined_call_operand.vmem [shape: f32[2,1], index: 7, kind: input, shape index: {}]
  %s8 = inlined_call_operand.vmem [shape: bf16[2,2,64], index: 8, kind: output, shape index: {}]
  %s9 = sld [smem:[#allocation0]]
  $region65: #{discriminator_forward.8} parent=0
    _
  %s11 = ssub.s32 1, %s9
  %s12 = scalar_select 0, %s11, %s9
  loop: start=0, step=1, limit=4
  $region2: #{discriminator_forward.8} parent=0 // loop_pre_header
    _
  $region3: #{discriminator_forward.8} parent=0 // loop_header
    %s14 = sphi 0, %s18
    %p15 = scmp.ge.s32.totalorder %s14, 4
    %s24 = sphi 0, %s26
    %s27 = sphi 0, %s24
    %s28 = sphi 0, %s27
    %s44 = sphi 0, %s28
    %s50 = sphi 0, %s52
    %s53 = sphi 0, %s50
    %s54 = sphi 0, %s53
    %s70 = sphi 0, %s54
    %s76 = sphi 0, %s78
    %s79 = sphi 0, %s76
    %s80 = sphi 0, %s79
    %s96 = sphi 0, %s80
    %s102 = sphi 0, %s104
    %s105 = sphi 0, %s102
    %s106 = sphi 0, %s105
    %s122 = sphi 0, %s106
    %s126 = sphi 0, %s126
    %s128 = sphi 0, %s126
    %s129 = sphi 0, %s128
    %s143 = sphi 0, %s129
    %s147 = sphi 0, %s147
    %s149 = sphi 0, %s147
    %s150 = sphi 0, %s149
    %s164 = sphi 0, %s150
    %s168 = sphi 0, %s168
    %s170 = sphi 0, %s168
    %s171 = sphi 0, %s170
    %s185 = sphi 0, %s171
    %s189 = sphi 0, %s189
    %s191 = sphi 0, %s189
    %s192 = sphi 0, %s191
    %s206 = sphi 0, %s192
    %s212 = sphi 0, %s214
    %s215 = sphi 0, %s212
    %s216 = sphi 0, %s215
    %s232 = sphi 0, %s216
  $region4: #{discriminator_forward.8} parent=0 // loop_header_branch
    %17 = sbr.rel (%p15) target = $region8
  $region5: #{discriminator_forward.8} parent=0 // loop_body
    %s19 = ssub.s32 %s14, 1
    %s20 = ssub.s32 %s14, 2
    %s21 = sadd.s32 %s14, 1
    %s22 = ssub.s32 %s14, %s21
    %p23 = scmp.eq.s32.totalorder %s22, 0
    %s25 = sadd.s32 %s24, 1
    %s26 = scalar_select %p23, %s24, %s25
    %p29 = pneg %p23
    %p30 = scmp.eq.s32.totalorder %s14, 1
    %p31 = por %p29, %p30
    %p32 = scmp.ne.s32.totalorder %s24, %s27
    %p33 = scmp.eq.s32.totalorder %s14, 0
    %p34 = por %p32, %p33
    %p35 = scmp.ne.s32.totalorder %s24, %s27
    %p36 = scmp.eq.s32.totalorder %s19, 1
    %p37 = por %p35, %p36
    %p38 = scmp.ne.s32.totalorder %s27, %s28
    %p39 = scmp.eq.s32.totalorder %s19, 0
    %p40 = por %p38, %p39
    %p41 = scmp.ne.s32.totalorder %s27, %s28
    %p42 = scmp.eq.s32.totalorder %s20, 1
    %p43 = por %p41, %p42
    %p45 = scmp.ne.s32.totalorder %s28, %s44
    %p46 = scmp.eq.s32.totalorder %s20, 0
    %p47 = por %p45, %p46
    %s48 = ssub.s32 %s14, %s21
    %p49 = scmp.eq.s32.totalorder %s48, 0
    %s51 = sadd.s32 %s50, 1
    %s52 = scalar_select %p49, %s50, %s51
    %p55 = pneg %p49
    %p56 = scmp.eq.s32.totalorder %s14, 1
    %p57 = por %p55, %p56
    %p58 = scmp.ne.s32.totalorder %s50, %s53
    %p59 = scmp.eq.s32.totalorder %s14, 0
    %p60 = por %p58, %p59
    %p61 = scmp.ne.s32.totalorder %s50, %s53
    %p62 = scmp.eq.s32.totalorder %s19, 1
    %p63 = por %p61, %p62
    %p64 = scmp.ne.s32.totalorder %s53, %s54
    %p65 = scmp.eq.s32.totalorder %s19, 0
    %p66 = por %p64, %p65
    %p67 = scmp.ne.s32.totalorder %s53, %s54
    %p68 = scmp.eq.s32.totalorder %s20, 1
    %p69 = por %p67, %p68
    %p71 = scmp.ne.s32.totalorder %s54, %s70
    %p72 = scmp.eq.s32.totalorder %s20, 0
    %p73 = por %p71, %p72
    %s74 = ssub.s32 %s14, %s21
    %p75 = scmp.eq.s32.totalorder %s74, 0
    %s77 = sadd.s32 %s76, 1
    %s78 = scalar_select %p75, %s76, %s77
    %p81 = pneg %p75
    %p82 = scmp.eq.s32.totalorder %s14, 1
    %p83 = por %p81, %p82
    %p84 = scmp.ne.s32.totalorder %s76, %s79
    %p85 = scmp.eq.s32.totalorder %s14, 0
    %p86 = por %p84, %p85
    %p87 = scmp.ne.s32.totalorder %s76, %s79
    %p88 = scmp.eq.s32.totalorder %s19, 1
    %p89 = por %p87, %p88
    %p90 = scmp.ne.s32.totalorder %s79, %s80
    %p91 = scmp.eq.s32.totalorder %s19, 0
    %p92 = por %p90, %p91
    %p93 = scmp.ne.s32.totalorder %s79, %s80
    %p94 = scmp.eq.s32.totalorder %s20, 1
    %p95 = por %p93, %p94
    %p97 = scmp.ne.s32.totalorder %s80, %s96
    %p98 = scmp.eq.s32.totalorder %s20, 0
    %p99 = por %p97, %p98
    %s100 = ssub.s32 %s14, %s21
    %p101 = scmp.eq.s32.totalorder %s100, 0
    %s103 = sadd.s32 %s102, 1
    %s104 = scalar_select %p101, %s102, %s103
    %p107 = pneg %p101
    %p108 = scmp.eq.s32.totalorder %s14, 1
    %p109 = por %p107, %p108
    %p110 = scmp.ne.s32.totalorder %s102, %s105
    %p111 = scmp.eq.s32.totalorder %s14, 0
    %p112 = por %p110, %p111
    %p113 = scmp.ne.s32.totalorder %s102, %s105
    %p114 = scmp.eq.s32.totalorder %s19, 1
    %p115 = por %p113, %p114
    %p116 = scmp.ne.s32.totalorder %s105, %s106
    %p117 = scmp.eq.s32.totalorder %s19, 0
    %p118 = por %p116, %p117
    %p119 = scmp.ne.s32.totalorder %s105, %s106
    %p120 = scmp.eq.s32.totalorder %s20, 1
    %p121 = por %p119, %p120
    %p123 = scmp.ne.s32.totalorder %s106, %s122
    %p124 = scmp.eq.s32.totalorder %s20, 0
    %p125 = por %p123, %p124
    %s127 = sadd.s32 %s126, 1
    %p130 = scmp.eq.s32.totalorder %s14, 1
    %p131 = scmp.ne.s32.totalorder %s126, %s128
    %p132 = scmp.eq.s32.totalorder %s14, 0
    %p133 = por %p131, %p132
    %p134 = scmp.ne.s32.totalorder %s126, %s128
    %p135 = scmp.eq.s32.totalorder %s19, 1
    %p136 = por %p134, %p135
    %p137 = scmp.ne.s32.totalorder %s128, %s129
    %p138 = scmp.eq.s32.totalorder %s19, 0
    %p139 = por %p137, %p138
    %p140 = scmp.ne.s32.totalorder %s128, %s129
    %p141 = scmp.eq.s32.totalorder %s20, 1
    %p142 = por %p140, %p141
    %p144 = scmp.ne.s32.totalorder %s129, %s143
    %p145 = scmp.eq.s32.totalorder %s20, 0
    %p146 = por %p144, %p145
    %s148 = sadd.s32 %s147, 1
    %p151 = scmp.eq.s32.totalorder %s14, 1
    %p152 = scmp.ne.s32.totalorder %s147, %s149
    %p153 = scmp.eq.s32.totalorder %s14, 0
    %p154 = por %p152, %p153
    %p155 = scmp.ne.s32.totalorder %s147, %s149
    %p156 = scmp.eq.s32.totalorder %s19, 1
    %p157 = por %p155, %p156
    %p158 = scmp.ne.s32.totalorder %s149, %s150
    %p159 = scmp.eq.s32.totalorder %s19, 0
    %p160 = por %p158, %p159
    %p161 = scmp.ne.s32.totalorder %s149, %s150
    %p162 = scmp.eq.s32.totalorder %s20, 1
    %p163 = por %p161, %p162
    %p165 = scmp.ne.s32.totalorder %s150, %s164
    %p166 = scmp.eq.s32.totalorder %s20, 0
    %p167 = por %p165, %p166
    %s169 = sadd.s32 %s168, 1
    %p172 = scmp.eq.s32.totalorder %s14, 1
    %p173 = scmp.ne.s32.totalorder %s168, %s170
    %p174 = scmp.eq.s32.totalorder %s14, 0
    %p175 = por %p173, %p174
    %p176 = scmp.ne.s32.totalorder %s168, %s170
    %p177 = scmp.eq.s32.totalorder %s19, 1
    %p178 = por %p176, %p177
    %p179 = scmp.ne.s32.totalorder %s170, %s171
    %p180 = scmp.eq.s32.totalorder %s19, 0
    %p181 = por %p179, %p180
    %p182 = scmp.ne.s32.totalorder %s170, %s171
    %p183 = scmp.eq.s32.totalorder %s20, 1
    %p184 = por %p182, %p183
    %p186 = scmp.ne.s32.totalorder %s171, %s185
    %p187 = scmp.eq.s32.totalorder %s20, 0
    %p188 = por %p186, %p187
    %s190 = sadd.s32 %s189, 1
    %p193 = scmp.eq.s32.totalorder %s14, 1
    %p194 = scmp.ne.s32.totalorder %s189, %s191
    %p195 = scmp.eq.s32.totalorder %s14, 0
    %p196 = por %p194, %p195
    %p197 = scmp.ne.s32.totalorder %s189, %s191
    %p198 = scmp.eq.s32.totalorder %s19, 1
    %p199 = por %p197, %p198
    %p200 = scmp.ne.s32.totalorder %s191, %s192
    %p201 = scmp.eq.s32.totalorder %s19, 0
    %p202 = por %p200, %p201
    %p203 = scmp.ne.s32.totalorder %s191, %s192
    %p204 = scmp.eq.s32.totalorder %s20, 1
    %p205 = por %p203, %p204
    %p207 = scmp.ne.s32.totalorder %s192, %s206
    %p208 = scmp.eq.s32.totalorder %s20, 0
    %p209 = por %p207, %p208
    %s210 = ssub.s32 %s14, %s21
    %p211 = scmp.eq.s32.totalorder %s210, 0
    %s213 = sadd.s32 %s212, 1
    %s214 = scalar_select %p211, %s212, %s213
    %p217 = pneg %p211
    %p218 = scmp.eq.s32.totalorder %s14, 1
    %p219 = por %p217, %p218
    %p220 = scmp.ne.s32.totalorder %s212, %s215
    %p221 = scmp.eq.s32.totalorder %s14, 0
    %p222 = por %p220, %p221
    %p223 = scmp.ne.s32.totalorder %s212, %s215
    %p224 = scmp.eq.s32.totalorder %s19, 1
    %p225 = por %p223, %p224
    %p226 = scmp.ne.s32.totalorder %s215, %s216
    %p227 = scmp.eq.s32.totalorder %s19, 0
    %p228 = por %p226, %p227
    %p229 = scmp.ne.s32.totalorder %s215, %s216
    %p230 = scmp.eq.s32.totalorder %s20, 1
    %p231 = por %p229, %p230
    %p233 = scmp.ne.s32.totalorder %s216, %s232
    %p234 = scmp.eq.s32.totalorder %s20, 0
    %p235 = por %p233, %p234
    %p236 = scmp.le.s32.totalorder 1, %s14
    %p237 = scmp.lt.s32.totalorder %s14, 3
    %p238 = pnand %p236, %p237
    %p239 = pneg %p238
    // Predicated region
    $region9: #{discriminator_forward.8} parent=5 // pred_check
      _
    $region10: #{discriminator_forward.8} parent=5 // pred_check_branch
      %241 = sbr.rel (%p238) target = $region12
    $region11: #{discriminator_forward.8} parent=5 // pred_region
      %s242 = ssub.s32 %s14, 1
      // Predicated region
      $region13: #{discriminator_forward.8} parent=11 // pred_check
        %p243 = pneg %p139
      $region14: #{discriminator_forward.8} parent=11 // pred_check_branch
        %245 = sbr.rel (%p243) target = $region16
      $region15: #{discriminator_forward.8} parent=11 // pred_region
        _
      $region16: #{discriminator_forward.8} parent=11 // pred_fallthru
        _
      // Predicated region
      $region17: #{discriminator_forward.8} parent=11 // pred_check
        %p246 = pneg %p160
      $region18: #{discriminator_forward.8} parent=11 // pred_check_branch
        %248 = sbr.rel (%p246) target = $region20
      $region19: #{discriminator_forward.8} parent=11 // pred_region
        _
      $region20: #{discriminator_forward.8} parent=11 // pred_fallthru
        _
      // Predicated region
      $region21: #{discriminator_forward.8} parent=11 // pred_check
        %p249 = pneg %p181
      $region22: #{discriminator_forward.8} parent=11 // pred_check_branch
        %251 = sbr.rel (%p249) target = $region24
      $region23: #{discriminator_forward.8} parent=11 // pred_region
        _
      $region24: #{discriminator_forward.8} parent=11 // pred_fallthru
        _
      // Predicated region
      $region25: #{discriminator_forward.8} parent=11 // pred_check
        %p252 = pneg %p202
      $region26: #{discriminator_forward.8} parent=11 // pred_check_branch
        %254 = sbr.rel (%p252) target = $region28
      $region27: #{discriminator_forward.8} parent=11 // pred_region
        _
      $region28: #{discriminator_forward.8} parent=11 // pred_fallthru
        _
    $region12: #{discriminator_forward.8} parent=5 // pred_fallthru
      _
    %p255 = scmp.lt.s32.totalorder %s14, 2
    // Predicated region
    $region29: #{discriminator_forward.8} parent=5 // pred_check
      %p256 = pneg %p255
    $region30: #{discriminator_forward.8} parent=5 // pred_check_branch
      %258 = sbr.rel (%p256) target = $region32
    $region31: #{discriminator_forward.8} parent=5 // pred_region
      // Predicated region
      $region33: #{discriminator_forward.8} parent=31 // pred_check
        %p259 = pneg %p34
      $region34: #{discriminator_forward.8} parent=31 // pred_check_branch
        %261 = sbr.rel (%p259) target = $region36
      $region35: #{discriminator_forward.8} parent=31 // pred_region
        %p262 = scmp.lt.s32.totalorder %s14, 1
        %s263 = scalar_select %p262, %s14, 1
        %s264 = smul.addr %s263, 4
        %s265 = scalar_lea.vmem %s0, %s264
      $region36: #{discriminator_forward.8} parent=31 // pred_fallthru
        _
      // Predicated region
      $region37: #{discriminator_forward.8} parent=31 // pred_check
        %p266 = pneg %p60
      $region38: #{discriminator_forward.8} parent=31 // pred_check_branch
        %268 = sbr.rel (%p266) target = $region40
      $region39: #{discriminator_forward.8} parent=31 // pred_region
        %p269 = scmp.lt.s32.totalorder %s14, 1
        %s270 = scalar_select %p269, %s14, 1
        %s271 = smul.addr %s270, 4
        %s272 = scalar_lea.vmem %s1, %s271
      $region40: #{discriminator_forward.8} parent=31 // pred_fallthru
        _
      // Predicated region
      $region41: #{discriminator_forward.8} parent=31 // pred_check
        %p273 = pneg %p86
      $region42: #{discriminator_forward.8} parent=31 // pred_check_branch
        %275 = sbr.rel (%p273) target = $region44
      $region43: #{discriminator_forward.8} parent=31 // pred_region
        %p276 = scmp.lt.s32.totalorder %s14, 1
        %s277 = scalar_select %p276, %s14, 1
        %s278 = smul.addr %s277, 4
        %s279 = scalar_lea.vmem %s2, %s278
      $region44: #{discriminator_forward.8} parent=31 // pred_fallthru
        _
      // Predicated region
      $region45: #{discriminator_forward.8} parent=31 // pred_check
        %p280 = pneg %p112
      $region46: #{discriminator_forward.8} parent=31 // pred_check_branch
        %282 = sbr.rel (%p280) target = $region48
      $region47: #{discriminator_forward.8} parent=31 // pred_region
        %p283 = scmp.lt.s32.totalorder %s14, 1
        %s284 = scalar_select %p283, %s14, 1
        %s285 = smul.addr %s284, 4
        %s286 = scalar_lea.vmem %s3, %s285
      $region48: #{discriminator_forward.8} parent=31 // pred_fallthru
        _
    $region32: #{discriminator_forward.8} parent=5 // pred_fallthru
      _
    %p287 = scmp.le.s32.totalorder 1, %s14
    %p288 = scmp.lt.s32.totalorder %s14, 3
    %p289 = pnand %p287, %p288
    %p290 = pneg %p289
    // Predicated region
    $region49: #{discriminator_forward.8} parent=5 // pred_check
      _
    $region50: #{discriminator_forward.8} parent=5 // pred_check_branch
      %292 = sbr.rel (%p289) target = $region52
    $region51: #{discriminator_forward.8} parent=5 // pred_region
      %s293 = ssub.s32 %s14, 1
      %p294 = scmp.lt.s32.totalorder %s19, 1
      %s295 = scalar_select %p294, %s19, 1
      %s296 = smul.addr %s295, 4
      %s297 = scalar_lea.vmem %s0, %s296
      %p298 = pneg %p40
      %p299 = pneg %p37
      %p300 = scmp.lt.s32.totalorder %s19, 1
      %s301 = scalar_select %p300, %s19, 1
      %s302 = smul.addr %s301, 4
      %s303 = scalar_lea.vmem %s1, %s302
      %p304 = pneg %p66
      %p305 = pneg %p63
      %p306 = scmp.lt.s32.totalorder %s19, 1
      %s307 = scalar_select %p306, %s19, 1
      %s308 = smul.addr %s307, 4
      %s309 = scalar_lea.vmem %s2, %s308
      %p310 = pneg %p92
      %p311 = pneg %p89
      %p312 = scmp.lt.s32.totalorder %s19, 1
      %s313 = scalar_select %p312, %s19, 1
      %s314 = smul.addr %s313, 4
      %s315 = scalar_lea.vmem %s3, %s314
      %p316 = pneg %p118
      %p317 = pneg %p115
      %p318 = pneg %p139
      %p319 = pneg %p136
      %p320 = pneg %p160
      %p321 = pneg %p157
      %p322 = pneg %p181
      %p323 = pneg %p178
      %p324 = pneg %p202
      %p325 = pneg %p199
      %p326 = pneg %p228
      %p327 = pneg %p225
      %p328 = scmp.lt.s32.totalorder %s19, 1
      %s329 = scalar_select %p328, %s19, 1
      %s330 = scalar_lea.vmem %s8, %s329
      %p331 = scmp.lt.s32.totalorder %s19, 1
      %s332 = scalar_select %p331, %s19, 1
      %s333 = smul.addr %s332, 4
      %s334 = scalar_lea.vmem %s0, %s333
      %p335 = scmp.lt.s32.totalorder %s19, 1
      %s336 = scalar_select %p335, %s19, 1
      %s337 = smul.addr %s336, 4
      %s338 = scalar_lea.vmem %s1, %s337
      %p339 = scmp.lt.s32.totalorder %s19, 1
      %s340 = scalar_select %p339, %s19, 1
      %s341 = smul.addr %s340, 4
      %s342 = scalar_lea.vmem %s2, %s341
      %p343 = scmp.lt.s32.totalorder %s19, 1
      %s344 = scalar_select %p343, %s19, 1
      %s345 = smul.addr %s344, 4
      %s346 = scalar_lea.vmem %s3, %s345
      %p347 = scmp.lt.s32.totalorder %s19, 1
      %s348 = scalar_select %p347, %s19, 1
      %s349 = scalar_lea.vmem %s8, %s348
      %v351 = vld [vmem:[%s334] sm:$0x1]
      %v352 = vld [vmem:[%s4] sm:$0xf]
      %v353 = vld [vmem:[%s4 + $0x4] sm:$0xf]
      %v354 = vld [vmem:[%s4 + $0x8] sm:$0xf]
      %v355 = vld [vmem:[%s4 + $0xc] sm:$0xf]
      %v356 = vld [vmem:[%s338] sm:$0x1]
      %s357 = scalar_lea.vmem %s4, 16
      %v358 = vld [vmem:[%s357] sm:$0xf]
      %v359 = vld [vmem:[%s357 + $0x4] sm:$0xf]
      %v360 = vld [vmem:[%s357 + $0x8] sm:$0xf]
      %v361 = vld [vmem:[%s357 + $0xc] sm:$0xf]
      %v366 = vunpack.c.l.b16 %v358
      %v367 = vunpack.c.l.b16 %v359
      %v368 = vunpack.c.l.b16 %v360
      %v369 = vunpack.c.l.b16 %v361
      %v370 = vpack.c.b16 %v367, %v366
      %v371 = vpack.c.b16 %v369, %v368
      %vm374 = vcmask 261120
      %v376 = vsel %vm374, %v356, 0
      %378 = vmatpush.bf16.msra.mxu0 0
      %379 = vmatpush.bf16.msra.mxu0 0
      %380 = vmatpush.bf16.msra.mxu0 0
      %381 = vmatpush.bf16.msra.mxu0 0
      %382 = vmatpush.bf16.msra.mxu0 0
      %383 = vmatpush.bf16.msra.mxu0 0
      %384 = vmatpush.bf16.msra.mxu0 %v371
      %385 = vmatpush.bf16.msra.mxu0 %v370
      %386 = vmatmul.bf16.gmra.mxu0 %v376
      %v387 = vpop.f32.mrf.mxu0
      %v388 = vadd.f32 0.0, %v387
      %v389 = vpop.f32.mrf.mxu0
      %390 = vdwg.mxu0
      %v395 = vunpack.c.l.b16 %v352
      %v396 = vunpack.c.l.b16 %v353
      %v397 = vunpack.c.l.b16 %v354
      %v398 = vunpack.c.l.b16 %v355
      %v399 = vpack.c.b16 %v396, %v395
      %v400 = vpack.c.b16 %v398, %v397
      %v404 = vsel %vm374, %v351, 0
      %406 = vmatpush.bf16.msra.mxu0 0
      %407 = vmatpush.bf16.msra.mxu0 0
      %408 = vmatpush.bf16.msra.mxu0 0
      %409 = vmatpush.bf16.msra.mxu0 0
      %410 = vmatpush.bf16.msra.mxu0 0
      %411 = vmatpush.bf16.msra.mxu0 0
      %412 = vmatpush.bf16.msra.mxu0 %v400
      %413 = vmatpush.bf16.msra.mxu0 %v399
      %414 = vmatmul.bf16.gmra.mxu0 %v404
      %v415 = vpop.f32.mrf.mxu0
      %v416 = vadd.f32 %v388, %v415
      %v417 = vpop.f32.mrf.mxu0
      %418 = vdwg.mxu0
      %v419 = vld [vmem:[%s334] sm:$0x3]
      %s420 = scalar_lea.vmem %s4, 32
      %v421 = vld [vmem:[%s420] sm:$0xf]
      %v422 = vld [vmem:[%s420 + $0x4] sm:$0xf]
      %v423 = vld [vmem:[%s420 + $0x8] sm:$0xf]
      %v424 = vld [vmem:[%s420 + $0xc] sm:$0xf]
      %v426 = vunpack.c.l.b16 %v419
      %v427 = vpack.c.b16 %v426, %v426
      %v429 = vshrl.u32 %v427, 16
      %v431 = vshll.u32 %v427, 16
      %v433 = vrot.slane %v431, 1
      %v434 = vor.u32 %v429, %v433
      %v439 = vunpack.c.l.b16 %v421
      %v440 = vunpack.c.l.b16 %v422
      %v441 = vunpack.c.l.b16 %v423
      %v442 = vunpack.c.l.b16 %v424
      %v443 = vpack.c.b16 %v440, %v439
      %v444 = vpack.c.b16 %v442, %v441
      %v448 = vsel %vm374, %v434, 0
      %450 = vmatpush.bf16.msra.mxu0 0
      %451 = vmatpush.bf16.msra.mxu0 0
      %452 = vmatpush.bf16.msra.mxu0 0
      %453 = vmatpush.bf16.msra.mxu0 0
      %454 = vmatpush.bf16.msra.mxu0 0
      %455 = vmatpush.bf16.msra.mxu0 0
      %456 = vmatpush.bf16.msra.mxu0 %v444
      %457 = vmatpush.bf16.msra.mxu0 %v443
      %458 = vmatmul.bf16.gmra.mxu0 %v448
      %v459 = vpop.f32.mrf.mxu0
      %v460 = vadd.f32 0.0, %v459
      %v461 = vpop.f32.mrf.mxu0
      %462 = vdwg.mxu0
      %v463 = vadd.f32 %v416, %v460
      %v464 = vld [vmem:[%s338] sm:$0x3]
      %s465 = scalar_lea.vmem %s4, 48
      %v466 = vld [vmem:[%s465] sm:$0xf]
      %v467 = vld [vmem:[%s465 + $0x4] sm:$0xf]
      %v468 = vld [vmem:[%s465 + $0x8] sm:$0xf]
      %v469 = vld [vmem:[%s465 + $0xc] sm:$0xf]
      %v471 = vunpack.c.l.b16 %v464
      %v472 = vpack.c.b16 %v471, %v471
      %v474 = vshrl.u32 %v472, 16
      %v476 = vshll.u32 %v472, 16
      %v478 = vrot.slane %v476, 1
      %v479 = vor.u32 %v474, %v478
      %v484 = vunpack.c.l.b16 %v466
      %v485 = vunpack.c.l.b16 %v467
      %v486 = vunpack.c.l.b16 %v468
      %v487 = vunpack.c.l.b16 %v469
      %v488 = vpack.c.b16 %v485, %v484
      %v489 = vpack.c.b16 %v487, %v486
      %v493 = vsel %vm374, %v479, 0
      %495 = vmatpush.bf16.msra.mxu0 0
      %496 = vmatpush.bf16.msra.mxu0 0
      %497 = vmatpush.bf16.msra.mxu0 0
      %498 = vmatpush.bf16.msra.mxu0 0
      %499 = vmatpush.bf16.msra.mxu0 0
      %500 = vmatpush.bf16.msra.mxu0 0
      %501 = vmatpush.bf16.msra.mxu0 %v489
      %502 = vmatpush.bf16.msra.mxu0 %v488
      %503 = vmatmul.bf16.gmra.mxu0 %v493
      %v504 = vpop.f32.mrf.mxu0
      %v505 = vadd.f32 0.0, %v504
      %v506 = vpop.f32.mrf.mxu0
      %507 = vdwg.mxu0
      %v508 = vadd.f32 %v463, %v505
      %v509 = vld [vmem:[%s342] sm:$0x1]
      %s510 = scalar_lea.vmem %s4, 64
      %v511 = vld [vmem:[%s510] sm:$0xf]
      %v512 = vld [vmem:[%s510 + $0x4] sm:$0xf]
      %v513 = vld [vmem:[%s510 + $0x8] sm:$0xf]
      %v514 = vld [vmem:[%s510 + $0xc] sm:$0xf]
      %v519 = vunpack.c.l.b16 %v511
      %v520 = vunpack.c.l.b16 %v512
      %v521 = vunpack.c.l.b16 %v513
      %v522 = vunpack.c.l.b16 %v514
      %v523 = vpack.c.b16 %v520, %v519
      %v524 = vpack.c.b16 %v522, %v521
      %v528 = vsel %vm374, %v509, 0
      %530 = vmatpush.bf16.msra.mxu0 0
      %531 = vmatpush.bf16.msra.mxu0 0
      %532 = vmatpush.bf16.msra.mxu0 0
      %533 = vmatpush.bf16.msra.mxu0 0
      %534 = vmatpush.bf16.msra.mxu0 0
      %535 = vmatpush.bf16.msra.mxu0 0
      %536 = vmatpush.bf16.msra.mxu0 %v524
      %537 = vmatpush.bf16.msra.mxu0 %v523
      %538 = vmatmul.bf16.gmra.mxu0 %v528
      %v539 = vpop.f32.mrf.mxu0
      %v540 = vadd.f32 0.0, %v539
      %v541 = vpop.f32.mrf.mxu0
      %542 = vdwg.mxu0
      %v543 = vadd.f32 %v508, %v540
      %v544 = vld [vmem:[%s346] sm:$0x1]
      %s545 = scalar_lea.vmem %s4, 80
      %v546 = vld [vmem:[%s545] sm:$0xf]
      %v547 = vld [vmem:[%s545 + $0x4] sm:$0xf]
      %v548 = vld [vmem:[%s545 + $0x8] sm:$0xf]
      %v549 = vld [vmem:[%s545 + $0xc] sm:$0xf]
      %v554 = vunpack.c.l.b16 %v546
      %v555 = vunpack.c.l.b16 %v547
      %v556 = vunpack.c.l.b16 %v548
      %v557 = vunpack.c.l.b16 %v549
      %v558 = vpack.c.b16 %v555, %v554
      %v559 = vpack.c.b16 %v557, %v556
      %v563 = vsel %vm374, %v544, 0
      %565 = vmatpush.bf16.msra.mxu0 0
      %566 = vmatpush.bf16.msra.mxu0 0
      %567 = vmatpush.bf16.msra.mxu0 0
      %568 = vmatpush.bf16.msra.mxu0 0
      %569 = vmatpush.bf16.msra.mxu0 0
      %570 = vmatpush.bf16.msra.mxu0 0
      %571 = vmatpush.bf16.msra.mxu0 %v559
      %572 = vmatpush.bf16.msra.mxu0 %v558
      %573 = vmatmul.bf16.gmra.mxu0 %v563
      %v574 = vpop.f32.mrf.mxu0
      %v575 = vadd.f32 0.0, %v574
      %v576 = vpop.f32.mrf.mxu0
      %577 = vdwg.mxu0
      %v578 = vadd.f32 %v543, %v575
      %v579 = vld [vmem:[%s342] sm:$0x3]
      %s580 = scalar_lea.vmem %s4, 96
      %v581 = vld [vmem:[%s580] sm:$0xf]
      %v582 = vld [vmem:[%s580 + $0x4] sm:$0xf]
      %v583 = vld [vmem:[%s580 + $0x8] sm:$0xf]
      %v584 = vld [vmem:[%s580 + $0xc] sm:$0xf]
      %v586 = vunpack.c.l.b16 %v579
      %v587 = vpack.c.b16 %v586, %v586
      %v589 = vshrl.u32 %v587, 16
      %v591 = vshll.u32 %v587, 16
      %v593 = vrot.slane %v591, 1
      %v594 = vor.u32 %v589, %v593
      %v599 = vunpack.c.l.b16 %v581
      %v600 = vunpack.c.l.b16 %v582
      %v601 = vunpack.c.l.b16 %v583
      %v602 = vunpack.c.l.b16 %v584
      %v603 = vpack.c.b16 %v600, %v599
      %v604 = vpack.c.b16 %v602, %v601
      %v608 = vsel %vm374, %v594, 0
      %610 = vmatpush.bf16.msra.mxu0 0
      %611 = vmatpush.bf16.msra.mxu0 0
      %612 = vmatpush.bf16.msra.mxu0 0
      %613 = vmatpush.bf16.msra.mxu0 0
      %614 = vmatpush.bf16.msra.mxu0 0
      %615 = vmatpush.bf16.msra.mxu0 0
      %616 = vmatpush.bf16.msra.mxu0 %v604
      %617 = vmatpush.bf16.msra.mxu0 %v603
      %618 = vmatmul.bf16.gmra.mxu0 %v608
      %v619 = vpop.f32.mrf.mxu0
      %v620 = vadd.f32 0.0, %v619
      %v621 = vpop.f32.mrf.mxu0
      %622 = vdwg.mxu0
      %v623 = vadd.f32 %v578, %v620
      %v624 = vld [vmem:[%s346] sm:$0x3]
      %s625 = scalar_lea.vmem %s4, 112
      %v626 = vld [vmem:[%s625] sm:$0xf]
      %v627 = vld [vmem:[%s625 + $0x4] sm:$0xf]
      %v628 = vld [vmem:[%s625 + $0x8] sm:$0xf]
      %v629 = vld [vmem:[%s625 + $0xc] sm:$0xf]
      %v631 = vunpack.c.l.b16 %v624
      %v632 = vpack.c.b16 %v631, %v631
      %v634 = vshrl.u32 %v632, 16
      %v636 = vshll.u32 %v632, 16
      %v638 = vrot.slane %v636, 1
      %v639 = vor.u32 %v634, %v638
      %v644 = vunpack.c.l.b16 %v626
      %v645 = vunpack.c.l.b16 %v627
      %v646 = vunpack.c.l.b16 %v628
      %v647 = vunpack.c.l.b16 %v629
      %v648 = vpack.c.b16 %v645, %v644
      %v649 = vpack.c.b16 %v647, %v646
      %v653 = vsel %vm374, %v639, 0
      %655 = vmatpush.bf16.msra.mxu0 0
      %656 = vmatpush.bf16.msra.mxu0 0
      %657 = vmatpush.bf16.msra.mxu0 0
      %658 = vmatpush.bf16.msra.mxu0 0
      %659 = vmatpush.bf16.msra.mxu0 0
      %660 = vmatpush.bf16.msra.mxu0 0
      %661 = vmatpush.bf16.msra.mxu0 %v649
      %662 = vmatpush.bf16.msra.mxu0 %v648
      %663 = vmatmul.bf16.gmra.mxu0 %v653
      %v664 = vpop.f32.mrf.mxu0
      %v665 = vadd.f32 0.0, %v664
      %v666 = vpop.f32.mrf.mxu0
      %667 = vdwg.mxu0
      %v668 = vadd.f32 %v623, %v665
      %v669 = vld [vmem:[%s334] sm:$0x2]
      %s670 = scalar_lea.vmem %s4, 128
      %v671 = vld [vmem:[%s670] sm:$0xf]
      %v672 = vld [vmem:[%s670 + $0x4] sm:$0xf]
      %v673 = vld [vmem:[%s670 + $0x8] sm:$0xf]
      %v674 = vld [vmem:[%s670 + $0xc] sm:$0xf]
      %v676 = vunpack.c.l.b16 %v669
      %v677 = vpack.c.b16 %v676, %v676
      %v678 = vrot.slane %v677, 1
      %v683 = vunpack.c.l.b16 %v671
      %v684 = vunpack.c.l.b16 %v672
      %v685 = vunpack.c.l.b16 %v673
      %v686 = vunpack.c.l.b16 %v674
      %v687 = vpack.c.b16 %v684, %v683
      %v688 = vpack.c.b16 %v686, %v685
      %v692 = vsel %vm374, %v678, 0
      %694 = vmatpush.bf16.msra.mxu0 0
      %695 = vmatpush.bf16.msra.mxu0 0
      %696 = vmatpush.bf16.msra.mxu0 0
      %697 = vmatpush.bf16.msra.mxu0 0
      %698 = vmatpush.bf16.msra.mxu0 0
      %699 = vmatpush.bf16.msra.mxu0 0
      %700 = vmatpush.bf16.msra.mxu0 %v688
      %701 = vmatpush.bf16.msra.mxu0 %v687
      %702 = vmatmul.bf16.gmra.mxu0 %v692
      %v703 = vpop.f32.mrf.mxu0
      %v704 = vadd.f32 0.0, %v703
      %v705 = vpop.f32.mrf.mxu0
      %706 = vdwg.mxu0
      %v707 = vadd.f32 %v668, %v704
      %v708 = vld [vmem:[%s338] sm:$0x2]
      %s709 = scalar_lea.vmem %s4, 144
      %v710 = vld [vmem:[%s709] sm:$0xf]
      %v711 = vld [vmem:[%s709 + $0x4] sm:$0xf]
      %v712 = vld [vmem:[%s709 + $0x8] sm:$0xf]
      %v713 = vld [vmem:[%s709 + $0xc] sm:$0xf]
      %v715 = vunpack.c.l.b16 %v708
      %v716 = vpack.c.b16 %v715, %v715
      %v717 = vrot.slane %v716, 1
      %v722 = vunpack.c.l.b16 %v710
      %v723 = vunpack.c.l.b16 %v711
      %v724 = vunpack.c.l.b16 %v712
      %v725 = vunpack.c.l.b16 %v713
      %v726 = vpack.c.b16 %v723, %v722
      %v727 = vpack.c.b16 %v725, %v724
      %v731 = vsel %vm374, %v717, 0
      %733 = vmatpush.bf16.msra.mxu0 0
      %734 = vmatpush.bf16.msra.mxu0 0
      %735 = vmatpush.bf16.msra.mxu0 0
      %736 = vmatpush.bf16.msra.mxu0 0
      %737 = vmatpush.bf16.msra.mxu0 0
      %738 = vmatpush.bf16.msra.mxu0 0
      %739 = vmatpush.bf16.msra.mxu0 %v727
      %740 = vmatpush.bf16.msra.mxu0 %v726
      %741 = vmatmul.bf16.gmra.mxu0 %v731
      %v742 = vpop.f32.mrf.mxu0
      %v743 = vadd.f32 0.0, %v742
      %v744 = vpop.f32.mrf.mxu0
      %745 = vdwg.mxu0
      %v746 = vadd.f32 %v707, %v743
      %v747 = vld [vmem:[%s334] sm:$0x6]
      %s748 = scalar_lea.vmem %s4, 160
      %v749 = vld [vmem:[%s748] sm:$0xf]
      %v750 = vld [vmem:[%s748 + $0x4] sm:$0xf]
      %v751 = vld [vmem:[%s748 + $0x8] sm:$0xf]
      %v752 = vld [vmem:[%s748 + $0xc] sm:$0xf]
      %v754 = vunpack.c.l.b16 %v747
      %v755 = vpack.c.b16 %v754, %v754
      %v757 = vshrl.u32 %v755, 16
      %v759 = vrot.slane %v757, 1
      %v760 = vshll.u32 %v755, 16
      %v762 = vrot.slane %v760, 2
      %v763 = vor.u32 %v759, %v762
      %v768 = vunpack.c.l.b16 %v749
      %v769 = vunpack.c.l.b16 %v750
      %v770 = vunpack.c.l.b16 %v751
      %v771 = vunpack.c.l.b16 %v752
      %v772 = vpack.c.b16 %v769, %v768
      %v773 = vpack.c.b16 %v771, %v770
      %v777 = vsel %vm374, %v763, 0
      %779 = vmatpush.bf16.msra.mxu0 0
      %780 = vmatpush.bf16.msra.mxu0 0
      %781 = vmatpush.bf16.msra.mxu0 0
      %782 = vmatpush.bf16.msra.mxu0 0
      %783 = vmatpush.bf16.msra.mxu0 0
      %784 = vmatpush.bf16.msra.mxu0 0
      %785 = vmatpush.bf16.msra.mxu0 %v773
      %786 = vmatpush.bf16.msra.mxu0 %v772
      %787 = vmatmul.bf16.gmra.mxu0 %v777
      %v788 = vpop.f32.mrf.mxu0
      %v789 = vadd.f32 0.0, %v788
      %v790 = vpop.f32.mrf.mxu0
      %791 = vdwg.mxu0
      %v792 = vadd.f32 %v746, %v789
      %v793 = vld [vmem:[%s338] sm:$0x6]
      %s794 = scalar_lea.vmem %s4, 176
      %v795 = vld [vmem:[%s794] sm:$0xf]
      %v796 = vld [vmem:[%s794 + $0x4] sm:$0xf]
      %v797 = vld [vmem:[%s794 + $0x8] sm:$0xf]
      %v798 = vld [vmem:[%s794 + $0xc] sm:$0xf]
      %v800 = vunpack.c.l.b16 %v793
      %v801 = vpack.c.b16 %v800, %v800
      %v803 = vshrl.u32 %v801, 16
      %v805 = vrot.slane %v803, 1
      %v806 = vshll.u32 %v801, 16
      %v808 = vrot.slane %v806, 2
      %v809 = vor.u32 %v805, %v808
      %v814 = vunpack.c.l.b16 %v795
      %v815 = vunpack.c.l.b16 %v796
      %v816 = vunpack.c.l.b16 %v797
      %v817 = vunpack.c.l.b16 %v798
      %v818 = vpack.c.b16 %v815, %v814
      %v819 = vpack.c.b16 %v817, %v816
      %v823 = vsel %vm374, %v809, 0
      %825 = vmatpush.bf16.msra.mxu0 0
      %826 = vmatpush.bf16.msra.mxu0 0
      %827 = vmatpush.bf16.msra.mxu0 0
      %828 = vmatpush.bf16.msra.mxu0 0
      %829 = vmatpush.bf16.msra.mxu0 0
      %830 = vmatpush.bf16.msra.mxu0 0
      %831 = vmatpush.bf16.msra.mxu0 %v819
      %832 = vmatpush.bf16.msra.mxu0 %v818
      %833 = vmatmul.bf16.gmra.mxu0 %v823
      %v834 = vpop.f32.mrf.mxu0
      %v835 = vadd.f32 0.0, %v834
      %v836 = vpop.f32.mrf.mxu0
      %837 = vdwg.mxu0
      %v838 = vadd.f32 %v792, %v835
      %v839 = vld [vmem:[%s342] sm:$0x2]
      %s840 = scalar_lea.vmem %s4, 192
      %v841 = vld [vmem:[%s840] sm:$0xf]
      %v842 = vld [vmem:[%s840 + $0x4] sm:$0xf]
      %v843 = vld [vmem:[%s840 + $0x8] sm:$0xf]
      %v844 = vld [vmem:[%s840 + $0xc] sm:$0xf]
      %v846 = vunpack.c.l.b16 %v839
      %v847 = vpack.c.b16 %v846, %v846
      %v848 = vrot.slane %v847, 1
      %v853 = vunpack.c.l.b16 %v841
      %v854 = vunpack.c.l.b16 %v842
      %v855 = vunpack.c.l.b16 %v843
      %v856 = vunpack.c.l.b16 %v844
      %v857 = vpack.c.b16 %v854, %v853
      %v858 = vpack.c.b16 %v856, %v855
      %v862 = vsel %vm374, %v848, 0
      %864 = vmatpush.bf16.msra.mxu0 0
      %865 = vmatpush.bf16.msra.mxu0 0
      %866 = vmatpush.bf16.msra.mxu0 0
      %867 = vmatpush.bf16.msra.mxu0 0
      %868 = vmatpush.bf16.msra.mxu0 0
      %869 = vmatpush.bf16.msra.mxu0 0
      %870 = vmatpush.bf16.msra.mxu0 %v858
      %871 = vmatpush.bf16.msra.mxu0 %v857
      %872 = vmatmul.bf16.gmra.mxu0 %v862
      %v873 = vpop.f32.mrf.mxu0
      %v874 = vadd.f32 0.0, %v873
      %v875 = vpop.f32.mrf.mxu0
      %876 = vdwg.mxu0
      %v877 = vadd.f32 %v838, %v874
      %v878 = vld [vmem:[%s346] sm:$0x2]
      %s879 = scalar_lea.vmem %s4, 208
      %v880 = vld [vmem:[%s879] sm:$0xf]
      %v881 = vld [vmem:[%s879 + $0x4] sm:$0xf]
      %v882 = vld [vmem:[%s879 + $0x8] sm:$0xf]
      %v883 = vld [vmem:[%s879 + $0xc] sm:$0xf]
      %v885 = vunpack.c.l.b16 %v878
      %v886 = vpack.c.b16 %v885, %v885
      %v887 = vrot.slane %v886, 1
      %v892 = vunpack.c.l.b16 %v880
      %v893 = vunpack.c.l.b16 %v881
      %v894 = vunpack.c.l.b16 %v882
      %v895 = vunpack.c.l.b16 %v883
      %v896 = vpack.c.b16 %v893, %v892
      %v897 = vpack.c.b16 %v895, %v894
      %v901 = vsel %vm374, %v887, 0
      %903 = vmatpush.bf16.msra.mxu0 0
      %904 = vmatpush.bf16.msra.mxu0 0
      %905 = vmatpush.bf16.msra.mxu0 0
      %906 = vmatpush.bf16.msra.mxu0 0
      %907 = vmatpush.bf16.msra.mxu0 0
      %908 = vmatpush.bf16.msra.mxu0 0
      %909 = vmatpush.bf16.msra.mxu0 %v897
      %910 = vmatpush.bf16.msra.mxu0 %v896
      %911 = vmatmul.bf16.gmra.mxu0 %v901
      %v912 = vpop.f32.mrf.mxu0
      %v913 = vadd.f32 0.0, %v912
      %v914 = vpop.f32.mrf.mxu0
      %915 = vdwg.mxu0
      %v916 = vadd.f32 %v877, %v913
      %v917 = vld [vmem:[%s342] sm:$0x6]
      %s918 = scalar_lea.vmem %s4, 224
      %v919 = vld [vmem:[%s918] sm:$0xf]
      %v920 = vld [vmem:[%s918 + $0x4] sm:$0xf]
      %v921 = vld [vmem:[%s918 + $0x8] sm:$0xf]
      %v922 = vld [vmem:[%s918 + $0xc] sm:$0xf]
      %v924 = vunpack.c.l.b16 %v917
      %v925 = vpack.c.b16 %v924, %v924
      %v927 = vshrl.u32 %v925, 16
      %v929 = vrot.slane %v927, 1
      %v930 = vshll.u32 %v925, 16
      %v932 = vrot.slane %v930, 2
      %v933 = vor.u32 %v929, %v932
      %v938 = vunpack.c.l.b16 %v919
      %v939 = vunpack.c.l.b16 %v920
      %v940 = vunpack.c.l.b16 %v921
      %v941 = vunpack.c.l.b16 %v922
      %v942 = vpack.c.b16 %v939, %v938
      %v943 = vpack.c.b16 %v941, %v940
      %v947 = vsel %vm374, %v933, 0
      %949 = vmatpush.bf16.msra.mxu0 0
      %950 = vmatpush.bf16.msra.mxu0 0
      %951 = vmatpush.bf16.msra.mxu0 0
      %952 = vmatpush.bf16.msra.mxu0 0
      %953 = vmatpush.bf16.msra.mxu0 0
      %954 = vmatpush.bf16.msra.mxu0 0
      %955 = vmatpush.bf16.msra.mxu0 %v943
      %956 = vmatpush.bf16.msra.mxu0 %v942
      %957 = vmatmul.bf16.gmra.mxu0 %v947
      %v958 = vpop.f32.mrf.mxu0
      %v959 = vadd.f32 0.0, %v958
      %v960 = vpop.f32.mrf.mxu0
      %961 = vdwg.mxu0
      %v962 = vadd.f32 %v916, %v959
      %v963 = vld [vmem:[%s346] sm:$0x6]
      %s964 = scalar_lea.vmem %s4, 240
      %v965 = vld [vmem:[%s964] sm:$0xf]
      %v966 = vld [vmem:[%s964 + $0x4] sm:$0xf]
      %v967 = vld [vmem:[%s964 + $0x8] sm:$0xf]
      %v968 = vld [vmem:[%s964 + $0xc] sm:$0xf]
      %v970 = vunpack.c.l.b16 %v963
      %v971 = vpack.c.b16 %v970, %v970
      %v973 = vshrl.u32 %v971, 16
      %v975 = vrot.slane %v973, 1
      %v976 = vshll.u32 %v971, 16
      %v978 = vrot.slane %v976, 2
      %v979 = vor.u32 %v975, %v978
      %v984 = vunpack.c.l.b16 %v965
      %v985 = vunpack.c.l.b16 %v966
      %v986 = vunpack.c.l.b16 %v967
      %v987 = vunpack.c.l.b16 %v968
      %v988 = vpack.c.b16 %v985, %v984
      %v989 = vpack.c.b16 %v987, %v986
      %v993 = vsel %vm374, %v979, 0
      %995 = vmatpush.bf16.msra.mxu0 0
      %996 = vmatpush.bf16.msra.mxu0 0
      %997 = vmatpush.bf16.msra.mxu0 0
      %998 = vmatpush.bf16.msra.mxu0 0
      %999 = vmatpush.bf16.msra.mxu0 0
      %1000 = vmatpush.bf16.msra.mxu0 0
      %1001 = vmatpush.bf16.msra.mxu0 %v989
      %1002 = vmatpush.bf16.msra.mxu0 %v988
      %1003 = vmatmul.bf16.gmra.mxu0 %v993
      %v1004 = vpop.f32.mrf.mxu0
      %v1005 = vadd.f32 0.0, %v1004
      %v1006 = vpop.f32.mrf.mxu0
      %1007 = vdwg.mxu0
      %v1008 = vadd.f32 %v962, %v1005
      %v1009 = vld [vmem:[%s7] sm:$0x3]
      %1011 = vset.pattern.permute.xlu0 0
      %1012 = vperm.xlu0 %1011, %v1009
      %v1013 = vpop.permute.xlu0 %1012
      %v1015 = vmul.f32 %v1008, %v1013
      %vm1016 = vcmask 517120
      %v1017 = vsel %vm1016, %v1015, 0.0
      %1018 = vadd.xlane.f32.xlu0 %v1017
      %v1019 = vpop.xlane.xlu0 %1018
      %v1020 = vrot.slane %v1019, 4
      %v1021 = vadd.f32 %v1019, %v1020
      %v1022 = vrot.slane %v1021, 2
      %v1023 = vadd.f32 %v1021, %v1022
      %v1024 = vrot.slane %v1023, 1
      %v1025 = vadd.f32 %v1023, %v1024
      %s1026 = vtos %v1025
      %v1027 = vstv %s1026
      %v1028 = vmul.f32 %v1027, 0.015625
      %v1029 = vsub.f32 %v1008, %v1028
      %v1030 = vmul.f32 %v1029, %v1013
      %v1031 = vmul.f32 %v1030, %v1030
      %v1032 = vsel %vm1016, %v1031, 0.0
      %1033 = vadd.xlane.f32.xlu0 %v1032
      %v1034 = vpop.xlane.xlu0 %1033
      %v1035 = vrot.slane %v1034, 4
      %v1036 = vadd.f32 %v1034, %v1035
      %v1037 = vrot.slane %v1036, 2
      %v1038 = vadd.f32 %v1036, %v1037
      %v1039 = vrot.slane %v1038, 1
      %v1040 = vadd.f32 %v1038, %v1039
      %s1041 = vtos %v1040
      %v1042 = vstv %s1041
      %v1043 = vmul.f32 %v1042, 0.015625
      %v1044 = vadd.f32 %v1043, 1e-05
      %v1045 = vrsqrt.pop %v1044
      %v1046 = vmul.f32 %v1045, %v1044
      %v1047 = vmul.f32 %v1046, %v1045
      %v1048 = vmul.f32 0.5, %v1047
      %v1049 = vsub.f32 1.5, %v1048
      %v1050 = vmul.f32 %v1045, %v1049
      %vm1051 = vweird.f32 %v1044
      %vm1052 = vweird.f32 %v1045
      %vm1053 = vmor %vm1051, %vm1052
      %v1054 = vsel %vm1053, %v1045, %v1050
      %v1055 = vmul.f32 %v1029, %v1054
      %v1056 = vld [vmem:[%s5] sm:$0x3]
      %v1057 = vmul.f32 %v1055, %v1056
      %v1058 = vld [vmem:[%s6] sm:$0x3]
      %v1059 = vadd.f32 %v1057, %v1058
      %vm1060 = vcmp.gt.f32.partialorder %v1059, 0.0
      %v1061 = vmul.f32 %v1059, 0.2
      %v1062 = vsel %vm1060, %v1059, %v1061
      %v1063 = vpack.c.bf16 %v1062, %v1062
      %vm1064 = vcmask 516096
      %1065 = vst.msk [vmem:[%s349] sm:$0x1] %vm1064, %v1063
      %p1066 = scmp.lt.s32.totalorder %s19, 1
      %s1067 = scalar_select %p1066, %s19, 1
      %s1068 = scalar_lea.vmem %s8, %s1067
      // Predicated region
      $region53: #{discriminator_forward.8} parent=51 // pred_check
        %p1069 = pneg %p225
      $region54: #{discriminator_forward.8} parent=51 // pred_check_branch
        %1071 = sbr.rel (%p1069) target = $region56
      $region55: #{discriminator_forward.8} parent=51 // pred_region
        _
      $region56: #{discriminator_forward.8} parent=51 // pred_fallthru
        _
    $region52: #{discriminator_forward.8} parent=5 // pred_fallthru
      _
    %p1072 = scmp.le.s32.totalorder 2, %s14
    // Predicated region
    $region57: #{discriminator_forward.8} parent=5 // pred_check
      %p1073 = pneg %p1072
    $region58: #{discriminator_forward.8} parent=5 // pred_check_branch
      %1075 = sbr.rel (%p1073) target = $region60
    $region59: #{discriminator_forward.8} parent=5 // pred_region
      %s1076 = ssub.s32 %s14, 2
      // Predicated region
      $region61: #{discriminator_forward.8} parent=59 // pred_check
        %p1077 = pneg %p231
      $region62: #{discriminator_forward.8} parent=59 // pred_check_branch
        %1079 = sbr.rel (%p1077) target = $region64
      $region63: #{discriminator_forward.8} parent=59 // pred_region
        %p1080 = scmp.lt.s32.totalorder %s20, 1
        %s1081 = scalar_select %p1080, %s20, 1
        %s1082 = scalar_lea.vmem %s8, %s1081
      $region64: #{discriminator_forward.8} parent=59 // pred_fallthru
        _
    $region60: #{discriminator_forward.8} parent=5 // pred_fallthru
      _
  $region6: #{discriminator_forward.8} parent=0 // loop_footer
    %s18 = sadd.s32 1, %s14
  $region7: #{discriminator_forward.8} parent=0 // loop_footer_branch
    %13 = sbr.rel target = $region3
  $region8: #{discriminator_forward.8} parent=0 // loop_exit
    _

// kernel: discriminator_forward.9
$region0: #{discriminator_forward.9}
  #allocation0 [shape = 'u32[]', space=smem, size = 0x4, offset = 0x4, fixed_abs, tag = 'smem constant byte address 0x4 - core index']
  #allocation1 [shape = 'u32[72,128]{1,0:T(1,128)}', space=vmem, size = 0x9000, scoped, tag = 'internal scratch']
  #allocation2 [shape = 'f32[2,5]{1,0:T(2,128)}', space=vmem, size = 0x400, scoped, tag = 'scratch operand']
  %s0 = inlined_call_operand.vmem [shape: bf16[2,128], index: 0, kind: input, shape index: {}]
  %s1 = inlined_call_operand.vmem [shape: bf16[128,5], index: 1, kind: input, shape index: {}]
  %s2 = inlined_call_operand.vmem [shape: f32[1,5], index: 2, kind: input, shape index: {}]
  %s3 = inlined_call_operand.vmem [shape: f32[2,5], index: 3, kind: output, shape index: {}]
  %s4 = sld [smem:[#allocation0]]
  $region30: #{discriminator_forward.9} parent=0
    _
  %s6 = ssub.s32 1, %s4
  %s7 = scalar_select 0, %s6, %s4
  // Predicated region
  $region2: #{discriminator_forward.9} parent=0 // pred_check
    _
  $region3: #{discriminator_forward.9} parent=0 // pred_check_branch
    %9 = sbr.rel (0) target = $region5
  $region4: #{discriminator_forward.9} parent=0 // pred_region
    _
  $region5: #{discriminator_forward.9} parent=0 // pred_fallthru
    _
  // Predicated region
  $region6: #{discriminator_forward.9} parent=0 // pred_check
    _
  $region7: #{discriminator_forward.9} parent=0 // pred_check_branch
    %11 = sbr.rel (0) target = $region9
  $region8: #{discriminator_forward.9} parent=0 // pred_region
    _
  $region9: #{discriminator_forward.9} parent=0 // pred_fallthru
    _
  // Predicated region
  $region10: #{discriminator_forward.9} parent=0 // pred_check
    _
  $region11: #{discriminator_forward.9} parent=0 // pred_check_branch
    %13 = sbr.rel (0) target = $region13
  $region12: #{discriminator_forward.9} parent=0 // pred_region
    _
  $region13: #{discriminator_forward.9} parent=0 // pred_fallthru
    _
  %p14 = scmp.eq.s32.totalorder 0, 0
  // Predicated region
  $region14: #{discriminator_forward.9} parent=0 // pred_check
    %p15 = pneg %p14
  $region15: #{discriminator_forward.9} parent=0 // pred_check_branch
    %17 = sbr.rel (%p15) target = $region17
  $region16: #{discriminator_forward.9} parent=0 // pred_region
    %vm18 = vcmask 33792
    %19 = vst.msk [vmem:[#allocation2] sm:$0x3] %vm18, 0.0
  $region17: #{discriminator_forward.9} parent=0 // pred_fallthru
    _
  %v20 = vld [vmem:[#allocation2] sm:$0x3]
  %v21 = vld [vmem:[%s0] sm:$0x1]
  %v22 = vld [vmem:[%s1] sm:$0xf]
  %v23 = vld [vmem:[%s1 + $0x4] sm:$0xf]
  %v24 = vld [vmem:[%s1 + $0x8] sm:$0xf]
  %v25 = vld [vmem:[%s1 + $0xc] sm:$0xf]
  %v26 = vld [vmem:[%s1 + $0x10] sm:$0xf]
  %v27 = vld [vmem:[%s1 + $0x14] sm:$0xf]
  %v28 = vld [vmem:[%s1 + $0x18] sm:$0xf]
  %v29 = vld [vmem:[%s1 + $0x1c] sm:$0xf]
  %v30 = vld [vmem:[%s1 + $0x20] sm:$0xf]
  %v31 = vld [vmem:[%s1 + $0x24] sm:$0xf]
  %v32 = vld [vmem:[%s1 + $0x28] sm:$0xf]
  %v33 = vld [vmem:[%s1 + $0x2c] sm:$0xf]
  %v34 = vld [vmem:[%s1 + $0x30] sm:$0xf]
  %v35 = vld [vmem:[%s1 + $0x34] sm:$0xf]
  %v36 = vld [vmem:[%s1 + $0x38] sm:$0xf]
  %v37 = vld [vmem:[%s1 + $0x3c] sm:$0xf]
  %v54 = vunpack.c.l.b16 %v22
  %v55 = vunpack.c.l.b16 %v23
  %v56 = vunpack.c.l.b16 %v24
  %v57 = vunpack.c.l.b16 %v25
  %v58 = vunpack.c.l.b16 %v26
  %v59 = vunpack.c.l.b16 %v27
  %v60 = vunpack.c.l.b16 %v28
  %v61 = vunpack.c.l.b16 %v29
  %v62 = vunpack.c.l.b16 %v30
  %v63 = vunpack.c.l.b16 %v31
  %v64 = vunpack.c.l.b16 %v32
  %v65 = vunpack.c.l.b16 %v33
  %v66 = vunpack.c.l.b16 %v34
  %v67 = vunpack.c.l.b16 %v35
  %v68 = vunpack.c.l.b16 %v36
  %v69 = vunpack.c.l.b16 %v37
  %v70 = vpack.c.b16 %v55, %v54
  %v71 = vpack.c.b16 %v57, %v56
  %v72 = vpack.c.b16 %v59, %v58
  %v73 = vpack.c.b16 %v61, %v60
  %v74 = vpack.c.b16 %v63, %v62
  %v75 = vpack.c.b16 %v65, %v64
  %v76 = vpack.c.b16 %v67, %v66
  %v77 = vpack.c.b16 %v69, %v68
  %86 = vmatpush.bf16.msra.mxu0 %v77
  %87 = vmatpush.bf16.msra.mxu0 %v76
  %88 = vmatpush.bf16.msra.mxu0 %v75
  %89 = vmatpush.bf16.msra.mxu0 %v74
  %90 = vmatpush.bf16.msra.mxu0 %v73
  %91 = vmatpush.bf16.msra.mxu0 %v72
  %92 = vmatpush.bf16.msra.mxu0 %v71
  %93 = vmatpush.bf16.msra.mxu0 %v70
  %94 = vmatmul.bf16.gmra.mxu0 %v21
  %v95 = vpop.f32.mrf.mxu0
  %v96 = vadd.f32 0.0, %v95
  %v97 = vpop.f32.mrf.mxu0
  %98 = vdwg.mxu0
  %v99 = vadd.f32 %v20, %v96
  %vm100 = vcmask 33792
  %101 = vst.msk [vmem:[#allocation2] sm:$0x3] %vm100, %v99
  // Predicated region
  $region18: #{discriminator_forward.9} parent=0 // pred_check
    %p102 = pneg %p14
  $region19: #{discriminator_forward.9} parent=0 // pred_check_branch
    %104 = sbr.rel (%p102) target = $region21
  $region20: #{discriminator_forward.9} parent=0 // pred_region
    %v105 = vld [vmem:[#allocation2] sm:$0x3]
    %v106 = vld [vmem:[%s2] sm:$0x1]
    %v108 = vperm.slane %v106, 0
    %v110 = vadd.f32 %v105, %v108
    %v111 = vlaneseq
    %v112 = vand.u32 %v111, 127
    %vm113 = vcmp.lt.s32.totalorder %v112, 1
    %v114 = vxor.u32 %v110, 2147483648
    %v115 = vmul.f32 %v114, 1.442695
    %v116 = vpow.pop %v115
    %v117 = vadd.f32 %v116, 1.0
    %v118 = vrcp.pop %v117
    %v119 = vmul.f32 %v117, %v118
    %v120 = vsub.f32 1.0, %v119
    %v121 = vmul.f32 %v118, %v120
    %v122 = vadd.f32 %v118, %v121
    %vm123 = vweird.f32 %v117
    %vm124 = vweird.f32 %v118
    %vm125 = vmor %vm123, %vm124
    %v126 = vsel %vm125, %v118, %v122
    %v127 = vand.u32 2147483647, %v117
    %vm128 = vcmp.eq.f32.partialorder %v127, 8.507059e+37
    %v129 = vand.u32 %v117, 2147483648
    %v130 = vor.u32 1.1754944e-38, %v129
    %v131 = vsel %vm128, %v130, %v126
    %v132 = vmul.f32 1.0, %v131
    %v133 = vsel %vm113, %v110, %v132
    %134 = vst.msk [vmem:[%s3] sm:$0x3] %vm100, %v133
  $region21: #{discriminator_forward.9} parent=0 // pred_fallthru
    _
  // Predicated region
  $region22: #{discriminator_forward.9} parent=0 // pred_check
    _
  $region23: #{discriminator_forward.9} parent=0 // pred_check_branch
    %136 = sbr.rel (0) target = $region25
  $region24: #{discriminator_forward.9} parent=0 // pred_region
    _
  $region25: #{discriminator_forward.9} parent=0 // pred_fallthru
    _
  // Predicated region
  $region26: #{discriminator_forward.9} parent=0 // pred_check
    _
  $region27: #{discriminator_forward.9} parent=0 // pred_check_branch
    %138 = sbr.rel (0) target = $region29
  $region28: #{discriminator_forward.9} parent=0 // pred_region
    _
  $region29: #{discriminator_forward.9} parent=0 // pred_fallthru
    _

</llo_original>
